<compile_context>
chip_gen: v7x
topology: tpu7x:2x2x1
jax: 0.10.0
libtpu: 0.0.40
codegen_flags: <defaults>
</compile_context>

<pallas_src>
import math

import jax
import jax.numpy as jnp
from jax.experimental import pallas as pl
from jax.experimental.pallas import tpu as pltpu

# ---------------- problem sizes (small, consistent with the module) ----------
H = 32              # hidden_dim
NH = 8              # num_heads
DH = H // NH        # head dim
NUM_LAYERS = 2      # transformer encoder layers (constructor arg; small demo)
S = 8               # sequence length
B = 4               # batch size
N = B               # num graph nodes (must equal B for the cat(...) in forward)
E = 6               # num edges
FF = 4 * H          # feed-forward width
EPS = 1e-5          # LayerNorm eps (PyTorch default)
BS = B * S
NEG_INF = -1e9

assert H % NH == 0
assert N == B, "graph_embeddings.expand(...) in forward requires num_nodes == batch"

N_LAYER_PARAMS = 12
N_PREFIX = 5        # x, enc_bias, nodes, gbias, expand
N_INPUTS = N_PREFIX + N_LAYER_PARAMS * NUM_LAYERS + 3 + 5


# ---------------- in-kernel helpers ------------------------------------------
def _layer_norm(x, w, b):
    mu = jnp.mean(x, axis=-1, keepdims=True)
    var = jnp.mean((x - mu) ** 2, axis=-1, keepdims=True)
    return (x - mu) * jax.lax.rsqrt(var + EPS) * w + b


def _mha_2d(x2d, bias2d, wqkv_t, bqkv, wo_t, bo, want_attn):
    """Multi-head attention, fully 2-D.

    x2d:    (R, H) rows (batch folded into rows).
    bias2d: (R, R) additive score bias (block-diagonal batch mask + key padding
            for the encoder, edge-connectivity bias for the graph engine).
    wqkv_t: (H, 3H) pre-transposed fused in-projection weight.
    wo_t:   (H, H)  pre-transposed out-projection weight.
    """
    nrows = x2d.shape[0]
    qkv = jnp.dot(x2d, wqkv_t, preferred_element_type=jnp.float32)   # (R, 3H)
    if bqkv is not None:
        qkv = qkv + bqkv
    scale = 1.0 / math.sqrt(DH)

    out = jnp.zeros((nrows, H), jnp.float32)
    attn_sum = jnp.zeros((nrows, nrows), jnp.float32) if want_attn else None
    for h in range(NH):                                # static unroll over heads
        qh = qkv[:, h * DH:(h + 1) * DH] * scale                        # (R, DH)
        kh = qkv[:, H + h * DH:H + (h + 1) * DH]                        # (R, DH)
        vh = qkv[:, 2 * H + h * DH:2 * H + (h + 1) * DH]                # (R, DH)

        # scores = qh @ kh^T via dot_general (no in-kernel transpose)
        s = jax.lax.dot_general(qh, kh, (((1,), (1,)), ((), ())),
                                preferred_element_type=jnp.float32) + bias2d
        s = s - jnp.max(s, axis=-1, keepdims=True)
        e = jnp.exp(s)
        p = e * pl.reciprocal(jnp.sum(e, axis=-1, keepdims=True), approx=True)
        if want_attn:
            attn_sum = attn_sum + p

        oh = jnp.dot(p, vh, preferred_element_type=jnp.float32)        # (R, DH)
        # out_proj on concatenated heads == sum of per-head (DH,H) row blocks
        out = out + jnp.dot(oh, wo_t[h * DH:(h + 1) * DH, :],
                            preferred_element_type=jnp.float32)
    return out + bo, attn_sum


# ---------------- the single fused forward kernel ----------------------------
def fused_forward_kernel(*refs):
    in_refs = refs[:N_INPUTS]
    out_ref, gattn_ref = refs[N_INPUTS], refs[N_INPUTS + 1]

    x_ref, encbias_ref, nodes_ref, gbias_ref, expand_ref = in_refs[:N_PREFIX]
    pos = N_PREFIX
    layer_refs = [in_refs[pos + N_LAYER_PARAMS * l: pos + N_LAYER_PARAMS * (l + 1)]
                  for l in range(NUM_LAYERS)]
    pos += N_LAYER_PARAMS * NUM_LAYERS
    gqkv_ref, gwo_ref, gbo_ref = in_refs[pos:pos + 3]
    pos += 3
    w1a_ref, w1b_ref, b1_ref, w2_ref, b2_ref = in_refs[pos:pos + 5]

    # ---- graph reasoning engine (synthetic edge-biased multi-head attention) ----
    # TODO(synk): GraphReasoningEngine source not provided; stand-in implementation.
    g_out, g_attn = _mha_2d(nodes_ref[...], gbias_ref[...], gqkv_ref[...], None,
                            gwo_ref[...], gbo_ref[...], want_attn=True)
    gattn_ref[...] = g_attn * (1.0 / NH)

    # ---- transformer encoder (post-LN, ReLU FFN), whole batch as one slab ----
    x = x_ref[...]                                   # (B*S, H)
    enc_bias = encbias_ref[...]                      # (B*S, B*S) block-diag + keypad
    for lrefs in layer_refs:
        (wqkv_t, bqkv, wo_t, bo, ln1w, ln1b, ff1t, ff1b,
         ff2t, ff2b, ln2w, ln2b) = [r[...] for r in lrefs]

        attn, _ = _mha_2d(x, enc_bias, wqkv_t, bqkv, wo_t, bo, want_attn=False)
        x = _layer_norm(x + attn, ln1w, ln1b)
        hmid = jnp.maximum(
            jnp.dot(x, ff1t, preferred_element_type=jnp.float32) + ff1b, 0.0)
        ff = jnp.dot(hmid, ff2t, preferred_element_type=jnp.float32) + ff2b
        x = _layer_norm(x + ff, ln2w, ln2b)

    # ---- integration: Linear(2H,H) -> ReLU -> Linear(H,H) on cat([seq, graph]) ----
    g1 = jnp.dot(g_out, w1b_ref[...], preferred_element_type=jnp.float32)       # (N, H)
    g_bcast = jnp.dot(expand_ref[...], g1, preferred_element_type=jnp.float32)  # (BS, H)
    h1 = jnp.maximum(
        jnp.dot(x, w1a_ref[...], preferred_element_type=jnp.float32)
        + g_bcast + b1_ref[...], 0.0)
    out_ref[...] = jnp.dot(h1, w2_ref[...],
                           preferred_element_type=jnp.float32) + b2_ref[...]


# ---------------- parameters (PyTorch layout) + host-side kernel re-layout ----
def init_params(key):
    def dense(k, shape, scale=0.05):
        return scale * jax.random.normal(k, shape, jnp.float32)

    keys = iter(jax.random.split(key, 64))
    layers = []
    for _ in range(NUM_LAYERS):
        layers.append(dict(
            in_proj_weight=dense(next(keys), (3 * H, H)),
            in_proj_bias=jnp.zeros((3 * H,), jnp.float32),
            out_proj_weight=dense(next(keys), (H, H)),
            out_proj_bias=jnp.zeros((H,), jnp.float32),
            norm1_weight=jnp.ones((H,), jnp.float32),
            norm1_bias=jnp.zeros((H,), jnp.float32),
            linear1_weight=dense(next(keys), (FF, H)),
            linear1_bias=jnp.zeros((FF,), jnp.float32),
            linear2_weight=dense(next(keys), (H, FF)),
            linear2_bias=jnp.zeros((H,), jnp.float32),
            norm2_weight=jnp.ones((H,), jnp.float32),
            norm2_bias=jnp.zeros((H,), jnp.float32),
        ))
    graph = dict(
        wq=dense(next(keys), (H, H)), wk=dense(next(keys), (H, H)),
        wv=dense(next(keys), (H, H)), wo=dense(next(keys), (H, H)),
        bo=jnp.zeros((H,), jnp.float32),
        w_edge=dense(next(keys), (H,)),
    )
    integration = dict(
        w1=dense(next(keys), (H, 2 * H)), b1=jnp.zeros((H,), jnp.float32),
        w2=dense(next(keys), (H, H)), b2=jnp.zeros((H,), jnp.float32),
    )
    return {"layers": layers, "graph": graph, "integration": integration}


def prepare_kernel_params(params):
    """Pre-transpose every weight so no `.T` is ever taken inside the kernel."""
    layer_args = []
    for lp in params["layers"]:
        layer_args += [
            lp["in_proj_weight"].T,                    # (H, 3H)
            lp["in_proj_bias"].reshape(1, 3 * H),
            lp["out_proj_weight"].T,                   # (H, H)
            lp["out_proj_bias"].reshape(1, H),
            lp["norm1_weight"].reshape(1, H), lp["norm1_bias"].reshape(1, H),
            lp["linear1_weight"].T, lp["linear1_bias"].reshape(1, FF),
            lp["linear2_weight"].T, lp["linear2_bias"].reshape(1, H),
            lp["norm2_weight"].reshape(1, H), lp["norm2_bias"].reshape(1, H),
        ]
    gp = params["graph"]
    graph_args = [
        jnp.concatenate([gp["wq"].T, gp["wk"].T, gp["wv"].T], axis=1),  # (H, 3H)
        gp["wo"].T,                                    # (H, H)
        gp["bo"].reshape(1, H),
    ]
    ip = params["integration"]
    w1_t = ip["w1"].T                                  # (2H, H)
    integ_args = [w1_t[:H, :], w1_t[H:, :], ip["b1"].reshape(1, H),
                  ip["w2"].T, ip["b2"].reshape(1, H)]
    return layer_args, graph_args, integ_args


# ---------------- full forward pass ------------------------------------------
@jax.jit
def _forward_jit(x_sbh, nodes, edges, edge_attr, keypad_add_bs, params):
    layer_args, graph_args, integ_args = prepare_kernel_params(params)

    # Graph attention bias from edges/edge_attr (tiny scatter; plain-JAX glue,
    # jitted together with the pallas_call).
    edge_score = edge_attr @ params["graph"]["w_edge"]                  # (E,)
    gbias = jnp.full((N, N), NEG_INF, jnp.float32)
    gbias = gbias.at[jnp.arange(N), jnp.arange(N)].set(0.0)             # self loops
    gbias = gbias.at[edges[0], edges[1]].set(0.0)                       # connectivity
    gbias = gbias.at[edges[0], edges[1]].add(edge_score)                # edge-feature bias

    # Encoder additive bias: block-diagonal (per-batch attention) + key padding.
    row_b = jnp.arange(BS, dtype=jnp.int32) // S
    same_batch = row_b[:, None] == row_b[None, :]
    enc_bias = jnp.where(same_batch, 0.0, NEG_INF).astype(jnp.float32)
    enc_bias = enc_bias + keypad_add_bs.reshape(1, BS)

    # One-hot (BS, N) matrix that broadcasts graph embeddings over the seq dim.
    expand = (row_b[:, None] ==
              jnp.arange(N, dtype=jnp.int32)[None, :]).astype(jnp.float32)

    x2 = jnp.transpose(x_sbh, (1, 0, 2)).reshape(BS, H)                 # (S,B,H)->(B*S,H)

    combined2, graph_attn = pl.pallas_call(
        fused_forward_kernel,
        out_shape=(jax.ShapeDtypeStruct((BS, H), jnp.float32),
                   jax.ShapeDtypeStruct((N, N), jnp.float32)),
        compiler_params=pltpu.CompilerParams(vmem_limit_bytes=64 * 1024 * 1024),
    )(x2, enc_bias, nodes, gbias, expand, *layer_args, *graph_args, *integ_args)

    combined_sbh = jnp.transpose(combined2.reshape(B, S, H), (1, 0, 2))  # (S,B,H)
    return combined_sbh, graph_attn


def compositional_engine_forward(input_embeddings_sbh, nodes, edges, edge_attr,
                                 params, mask=None):
    if mask is not None:  # PyTorch src_key_padding_mask: True == ignore key
        keypad_add = jnp.where(mask, NEG_INF, 0.0).astype(jnp.float32)   # (B, S)
    else:
        keypad_add = jnp.zeros((B, S), jnp.float32)
    combined_sbh, graph_attn = _forward_jit(input_embeddings_sbh, nodes, edges,
                                            edge_attr, keypad_add, params)
    return combined_sbh, {"graph_attention": graph_attn}


if __name__ == "__main__":
    key = jax.random.PRNGKey(0)
    k1, k2, k3 = jax.random.split(key, 3)
    input_embeddings = jax.random.normal(k1, (S, B, H), jnp.float32)    # (seq, batch, hidden)
    nodes = jax.random.normal(k2, (N, H), jnp.float32)
    edges = jnp.array([[0, 1, 2, 3, 0, 2],
                       [1, 2, 3, 0, 2, 1]], dtype=jnp.int32)            # (2, E)
    edge_attr = jax.random.normal(k3, (E, H), jnp.float32)

    params = init_params(jax.random.PRNGKey(42))

    out, aux = compositional_engine_forward(input_embeddings, nodes, edges,
                                            edge_attr, params, mask=None)
    jax.block_until_ready((out, aux))
    assert out.shape == (S, B, H)
    assert aux["graph_attention"].shape == (N, N)
    assert bool(jnp.all(jnp.isfinite(out)))
    print("KERNEL_OK")
</pallas_src>

<mosaic_0001>
module attributes {stable_mosaic.version = 11 : i64} {
  func.func @fused_forward_kernel(%arg0: memref<32x32xf32, #tpu.memory_space<vmem>>, %arg1: memref<32x32xf32, #tpu.memory_space<vmem>>, %arg2: memref<4x32xf32, #tpu.memory_space<vmem>>, %arg3: memref<4x4xf32, #tpu.memory_space<vmem>>, %arg4: memref<32x4xf32, #tpu.memory_space<vmem>>, %arg5: memref<32x96xf32, #tpu.memory_space<vmem>>, %arg6: memref<1x96xf32, #tpu.memory_space<vmem>>, %arg7: memref<32x32xf32, #tpu.memory_space<vmem>>, %arg8: memref<1x32xf32, #tpu.memory_space<vmem>>, %arg9: memref<1x32xf32, #tpu.memory_space<vmem>>, %arg10: memref<1x32xf32, #tpu.memory_space<vmem>>, %arg11: memref<32x128xf32, #tpu.memory_space<vmem>>, %arg12: memref<1x128xf32, #tpu.memory_space<vmem>>, %arg13: memref<128x32xf32, #tpu.memory_space<vmem>>, %arg14: memref<1x32xf32, #tpu.memory_space<vmem>>, %arg15: memref<1x32xf32, #tpu.memory_space<vmem>>, %arg16: memref<1x32xf32, #tpu.memory_space<vmem>>, %arg17: memref<32x96xf32, #tpu.memory_space<vmem>>, %arg18: memref<1x96xf32, #tpu.memory_space<vmem>>, %arg19: memref<32x32xf32, #tpu.memory_space<vmem>>, %arg20: memref<1x32xf32, #tpu.memory_space<vmem>>, %arg21: memref<1x32xf32, #tpu.memory_space<vmem>>, %arg22: memref<1x32xf32, #tpu.memory_space<vmem>>, %arg23: memref<32x128xf32, #tpu.memory_space<vmem>>, %arg24: memref<1x128xf32, #tpu.memory_space<vmem>>, %arg25: memref<128x32xf32, #tpu.memory_space<vmem>>, %arg26: memref<1x32xf32, #tpu.memory_space<vmem>>, %arg27: memref<1x32xf32, #tpu.memory_space<vmem>>, %arg28: memref<1x32xf32, #tpu.memory_space<vmem>>, %arg29: memref<32x96xf32, #tpu.memory_space<vmem>>, %arg30: memref<32x32xf32, #tpu.memory_space<vmem>>, %arg31: memref<1x32xf32, #tpu.memory_space<vmem>>, %arg32: memref<32x32xf32, #tpu.memory_space<vmem>>, %arg33: memref<32x32xf32, #tpu.memory_space<vmem>>, %arg34: memref<1x32xf32, #tpu.memory_space<vmem>>, %arg35: memref<32x32xf32, #tpu.memory_space<vmem>>, %arg36: memref<1x32xf32, #tpu.memory_space<vmem>>, %arg37: memref<32x32xf32, #tpu.memory_space<vmem>>, %arg38: memref<4x4xf32, #tpu.memory_space<vmem>>) attributes {dimension_semantics = [], scalar_prefetch = 0 : i64, scratch_operands = 0 : i64, tpu.core_type = #tpu.core_type<tc>} {
    %c0 = arith.constant 0 : index
    %c0_0 = arith.constant 0 : index
    %0 = vector.load %arg2[%c0, %c0_0] : memref<4x32xf32, #tpu.memory_space<vmem>>, vector<4x32xf32>
    %c0_1 = arith.constant 0 : index
    %c0_2 = arith.constant 0 : index
    %1 = vector.load %arg3[%c0_1, %c0_2] : memref<4x4xf32, #tpu.memory_space<vmem>>, vector<4x4xf32>
    %c0_3 = arith.constant 0 : index
    %c0_4 = arith.constant 0 : index
    %2 = vector.load %arg29[%c0_3, %c0_4] : memref<32x96xf32, #tpu.memory_space<vmem>>, vector<32x96xf32>
    %c0_5 = arith.constant 0 : index
    %c0_6 = arith.constant 0 : index
    %3 = vector.load %arg30[%c0_5, %c0_6] : memref<32x32xf32, #tpu.memory_space<vmem>>, vector<32x32xf32>
    %c0_7 = arith.constant 0 : index
    %c0_8 = arith.constant 0 : index
    %4 = vector.load %arg31[%c0_7, %c0_8] : memref<1x32xf32, #tpu.memory_space<vmem>>, vector<1x32xf32>
    %cst = arith.constant dense<0.000000e+00> : vector<4x96xf32>
    %5 = tpu.matmul %0, %2, %cst {dimension_numbers = #tpu.dot_dimension_numbers<[1], [0], [0], [1], [0, 0, 1, 1], [], []>} : vector<4x32xf32>, vector<32x96xf32>, vector<4x96xf32> -> vector<4x96xf32>
    %cst_9 = arith.constant 0.000000e+00 : f32
    %6 = vector.broadcast %cst_9 : f32 to vector<4x32xf32>
    %cst_10 = arith.constant 0.000000e+00 : f32
    %7 = vector.broadcast %cst_10 : f32 to vector<4x4xf32>
    %8 = vector.extract_strided_slice %5 {offsets = [0, 0], sizes = [4, 4], strides = [1, 1]} : vector<4x96xf32> to vector<4x4xf32>
    %cst_11 = arith.constant 5.000000e-01 : f32
    %9 = vector.broadcast %cst_11 : f32 to vector<4x4xf32>
    %10 = arith.mulf %8, %9 : vector<4x4xf32>
    %11 = vector.extract_strided_slice %5 {offsets = [0, 32], sizes = [4, 4], strides = [1, 1]} : vector<4x96xf32> to vector<4x4xf32>
    %12 = vector.extract_strided_slice %5 {offsets = [0, 64], sizes = [4, 4], strides = [1, 1]} : vector<4x96xf32> to vector<4x4xf32>
    %cst_12 = arith.constant dense<0.000000e+00> : vector<4x4xf32>
    %13 = tpu.matmul %10, %11, %cst_12 {dimension_numbers = #tpu.dot_dimension_numbers<[1], [1], [0], [0], [0, 0, 1, 0], [], []>} : vector<4x4xf32>, vector<4x4xf32>, vector<4x4xf32> -> vector<4x4xf32>
    %14 = arith.addf %13, %1 : vector<4x4xf32>
    %cst_13 = arith.constant dense<0xFF800000> : vector<4xf32>
    %15 = vector.multi_reduction <maximumf>, %14, %cst_13 [1] : vector<4x4xf32> to vector<4xf32>
    %16 = vector.shape_cast %15 : vector<4xf32> to vector<4x1xf32>
    %17 = vector.broadcast %16 : vector<4x1xf32> to vector<4x4xf32>
    %18 = arith.subf %14, %17 : vector<4x4xf32>
    %19 = math.exp %18 : vector<4x4xf32>
    %cst_14 = arith.constant dense<0.000000e+00> : vector<4xf32>
    %20 = vector.multi_reduction <add>, %19, %cst_14 [1] : vector<4x4xf32> to vector<4xf32>
    %21 = vector.shape_cast %20 : vector<4xf32> to vector<4x1xf32>
    %22 = tpu.reciprocal %21 {approx = true} : vector<4x1xf32> -> vector<4x1xf32>
    %23 = vector.broadcast %22 : vector<4x1xf32> to vector<4x4xf32>
    %24 = arith.mulf %19, %23 : vector<4x4xf32>
    %25 = arith.addf %7, %24 : vector<4x4xf32>
    %cst_15 = arith.constant dense<0.000000e+00> : vector<4x4xf32>
    %26 = tpu.matmul %24, %12, %cst_15 {dimension_numbers = #tpu.dot_dimension_numbers<[1], [0], [0], [1], [0, 0, 1, 1], [], []>} : vector<4x4xf32>, vector<4x4xf32>, vector<4x4xf32> -> vector<4x4xf32>
    %27 = vector.extract_strided_slice %3 {offsets = [0, 0], sizes = [4, 32], strides = [1, 1]} : vector<32x32xf32> to vector<4x32xf32>
    %cst_16 = arith.constant dense<0.000000e+00> : vector<4x32xf32>
    %28 = tpu.matmul %26, %27, %cst_16 {dimension_numbers = #tpu.dot_dimension_numbers<[1], [0], [0], [1], [0, 0, 1, 1], [], []>} : vector<4x4xf32>, vector<4x32xf32>, vector<4x32xf32> -> vector<4x32xf32>
    %29 = arith.addf %6, %28 : vector<4x32xf32>
    %30 = vector.extract_strided_slice %5 {offsets = [0, 4], sizes = [4, 4], strides = [1, 1]} : vector<4x96xf32> to vector<4x4xf32>
    %cst_17 = arith.constant 5.000000e-01 : f32
    %31 = vector.broadcast %cst_17 : f32 to vector<4x4xf32>
    %32 = arith.mulf %30, %31 : vector<4x4xf32>
    %33 = vector.extract_strided_slice %5 {offsets = [0, 36], sizes = [4, 4], strides = [1, 1]} : vector<4x96xf32> to vector<4x4xf32>
    %34 = vector.extract_strided_slice %5 {offsets = [0, 68], sizes = [4, 4], strides = [1, 1]} : vector<4x96xf32> to vector<4x4xf32>
    %cst_18 = arith.constant dense<0.000000e+00> : vector<4x4xf32>
    %35 = tpu.matmul %32, %33, %cst_18 {dimension_numbers = #tpu.dot_dimension_numbers<[1], [1], [0], [0], [0, 0, 1, 0], [], []>} : vector<4x4xf32>, vector<4x4xf32>, vector<4x4xf32> -> vector<4x4xf32>
    %36 = arith.addf %35, %1 : vector<4x4xf32>
    %cst_19 = arith.constant dense<0xFF800000> : vector<4xf32>
    %37 = vector.multi_reduction <maximumf>, %36, %cst_19 [1] : vector<4x4xf32> to vector<4xf32>
    %38 = vector.shape_cast %37 : vector<4xf32> to vector<4x1xf32>
    %39 = vector.broadcast %38 : vector<4x1xf32> to vector<4x4xf32>
    %40 = arith.subf %36, %39 : vector<4x4xf32>
    %41 = math.exp %40 : vector<4x4xf32>
    %cst_20 = arith.constant dense<0.000000e+00> : vector<4xf32>
    %42 = vector.multi_reduction <add>, %41, %cst_20 [1] : vector<4x4xf32> to vector<4xf32>
    %43 = vector.shape_cast %42 : vector<4xf32> to vector<4x1xf32>
    %44 = tpu.reciprocal %43 {approx = true} : vector<4x1xf32> -> vector<4x1xf32>
    %45 = vector.broadcast %44 : vector<4x1xf32> to vector<4x4xf32>
    %46 = arith.mulf %41, %45 : vector<4x4xf32>
    %47 = arith.addf %25, %46 : vector<4x4xf32>
    %cst_21 = arith.constant dense<0.000000e+00> : vector<4x4xf32>
    %48 = tpu.matmul %46, %34, %cst_21 {dimension_numbers = #tpu.dot_dimension_numbers<[1], [0], [0], [1], [0, 0, 1, 1], [], []>} : vector<4x4xf32>, vector<4x4xf32>, vector<4x4xf32> -> vector<4x4xf32>
    %49 = vector.extract_strided_slice %3 {offsets = [4, 0], sizes = [4, 32], strides = [1, 1]} : vector<32x32xf32> to vector<4x32xf32>
    %cst_22 = arith.constant dense<0.000000e+00> : vector<4x32xf32>
    %50 = tpu.matmul %48, %49, %cst_22 {dimension_numbers = #tpu.dot_dimension_numbers<[1], [0], [0], [1], [0, 0, 1, 1], [], []>} : vector<4x4xf32>, vector<4x32xf32>, vector<4x32xf32> -> vector<4x32xf32>
    %51 = arith.addf %29, %50 : vector<4x32xf32>
    %52 = vector.extract_strided_slice %5 {offsets = [0, 8], sizes = [4, 4], strides = [1, 1]} : vector<4x96xf32> to vector<4x4xf32>
    %cst_23 = arith.constant 5.000000e-01 : f32
    %53 = vector.broadcast %cst_23 : f32 to vector<4x4xf32>
    %54 = arith.mulf %52, %53 : vector<4x4xf32>
    %55 = vector.extract_strided_slice %5 {offsets = [0, 40], sizes = [4, 4], strides = [1, 1]} : vector<4x96xf32> to vector<4x4xf32>
    %56 = vector.extract_strided_slice %5 {offsets = [0, 72], sizes = [4, 4], strides = [1, 1]} : vector<4x96xf32> to vector<4x4xf32>
    %cst_24 = arith.constant dense<0.000000e+00> : vector<4x4xf32>
    %57 = tpu.matmul %54, %55, %cst_24 {dimension_numbers = #tpu.dot_dimension_numbers<[1], [1], [0], [0], [0, 0, 1, 0], [], []>} : vector<4x4xf32>, vector<4x4xf32>, vector<4x4xf32> -> vector<4x4xf32>
    %58 = arith.addf %57, %1 : vector<4x4xf32>
    %cst_25 = arith.constant dense<0xFF800000> : vector<4xf32>
    %59 = vector.multi_reduction <maximumf>, %58, %cst_25 [1] : vector<4x4xf32> to vector<4xf32>
    %60 = vector.shape_cast %59 : vector<4xf32> to vector<4x1xf32>
    %61 = vector.broadcast %60 : vector<4x1xf32> to vector<4x4xf32>
    %62 = arith.subf %58, %61 : vector<4x4xf32>
    %63 = math.exp %62 : vector<4x4xf32>
    %cst_26 = arith.constant dense<0.000000e+00> : vector<4xf32>
    %64 = vector.multi_reduction <add>, %63, %cst_26 [1] : vector<4x4xf32> to vector<4xf32>
    %65 = vector.shape_cast %64 : vector<4xf32> to vector<4x1xf32>
    %66 = tpu.reciprocal %65 {approx = true} : vector<4x1xf32> -> vector<4x1xf32>
    %67 = vector.broadcast %66 : vector<4x1xf32> to vector<4x4xf32>
    %68 = arith.mulf %63, %67 : vector<4x4xf32>
    %69 = arith.addf %47, %68 : vector<4x4xf32>
    %cst_27 = arith.constant dense<0.000000e+00> : vector<4x4xf32>
    %70 = tpu.matmul %68, %56, %cst_27 {dimension_numbers = #tpu.dot_dimension_numbers<[1], [0], [0], [1], [0, 0, 1, 1], [], []>} : vector<4x4xf32>, vector<4x4xf32>, vector<4x4xf32> -> vector<4x4xf32>
    %71 = vector.extract_strided_slice %3 {offsets = [8, 0], sizes = [4, 32], strides = [1, 1]} : vector<32x32xf32> to vector<4x32xf32>
    %cst_28 = arith.constant dense<0.000000e+00> : vector<4x32xf32>
    %72 = tpu.matmul %70, %71, %cst_28 {dimension_numbers = #tpu.dot_dimension_numbers<[1], [0], [0], [1], [0, 0, 1, 1], [], []>} : vector<4x4xf32>, vector<4x32xf32>, vector<4x32xf32> -> vector<4x32xf32>
    %73 = arith.addf %51, %72 : vector<4x32xf32>
    %74 = vector.extract_strided_slice %5 {offsets = [0, 12], sizes = [4, 4], strides = [1, 1]} : vector<4x96xf32> to vector<4x4xf32>
    %cst_29 = arith.constant 5.000000e-01 : f32
    %75 = vector.broadcast %cst_29 : f32 to vector<4x4xf32>
    %76 = arith.mulf %74, %75 : vector<4x4xf32>
    %77 = vector.extract_strided_slice %5 {offsets = [0, 44], sizes = [4, 4], strides = [1, 1]} : vector<4x96xf32> to vector<4x4xf32>
    %78 = vector.extract_strided_slice %5 {offsets = [0, 76], sizes = [4, 4], strides = [1, 1]} : vector<4x96xf32> to vector<4x4xf32>
    %cst_30 = arith.constant dense<0.000000e+00> : vector<4x4xf32>
    %79 = tpu.matmul %76, %77, %cst_30 {dimension_numbers = #tpu.dot_dimension_numbers<[1], [1], [0], [0], [0, 0, 1, 0], [], []>} : vector<4x4xf32>, vector<4x4xf32>, vector<4x4xf32> -> vector<4x4xf32>
    %80 = arith.addf %79, %1 : vector<4x4xf32>
    %cst_31 = arith.constant dense<0xFF800000> : vector<4xf32>
    %81 = vector.multi_reduction <maximumf>, %80, %cst_31 [1] : vector<4x4xf32> to vector<4xf32>
    %82 = vector.shape_cast %81 : vector<4xf32> to vector<4x1xf32>
    %83 = vector.broadcast %82 : vector<4x1xf32> to vector<4x4xf32>
    %84 = arith.subf %80, %83 : vector<4x4xf32>
    %85 = math.exp %84 : vector<4x4xf32>
    %cst_32 = arith.constant dense<0.000000e+00> : vector<4xf32>
    %86 = vector.multi_reduction <add>, %85, %cst_32 [1] : vector<4x4xf32> to vector<4xf32>
    %87 = vector.shape_cast %86 : vector<4xf32> to vector<4x1xf32>
    %88 = tpu.reciprocal %87 {approx = true} : vector<4x1xf32> -> vector<4x1xf32>
    %89 = vector.broadcast %88 : vector<4x1xf32> to vector<4x4xf32>
    %90 = arith.mulf %85, %89 : vector<4x4xf32>
    %91 = arith.addf %69, %90 : vector<4x4xf32>
    %cst_33 = arith.constant dense<0.000000e+00> : vector<4x4xf32>
    %92 = tpu.matmul %90, %78, %cst_33 {dimension_numbers = #tpu.dot_dimension_numbers<[1], [0], [0], [1], [0, 0, 1, 1], [], []>} : vector<4x4xf32>, vector<4x4xf32>, vector<4x4xf32> -> vector<4x4xf32>
    %93 = vector.extract_strided_slice %3 {offsets = [12, 0], sizes = [4, 32], strides = [1, 1]} : vector<32x32xf32> to vector<4x32xf32>
    %cst_34 = arith.constant dense<0.000000e+00> : vector<4x32xf32>
    %94 = tpu.matmul %92, %93, %cst_34 {dimension_numbers = #tpu.dot_dimension_numbers<[1], [0], [0], [1], [0, 0, 1, 1], [], []>} : vector<4x4xf32>, vector<4x32xf32>, vector<4x32xf32> -> vector<4x32xf32>
    %95 = arith.addf %73, %94 : vector<4x32xf32>
    %96 = vector.extract_strided_slice %5 {offsets = [0, 16], sizes = [4, 4], strides = [1, 1]} : vector<4x96xf32> to vector<4x4xf32>
    %cst_35 = arith.constant 5.000000e-01 : f32
    %97 = vector.broadcast %cst_35 : f32 to vector<4x4xf32>
    %98 = arith.mulf %96, %97 : vector<4x4xf32>
    %99 = vector.extract_strided_slice %5 {offsets = [0, 48], sizes = [4, 4], strides = [1, 1]} : vector<4x96xf32> to vector<4x4xf32>
    %100 = vector.extract_strided_slice %5 {offsets = [0, 80], sizes = [4, 4], strides = [1, 1]} : vector<4x96xf32> to vector<4x4xf32>
    %cst_36 = arith.constant dense<0.000000e+00> : vector<4x4xf32>
    %101 = tpu.matmul %98, %99, %cst_36 {dimension_numbers = #tpu.dot_dimension_numbers<[1], [1], [0], [0], [0, 0, 1, 0], [], []>} : vector<4x4xf32>, vector<4x4xf32>, vector<4x4xf32> -> vector<4x4xf32>
    %102 = arith.addf %101, %1 : vector<4x4xf32>
    %cst_37 = arith.constant dense<0xFF800000> : vector<4xf32>
    %103 = vector.multi_reduction <maximumf>, %102, %cst_37 [1] : vector<4x4xf32> to vector<4xf32>
    %104 = vector.shape_cast %103 : vector<4xf32> to vector<4x1xf32>
    %105 = vector.broadcast %104 : vector<4x1xf32> to vector<4x4xf32>
    %106 = arith.subf %102, %105 : vector<4x4xf32>
    %107 = math.exp %106 : vector<4x4xf32>
    %cst_38 = arith.constant dense<0.000000e+00> : vector<4xf32>
    %108 = vector.multi_reduction <add>, %107, %cst_38 [1] : vector<4x4xf32> to vector<4xf32>
    %109 = vector.shape_cast %108 : vector<4xf32> to vector<4x1xf32>
    %110 = tpu.reciprocal %109 {approx = true} : vector<4x1xf32> -> vector<4x1xf32>
    %111 = vector.broadcast %110 : vector<4x1xf32> to vector<4x4xf32>
    %112 = arith.mulf %107, %111 : vector<4x4xf32>
    %113 = arith.addf %91, %112 : vector<4x4xf32>
    %cst_39 = arith.constant dense<0.000000e+00> : vector<4x4xf32>
    %114 = tpu.matmul %112, %100, %cst_39 {dimension_numbers = #tpu.dot_dimension_numbers<[1], [0], [0], [1], [0, 0, 1, 1], [], []>} : vector<4x4xf32>, vector<4x4xf32>, vector<4x4xf32> -> vector<4x4xf32>
    %115 = vector.extract_strided_slice %3 {offsets = [16, 0], sizes = [4, 32], strides = [1, 1]} : vector<32x32xf32> to vector<4x32xf32>
    %cst_40 = arith.constant dense<0.000000e+00> : vector<4x32xf32>
    %116 = tpu.matmul %114, %115, %cst_40 {dimension_numbers = #tpu.dot_dimension_numbers<[1], [0], [0], [1], [0, 0, 1, 1], [], []>} : vector<4x4xf32>, vector<4x32xf32>, vector<4x32xf32> -> vector<4x32xf32>
    %117 = arith.addf %95, %116 : vector<4x32xf32>
    %118 = vector.extract_strided_slice %5 {offsets = [0, 20], sizes = [4, 4], strides = [1, 1]} : vector<4x96xf32> to vector<4x4xf32>
    %cst_41 = arith.constant 5.000000e-01 : f32
    %119 = vector.broadcast %cst_41 : f32 to vector<4x4xf32>
    %120 = arith.mulf %118, %119 : vector<4x4xf32>
    %121 = vector.extract_strided_slice %5 {offsets = [0, 52], sizes = [4, 4], strides = [1, 1]} : vector<4x96xf32> to vector<4x4xf32>
    %122 = vector.extract_strided_slice %5 {offsets = [0, 84], sizes = [4, 4], strides = [1, 1]} : vector<4x96xf32> to vector<4x4xf32>
    %cst_42 = arith.constant dense<0.000000e+00> : vector<4x4xf32>
    %123 = tpu.matmul %120, %121, %cst_42 {dimension_numbers = #tpu.dot_dimension_numbers<[1], [1], [0], [0], [0, 0, 1, 0], [], []>} : vector<4x4xf32>, vector<4x4xf32>, vector<4x4xf32> -> vector<4x4xf32>
    %124 = arith.addf %123, %1 : vector<4x4xf32>
    %cst_43 = arith.constant dense<0xFF800000> : vector<4xf32>
    %125 = vector.multi_reduction <maximumf>, %124, %cst_43 [1] : vector<4x4xf32> to vector<4xf32>
    %126 = vector.shape_cast %125 : vector<4xf32> to vector<4x1xf32>
    %127 = vector.broadcast %126 : vector<4x1xf32> to vector<4x4xf32>
    %128 = arith.subf %124, %127 : vector<4x4xf32>
    %129 = math.exp %128 : vector<4x4xf32>
    %cst_44 = arith.constant dense<0.000000e+00> : vector<4xf32>
    %130 = vector.multi_reduction <add>, %129, %cst_44 [1] : vector<4x4xf32> to vector<4xf32>
    %131 = vector.shape_cast %130 : vector<4xf32> to vector<4x1xf32>
    %132 = tpu.reciprocal %131 {approx = true} : vector<4x1xf32> -> vector<4x1xf32>
    %133 = vector.broadcast %132 : vector<4x1xf32> to vector<4x4xf32>
    %134 = arith.mulf %129, %133 : vector<4x4xf32>
    %135 = arith.addf %113, %134 : vector<4x4xf32>
    %cst_45 = arith.constant dense<0.000000e+00> : vector<4x4xf32>
    %136 = tpu.matmul %134, %122, %cst_45 {dimension_numbers = #tpu.dot_dimension_numbers<[1], [0], [0], [1], [0, 0, 1, 1], [], []>} : vector<4x4xf32>, vector<4x4xf32>, vector<4x4xf32> -> vector<4x4xf32>
    %137 = vector.extract_strided_slice %3 {offsets = [20, 0], sizes = [4, 32], strides = [1, 1]} : vector<32x32xf32> to vector<4x32xf32>
    %cst_46 = arith.constant dense<0.000000e+00> : vector<4x32xf32>
    %138 = tpu.matmul %136, %137, %cst_46 {dimension_numbers = #tpu.dot_dimension_numbers<[1], [0], [0], [1], [0, 0, 1, 1], [], []>} : vector<4x4xf32>, vector<4x32xf32>, vector<4x32xf32> -> vector<4x32xf32>
    %139 = arith.addf %117, %138 : vector<4x32xf32>
    %140 = vector.extract_strided_slice %5 {offsets = [0, 24], sizes = [4, 4], strides = [1, 1]} : vector<4x96xf32> to vector<4x4xf32>
    %cst_47 = arith.constant 5.000000e-01 : f32
    %141 = vector.broadcast %cst_47 : f32 to vector<4x4xf32>
    %142 = arith.mulf %140, %141 : vector<4x4xf32>
    %143 = vector.extract_strided_slice %5 {offsets = [0, 56], sizes = [4, 4], strides = [1, 1]} : vector<4x96xf32> to vector<4x4xf32>
    %144 = vector.extract_strided_slice %5 {offsets = [0, 88], sizes = [4, 4], strides = [1, 1]} : vector<4x96xf32> to vector<4x4xf32>
    %cst_48 = arith.constant dense<0.000000e+00> : vector<4x4xf32>
    %145 = tpu.matmul %142, %143, %cst_48 {dimension_numbers = #tpu.dot_dimension_numbers<[1], [1], [0], [0], [0, 0, 1, 0], [], []>} : vector<4x4xf32>, vector<4x4xf32>, vector<4x4xf32> -> vector<4x4xf32>
    %146 = arith.addf %145, %1 : vector<4x4xf32>
    %cst_49 = arith.constant dense<0xFF800000> : vector<4xf32>
    %147 = vector.multi_reduction <maximumf>, %146, %cst_49 [1] : vector<4x4xf32> to vector<4xf32>
    %148 = vector.shape_cast %147 : vector<4xf32> to vector<4x1xf32>
    %149 = vector.broadcast %148 : vector<4x1xf32> to vector<4x4xf32>
    %150 = arith.subf %146, %149 : vector<4x4xf32>
    %151 = math.exp %150 : vector<4x4xf32>
    %cst_50 = arith.constant dense<0.000000e+00> : vector<4xf32>
    %152 = vector.multi_reduction <add>, %151, %cst_50 [1] : vector<4x4xf32> to vector<4xf32>
    %153 = vector.shape_cast %152 : vector<4xf32> to vector<4x1xf32>
    %154 = tpu.reciprocal %153 {approx = true} : vector<4x1xf32> -> vector<4x1xf32>
    %155 = vector.broadcast %154 : vector<4x1xf32> to vector<4x4xf32>
    %156 = arith.mulf %151, %155 : vector<4x4xf32>
    %157 = arith.addf %135, %156 : vector<4x4xf32>
    %cst_51 = arith.constant dense<0.000000e+00> : vector<4x4xf32>
    %158 = tpu.matmul %156, %144, %cst_51 {dimension_numbers = #tpu.dot_dimension_numbers<[1], [0], [0], [1], [0, 0, 1, 1], [], []>} : vector<4x4xf32>, vector<4x4xf32>, vector<4x4xf32> -> vector<4x4xf32>
    %159 = vector.extract_strided_slice %3 {offsets = [24, 0], sizes = [4, 32], strides = [1, 1]} : vector<32x32xf32> to vector<4x32xf32>
    %cst_52 = arith.constant dense<0.000000e+00> : vector<4x32xf32>
    %160 = tpu.matmul %158, %159, %cst_52 {dimension_numbers = #tpu.dot_dimension_numbers<[1], [0], [0], [1], [0, 0, 1, 1], [], []>} : vector<4x4xf32>, vector<4x32xf32>, vector<4x32xf32> -> vector<4x32xf32>
    %161 = arith.addf %139, %160 : vector<4x32xf32>
    %162 = vector.extract_strided_slice %5 {offsets = [0, 28], sizes = [4, 4], strides = [1, 1]} : vector<4x96xf32> to vector<4x4xf32>
    %cst_53 = arith.constant 5.000000e-01 : f32
    %163 = vector.broadcast %cst_53 : f32 to vector<4x4xf32>
    %164 = arith.mulf %162, %163 : vector<4x4xf32>
    %165 = vector.extract_strided_slice %5 {offsets = [0, 60], sizes = [4, 4], strides = [1, 1]} : vector<4x96xf32> to vector<4x4xf32>
    %166 = vector.extract_strided_slice %5 {offsets = [0, 92], sizes = [4, 4], strides = [1, 1]} : vector<4x96xf32> to vector<4x4xf32>
    %cst_54 = arith.constant dense<0.000000e+00> : vector<4x4xf32>
    %167 = tpu.matmul %164, %165, %cst_54 {dimension_numbers = #tpu.dot_dimension_numbers<[1], [1], [0], [0], [0, 0, 1, 0], [], []>} : vector<4x4xf32>, vector<4x4xf32>, vector<4x4xf32> -> vector<4x4xf32>
    %168 = arith.addf %167, %1 : vector<4x4xf32>
    %cst_55 = arith.constant dense<0xFF800000> : vector<4xf32>
    %169 = vector.multi_reduction <maximumf>, %168, %cst_55 [1] : vector<4x4xf32> to vector<4xf32>
    %170 = vector.shape_cast %169 : vector<4xf32> to vector<4x1xf32>
    %171 = vector.broadcast %170 : vector<4x1xf32> to vector<4x4xf32>
    %172 = arith.subf %168, %171 : vector<4x4xf32>
    %173 = math.exp %172 : vector<4x4xf32>
    %cst_56 = arith.constant dense<0.000000e+00> : vector<4xf32>
    %174 = vector.multi_reduction <add>, %173, %cst_56 [1] : vector<4x4xf32> to vector<4xf32>
    %175 = vector.shape_cast %174 : vector<4xf32> to vector<4x1xf32>
    %176 = tpu.reciprocal %175 {approx = true} : vector<4x1xf32> -> vector<4x1xf32>
    %177 = vector.broadcast %176 : vector<4x1xf32> to vector<4x4xf32>
    %178 = arith.mulf %173, %177 : vector<4x4xf32>
    %179 = arith.addf %157, %178 : vector<4x4xf32>
    %cst_57 = arith.constant dense<0.000000e+00> : vector<4x4xf32>
    %180 = tpu.matmul %178, %166, %cst_57 {dimension_numbers = #tpu.dot_dimension_numbers<[1], [0], [0], [1], [0, 0, 1, 1], [], []>} : vector<4x4xf32>, vector<4x4xf32>, vector<4x4xf32> -> vector<4x4xf32>
    %181 = vector.extract_strided_slice %3 {offsets = [28, 0], sizes = [4, 32], strides = [1, 1]} : vector<32x32xf32> to vector<4x32xf32>
    %cst_58 = arith.constant dense<0.000000e+00> : vector<4x32xf32>
    %182 = tpu.matmul %180, %181, %cst_58 {dimension_numbers = #tpu.dot_dimension_numbers<[1], [0], [0], [1], [0, 0, 1, 1], [], []>} : vector<4x4xf32>, vector<4x32xf32>, vector<4x32xf32> -> vector<4x32xf32>
    %183 = arith.addf %161, %182 : vector<4x32xf32>
    %184 = vector.broadcast %4 : vector<1x32xf32> to vector<4x32xf32>
    %185 = arith.addf %183, %184 : vector<4x32xf32>
    %cst_59 = arith.constant 1.250000e-01 : f32
    %186 = vector.broadcast %cst_59 : f32 to vector<4x4xf32>
    %187 = arith.mulf %179, %186 : vector<4x4xf32>
    %c0_60 = arith.constant 0 : index
    %c0_61 = arith.constant 0 : index
    %188 = vector.load %arg38[%c0_60, %c0_61] : memref<4x4xf32, #tpu.memory_space<vmem>>, vector<4x4xf32>
    tpu.vector_store %arg38[%c0_60, %c0_61], %187 {strides = array<i32>} : memref<4x4xf32, #tpu.memory_space<vmem>>, vector<4x4xf32>,
    %c0_62 = arith.constant 0 : index
    %c0_63 = arith.constant 0 : index
    %189 = vector.load %arg0[%c0_62, %c0_63] : memref<32x32xf32, #tpu.memory_space<vmem>>, vector<32x32xf32>
    %c0_64 = arith.constant 0 : index
    %c0_65 = arith.constant 0 : index
    %190 = vector.load %arg1[%c0_64, %c0_65] : memref<32x32xf32, #tpu.memory_space<vmem>>, vector<32x32xf32>
    %c0_66 = arith.constant 0 : index
    %c0_67 = arith.constant 0 : index
    %191 = vector.load %arg5[%c0_66, %c0_67] : memref<32x96xf32, #tpu.memory_space<vmem>>, vector<32x96xf32>
    %c0_68 = arith.constant 0 : index
    %c0_69 = arith.constant 0 : index
    %192 = vector.load %arg6[%c0_68, %c0_69] : memref<1x96xf32, #tpu.memory_space<vmem>>, vector<1x96xf32>
    %c0_70 = arith.constant 0 : index
    %c0_71 = arith.constant 0 : index
    %193 = vector.load %arg7[%c0_70, %c0_71] : memref<32x32xf32, #tpu.memory_space<vmem>>, vector<32x32xf32>
    %c0_72 = arith.constant 0 : index
    %c0_73 = arith.constant 0 : index
    %194 = vector.load %arg8[%c0_72, %c0_73] : memref<1x32xf32, #tpu.memory_space<vmem>>, vector<1x32xf32>
    %c0_74 = arith.constant 0 : index
    %c0_75 = arith.constant 0 : index
    %195 = vector.load %arg9[%c0_74, %c0_75] : memref<1x32xf32, #tpu.memory_space<vmem>>, vector<1x32xf32>
    %c0_76 = arith.constant 0 : index
    %c0_77 = arith.constant 0 : index
    %196 = vector.load %arg10[%c0_76, %c0_77] : memref<1x32xf32, #tpu.memory_space<vmem>>, vector<1x32xf32>
    %c0_78 = arith.constant 0 : index
    %c0_79 = arith.constant 0 : index
    %197 = vector.load %arg11[%c0_78, %c0_79] : memref<32x128xf32, #tpu.memory_space<vmem>>, vector<32x128xf32>
    %c0_80 = arith.constant 0 : index
    %c0_81 = arith.constant 0 : index
    %198 = vector.load %arg12[%c0_80, %c0_81] : memref<1x128xf32, #tpu.memory_space<vmem>>, vector<1x128xf32>
    %c0_82 = arith.constant 0 : index
    %c0_83 = arith.constant 0 : index
    %199 = vector.load %arg13[%c0_82, %c0_83] : memref<128x32xf32, #tpu.memory_space<vmem>>, vector<128x32xf32>
    %c0_84 = arith.constant 0 : index
    %c0_85 = arith.constant 0 : index
    %200 = vector.load %arg14[%c0_84, %c0_85] : memref<1x32xf32, #tpu.memory_space<vmem>>, vector<1x32xf32>
    %c0_86 = arith.constant 0 : index
    %c0_87 = arith.constant 0 : index
    %201 = vector.load %arg15[%c0_86, %c0_87] : memref<1x32xf32, #tpu.memory_space<vmem>>, vector<1x32xf32>
    %c0_88 = arith.constant 0 : index
    %c0_89 = arith.constant 0 : index
    %202 = vector.load %arg16[%c0_88, %c0_89] : memref<1x32xf32, #tpu.memory_space<vmem>>, vector<1x32xf32>
    %cst_90 = arith.constant dense<0.000000e+00> : vector<32x96xf32>
    %203 = tpu.matmul %189, %191, %cst_90 {dimension_numbers = #tpu.dot_dimension_numbers<[1], [0], [0], [1], [0, 0, 1, 1], [], []>} : vector<32x32xf32>, vector<32x96xf32>, vector<32x96xf32> -> vector<32x96xf32>
    %204 = vector.broadcast %192 : vector<1x96xf32> to vector<32x96xf32>
    %205 = arith.addf %203, %204 : vector<32x96xf32>
    %cst_91 = arith.constant 0.000000e+00 : f32
    %206 = vector.broadcast %cst_91 : f32 to vector<32x32xf32>
    %207 = vector.extract_strided_slice %205 {offsets = [0, 0], sizes = [32, 4], strides = [1, 1]} : vector<32x96xf32> to vector<32x4xf32>
    %cst_92 = arith.constant 5.000000e-01 : f32
    %208 = vector.broadcast %cst_92 : f32 to vector<32x4xf32>
    %209 = arith.mulf %207, %208 : vector<32x4xf32>
    %210 = vector.extract_strided_slice %205 {offsets = [0, 32], sizes = [32, 4], strides = [1, 1]} : vector<32x96xf32> to vector<32x4xf32>
    %211 = vector.extract_strided_slice %205 {offsets = [0, 64], sizes = [32, 4], strides = [1, 1]} : vector<32x96xf32> to vector<32x4xf32>
    %cst_93 = arith.constant dense<0.000000e+00> : vector<32x32xf32>
    %212 = tpu.matmul %209, %210, %cst_93 {dimension_numbers = #tpu.dot_dimension_numbers<[1], [1], [0], [0], [0, 0, 1, 0], [], []>} : vector<32x4xf32>, vector<32x4xf32>, vector<32x32xf32> -> vector<32x32xf32>
    %213 = arith.addf %212, %190 : vector<32x32xf32>
    %cst_94 = arith.constant dense<0xFF800000> : vector<32xf32>
    %214 = vector.multi_reduction <maximumf>, %213, %cst_94 [1] : vector<32x32xf32> to vector<32xf32>
    %215 = vector.shape_cast %214 : vector<32xf32> to vector<32x1xf32>
    %216 = vector.broadcast %215 : vector<32x1xf32> to vector<32x32xf32>
    %217 = arith.subf %213, %216 : vector<32x32xf32>
    %218 = math.exp %217 : vector<32x32xf32>
    %cst_95 = arith.constant dense<0.000000e+00> : vector<32xf32>
    %219 = vector.multi_reduction <add>, %218, %cst_95 [1] : vector<32x32xf32> to vector<32xf32>
    %220 = vector.shape_cast %219 : vector<32xf32> to vector<32x1xf32>
    %221 = tpu.reciprocal %220 {approx = true} : vector<32x1xf32> -> vector<32x1xf32>
    %222 = vector.broadcast %221 : vector<32x1xf32> to vector<32x32xf32>
    %223 = arith.mulf %218, %222 : vector<32x32xf32>
    %cst_96 = arith.constant dense<0.000000e+00> : vector<32x4xf32>
    %224 = tpu.matmul %223, %211, %cst_96 {dimension_numbers = #tpu.dot_dimension_numbers<[1], [0], [0], [1], [0, 0, 1, 1], [], []>} : vector<32x32xf32>, vector<32x4xf32>, vector<32x4xf32> -> vector<32x4xf32>
    %225 = vector.extract_strided_slice %193 {offsets = [0, 0], sizes = [4, 32], strides = [1, 1]} : vector<32x32xf32> to vector<4x32xf32>
    %cst_97 = arith.constant dense<0.000000e+00> : vector<32x32xf32>
    %226 = tpu.matmul %224, %225, %cst_97 {dimension_numbers = #tpu.dot_dimension_numbers<[1], [0], [0], [1], [0, 0, 1, 1], [], []>} : vector<32x4xf32>, vector<4x32xf32>, vector<32x32xf32> -> vector<32x32xf32>
    %227 = arith.addf %206, %226 : vector<32x32xf32>
    %228 = vector.extract_strided_slice %205 {offsets = [0, 4], sizes = [32, 4], strides = [1, 1]} : vector<32x96xf32> to vector<32x4xf32>
    %cst_98 = arith.constant 5.000000e-01 : f32
    %229 = vector.broadcast %cst_98 : f32 to vector<32x4xf32>
    %230 = arith.mulf %228, %229 : vector<32x4xf32>
    %231 = vector.extract_strided_slice %205 {offsets = [0, 36], sizes = [32, 4], strides = [1, 1]} : vector<32x96xf32> to vector<32x4xf32>
    %232 = vector.extract_strided_slice %205 {offsets = [0, 68], sizes = [32, 4], strides = [1, 1]} : vector<32x96xf32> to vector<32x4xf32>
    %cst_99 = arith.constant dense<0.000000e+00> : vector<32x32xf32>
    %233 = tpu.matmul %230, %231, %cst_99 {dimension_numbers = #tpu.dot_dimension_numbers<[1], [1], [0], [0], [0, 0, 1, 0], [], []>} : vector<32x4xf32>, vector<32x4xf32>, vector<32x32xf32> -> vector<32x32xf32>
    %234 = arith.addf %233, %190 : vector<32x32xf32>
    %cst_100 = arith.constant dense<0xFF800000> : vector<32xf32>
    %235 = vector.multi_reduction <maximumf>, %234, %cst_100 [1] : vector<32x32xf32> to vector<32xf32>
    %236 = vector.shape_cast %235 : vector<32xf32> to vector<32x1xf32>
    %237 = vector.broadcast %236 : vector<32x1xf32> to vector<32x32xf32>
    %238 = arith.subf %234, %237 : vector<32x32xf32>
    %239 = math.exp %238 : vector<32x32xf32>
    %cst_101 = arith.constant dense<0.000000e+00> : vector<32xf32>
    %240 = vector.multi_reduction <add>, %239, %cst_101 [1] : vector<32x32xf32> to vector<32xf32>
    %241 = vector.shape_cast %240 : vector<32xf32> to vector<32x1xf32>
    %242 = tpu.reciprocal %241 {approx = true} : vector<32x1xf32> -> vector<32x1xf32>
    %243 = vector.broadcast %242 : vector<32x1xf32> to vector<32x32xf32>
    %244 = arith.mulf %239, %243 : vector<32x32xf32>
    %cst_102 = arith.constant dense<0.000000e+00> : vector<32x4xf32>
    %245 = tpu.matmul %244, %232, %cst_102 {dimension_numbers = #tpu.dot_dimension_numbers<[1], [0], [0], [1], [0, 0, 1, 1], [], []>} : vector<32x32xf32>, vector<32x4xf32>, vector<32x4xf32> -> vector<32x4xf32>
    %246 = vector.extract_strided_slice %193 {offsets = [4, 0], sizes = [4, 32], strides = [1, 1]} : vector<32x32xf32> to vector<4x32xf32>
    %cst_103 = arith.constant dense<0.000000e+00> : vector<32x32xf32>
    %247 = tpu.matmul %245, %246, %cst_103 {dimension_numbers = #tpu.dot_dimension_numbers<[1], [0], [0], [1], [0, 0, 1, 1], [], []>} : vector<32x4xf32>, vector<4x32xf32>, vector<32x32xf32> -> vector<32x32xf32>
    %248 = arith.addf %227, %247 : vector<32x32xf32>
    %249 = vector.extract_strided_slice %205 {offsets = [0, 8], sizes = [32, 4], strides = [1, 1]} : vector<32x96xf32> to vector<32x4xf32>
    %cst_104 = arith.constant 5.000000e-01 : f32
    %250 = vector.broadcast %cst_104 : f32 to vector<32x4xf32>
    %251 = arith.mulf %249, %250 : vector<32x4xf32>
    %252 = vector.extract_strided_slice %205 {offsets = [0, 40], sizes = [32, 4], strides = [1, 1]} : vector<32x96xf32> to vector<32x4xf32>
    %253 = vector.extract_strided_slice %205 {offsets = [0, 72], sizes = [32, 4], strides = [1, 1]} : vector<32x96xf32> to vector<32x4xf32>
    %cst_105 = arith.constant dense<0.000000e+00> : vector<32x32xf32>
    %254 = tpu.matmul %251, %252, %cst_105 {dimension_numbers = #tpu.dot_dimension_numbers<[1], [1], [0], [0], [0, 0, 1, 0], [], []>} : vector<32x4xf32>, vector<32x4xf32>, vector<32x32xf32> -> vector<32x32xf32>
    %255 = arith.addf %254, %190 : vector<32x32xf32>
    %cst_106 = arith.constant dense<0xFF800000> : vector<32xf32>
    %256 = vector.multi_reduction <maximumf>, %255, %cst_106 [1] : vector<32x32xf32> to vector<32xf32>
    %257 = vector.shape_cast %256 : vector<32xf32> to vector<32x1xf32>
    %258 = vector.broadcast %257 : vector<32x1xf32> to vector<32x32xf32>
    %259 = arith.subf %255, %258 : vector<32x32xf32>
    %260 = math.exp %259 : vector<32x32xf32>
    %cst_107 = arith.constant dense<0.000000e+00> : vector<32xf32>
    %261 = vector.multi_reduction <add>, %260, %cst_107 [1] : vector<32x32xf32> to vector<32xf32>
    %262 = vector.shape_cast %261 : vector<32xf32> to vector<32x1xf32>
    %263 = tpu.reciprocal %262 {approx = true} : vector<32x1xf32> -> vector<32x1xf32>
    %264 = vector.broadcast %263 : vector<32x1xf32> to vector<32x32xf32>
    %265 = arith.mulf %260, %264 : vector<32x32xf32>
    %cst_108 = arith.constant dense<0.000000e+00> : vector<32x4xf32>
    %266 = tpu.matmul %265, %253, %cst_108 {dimension_numbers = #tpu.dot_dimension_numbers<[1], [0], [0], [1], [0, 0, 1, 1], [], []>} : vector<32x32xf32>, vector<32x4xf32>, vector<32x4xf32> -> vector<32x4xf32>
    %267 = vector.extract_strided_slice %193 {offsets = [8, 0], sizes = [4, 32], strides = [1, 1]} : vector<32x32xf32> to vector<4x32xf32>
    %cst_109 = arith.constant dense<0.000000e+00> : vector<32x32xf32>
    %268 = tpu.matmul %266, %267, %cst_109 {dimension_numbers = #tpu.dot_dimension_numbers<[1], [0], [0], [1], [0, 0, 1, 1], [], []>} : vector<32x4xf32>, vector<4x32xf32>, vector<32x32xf32> -> vector<32x32xf32>
    %269 = arith.addf %248, %268 : vector<32x32xf32>
    %270 = vector.extract_strided_slice %205 {offsets = [0, 12], sizes = [32, 4], strides = [1, 1]} : vector<32x96xf32> to vector<32x4xf32>
    %cst_110 = arith.constant 5.000000e-01 : f32
    %271 = vector.broadcast %cst_110 : f32 to vector<32x4xf32>
    %272 = arith.mulf %270, %271 : vector<32x4xf32>
    %273 = vector.extract_strided_slice %205 {offsets = [0, 44], sizes = [32, 4], strides = [1, 1]} : vector<32x96xf32> to vector<32x4xf32>
    %274 = vector.extract_strided_slice %205 {offsets = [0, 76], sizes = [32, 4], strides = [1, 1]} : vector<32x96xf32> to vector<32x4xf32>
    %cst_111 = arith.constant dense<0.000000e+00> : vector<32x32xf32>
    %275 = tpu.matmul %272, %273, %cst_111 {dimension_numbers = #tpu.dot_dimension_numbers<[1], [1], [0], [0], [0, 0, 1, 0], [], []>} : vector<32x4xf32>, vector<32x4xf32>, vector<32x32xf32> -> vector<32x32xf32>
    %276 = arith.addf %275, %190 : vector<32x32xf32>
    %cst_112 = arith.constant dense<0xFF800000> : vector<32xf32>
    %277 = vector.multi_reduction <maximumf>, %276, %cst_112 [1] : vector<32x32xf32> to vector<32xf32>
    %278 = vector.shape_cast %277 : vector<32xf32> to vector<32x1xf32>
    %279 = vector.broadcast %278 : vector<32x1xf32> to vector<32x32xf32>
    %280 = arith.subf %276, %279 : vector<32x32xf32>
    %281 = math.exp %280 : vector<32x32xf32>
    %cst_113 = arith.constant dense<0.000000e+00> : vector<32xf32>
    %282 = vector.multi_reduction <add>, %281, %cst_113 [1] : vector<32x32xf32> to vector<32xf32>
    %283 = vector.shape_cast %282 : vector<32xf32> to vector<32x1xf32>
    %284 = tpu.reciprocal %283 {approx = true} : vector<32x1xf32> -> vector<32x1xf32>
    %285 = vector.broadcast %284 : vector<32x1xf32> to vector<32x32xf32>
    %286 = arith.mulf %281, %285 : vector<32x32xf32>
    %cst_114 = arith.constant dense<0.000000e+00> : vector<32x4xf32>
    %287 = tpu.matmul %286, %274, %cst_114 {dimension_numbers = #tpu.dot_dimension_numbers<[1], [0], [0], [1], [0, 0, 1, 1], [], []>} : vector<32x32xf32>, vector<32x4xf32>, vector<32x4xf32> -> vector<32x4xf32>
    %288 = vector.extract_strided_slice %193 {offsets = [12, 0], sizes = [4, 32], strides = [1, 1]} : vector<32x32xf32> to vector<4x32xf32>
    %cst_115 = arith.constant dense<0.000000e+00> : vector<32x32xf32>
    %289 = tpu.matmul %287, %288, %cst_115 {dimension_numbers = #tpu.dot_dimension_numbers<[1], [0], [0], [1], [0, 0, 1, 1], [], []>} : vector<32x4xf32>, vector<4x32xf32>, vector<32x32xf32> -> vector<32x32xf32>
    %290 = arith.addf %269, %289 : vector<32x32xf32>
    %291 = vector.extract_strided_slice %205 {offsets = [0, 16], sizes = [32, 4], strides = [1, 1]} : vector<32x96xf32> to vector<32x4xf32>
    %cst_116 = arith.constant 5.000000e-01 : f32
    %292 = vector.broadcast %cst_116 : f32 to vector<32x4xf32>
    %293 = arith.mulf %291, %292 : vector<32x4xf32>
    %294 = vector.extract_strided_slice %205 {offsets = [0, 48], sizes = [32, 4], strides = [1, 1]} : vector<32x96xf32> to vector<32x4xf32>
    %295 = vector.extract_strided_slice %205 {offsets = [0, 80], sizes = [32, 4], strides = [1, 1]} : vector<32x96xf32> to vector<32x4xf32>
    %cst_117 = arith.constant dense<0.000000e+00> : vector<32x32xf32>
    %296 = tpu.matmul %293, %294, %cst_117 {dimension_numbers = #tpu.dot_dimension_numbers<[1], [1], [0], [0], [0, 0, 1, 0], [], []>} : vector<32x4xf32>, vector<32x4xf32>, vector<32x32xf32> -> vector<32x32xf32>
    %297 = arith.addf %296, %190 : vector<32x32xf32>
    %cst_118 = arith.constant dense<0xFF800000> : vector<32xf32>
    %298 = vector.multi_reduction <maximumf>, %297, %cst_118 [1] : vector<32x32xf32> to vector<32xf32>
    %299 = vector.shape_cast %298 : vector<32xf32> to vector<32x1xf32>
    %300 = vector.broadcast %299 : vector<32x1xf32> to vector<32x32xf32>
    %301 = arith.subf %297, %300 : vector<32x32xf32>
    %302 = math.exp %301 : vector<32x32xf32>
    %cst_119 = arith.constant dense<0.000000e+00> : vector<32xf32>
    %303 = vector.multi_reduction <add>, %302, %cst_119 [1] : vector<32x32xf32> to vector<32xf32>
    %304 = vector.shape_cast %303 : vector<32xf32> to vector<32x1xf32>
    %305 = tpu.reciprocal %304 {approx = true} : vector<32x1xf32> -> vector<32x1xf32>
    %306 = vector.broadcast %305 : vector<32x1xf32> to vector<32x32xf32>
    %307 = arith.mulf %302, %306 : vector<32x32xf32>
    %cst_120 = arith.constant dense<0.000000e+00> : vector<32x4xf32>
    %308 = tpu.matmul %307, %295, %cst_120 {dimension_numbers = #tpu.dot_dimension_numbers<[1], [0], [0], [1], [0, 0, 1, 1], [], []>} : vector<32x32xf32>, vector<32x4xf32>, vector<32x4xf32> -> vector<32x4xf32>
    %309 = vector.extract_strided_slice %193 {offsets = [16, 0], sizes = [4, 32], strides = [1, 1]} : vector<32x32xf32> to vector<4x32xf32>
    %cst_121 = arith.constant dense<0.000000e+00> : vector<32x32xf32>
    %310 = tpu.matmul %308, %309, %cst_121 {dimension_numbers = #tpu.dot_dimension_numbers<[1], [0], [0], [1], [0, 0, 1, 1], [], []>} : vector<32x4xf32>, vector<4x32xf32>, vector<32x32xf32> -> vector<32x32xf32>
    %311 = arith.addf %290, %310 : vector<32x32xf32>
    %312 = vector.extract_strided_slice %205 {offsets = [0, 20], sizes = [32, 4], strides = [1, 1]} : vector<32x96xf32> to vector<32x4xf32>
    %cst_122 = arith.constant 5.000000e-01 : f32
    %313 = vector.broadcast %cst_122 : f32 to vector<32x4xf32>
    %314 = arith.mulf %312, %313 : vector<32x4xf32>
    %315 = vector.extract_strided_slice %205 {offsets = [0, 52], sizes = [32, 4], strides = [1, 1]} : vector<32x96xf32> to vector<32x4xf32>
    %316 = vector.extract_strided_slice %205 {offsets = [0, 84], sizes = [32, 4], strides = [1, 1]} : vector<32x96xf32> to vector<32x4xf32>
    %cst_123 = arith.constant dense<0.000000e+00> : vector<32x32xf32>
    %317 = tpu.matmul %314, %315, %cst_123 {dimension_numbers = #tpu.dot_dimension_numbers<[1], [1], [0], [0], [0, 0, 1, 0], [], []>} : vector<32x4xf32>, vector<32x4xf32>, vector<32x32xf32> -> vector<32x32xf32>
    %318 = arith.addf %317, %190 : vector<32x32xf32>
    %cst_124 = arith.constant dense<0xFF800000> : vector<32xf32>
    %319 = vector.multi_reduction <maximumf>, %318, %cst_124 [1] : vector<32x32xf32> to vector<32xf32>
    %320 = vector.shape_cast %319 : vector<32xf32> to vector<32x1xf32>
    %321 = vector.broadcast %320 : vector<32x1xf32> to vector<32x32xf32>
    %322 = arith.subf %318, %321 : vector<32x32xf32>
    %323 = math.exp %322 : vector<32x32xf32>
    %cst_125 = arith.constant dense<0.000000e+00> : vector<32xf32>
    %324 = vector.multi_reduction <add>, %323, %cst_125 [1] : vector<32x32xf32> to vector<32xf32>
    %325 = vector.shape_cast %324 : vector<32xf32> to vector<32x1xf32>
    %326 = tpu.reciprocal %325 {approx = true} : vector<32x1xf32> -> vector<32x1xf32>
    %327 = vector.broadcast %326 : vector<32x1xf32> to vector<32x32xf32>
    %328 = arith.mulf %323, %327 : vector<32x32xf32>
    %cst_126 = arith.constant dense<0.000000e+00> : vector<32x4xf32>
    %329 = tpu.matmul %328, %316, %cst_126 {dimension_numbers = #tpu.dot_dimension_numbers<[1], [0], [0], [1], [0, 0, 1, 1], [], []>} : vector<32x32xf32>, vector<32x4xf32>, vector<32x4xf32> -> vector<32x4xf32>
    %330 = vector.extract_strided_slice %193 {offsets = [20, 0], sizes = [4, 32], strides = [1, 1]} : vector<32x32xf32> to vector<4x32xf32>
    %cst_127 = arith.constant dense<0.000000e+00> : vector<32x32xf32>
    %331 = tpu.matmul %329, %330, %cst_127 {dimension_numbers = #tpu.dot_dimension_numbers<[1], [0], [0], [1], [0, 0, 1, 1], [], []>} : vector<32x4xf32>, vector<4x32xf32>, vector<32x32xf32> -> vector<32x32xf32>
    %332 = arith.addf %311, %331 : vector<32x32xf32>
    %333 = vector.extract_strided_slice %205 {offsets = [0, 24], sizes = [32, 4], strides = [1, 1]} : vector<32x96xf32> to vector<32x4xf32>
    %cst_128 = arith.constant 5.000000e-01 : f32
    %334 = vector.broadcast %cst_128 : f32 to vector<32x4xf32>
    %335 = arith.mulf %333, %334 : vector<32x4xf32>
    %336 = vector.extract_strided_slice %205 {offsets = [0, 56], sizes = [32, 4], strides = [1, 1]} : vector<32x96xf32> to vector<32x4xf32>
    %337 = vector.extract_strided_slice %205 {offsets = [0, 88], sizes = [32, 4], strides = [1, 1]} : vector<32x96xf32> to vector<32x4xf32>
    %cst_129 = arith.constant dense<0.000000e+00> : vector<32x32xf32>
    %338 = tpu.matmul %335, %336, %cst_129 {dimension_numbers = #tpu.dot_dimension_numbers<[1], [1], [0], [0], [0, 0, 1, 0], [], []>} : vector<32x4xf32>, vector<32x4xf32>, vector<32x32xf32> -> vector<32x32xf32>
    %339 = arith.addf %338, %190 : vector<32x32xf32>
    %cst_130 = arith.constant dense<0xFF800000> : vector<32xf32>
    %340 = vector.multi_reduction <maximumf>, %339, %cst_130 [1] : vector<32x32xf32> to vector<32xf32>
    %341 = vector.shape_cast %340 : vector<32xf32> to vector<32x1xf32>
    %342 = vector.broadcast %341 : vector<32x1xf32> to vector<32x32xf32>
    %343 = arith.subf %339, %342 : vector<32x32xf32>
    %344 = math.exp %343 : vector<32x32xf32>
    %cst_131 = arith.constant dense<0.000000e+00> : vector<32xf32>
    %345 = vector.multi_reduction <add>, %344, %cst_131 [1] : vector<32x32xf32> to vector<32xf32>
    %346 = vector.shape_cast %345 : vector<32xf32> to vector<32x1xf32>
    %347 = tpu.reciprocal %346 {approx = true} : vector<32x1xf32> -> vector<32x1xf32>
    %348 = vector.broadcast %347 : vector<32x1xf32> to vector<32x32xf32>
    %349 = arith.mulf %344, %348 : vector<32x32xf32>
    %cst_132 = arith.constant dense<0.000000e+00> : vector<32x4xf32>
    %350 = tpu.matmul %349, %337, %cst_132 {dimension_numbers = #tpu.dot_dimension_numbers<[1], [0], [0], [1], [0, 0, 1, 1], [], []>} : vector<32x32xf32>, vector<32x4xf32>, vector<32x4xf32> -> vector<32x4xf32>
    %351 = vector.extract_strided_slice %193 {offsets = [24, 0], sizes = [4, 32], strides = [1, 1]} : vector<32x32xf32> to vector<4x32xf32>
    %cst_133 = arith.constant dense<0.000000e+00> : vector<32x32xf32>
    %352 = tpu.matmul %350, %351, %cst_133 {dimension_numbers = #tpu.dot_dimension_numbers<[1], [0], [0], [1], [0, 0, 1, 1], [], []>} : vector<32x4xf32>, vector<4x32xf32>, vector<32x32xf32> -> vector<32x32xf32>
    %353 = arith.addf %332, %352 : vector<32x32xf32>
    %354 = vector.extract_strided_slice %205 {offsets = [0, 28], sizes = [32, 4], strides = [1, 1]} : vector<32x96xf32> to vector<32x4xf32>
    %cst_134 = arith.constant 5.000000e-01 : f32
    %355 = vector.broadcast %cst_134 : f32 to vector<32x4xf32>
    %356 = arith.mulf %354, %355 : vector<32x4xf32>
    %357 = vector.extract_strided_slice %205 {offsets = [0, 60], sizes = [32, 4], strides = [1, 1]} : vector<32x96xf32> to vector<32x4xf32>
    %358 = vector.extract_strided_slice %205 {offsets = [0, 92], sizes = [32, 4], strides = [1, 1]} : vector<32x96xf32> to vector<32x4xf32>
    %cst_135 = arith.constant dense<0.000000e+00> : vector<32x32xf32>
    %359 = tpu.matmul %356, %357, %cst_135 {dimension_numbers = #tpu.dot_dimension_numbers<[1], [1], [0], [0], [0, 0, 1, 0], [], []>} : vector<32x4xf32>, vector<32x4xf32>, vector<32x32xf32> -> vector<32x32xf32>
    %360 = arith.addf %359, %190 : vector<32x32xf32>
    %cst_136 = arith.constant dense<0xFF800000> : vector<32xf32>
    %361 = vector.multi_reduction <maximumf>, %360, %cst_136 [1] : vector<32x32xf32> to vector<32xf32>
    %362 = vector.shape_cast %361 : vector<32xf32> to vector<32x1xf32>
    %363 = vector.broadcast %362 : vector<32x1xf32> to vector<32x32xf32>
    %364 = arith.subf %360, %363 : vector<32x32xf32>
    %365 = math.exp %364 : vector<32x32xf32>
    %cst_137 = arith.constant dense<0.000000e+00> : vector<32xf32>
    %366 = vector.multi_reduction <add>, %365, %cst_137 [1] : vector<32x32xf32> to vector<32xf32>
    %367 = vector.shape_cast %366 : vector<32xf32> to vector<32x1xf32>
    %368 = tpu.reciprocal %367 {approx = true} : vector<32x1xf32> -> vector<32x1xf32>
    %369 = vector.broadcast %368 : vector<32x1xf32> to vector<32x32xf32>
    %370 = arith.mulf %365, %369 : vector<32x32xf32>
    %cst_138 = arith.constant dense<0.000000e+00> : vector<32x4xf32>
    %371 = tpu.matmul %370, %358, %cst_138 {dimension_numbers = #tpu.dot_dimension_numbers<[1], [0], [0], [1], [0, 0, 1, 1], [], []>} : vector<32x32xf32>, vector<32x4xf32>, vector<32x4xf32> -> vector<32x4xf32>
    %372 = vector.extract_strided_slice %193 {offsets = [28, 0], sizes = [4, 32], strides = [1, 1]} : vector<32x32xf32> to vector<4x32xf32>
    %cst_139 = arith.constant dense<0.000000e+00> : vector<32x32xf32>
    %373 = tpu.matmul %371, %372, %cst_139 {dimension_numbers = #tpu.dot_dimension_numbers<[1], [0], [0], [1], [0, 0, 1, 1], [], []>} : vector<32x4xf32>, vector<4x32xf32>, vector<32x32xf32> -> vector<32x32xf32>
    %374 = arith.addf %353, %373 : vector<32x32xf32>
    %375 = vector.broadcast %194 : vector<1x32xf32> to vector<32x32xf32>
    %376 = arith.addf %374, %375 : vector<32x32xf32>
    %377 = arith.addf %189, %376 : vector<32x32xf32>
    %cst_140 = arith.constant dense<0.000000e+00> : vector<32xf32>
    %378 = vector.multi_reduction <add>, %377, %cst_140 [1] : vector<32x32xf32> to vector<32xf32>
    %379 = vector.shape_cast %378 : vector<32xf32> to vector<32x1xf32>
    %cst_141 = arith.constant 3.200000e+01 : f32
    %380 = vector.broadcast %cst_141 : f32 to vector<32x1xf32>
    %381 = arith.divf %379, %380 : vector<32x1xf32>
    %382 = vector.broadcast %381 : vector<32x1xf32> to vector<32x32xf32>
    %383 = arith.subf %377, %382 : vector<32x32xf32>
    %384 = arith.mulf %383, %383 : vector<32x32xf32>
    %cst_142 = arith.constant dense<0.000000e+00> : vector<32xf32>
    %385 = vector.multi_reduction <add>, %384, %cst_142 [1] : vector<32x32xf32> to vector<32xf32>
    %386 = vector.shape_cast %385 : vector<32xf32> to vector<32x1xf32>
    %cst_143 = arith.constant 3.200000e+01 : f32
    %387 = vector.broadcast %cst_143 : f32 to vector<32x1xf32>
    %388 = arith.divf %386, %387 : vector<32x1xf32>
    %389 = vector.broadcast %381 : vector<32x1xf32> to vector<32x32xf32>
    %390 = arith.subf %377, %389 : vector<32x32xf32>
    %cst_144 = arith.constant 9.99999974E-6 : f32
    %391 = vector.broadcast %cst_144 : f32 to vector<32x1xf32>
    %392 = arith.addf %388, %391 : vector<32x1xf32>
    %393 = math.rsqrt %392 : vector<32x1xf32>
    %394 = vector.broadcast %393 : vector<32x1xf32> to vector<32x32xf32>
    %395 = arith.mulf %390, %394 : vector<32x32xf32>
    %396 = vector.broadcast %195 : vector<1x32xf32> to vector<32x32xf32>
    %397 = arith.mulf %395, %396 : vector<32x32xf32>
    %398 = vector.broadcast %196 : vector<1x32xf32> to vector<32x32xf32>
    %399 = arith.addf %397, %398 : vector<32x32xf32>
    %cst_145 = arith.constant dense<0.000000e+00> : vector<32x128xf32>
    %400 = tpu.matmul %399, %197, %cst_145 {dimension_numbers = #tpu.dot_dimension_numbers<[1], [0], [0], [1], [0, 0, 1, 1], [], []>} : vector<32x32xf32>, vector<32x128xf32>, vector<32x128xf32> -> vector<32x128xf32>
    %401 = vector.broadcast %198 : vector<1x128xf32> to vector<32x128xf32>
    %402 = arith.addf %400, %401 : vector<32x128xf32>
    %cst_146 = arith.constant 0.000000e+00 : f32
    %403 = vector.broadcast %cst_146 : f32 to vector<32x128xf32>
    %404 = arith.maximumf %402, %403 : vector<32x128xf32>
    %cst_147 = arith.constant dense<0.000000e+00> : vector<32x32xf32>
    %405 = tpu.matmul %404, %199, %cst_147 {dimension_numbers = #tpu.dot_dimension_numbers<[1], [0], [0], [1], [0, 0, 1, 1], [], []>} : vector<32x128xf32>, vector<128x32xf32>, vector<32x32xf32> -> vector<32x32xf32>
    %406 = vector.broadcast %200 : vector<1x32xf32> to vector<32x32xf32>
    %407 = arith.addf %405, %406 : vector<32x32xf32>
    %408 = arith.addf %399, %407 : vector<32x32xf32>
    %cst_148 = arith.constant dense<0.000000e+00> : vector<32xf32>
    %409 = vector.multi_reduction <add>, %408, %cst_148 [1] : vector<32x32xf32> to vector<32xf32>
    %410 = vector.shape_cast %409 : vector<32xf32> to vector<32x1xf32>
    %cst_149 = arith.constant 3.200000e+01 : f32
    %411 = vector.broadcast %cst_149 : f32 to vector<32x1xf32>
    %412 = arith.divf %410, %411 : vector<32x1xf32>
    %413 = vector.broadcast %412 : vector<32x1xf32> to vector<32x32xf32>
    %414 = arith.subf %408, %413 : vector<32x32xf32>
    %415 = arith.mulf %414, %414 : vector<32x32xf32>
    %cst_150 = arith.constant dense<0.000000e+00> : vector<32xf32>
    %416 = vector.multi_reduction <add>, %415, %cst_150 [1] : vector<32x32xf32> to vector<32xf32>
    %417 = vector.shape_cast %416 : vector<32xf32> to vector<32x1xf32>
    %cst_151 = arith.constant 3.200000e+01 : f32
    %418 = vector.broadcast %cst_151 : f32 to vector<32x1xf32>
    %419 = arith.divf %417, %418 : vector<32x1xf32>
    %420 = vector.broadcast %412 : vector<32x1xf32> to vector<32x32xf32>
    %421 = arith.subf %408, %420 : vector<32x32xf32>
    %cst_152 = arith.constant 9.99999974E-6 : f32
    %422 = vector.broadcast %cst_152 : f32 to vector<32x1xf32>
    %423 = arith.addf %419, %422 : vector<32x1xf32>
    %424 = math.rsqrt %423 : vector<32x1xf32>
    %425 = vector.broadcast %424 : vector<32x1xf32> to vector<32x32xf32>
    %426 = arith.mulf %421, %425 : vector<32x32xf32>
    %427 = vector.broadcast %201 : vector<1x32xf32> to vector<32x32xf32>
    %428 = arith.mulf %426, %427 : vector<32x32xf32>
    %429 = vector.broadcast %202 : vector<1x32xf32> to vector<32x32xf32>
    %430 = arith.addf %428, %429 : vector<32x32xf32>
    %c0_153 = arith.constant 0 : index
    %c0_154 = arith.constant 0 : index
    %431 = vector.load %arg17[%c0_153, %c0_154] : memref<32x96xf32, #tpu.memory_space<vmem>>, vector<32x96xf32>
    %c0_155 = arith.constant 0 : index
    %c0_156 = arith.constant 0 : index
    %432 = vector.load %arg18[%c0_155, %c0_156] : memref<1x96xf32, #tpu.memory_space<vmem>>, vector<1x96xf32>
    %c0_157 = arith.constant 0 : index
    %c0_158 = arith.constant 0 : index
    %433 = vector.load %arg19[%c0_157, %c0_158] : memref<32x32xf32, #tpu.memory_space<vmem>>, vector<32x32xf32>
    %c0_159 = arith.constant 0 : index
    %c0_160 = arith.constant 0 : index
    %434 = vector.load %arg20[%c0_159, %c0_160] : memref<1x32xf32, #tpu.memory_space<vmem>>, vector<1x32xf32>
    %c0_161 = arith.constant 0 : index
    %c0_162 = arith.constant 0 : index
    %435 = vector.load %arg21[%c0_161, %c0_162] : memref<1x32xf32, #tpu.memory_space<vmem>>, vector<1x32xf32>
    %c0_163 = arith.constant 0 : index
    %c0_164 = arith.constant 0 : index
    %436 = vector.load %arg22[%c0_163, %c0_164] : memref<1x32xf32, #tpu.memory_space<vmem>>, vector<1x32xf32>
    %c0_165 = arith.constant 0 : index
    %c0_166 = arith.constant 0 : index
    %437 = vector.load %arg23[%c0_165, %c0_166] : memref<32x128xf32, #tpu.memory_space<vmem>>, vector<32x128xf32>
    %c0_167 = arith.constant 0 : index
    %c0_168 = arith.constant 0 : index
    %438 = vector.load %arg24[%c0_167, %c0_168] : memref<1x128xf32, #tpu.memory_space<vmem>>, vector<1x128xf32>
    %c0_169 = arith.constant 0 : index
    %c0_170 = arith.constant 0 : index
    %439 = vector.load %arg25[%c0_169, %c0_170] : memref<128x32xf32, #tpu.memory_space<vmem>>, vector<128x32xf32>
    %c0_171 = arith.constant 0 : index
    %c0_172 = arith.constant 0 : index
    %440 = vector.load %arg26[%c0_171, %c0_172] : memref<1x32xf32, #tpu.memory_space<vmem>>, vector<1x32xf32>
    %c0_173 = arith.constant 0 : index
    %c0_174 = arith.constant 0 : index
    %441 = vector.load %arg27[%c0_173, %c0_174] : memref<1x32xf32, #tpu.memory_space<vmem>>, vector<1x32xf32>
    %c0_175 = arith.constant 0 : index
    %c0_176 = arith.constant 0 : index
    %442 = vector.load %arg28[%c0_175, %c0_176] : memref<1x32xf32, #tpu.memory_space<vmem>>, vector<1x32xf32>
    %cst_177 = arith.constant dense<0.000000e+00> : vector<32x96xf32>
    %443 = tpu.matmul %430, %431, %cst_177 {dimension_numbers = #tpu.dot_dimension_numbers<[1], [0], [0], [1], [0, 0, 1, 1], [], []>} : vector<32x32xf32>, vector<32x96xf32>, vector<32x96xf32> -> vector<32x96xf32>
    %444 = vector.broadcast %432 : vector<1x96xf32> to vector<32x96xf32>
    %445 = arith.addf %443, %444 : vector<32x96xf32>
    %cst_178 = arith.constant 0.000000e+00 : f32
    %446 = vector.broadcast %cst_178 : f32 to vector<32x32xf32>
    %447 = vector.extract_strided_slice %445 {offsets = [0, 0], sizes = [32, 4], strides = [1, 1]} : vector<32x96xf32> to vector<32x4xf32>
    %cst_179 = arith.constant 5.000000e-01 : f32
    %448 = vector.broadcast %cst_179 : f32 to vector<32x4xf32>
    %449 = arith.mulf %447, %448 : vector<32x4xf32>
    %450 = vector.extract_strided_slice %445 {offsets = [0, 32], sizes = [32, 4], strides = [1, 1]} : vector<32x96xf32> to vector<32x4xf32>
    %451 = vector.extract_strided_slice %445 {offsets = [0, 64], sizes = [32, 4], strides = [1, 1]} : vector<32x96xf32> to vector<32x4xf32>
    %cst_180 = arith.constant dense<0.000000e+00> : vector<32x32xf32>
    %452 = tpu.matmul %449, %450, %cst_180 {dimension_numbers = #tpu.dot_dimension_numbers<[1], [1], [0], [0], [0, 0, 1, 0], [], []>} : vector<32x4xf32>, vector<32x4xf32>, vector<32x32xf32> -> vector<32x32xf32>
    %453 = arith.addf %452, %190 : vector<32x32xf32>
    %cst_181 = arith.constant dense<0xFF800000> : vector<32xf32>
    %454 = vector.multi_reduction <maximumf>, %453, %cst_181 [1] : vector<32x32xf32> to vector<32xf32>
    %455 = vector.shape_cast %454 : vector<32xf32> to vector<32x1xf32>
    %456 = vector.broadcast %455 : vector<32x1xf32> to vector<32x32xf32>
    %457 = arith.subf %453, %456 : vector<32x32xf32>
    %458 = math.exp %457 : vector<32x32xf32>
    %cst_182 = arith.constant dense<0.000000e+00> : vector<32xf32>
    %459 = vector.multi_reduction <add>, %458, %cst_182 [1] : vector<32x32xf32> to vector<32xf32>
    %460 = vector.shape_cast %459 : vector<32xf32> to vector<32x1xf32>
    %461 = tpu.reciprocal %460 {approx = true} : vector<32x1xf32> -> vector<32x1xf32>
    %462 = vector.broadcast %461 : vector<32x1xf32> to vector<32x32xf32>
    %463 = arith.mulf %458, %462 : vector<32x32xf32>
    %cst_183 = arith.constant dense<0.000000e+00> : vector<32x4xf32>
    %464 = tpu.matmul %463, %451, %cst_183 {dimension_numbers = #tpu.dot_dimension_numbers<[1], [0], [0], [1], [0, 0, 1, 1], [], []>} : vector<32x32xf32>, vector<32x4xf32>, vector<32x4xf32> -> vector<32x4xf32>
    %465 = vector.extract_strided_slice %433 {offsets = [0, 0], sizes = [4, 32], strides = [1, 1]} : vector<32x32xf32> to vector<4x32xf32>
    %cst_184 = arith.constant dense<0.000000e+00> : vector<32x32xf32>
    %466 = tpu.matmul %464, %465, %cst_184 {dimension_numbers = #tpu.dot_dimension_numbers<[1], [0], [0], [1], [0, 0, 1, 1], [], []>} : vector<32x4xf32>, vector<4x32xf32>, vector<32x32xf32> -> vector<32x32xf32>
    %467 = arith.addf %446, %466 : vector<32x32xf32>
    %468 = vector.extract_strided_slice %445 {offsets = [0, 4], sizes = [32, 4], strides = [1, 1]} : vector<32x96xf32> to vector<32x4xf32>
    %cst_185 = arith.constant 5.000000e-01 : f32
    %469 = vector.broadcast %cst_185 : f32 to vector<32x4xf32>
    %470 = arith.mulf %468, %469 : vector<32x4xf32>
    %471 = vector.extract_strided_slice %445 {offsets = [0, 36], sizes = [32, 4], strides = [1, 1]} : vector<32x96xf32> to vector<32x4xf32>
    %472 = vector.extract_strided_slice %445 {offsets = [0, 68], sizes = [32, 4], strides = [1, 1]} : vector<32x96xf32> to vector<32x4xf32>
    %cst_186 = arith.constant dense<0.000000e+00> : vector<32x32xf32>
    %473 = tpu.matmul %470, %471, %cst_186 {dimension_numbers = #tpu.dot_dimension_numbers<[1], [1], [0], [0], [0, 0, 1, 0], [], []>} : vector<32x4xf32>, vector<32x4xf32>, vector<32x32xf32> -> vector<32x32xf32>
    %474 = arith.addf %473, %190 : vector<32x32xf32>
    %cst_187 = arith.constant dense<0xFF800000> : vector<32xf32>
    %475 = vector.multi_reduction <maximumf>, %474, %cst_187 [1] : vector<32x32xf32> to vector<32xf32>
    %476 = vector.shape_cast %475 : vector<32xf32> to vector<32x1xf32>
    %477 = vector.broadcast %476 : vector<32x1xf32> to vector<32x32xf32>
    %478 = arith.subf %474, %477 : vector<32x32xf32>
    %479 = math.exp %478 : vector<32x32xf32>
    %cst_188 = arith.constant dense<0.000000e+00> : vector<32xf32>
    %480 = vector.multi_reduction <add>, %479, %cst_188 [1] : vector<32x32xf32> to vector<32xf32>
    %481 = vector.shape_cast %480 : vector<32xf32> to vector<32x1xf32>
    %482 = tpu.reciprocal %481 {approx = true} : vector<32x1xf32> -> vector<32x1xf32>
    %483 = vector.broadcast %482 : vector<32x1xf32> to vector<32x32xf32>
    %484 = arith.mulf %479, %483 : vector<32x32xf32>
    %cst_189 = arith.constant dense<0.000000e+00> : vector<32x4xf32>
    %485 = tpu.matmul %484, %472, %cst_189 {dimension_numbers = #tpu.dot_dimension_numbers<[1], [0], [0], [1], [0, 0, 1, 1], [], []>} : vector<32x32xf32>, vector<32x4xf32>, vector<32x4xf32> -> vector<32x4xf32>
    %486 = vector.extract_strided_slice %433 {offsets = [4, 0], sizes = [4, 32], strides = [1, 1]} : vector<32x32xf32> to vector<4x32xf32>
    %cst_190 = arith.constant dense<0.000000e+00> : vector<32x32xf32>
    %487 = tpu.matmul %485, %486, %cst_190 {dimension_numbers = #tpu.dot_dimension_numbers<[1], [0], [0], [1], [0, 0, 1, 1], [], []>} : vector<32x4xf32>, vector<4x32xf32>, vector<32x32xf32> -> vector<32x32xf32>
    %488 = arith.addf %467, %487 : vector<32x32xf32>
    %489 = vector.extract_strided_slice %445 {offsets = [0, 8], sizes = [32, 4], strides = [1, 1]} : vector<32x96xf32> to vector<32x4xf32>
    %cst_191 = arith.constant 5.000000e-01 : f32
    %490 = vector.broadcast %cst_191 : f32 to vector<32x4xf32>
    %491 = arith.mulf %489, %490 : vector<32x4xf32>
    %492 = vector.extract_strided_slice %445 {offsets = [0, 40], sizes = [32, 4], strides = [1, 1]} : vector<32x96xf32> to vector<32x4xf32>
    %493 = vector.extract_strided_slice %445 {offsets = [0, 72], sizes = [32, 4], strides = [1, 1]} : vector<32x96xf32> to vector<32x4xf32>
    %cst_192 = arith.constant dense<0.000000e+00> : vector<32x32xf32>
    %494 = tpu.matmul %491, %492, %cst_192 {dimension_numbers = #tpu.dot_dimension_numbers<[1], [1], [0], [0], [0, 0, 1, 0], [], []>} : vector<32x4xf32>, vector<32x4xf32>, vector<32x32xf32> -> vector<32x32xf32>
    %495 = arith.addf %494, %190 : vector<32x32xf32>
    %cst_193 = arith.constant dense<0xFF800000> : vector<32xf32>
    %496 = vector.multi_reduction <maximumf>, %495, %cst_193 [1] : vector<32x32xf32> to vector<32xf32>
    %497 = vector.shape_cast %496 : vector<32xf32> to vector<32x1xf32>
    %498 = vector.broadcast %497 : vector<32x1xf32> to vector<32x32xf32>
    %499 = arith.subf %495, %498 : vector<32x32xf32>
    %500 = math.exp %499 : vector<32x32xf32>
    %cst_194 = arith.constant dense<0.000000e+00> : vector<32xf32>
    %501 = vector.multi_reduction <add>, %500, %cst_194 [1] : vector<32x32xf32> to vector<32xf32>
    %502 = vector.shape_cast %501 : vector<32xf32> to vector<32x1xf32>
    %503 = tpu.reciprocal %502 {approx = true} : vector<32x1xf32> -> vector<32x1xf32>
    %504 = vector.broadcast %503 : vector<32x1xf32> to vector<32x32xf32>
    %505 = arith.mulf %500, %504 : vector<32x32xf32>
    %cst_195 = arith.constant dense<0.000000e+00> : vector<32x4xf32>
    %506 = tpu.matmul %505, %493, %cst_195 {dimension_numbers = #tpu.dot_dimension_numbers<[1], [0], [0], [1], [0, 0, 1, 1], [], []>} : vector<32x32xf32>, vector<32x4xf32>, vector<32x4xf32> -> vector<32x4xf32>
    %507 = vector.extract_strided_slice %433 {offsets = [8, 0], sizes = [4, 32], strides = [1, 1]} : vector<32x32xf32> to vector<4x32xf32>
    %cst_196 = arith.constant dense<0.000000e+00> : vector<32x32xf32>
    %508 = tpu.matmul %506, %507, %cst_196 {dimension_numbers = #tpu.dot_dimension_numbers<[1], [0], [0], [1], [0, 0, 1, 1], [], []>} : vector<32x4xf32>, vector<4x32xf32>, vector<32x32xf32> -> vector<32x32xf32>
    %509 = arith.addf %488, %508 : vector<32x32xf32>
    %510 = vector.extract_strided_slice %445 {offsets = [0, 12], sizes = [32, 4], strides = [1, 1]} : vector<32x96xf32> to vector<32x4xf32>
    %cst_197 = arith.constant 5.000000e-01 : f32
    %511 = vector.broadcast %cst_197 : f32 to vector<32x4xf32>
    %512 = arith.mulf %510, %511 : vector<32x4xf32>
    %513 = vector.extract_strided_slice %445 {offsets = [0, 44], sizes = [32, 4], strides = [1, 1]} : vector<32x96xf32> to vector<32x4xf32>
    %514 = vector.extract_strided_slice %445 {offsets = [0, 76], sizes = [32, 4], strides = [1, 1]} : vector<32x96xf32> to vector<32x4xf32>
    %cst_198 = arith.constant dense<0.000000e+00> : vector<32x32xf32>
    %515 = tpu.matmul %512, %513, %cst_198 {dimension_numbers = #tpu.dot_dimension_numbers<[1], [1], [0], [0], [0, 0, 1, 0], [], []>} : vector<32x4xf32>, vector<32x4xf32>, vector<32x32xf32> -> vector<32x32xf32>
    %516 = arith.addf %515, %190 : vector<32x32xf32>
    %cst_199 = arith.constant dense<0xFF800000> : vector<32xf32>
    %517 = vector.multi_reduction <maximumf>, %516, %cst_199 [1] : vector<32x32xf32> to vector<32xf32>
    %518 = vector.shape_cast %517 : vector<32xf32> to vector<32x1xf32>
    %519 = vector.broadcast %518 : vector<32x1xf32> to vector<32x32xf32>
    %520 = arith.subf %516, %519 : vector<32x32xf32>
    %521 = math.exp %520 : vector<32x32xf32>
    %cst_200 = arith.constant dense<0.000000e+00> : vector<32xf32>
    %522 = vector.multi_reduction <add>, %521, %cst_200 [1] : vector<32x32xf32> to vector<32xf32>
    %523 = vector.shape_cast %522 : vector<32xf32> to vector<32x1xf32>
    %524 = tpu.reciprocal %523 {approx = true} : vector<32x1xf32> -> vector<32x1xf32>
    %525 = vector.broadcast %524 : vector<32x1xf32> to vector<32x32xf32>
    %526 = arith.mulf %521, %525 : vector<32x32xf32>
    %cst_201 = arith.constant dense<0.000000e+00> : vector<32x4xf32>
    %527 = tpu.matmul %526, %514, %cst_201 {dimension_numbers = #tpu.dot_dimension_numbers<[1], [0], [0], [1], [0, 0, 1, 1], [], []>} : vector<32x32xf32>, vector<32x4xf32>, vector<32x4xf32> -> vector<32x4xf32>
    %528 = vector.extract_strided_slice %433 {offsets = [12, 0], sizes = [4, 32], strides = [1, 1]} : vector<32x32xf32> to vector<4x32xf32>
    %cst_202 = arith.constant dense<0.000000e+00> : vector<32x32xf32>
    %529 = tpu.matmul %527, %528, %cst_202 {dimension_numbers = #tpu.dot_dimension_numbers<[1], [0], [0], [1], [0, 0, 1, 1], [], []>} : vector<32x4xf32>, vector<4x32xf32>, vector<32x32xf32> -> vector<32x32xf32>
    %530 = arith.addf %509, %529 : vector<32x32xf32>
    %531 = vector.extract_strided_slice %445 {offsets = [0, 16], sizes = [32, 4], strides = [1, 1]} : vector<32x96xf32> to vector<32x4xf32>
    %cst_203 = arith.constant 5.000000e-01 : f32
    %532 = vector.broadcast %cst_203 : f32 to vector<32x4xf32>
    %533 = arith.mulf %531, %532 : vector<32x4xf32>
    %534 = vector.extract_strided_slice %445 {offsets = [0, 48], sizes = [32, 4], strides = [1, 1]} : vector<32x96xf32> to vector<32x4xf32>
    %535 = vector.extract_strided_slice %445 {offsets = [0, 80], sizes = [32, 4], strides = [1, 1]} : vector<32x96xf32> to vector<32x4xf32>
    %cst_204 = arith.constant dense<0.000000e+00> : vector<32x32xf32>
    %536 = tpu.matmul %533, %534, %cst_204 {dimension_numbers = #tpu.dot_dimension_numbers<[1], [1], [0], [0], [0, 0, 1, 0], [], []>} : vector<32x4xf32>, vector<32x4xf32>, vector<32x32xf32> -> vector<32x32xf32>
    %537 = arith.addf %536, %190 : vector<32x32xf32>
    %cst_205 = arith.constant dense<0xFF800000> : vector<32xf32>
    %538 = vector.multi_reduction <maximumf>, %537, %cst_205 [1] : vector<32x32xf32> to vector<32xf32>
    %539 = vector.shape_cast %538 : vector<32xf32> to vector<32x1xf32>
    %540 = vector.broadcast %539 : vector<32x1xf32> to vector<32x32xf32>
    %541 = arith.subf %537, %540 : vector<32x32xf32>
    %542 = math.exp %541 : vector<32x32xf32>
    %cst_206 = arith.constant dense<0.000000e+00> : vector<32xf32>
    %543 = vector.multi_reduction <add>, %542, %cst_206 [1] : vector<32x32xf32> to vector<32xf32>
    %544 = vector.shape_cast %543 : vector<32xf32> to vector<32x1xf32>
    %545 = tpu.reciprocal %544 {approx = true} : vector<32x1xf32> -> vector<32x1xf32>
    %546 = vector.broadcast %545 : vector<32x1xf32> to vector<32x32xf32>
    %547 = arith.mulf %542, %546 : vector<32x32xf32>
    %cst_207 = arith.constant dense<0.000000e+00> : vector<32x4xf32>
    %548 = tpu.matmul %547, %535, %cst_207 {dimension_numbers = #tpu.dot_dimension_numbers<[1], [0], [0], [1], [0, 0, 1, 1], [], []>} : vector<32x32xf32>, vector<32x4xf32>, vector<32x4xf32> -> vector<32x4xf32>
    %549 = vector.extract_strided_slice %433 {offsets = [16, 0], sizes = [4, 32], strides = [1, 1]} : vector<32x32xf32> to vector<4x32xf32>
    %cst_208 = arith.constant dense<0.000000e+00> : vector<32x32xf32>
    %550 = tpu.matmul %548, %549, %cst_208 {dimension_numbers = #tpu.dot_dimension_numbers<[1], [0], [0], [1], [0, 0, 1, 1], [], []>} : vector<32x4xf32>, vector<4x32xf32>, vector<32x32xf32> -> vector<32x32xf32>
    %551 = arith.addf %530, %550 : vector<32x32xf32>
    %552 = vector.extract_strided_slice %445 {offsets = [0, 20], sizes = [32, 4], strides = [1, 1]} : vector<32x96xf32> to vector<32x4xf32>
    %cst_209 = arith.constant 5.000000e-01 : f32
    %553 = vector.broadcast %cst_209 : f32 to vector<32x4xf32>
    %554 = arith.mulf %552, %553 : vector<32x4xf32>
    %555 = vector.extract_strided_slice %445 {offsets = [0, 52], sizes = [32, 4], strides = [1, 1]} : vector<32x96xf32> to vector<32x4xf32>
    %556 = vector.extract_strided_slice %445 {offsets = [0, 84], sizes = [32, 4], strides = [1, 1]} : vector<32x96xf32> to vector<32x4xf32>
    %cst_210 = arith.constant dense<0.000000e+00> : vector<32x32xf32>
    %557 = tpu.matmul %554, %555, %cst_210 {dimension_numbers = #tpu.dot_dimension_numbers<[1], [1], [0], [0], [0, 0, 1, 0], [], []>} : vector<32x4xf32>, vector<32x4xf32>, vector<32x32xf32> -> vector<32x32xf32>
    %558 = arith.addf %557, %190 : vector<32x32xf32>
    %cst_211 = arith.constant dense<0xFF800000> : vector<32xf32>
    %559 = vector.multi_reduction <maximumf>, %558, %cst_211 [1] : vector<32x32xf32> to vector<32xf32>
    %560 = vector.shape_cast %559 : vector<32xf32> to vector<32x1xf32>
    %561 = vector.broadcast %560 : vector<32x1xf32> to vector<32x32xf32>
    %562 = arith.subf %558, %561 : vector<32x32xf32>
    %563 = math.exp %562 : vector<32x32xf32>
    %cst_212 = arith.constant dense<0.000000e+00> : vector<32xf32>
    %564 = vector.multi_reduction <add>, %563, %cst_212 [1] : vector<32x32xf32> to vector<32xf32>
    %565 = vector.shape_cast %564 : vector<32xf32> to vector<32x1xf32>
    %566 = tpu.reciprocal %565 {approx = true} : vector<32x1xf32> -> vector<32x1xf32>
    %567 = vector.broadcast %566 : vector<32x1xf32> to vector<32x32xf32>
    %568 = arith.mulf %563, %567 : vector<32x32xf32>
    %cst_213 = arith.constant dense<0.000000e+00> : vector<32x4xf32>
    %569 = tpu.matmul %568, %556, %cst_213 {dimension_numbers = #tpu.dot_dimension_numbers<[1], [0], [0], [1], [0, 0, 1, 1], [], []>} : vector<32x32xf32>, vector<32x4xf32>, vector<32x4xf32> -> vector<32x4xf32>
    %570 = vector.extract_strided_slice %433 {offsets = [20, 0], sizes = [4, 32], strides = [1, 1]} : vector<32x32xf32> to vector<4x32xf32>
    %cst_214 = arith.constant dense<0.000000e+00> : vector<32x32xf32>
    %571 = tpu.matmul %569, %570, %cst_214 {dimension_numbers = #tpu.dot_dimension_numbers<[1], [0], [0], [1], [0, 0, 1, 1], [], []>} : vector<32x4xf32>, vector<4x32xf32>, vector<32x32xf32> -> vector<32x32xf32>
    %572 = arith.addf %551, %571 : vector<32x32xf32>
    %573 = vector.extract_strided_slice %445 {offsets = [0, 24], sizes = [32, 4], strides = [1, 1]} : vector<32x96xf32> to vector<32x4xf32>
    %cst_215 = arith.constant 5.000000e-01 : f32
    %574 = vector.broadcast %cst_215 : f32 to vector<32x4xf32>
    %575 = arith.mulf %573, %574 : vector<32x4xf32>
    %576 = vector.extract_strided_slice %445 {offsets = [0, 56], sizes = [32, 4], strides = [1, 1]} : vector<32x96xf32> to vector<32x4xf32>
    %577 = vector.extract_strided_slice %445 {offsets = [0, 88], sizes = [32, 4], strides = [1, 1]} : vector<32x96xf32> to vector<32x4xf32>
    %cst_216 = arith.constant dense<0.000000e+00> : vector<32x32xf32>
    %578 = tpu.matmul %575, %576, %cst_216 {dimension_numbers = #tpu.dot_dimension_numbers<[1], [1], [0], [0], [0, 0, 1, 0], [], []>} : vector<32x4xf32>, vector<32x4xf32>, vector<32x32xf32> -> vector<32x32xf32>
    %579 = arith.addf %578, %190 : vector<32x32xf32>
    %cst_217 = arith.constant dense<0xFF800000> : vector<32xf32>
    %580 = vector.multi_reduction <maximumf>, %579, %cst_217 [1] : vector<32x32xf32> to vector<32xf32>
    %581 = vector.shape_cast %580 : vector<32xf32> to vector<32x1xf32>
    %582 = vector.broadcast %581 : vector<32x1xf32> to vector<32x32xf32>
    %583 = arith.subf %579, %582 : vector<32x32xf32>
    %584 = math.exp %583 : vector<32x32xf32>
    %cst_218 = arith.constant dense<0.000000e+00> : vector<32xf32>
    %585 = vector.multi_reduction <add>, %584, %cst_218 [1] : vector<32x32xf32> to vector<32xf32>
    %586 = vector.shape_cast %585 : vector<32xf32> to vector<32x1xf32>
    %587 = tpu.reciprocal %586 {approx = true} : vector<32x1xf32> -> vector<32x1xf32>
    %588 = vector.broadcast %587 : vector<32x1xf32> to vector<32x32xf32>
    %589 = arith.mulf %584, %588 : vector<32x32xf32>
    %cst_219 = arith.constant dense<0.000000e+00> : vector<32x4xf32>
    %590 = tpu.matmul %589, %577, %cst_219 {dimension_numbers = #tpu.dot_dimension_numbers<[1], [0], [0], [1], [0, 0, 1, 1], [], []>} : vector<32x32xf32>, vector<32x4xf32>, vector<32x4xf32> -> vector<32x4xf32>
    %591 = vector.extract_strided_slice %433 {offsets = [24, 0], sizes = [4, 32], strides = [1, 1]} : vector<32x32xf32> to vector<4x32xf32>
    %cst_220 = arith.constant dense<0.000000e+00> : vector<32x32xf32>
    %592 = tpu.matmul %590, %591, %cst_220 {dimension_numbers = #tpu.dot_dimension_numbers<[1], [0], [0], [1], [0, 0, 1, 1], [], []>} : vector<32x4xf32>, vector<4x32xf32>, vector<32x32xf32> -> vector<32x32xf32>
    %593 = arith.addf %572, %592 : vector<32x32xf32>
    %594 = vector.extract_strided_slice %445 {offsets = [0, 28], sizes = [32, 4], strides = [1, 1]} : vector<32x96xf32> to vector<32x4xf32>
    %cst_221 = arith.constant 5.000000e-01 : f32
    %595 = vector.broadcast %cst_221 : f32 to vector<32x4xf32>
    %596 = arith.mulf %594, %595 : vector<32x4xf32>
    %597 = vector.extract_strided_slice %445 {offsets = [0, 60], sizes = [32, 4], strides = [1, 1]} : vector<32x96xf32> to vector<32x4xf32>
    %598 = vector.extract_strided_slice %445 {offsets = [0, 92], sizes = [32, 4], strides = [1, 1]} : vector<32x96xf32> to vector<32x4xf32>
    %cst_222 = arith.constant dense<0.000000e+00> : vector<32x32xf32>
    %599 = tpu.matmul %596, %597, %cst_222 {dimension_numbers = #tpu.dot_dimension_numbers<[1], [1], [0], [0], [0, 0, 1, 0], [], []>} : vector<32x4xf32>, vector<32x4xf32>, vector<32x32xf32> -> vector<32x32xf32>
    %600 = arith.addf %599, %190 : vector<32x32xf32>
    %cst_223 = arith.constant dense<0xFF800000> : vector<32xf32>
    %601 = vector.multi_reduction <maximumf>, %600, %cst_223 [1] : vector<32x32xf32> to vector<32xf32>
    %602 = vector.shape_cast %601 : vector<32xf32> to vector<32x1xf32>
    %603 = vector.broadcast %602 : vector<32x1xf32> to vector<32x32xf32>
    %604 = arith.subf %600, %603 : vector<32x32xf32>
    %605 = math.exp %604 : vector<32x32xf32>
    %cst_224 = arith.constant dense<0.000000e+00> : vector<32xf32>
    %606 = vector.multi_reduction <add>, %605, %cst_224 [1] : vector<32x32xf32> to vector<32xf32>
    %607 = vector.shape_cast %606 : vector<32xf32> to vector<32x1xf32>
    %608 = tpu.reciprocal %607 {approx = true} : vector<32x1xf32> -> vector<32x1xf32>
    %609 = vector.broadcast %608 : vector<32x1xf32> to vector<32x32xf32>
    %610 = arith.mulf %605, %609 : vector<32x32xf32>
    %cst_225 = arith.constant dense<0.000000e+00> : vector<32x4xf32>
    %611 = tpu.matmul %610, %598, %cst_225 {dimension_numbers = #tpu.dot_dimension_numbers<[1], [0], [0], [1], [0, 0, 1, 1], [], []>} : vector<32x32xf32>, vector<32x4xf32>, vector<32x4xf32> -> vector<32x4xf32>
    %612 = vector.extract_strided_slice %433 {offsets = [28, 0], sizes = [4, 32], strides = [1, 1]} : vector<32x32xf32> to vector<4x32xf32>
    %cst_226 = arith.constant dense<0.000000e+00> : vector<32x32xf32>
    %613 = tpu.matmul %611, %612, %cst_226 {dimension_numbers = #tpu.dot_dimension_numbers<[1], [0], [0], [1], [0, 0, 1, 1], [], []>} : vector<32x4xf32>, vector<4x32xf32>, vector<32x32xf32> -> vector<32x32xf32>
    %614 = arith.addf %593, %613 : vector<32x32xf32>
    %615 = vector.broadcast %434 : vector<1x32xf32> to vector<32x32xf32>
    %616 = arith.addf %614, %615 : vector<32x32xf32>
    %617 = arith.addf %430, %616 : vector<32x32xf32>
    %cst_227 = arith.constant dense<0.000000e+00> : vector<32xf32>
    %618 = vector.multi_reduction <add>, %617, %cst_227 [1] : vector<32x32xf32> to vector<32xf32>
    %619 = vector.shape_cast %618 : vector<32xf32> to vector<32x1xf32>
    %cst_228 = arith.constant 3.200000e+01 : f32
    %620 = vector.broadcast %cst_228 : f32 to vector<32x1xf32>
    %621 = arith.divf %619, %620 : vector<32x1xf32>
    %622 = vector.broadcast %621 : vector<32x1xf32> to vector<32x32xf32>
    %623 = arith.subf %617, %622 : vector<32x32xf32>
    %624 = arith.mulf %623, %623 : vector<32x32xf32>
    %cst_229 = arith.constant dense<0.000000e+00> : vector<32xf32>
    %625 = vector.multi_reduction <add>, %624, %cst_229 [1] : vector<32x32xf32> to vector<32xf32>
    %626 = vector.shape_cast %625 : vector<32xf32> to vector<32x1xf32>
    %cst_230 = arith.constant 3.200000e+01 : f32
    %627 = vector.broadcast %cst_230 : f32 to vector<32x1xf32>
    %628 = arith.divf %626, %627 : vector<32x1xf32>
    %629 = vector.broadcast %621 : vector<32x1xf32> to vector<32x32xf32>
    %630 = arith.subf %617, %629 : vector<32x32xf32>
    %cst_231 = arith.constant 9.99999974E-6 : f32
    %631 = vector.broadcast %cst_231 : f32 to vector<32x1xf32>
    %632 = arith.addf %628, %631 : vector<32x1xf32>
    %633 = math.rsqrt %632 : vector<32x1xf32>
    %634 = vector.broadcast %633 : vector<32x1xf32> to vector<32x32xf32>
    %635 = arith.mulf %630, %634 : vector<32x32xf32>
    %636 = vector.broadcast %435 : vector<1x32xf32> to vector<32x32xf32>
    %637 = arith.mulf %635, %636 : vector<32x32xf32>
    %638 = vector.broadcast %436 : vector<1x32xf32> to vector<32x32xf32>
    %639 = arith.addf %637, %638 : vector<32x32xf32>
    %cst_232 = arith.constant dense<0.000000e+00> : vector<32x128xf32>
    %640 = tpu.matmul %639, %437, %cst_232 {dimension_numbers = #tpu.dot_dimension_numbers<[1], [0], [0], [1], [0, 0, 1, 1], [], []>} : vector<32x32xf32>, vector<32x128xf32>, vector<32x128xf32> -> vector<32x128xf32>
    %641 = vector.broadcast %438 : vector<1x128xf32> to vector<32x128xf32>
    %642 = arith.addf %640, %641 : vector<32x128xf32>
    %cst_233 = arith.constant 0.000000e+00 : f32
    %643 = vector.broadcast %cst_233 : f32 to vector<32x128xf32>
    %644 = arith.maximumf %642, %643 : vector<32x128xf32>
    %cst_234 = arith.constant dense<0.000000e+00> : vector<32x32xf32>
    %645 = tpu.matmul %644, %439, %cst_234 {dimension_numbers = #tpu.dot_dimension_numbers<[1], [0], [0], [1], [0, 0, 1, 1], [], []>} : vector<32x128xf32>, vector<128x32xf32>, vector<32x32xf32> -> vector<32x32xf32>
    %646 = vector.broadcast %440 : vector<1x32xf32> to vector<32x32xf32>
    %647 = arith.addf %645, %646 : vector<32x32xf32>
    %648 = arith.addf %639, %647 : vector<32x32xf32>
    %cst_235 = arith.constant dense<0.000000e+00> : vector<32xf32>
    %649 = vector.multi_reduction <add>, %648, %cst_235 [1] : vector<32x32xf32> to vector<32xf32>
    %650 = vector.shape_cast %649 : vector<32xf32> to vector<32x1xf32>
    %cst_236 = arith.constant 3.200000e+01 : f32
    %651 = vector.broadcast %cst_236 : f32 to vector<32x1xf32>
    %652 = arith.divf %650, %651 : vector<32x1xf32>
    %653 = vector.broadcast %652 : vector<32x1xf32> to vector<32x32xf32>
    %654 = arith.subf %648, %653 : vector<32x32xf32>
    %655 = arith.mulf %654, %654 : vector<32x32xf32>
    %cst_237 = arith.constant dense<0.000000e+00> : vector<32xf32>
    %656 = vector.multi_reduction <add>, %655, %cst_237 [1] : vector<32x32xf32> to vector<32xf32>
    %657 = vector.shape_cast %656 : vector<32xf32> to vector<32x1xf32>
    %cst_238 = arith.constant 3.200000e+01 : f32
    %658 = vector.broadcast %cst_238 : f32 to vector<32x1xf32>
    %659 = arith.divf %657, %658 : vector<32x1xf32>
    %660 = vector.broadcast %652 : vector<32x1xf32> to vector<32x32xf32>
    %661 = arith.subf %648, %660 : vector<32x32xf32>
    %cst_239 = arith.constant 9.99999974E-6 : f32
    %662 = vector.broadcast %cst_239 : f32 to vector<32x1xf32>
    %663 = arith.addf %659, %662 : vector<32x1xf32>
    %664 = math.rsqrt %663 : vector<32x1xf32>
    %665 = vector.broadcast %664 : vector<32x1xf32> to vector<32x32xf32>
    %666 = arith.mulf %661, %665 : vector<32x32xf32>
    %667 = vector.broadcast %441 : vector<1x32xf32> to vector<32x32xf32>
    %668 = arith.mulf %666, %667 : vector<32x32xf32>
    %669 = vector.broadcast %442 : vector<1x32xf32> to vector<32x32xf32>
    %670 = arith.addf %668, %669 : vector<32x32xf32>
    %c0_240 = arith.constant 0 : index
    %c0_241 = arith.constant 0 : index
    %671 = vector.load %arg33[%c0_240, %c0_241] : memref<32x32xf32, #tpu.memory_space<vmem>>, vector<32x32xf32>
    %cst_242 = arith.constant dense<0.000000e+00> : vector<4x32xf32>
    %672 = tpu.matmul %185, %671, %cst_242 {dimension_numbers = #tpu.dot_dimension_numbers<[1], [0], [0], [1], [0, 0, 1, 1], [], []>} : vector<4x32xf32>, vector<32x32xf32>, vector<4x32xf32> -> vector<4x32xf32>
    %c0_243 = arith.constant 0 : index
    %c0_244 = arith.constant 0 : index
    %673 = vector.load %arg4[%c0_243, %c0_244] : memref<32x4xf32, #tpu.memory_space<vmem>>, vector<32x4xf32>
    %cst_245 = arith.constant dense<0.000000e+00> : vector<32x32xf32>
    %674 = tpu.matmul %673, %672, %cst_245 {dimension_numbers = #tpu.dot_dimension_numbers<[1], [0], [0], [1], [0, 0, 1, 1], [], []>} : vector<32x4xf32>, vector<4x32xf32>, vector<32x32xf32> -> vector<32x32xf32>
    %c0_246 = arith.constant 0 : index
    %c0_247 = arith.constant 0 : index
    %675 = vector.load %arg32[%c0_246, %c0_247] : memref<32x32xf32, #tpu.memory_space<vmem>>, vector<32x32xf32>
    %cst_248 = arith.constant dense<0.000000e+00> : vector<32x32xf32>
    %676 = tpu.matmul %670, %675, %cst_248 {dimension_numbers = #tpu.dot_dimension_numbers<[1], [0], [0], [1], [0, 0, 1, 1], [], []>} : vector<32x32xf32>, vector<32x32xf32>, vector<32x32xf32> -> vector<32x32xf32>
    %677 = arith.addf %676, %674 : vector<32x32xf32>
    %c0_249 = arith.constant 0 : index
    %c0_250 = arith.constant 0 : index
    %678 = vector.load %arg34[%c0_249, %c0_250] : memref<1x32xf32, #tpu.memory_space<vmem>>, vector<1x32xf32>
    %679 = vector.broadcast %678 : vector<1x32xf32> to vector<32x32xf32>
    %680 = arith.addf %677, %679 : vector<32x32xf32>
    %cst_251 = arith.constant 0.000000e+00 : f32
    %681 = vector.broadcast %cst_251 : f32 to vector<32x32xf32>
    %682 = arith.maximumf %680, %681 : vector<32x32xf32>
    %c0_252 = arith.constant 0 : index
    %c0_253 = arith.constant 0 : index
    %683 = vector.load %arg35[%c0_252, %c0_253] : memref<32x32xf32, #tpu.memory_space<vmem>>, vector<32x32xf32>
    %cst_254 = arith.constant dense<0.000000e+00> : vector<32x32xf32>
    %684 = tpu.matmul %682, %683, %cst_254 {dimension_numbers = #tpu.dot_dimension_numbers<[1], [0], [0], [1], [0, 0, 1, 1], [], []>} : vector<32x32xf32>, vector<32x32xf32>, vector<32x32xf32> -> vector<32x32xf32>
    %c0_255 = arith.constant 0 : index
    %c0_256 = arith.constant 0 : index
    %685 = vector.load %arg36[%c0_255, %c0_256] : memref<1x32xf32, #tpu.memory_space<vmem>>, vector<1x32xf32>
    %686 = vector.broadcast %685 : vector<1x32xf32> to vector<32x32xf32>
    %687 = arith.addf %684, %686 : vector<32x32xf32>
    %c0_257 = arith.constant 0 : index
    %c0_258 = arith.constant 0 : index
    %688 = vector.load %arg37[%c0_257, %c0_258] : memref<32x32xf32, #tpu.memory_space<vmem>>, vector<32x32xf32>
    tpu.vector_store %arg37[%c0_257, %c0_258], %687 {strides = array<i32>} : memref<32x32xf32, #tpu.memory_space<vmem>>, vector<32x32xf32>,
    return
  }
}

</mosaic_0001>

<llo_original>
// kernel: _forward_jit.1
$region0: #{_forward_jit.1}
  #allocation0 [shape = 'u32[]', space=smem, size = 0x4, offset = 0x4, fixed_abs, tag = 'smem constant byte address 0x4 - core index']
  #allocation1 [shape = 'u32[144,128]{1,0:T(1,128)}', space=vmem, size = 0x12000, scoped, tag = 'internal scratch']
  %s0 = inlined_call_operand.smem [shape: u32[39], index: -1, kind: input, shape index: {}]
  %s1 = sld [smem:[%s0]]
  %s2 = scalar_lea.smem %s0, 1
  %s3 = sld [smem:[%s2]]
  %s4 = scalar_lea.smem %s0, 2
  %s5 = sld [smem:[%s4]]
  %s6 = scalar_lea.smem %s0, 3
  %s7 = sld [smem:[%s6]]
  %s8 = scalar_lea.smem %s0, 4
  %s9 = sld [smem:[%s8]]
  %s10 = scalar_lea.smem %s0, 5
  %s11 = sld [smem:[%s10]]
  %s12 = scalar_lea.smem %s0, 6
  %s13 = sld [smem:[%s12]]
  %s14 = scalar_lea.smem %s0, 7
  %s15 = sld [smem:[%s14]]
  %s16 = scalar_lea.smem %s0, 8
  %s17 = sld [smem:[%s16]]
  %s18 = scalar_lea.smem %s0, 9
  %s19 = sld [smem:[%s18]]
  %s20 = scalar_lea.smem %s0, 10
  %s21 = sld [smem:[%s20]]
  %s22 = scalar_lea.smem %s0, 11
  %s23 = sld [smem:[%s22]]
  %s24 = scalar_lea.smem %s0, 12
  %s25 = sld [smem:[%s24]]
  %s26 = scalar_lea.smem %s0, 13
  %s27 = sld [smem:[%s26]]
  %s28 = scalar_lea.smem %s0, 14
  %s29 = sld [smem:[%s28]]
  %s30 = scalar_lea.smem %s0, 15
  %s31 = sld [smem:[%s30]]
  %s32 = scalar_lea.smem %s0, 16
  %s33 = sld [smem:[%s32]]
  %s34 = scalar_lea.smem %s0, 17
  %s35 = sld [smem:[%s34]]
  %s36 = scalar_lea.smem %s0, 18
  %s37 = sld [smem:[%s36]]
  %s38 = scalar_lea.smem %s0, 19
  %s39 = sld [smem:[%s38]]
  %s40 = scalar_lea.smem %s0, 20
  %s41 = sld [smem:[%s40]]
  %s42 = scalar_lea.smem %s0, 21
  %s43 = sld [smem:[%s42]]
  %s44 = scalar_lea.smem %s0, 22
  %s45 = sld [smem:[%s44]]
  %s46 = scalar_lea.smem %s0, 23
  %s47 = sld [smem:[%s46]]
  %s48 = scalar_lea.smem %s0, 24
  %s49 = sld [smem:[%s48]]
  %s50 = scalar_lea.smem %s0, 25
  %s51 = sld [smem:[%s50]]
  %s52 = scalar_lea.smem %s0, 26
  %s53 = sld [smem:[%s52]]
  %s54 = scalar_lea.smem %s0, 27
  %s55 = sld [smem:[%s54]]
  %s56 = scalar_lea.smem %s0, 28
  %s57 = sld [smem:[%s56]]
  %s58 = scalar_lea.smem %s0, 29
  %s59 = sld [smem:[%s58]]
  %s60 = scalar_lea.smem %s0, 30
  %s61 = sld [smem:[%s60]]
  %s62 = scalar_lea.smem %s0, 31
  %s63 = sld [smem:[%s62]]
  %s64 = scalar_lea.smem %s0, 32
  %s65 = sld [smem:[%s64]]
  %s66 = scalar_lea.smem %s0, 33
  %s67 = sld [smem:[%s66]]
  %s68 = scalar_lea.smem %s0, 34
  %s69 = sld [smem:[%s68]]
  %s70 = scalar_lea.smem %s0, 35
  %s71 = sld [smem:[%s70]]
  %s72 = scalar_lea.smem %s0, 36
  %s73 = sld [smem:[%s72]]
  %s74 = scalar_lea.smem %s0, 37
  %s75 = sld [smem:[%s74]]
  %s76 = scalar_lea.smem %s0, 38
  %s77 = sld [smem:[%s76]]
  %78 = xla_tuple %s75, %s77
  %s79 = sld [smem:[#allocation0]]
  $region314: #{_forward_jit.1} parent=0
    _
  %s81 = ssub.s32 1, %s79
  %s82 = scalar_select 0, %s81, %s79
  $region1: #{_forward_jit.1} parent=0
    #allocation2 [shape = 'u8[16384]{0}', space=vmem, size = 0x4000, scoped, tag = 'input window, operand 0, single buffered']
    #allocation3 [shape = 's32[1]{0}', space=sflag, size = 0x4, scoped, tag = 'scoped memory for _forward_jit.1']
    #allocation4 [shape = 's32[1]{0}', space=sflag, size = 0x4, scoped, tag = 'scoped memory for _forward_jit.1']
    #allocation5 [shape = 'u8[16384]{0}', space=vmem, size = 0x4000, scoped, tag = 'input window, operand 1, single buffered']
    #allocation6 [shape = 's32[1]{0}', space=sflag, size = 0x4, scoped, tag = 'scoped memory for _forward_jit.1']
    #allocation7 [shape = 'u8[2048]{0}', space=vmem, size = 0x800, scoped, tag = 'input window, operand 2, single buffered']
    #allocation8 [shape = 'u8[2048]{0}', space=vmem, size = 0x800, scoped, tag = 'input window, operand 3, single buffered']
    #allocation9 [shape = 's32[1]{0}', space=sflag, size = 0x4, scoped, tag = 'scoped memory for _forward_jit.1']
    #allocation10 [shape = 'u8[16384]{0}', space=vmem, size = 0x4000, scoped, tag = 'input window, operand 4, single buffered']
    #allocation11 [shape = 'u8[16384]{0}', space=vmem, size = 0x4000, scoped, tag = 'input window, operand 5, single buffered']
    #allocation12 [shape = 's32[1]{0}', space=sflag, size = 0x4, scoped, tag = 'scoped memory for _forward_jit.1']
    #allocation13 [shape = 'u8[512]{0}', space=vmem, size = 0x400, scoped, tag = 'input window, operand 6, single buffered']
    #allocation14 [shape = 'u8[16384]{0}', space=vmem, size = 0x4000, scoped, tag = 'input window, operand 7, single buffered']
    #allocation15 [shape = 's32[1]{0}', space=sflag, size = 0x4, scoped, tag = 'scoped memory for _forward_jit.1']
    #allocation16 [shape = 'u8[512]{0}', space=vmem, size = 0x400, scoped, tag = 'input window, operand 8, single buffered']
    #allocation17 [shape = 'u8[512]{0}', space=vmem, size = 0x400, scoped, tag = 'input window, operand 9, single buffered']
    #allocation18 [shape = 's32[1]{0}', space=sflag, size = 0x4, scoped, tag = 'scoped memory for _forward_jit.1']
    #allocation19 [shape = 'u8[512]{0}', space=vmem, size = 0x400, scoped, tag = 'input window, operand 10, single buffered']
    #allocation20 [shape = 'u8[16384]{0}', space=vmem, size = 0x4000, scoped, tag = 'input window, operand 11, single buffered']
    #allocation21 [shape = 's32[1]{0}', space=sflag, size = 0x4, scoped, tag = 'scoped memory for _forward_jit.1']
    #allocation22 [shape = 'u8[512]{0}', space=vmem, size = 0x400, scoped, tag = 'input window, operand 12, single buffered']
    #allocation23 [shape = 'u8[65536]{0}', space=vmem, size = 0x10000, scoped, tag = 'input window, operand 13, single buffered']
    #allocation24 [shape = 's32[1]{0}', space=sflag, size = 0x4, scoped, tag = 'scoped memory for _forward_jit.1']
    #allocation25 [shape = 'u8[512]{0}', space=vmem, size = 0x400, scoped, tag = 'input window, operand 14, single buffered']
    #allocation26 [shape = 'u8[512]{0}', space=vmem, size = 0x400, scoped, tag = 'input window, operand 15, single buffered']
    #allocation27 [shape = 's32[1]{0}', space=sflag, size = 0x4, scoped, tag = 'scoped memory for _forward_jit.1']
    #allocation28 [shape = 'u8[512]{0}', space=vmem, size = 0x400, scoped, tag = 'input window, operand 16, single buffered']
    #allocation29 [shape = 'u8[16384]{0}', space=vmem, size = 0x4000, scoped, tag = 'input window, operand 17, single buffered']
    #allocation30 [shape = 's32[1]{0}', space=sflag, size = 0x4, scoped, tag = 'scoped memory for _forward_jit.1']
    #allocation31 [shape = 'u8[512]{0}', space=vmem, size = 0x400, scoped, tag = 'input window, operand 18, single buffered']
    #allocation32 [shape = 'u8[16384]{0}', space=vmem, size = 0x4000, scoped, tag = 'input window, operand 19, single buffered']
    #allocation33 [shape = 's32[1]{0}', space=sflag, size = 0x4, scoped, tag = 'scoped memory for _forward_jit.1']
    #allocation34 [shape = 'u8[512]{0}', space=vmem, size = 0x400, scoped, tag = 'input window, operand 20, single buffered']
    #allocation35 [shape = 'u8[512]{0}', space=vmem, size = 0x400, scoped, tag = 'input window, operand 21, single buffered']
    #allocation36 [shape = 's32[1]{0}', space=sflag, size = 0x4, scoped, tag = 'scoped memory for _forward_jit.1']
    #allocation37 [shape = 'u8[512]{0}', space=vmem, size = 0x400, scoped, tag = 'input window, operand 22, single buffered']
    #allocation38 [shape = 'u8[16384]{0}', space=vmem, size = 0x4000, scoped, tag = 'input window, operand 23, single buffered']
    #allocation39 [shape = 's32[1]{0}', space=sflag, size = 0x4, scoped, tag = 'scoped memory for _forward_jit.1']
    #allocation40 [shape = 'u8[512]{0}', space=vmem, size = 0x400, scoped, tag = 'input window, operand 24, single buffered']
    #allocation41 [shape = 'u8[65536]{0}', space=vmem, size = 0x10000, scoped, tag = 'input window, operand 25, single buffered']
    #allocation42 [shape = 's32[1]{0}', space=sflag, size = 0x4, scoped, tag = 'scoped memory for _forward_jit.1']
    #allocation43 [shape = 'u8[512]{0}', space=vmem, size = 0x400, scoped, tag = 'input window, operand 26, single buffered']
    #allocation44 [shape = 'u8[512]{0}', space=vmem, size = 0x400, scoped, tag = 'input window, operand 27, single buffered']
    #allocation45 [shape = 's32[1]{0}', space=sflag, size = 0x4, scoped, tag = 'scoped memory for _forward_jit.1']
    #allocation46 [shape = 'u8[512]{0}', space=vmem, size = 0x400, scoped, tag = 'input window, operand 28, single buffered']
    #allocation47 [shape = 'u8[16384]{0}', space=vmem, size = 0x4000, scoped, tag = 'input window, operand 29, single buffered']
    #allocation48 [shape = 's32[1]{0}', space=sflag, size = 0x4, scoped, tag = 'scoped memory for _forward_jit.1']
    #allocation49 [shape = 'u8[16384]{0}', space=vmem, size = 0x4000, scoped, tag = 'input window, operand 30, single buffered']
    #allocation50 [shape = 'u8[512]{0}', space=vmem, size = 0x400, scoped, tag = 'input window, operand 31, single buffered']
    #allocation51 [shape = 's32[1]{0}', space=sflag, size = 0x4, scoped, tag = 'scoped memory for _forward_jit.1']
    #allocation52 [shape = 'u8[16384]{0}', space=vmem, size = 0x4000, scoped, tag = 'input window, operand 32, single buffered']
    #allocation53 [shape = 'u8[16384]{0}', space=vmem, size = 0x4000, scoped, tag = 'input window, operand 33, single buffered']
    #allocation54 [shape = 's32[1]{0}', space=sflag, size = 0x4, scoped, tag = 'scoped memory for _forward_jit.1']
    #allocation55 [shape = 'u8[512]{0}', space=vmem, size = 0x400, scoped, tag = 'input window, operand 34, single buffered']
    #allocation56 [shape = 'u8[16384]{0}', space=vmem, size = 0x4000, scoped, tag = 'input window, operand 35, single buffered']
    #allocation57 [shape = 's32[1]{0}', space=sflag, size = 0x4, scoped, tag = 'scoped memory for _forward_jit.1']
    #allocation58 [shape = 'u8[512]{0}', space=vmem, size = 0x400, scoped, tag = 'input window, operand 36, single buffered']
    #allocation59 [shape = 'u8[16384]{0}', space=vmem, size = 0x4000, scoped, tag = 'output window, operand 0, single buffered']
    #allocation60 [shape = 'u8[2048]{0}', space=vmem, size = 0x800, scoped, tag = 'output window, operand 1, single buffered']
    #allocation61 [shape = 's32[1]{0}', space=sflag, size = 0x4, scoped, tag = 'scoped memory for _forward_jit.1']
    %83 = vsyncpa [#allocation3], 0
    %84 = vsyncpa [#allocation6], 0
    %85 = vsyncpa [#allocation9], 0
    %86 = vsyncpa [#allocation12], 0
    %87 = vsyncpa [#allocation15], 0
    %88 = vsyncpa [#allocation18], 0
    %89 = vsyncpa [#allocation21], 0
    %90 = vsyncpa [#allocation24], 0
    %91 = vsyncpa [#allocation27], 0
    %92 = vsyncpa [#allocation30], 0
    %93 = vsyncpa [#allocation33], 0
    %94 = vsyncpa [#allocation36], 0
    %95 = vsyncpa [#allocation39], 0
    %96 = vsyncpa [#allocation42], 0
    %97 = vsyncpa [#allocation45], 0
    %98 = vsyncpa [#allocation48], 0
    %99 = vsyncpa [#allocation51], 0
    %100 = vsyncpa [#allocation54], 0
    %101 = vsyncpa [#allocation57], 0
    %102 = vsyncpa [#allocation4], 0
    %103 = vsyncpa [#allocation61], 0
    // Predicated region
    $region2: #{_forward_jit.1} parent=1 // pred_check
      _
    $region3: #{_forward_jit.1} parent=1 // pred_check_branch
      %105 = sbr.rel (0) target = $region5
    $region4: #{_forward_jit.1} parent=1 // pred_region
      %s107 = ssub.s32 512, 512
      %108 = vsyncadd [#allocation3], %s107
      %s109 = sshll.u32 [#allocation2], 4
      %s110 = int_to_ptr.vmem [resolvable:$true] %s109
      %115 = dma.hbm_to_vmem [thread:$0]  %s1, 512, %s110, [#allocation3], 128, 128, 8
    $region5: #{_forward_jit.1} parent=1 // pred_fallthru
      _
    // Predicated region
    $region6: #{_forward_jit.1} parent=1 // pred_check
      _
    $region7: #{_forward_jit.1} parent=1 // pred_check_branch
      %117 = sbr.rel (0) target = $region9
    $region8: #{_forward_jit.1} parent=1 // pred_region
      %s119 = ssub.s32 512, 512
      %120 = vsyncadd [#allocation6], %s119
      %s121 = sshll.u32 [#allocation5], 4
      %s122 = int_to_ptr.vmem [resolvable:$true] %s121
      %127 = dma.hbm_to_vmem [thread:$0]  %s3, 512, %s122, [#allocation6], 128, 128, 8
    $region9: #{_forward_jit.1} parent=1 // pred_fallthru
      _
    // Predicated region
    $region10: #{_forward_jit.1} parent=1 // pred_check
      _
    $region11: #{_forward_jit.1} parent=1 // pred_check_branch
      %129 = sbr.rel (0) target = $region13
    $region12: #{_forward_jit.1} parent=1 // pred_region
      %s131 = ssub.s32 64, 64
      %132 = vsyncadd [#allocation6], %s131
      %s134 = sshll.u32 [#allocation7], 4
      %s135 = int_to_ptr.vmem [resolvable:$true] %s134
      %137 = dma.hbm_to_vmem [thread:$0]  %s5, 64, %s135, [#allocation6]
    $region13: #{_forward_jit.1} parent=1 // pred_fallthru
      _
    // Predicated region
    $region14: #{_forward_jit.1} parent=1 // pred_check
      _
    $region15: #{_forward_jit.1} parent=1 // pred_check_branch
      %139 = sbr.rel (0) target = $region17
    $region16: #{_forward_jit.1} parent=1 // pred_region
      %s141 = ssub.s32 64, 64
      %142 = vsyncadd [#allocation9], %s141
      %s144 = sshll.u32 [#allocation8], 4
      %s145 = int_to_ptr.vmem [resolvable:$true] %s144
      %147 = dma.hbm_to_vmem [thread:$0]  %s7, 64, %s145, [#allocation9]
    $region17: #{_forward_jit.1} parent=1 // pred_fallthru
      _
    // Predicated region
    $region18: #{_forward_jit.1} parent=1 // pred_check
      _
    $region19: #{_forward_jit.1} parent=1 // pred_check_branch
      %149 = sbr.rel (0) target = $region21
    $region20: #{_forward_jit.1} parent=1 // pred_region
      %s151 = ssub.s32 512, 512
      %152 = vsyncadd [#allocation9], %s151
      %s153 = sshll.u32 [#allocation10], 4
      %s154 = int_to_ptr.vmem [resolvable:$true] %s153
      %159 = dma.hbm_to_vmem [thread:$0]  %s9, 512, %s154, [#allocation9], 128, 128, 8
    $region21: #{_forward_jit.1} parent=1 // pred_fallthru
      _
    // Predicated region
    $region22: #{_forward_jit.1} parent=1 // pred_check
      _
    $region23: #{_forward_jit.1} parent=1 // pred_check_branch
      %161 = sbr.rel (0) target = $region25
    $region24: #{_forward_jit.1} parent=1 // pred_region
      %s163 = ssub.s32 512, 512
      %164 = vsyncadd [#allocation12], %s163
      %s165 = sshll.u32 [#allocation11], 4
      %s166 = int_to_ptr.vmem [resolvable:$true] %s165
      %171 = dma.hbm_to_vmem [thread:$0]  %s11, 512, %s166, [#allocation12], 128, 128, 8
    $region25: #{_forward_jit.1} parent=1 // pred_fallthru
      _
    // Predicated region
    $region26: #{_forward_jit.1} parent=1 // pred_check
      _
    $region27: #{_forward_jit.1} parent=1 // pred_check_branch
      %173 = sbr.rel (0) target = $region29
    $region28: #{_forward_jit.1} parent=1 // pred_region
      %s175 = ssub.s32 16, 16
      %176 = vsyncadd [#allocation12], %s175
      %s178 = sshll.u32 [#allocation13], 4
      %s179 = int_to_ptr.vmem [resolvable:$true] %s178
      %181 = dma.hbm_to_vmem [thread:$0]  %s13, 16, %s179, [#allocation12]
    $region29: #{_forward_jit.1} parent=1 // pred_fallthru
      _
    // Predicated region
    $region30: #{_forward_jit.1} parent=1 // pred_check
      _
    $region31: #{_forward_jit.1} parent=1 // pred_check_branch
      %183 = sbr.rel (0) target = $region33
    $region32: #{_forward_jit.1} parent=1 // pred_region
      %s185 = ssub.s32 512, 512
      %186 = vsyncadd [#allocation15], %s185
      %s187 = sshll.u32 [#allocation14], 4
      %s188 = int_to_ptr.vmem [resolvable:$true] %s187
      %193 = dma.hbm_to_vmem [thread:$0]  %s15, 512, %s188, [#allocation15], 128, 128, 8
    $region33: #{_forward_jit.1} parent=1 // pred_fallthru
      _
    // Predicated region
    $region34: #{_forward_jit.1} parent=1 // pred_check
      _
    $region35: #{_forward_jit.1} parent=1 // pred_check_branch
      %195 = sbr.rel (0) target = $region37
    $region36: #{_forward_jit.1} parent=1 // pred_region
      %s197 = ssub.s32 16, 16
      %198 = vsyncadd [#allocation15], %s197
      %s200 = sshll.u32 [#allocation16], 4
      %s201 = int_to_ptr.vmem [resolvable:$true] %s200
      %203 = dma.hbm_to_vmem [thread:$0]  %s17, 16, %s201, [#allocation15]
    $region37: #{_forward_jit.1} parent=1 // pred_fallthru
      _
    // Predicated region
    $region38: #{_forward_jit.1} parent=1 // pred_check
      _
    $region39: #{_forward_jit.1} parent=1 // pred_check_branch
      %205 = sbr.rel (0) target = $region41
    $region40: #{_forward_jit.1} parent=1 // pred_region
      %s207 = ssub.s32 16, 16
      %208 = vsyncadd [#allocation18], %s207
      %s210 = sshll.u32 [#allocation17], 4
      %s211 = int_to_ptr.vmem [resolvable:$true] %s210
      %213 = dma.hbm_to_vmem [thread:$0]  %s19, 16, %s211, [#allocation18]
    $region41: #{_forward_jit.1} parent=1 // pred_fallthru
      _
    // Predicated region
    $region42: #{_forward_jit.1} parent=1 // pred_check
      _
    $region43: #{_forward_jit.1} parent=1 // pred_check_branch
      %215 = sbr.rel (0) target = $region45
    $region44: #{_forward_jit.1} parent=1 // pred_region
      %s217 = ssub.s32 16, 16
      %218 = vsyncadd [#allocation18], %s217
      %s220 = sshll.u32 [#allocation19], 4
      %s221 = int_to_ptr.vmem [resolvable:$true] %s220
      %223 = dma.hbm_to_vmem [thread:$0]  %s21, 16, %s221, [#allocation18]
    $region45: #{_forward_jit.1} parent=1 // pred_fallthru
      _
    // Predicated region
    $region46: #{_forward_jit.1} parent=1 // pred_check
      _
    $region47: #{_forward_jit.1} parent=1 // pred_check_branch
      %225 = sbr.rel (0) target = $region49
    $region48: #{_forward_jit.1} parent=1 // pred_region
      %s227 = ssub.s32 512, 512
      %228 = vsyncadd [#allocation21], %s227
      %s229 = sshll.u32 [#allocation20], 4
      %s230 = int_to_ptr.vmem [resolvable:$true] %s229
      %235 = dma.hbm_to_vmem [thread:$0]  %s23, 512, %s230, [#allocation21], 128, 128, 8
    $region49: #{_forward_jit.1} parent=1 // pred_fallthru
      _
    // Predicated region
    $region50: #{_forward_jit.1} parent=1 // pred_check
      _
    $region51: #{_forward_jit.1} parent=1 // pred_check_branch
      %237 = sbr.rel (0) target = $region53
    $region52: #{_forward_jit.1} parent=1 // pred_region
      %s239 = ssub.s32 16, 16
      %240 = vsyncadd [#allocation21], %s239
      %s242 = sshll.u32 [#allocation22], 4
      %s243 = int_to_ptr.vmem [resolvable:$true] %s242
      %245 = dma.hbm_to_vmem [thread:$0]  %s25, 16, %s243, [#allocation21]
    $region53: #{_forward_jit.1} parent=1 // pred_fallthru
      _
    // Predicated region
    $region54: #{_forward_jit.1} parent=1 // pred_check
      _
    $region55: #{_forward_jit.1} parent=1 // pred_check_branch
      %247 = sbr.rel (0) target = $region57
    $region56: #{_forward_jit.1} parent=1 // pred_region
      %s249 = ssub.s32 2048, 2048
      %250 = vsyncadd [#allocation24], %s249
      %s251 = sshll.u32 [#allocation23], 4
      %s252 = int_to_ptr.vmem [resolvable:$true] %s251
      %257 = dma.hbm_to_vmem [thread:$0]  %s27, 2048, %s252, [#allocation24], 128, 128, 8
    $region57: #{_forward_jit.1} parent=1 // pred_fallthru
      _
    // Predicated region
    $region58: #{_forward_jit.1} parent=1 // pred_check
      _
    $region59: #{_forward_jit.1} parent=1 // pred_check_branch
      %259 = sbr.rel (0) target = $region61
    $region60: #{_forward_jit.1} parent=1 // pred_region
      %s261 = ssub.s32 16, 16
      %262 = vsyncadd [#allocation24], %s261
      %s264 = sshll.u32 [#allocation25], 4
      %s265 = int_to_ptr.vmem [resolvable:$true] %s264
      %267 = dma.hbm_to_vmem [thread:$0]  %s29, 16, %s265, [#allocation24]
    $region61: #{_forward_jit.1} parent=1 // pred_fallthru
      _
    // Predicated region
    $region62: #{_forward_jit.1} parent=1 // pred_check
      _
    $region63: #{_forward_jit.1} parent=1 // pred_check_branch
      %269 = sbr.rel (0) target = $region65
    $region64: #{_forward_jit.1} parent=1 // pred_region
      %s271 = ssub.s32 16, 16
      %272 = vsyncadd [#allocation27], %s271
      %s274 = sshll.u32 [#allocation26], 4
      %s275 = int_to_ptr.vmem [resolvable:$true] %s274
      %277 = dma.hbm_to_vmem [thread:$0]  %s31, 16, %s275, [#allocation27]
    $region65: #{_forward_jit.1} parent=1 // pred_fallthru
      _
    // Predicated region
    $region66: #{_forward_jit.1} parent=1 // pred_check
      _
    $region67: #{_forward_jit.1} parent=1 // pred_check_branch
      %279 = sbr.rel (0) target = $region69
    $region68: #{_forward_jit.1} parent=1 // pred_region
      %s281 = ssub.s32 16, 16
      %282 = vsyncadd [#allocation27], %s281
      %s284 = sshll.u32 [#allocation28], 4
      %s285 = int_to_ptr.vmem [resolvable:$true] %s284
      %287 = dma.hbm_to_vmem [thread:$0]  %s33, 16, %s285, [#allocation27]
    $region69: #{_forward_jit.1} parent=1 // pred_fallthru
      _
    // Predicated region
    $region70: #{_forward_jit.1} parent=1 // pred_check
      _
    $region71: #{_forward_jit.1} parent=1 // pred_check_branch
      %289 = sbr.rel (0) target = $region73
    $region72: #{_forward_jit.1} parent=1 // pred_region
      %s291 = ssub.s32 512, 512
      %292 = vsyncadd [#allocation30], %s291
      %s293 = sshll.u32 [#allocation29], 4
      %s294 = int_to_ptr.vmem [resolvable:$true] %s293
      %299 = dma.hbm_to_vmem [thread:$0]  %s35, 512, %s294, [#allocation30], 128, 128, 8
    $region73: #{_forward_jit.1} parent=1 // pred_fallthru
      _
    // Predicated region
    $region74: #{_forward_jit.1} parent=1 // pred_check
      _
    $region75: #{_forward_jit.1} parent=1 // pred_check_branch
      %301 = sbr.rel (0) target = $region77
    $region76: #{_forward_jit.1} parent=1 // pred_region
      %s303 = ssub.s32 16, 16
      %304 = vsyncadd [#allocation30], %s303
      %s306 = sshll.u32 [#allocation31], 4
      %s307 = int_to_ptr.vmem [resolvable:$true] %s306
      %309 = dma.hbm_to_vmem [thread:$0]  %s37, 16, %s307, [#allocation30]
    $region77: #{_forward_jit.1} parent=1 // pred_fallthru
      _
    // Predicated region
    $region78: #{_forward_jit.1} parent=1 // pred_check
      _
    $region79: #{_forward_jit.1} parent=1 // pred_check_branch
      %311 = sbr.rel (0) target = $region81
    $region80: #{_forward_jit.1} parent=1 // pred_region
      %s313 = ssub.s32 512, 512
      %314 = vsyncadd [#allocation33], %s313
      %s315 = sshll.u32 [#allocation32], 4
      %s316 = int_to_ptr.vmem [resolvable:$true] %s315
      %321 = dma.hbm_to_vmem [thread:$0]  %s39, 512, %s316, [#allocation33], 128, 128, 8
    $region81: #{_forward_jit.1} parent=1 // pred_fallthru
      _
    // Predicated region
    $region82: #{_forward_jit.1} parent=1 // pred_check
      _
    $region83: #{_forward_jit.1} parent=1 // pred_check_branch
      %323 = sbr.rel (0) target = $region85
    $region84: #{_forward_jit.1} parent=1 // pred_region
      %s325 = ssub.s32 16, 16
      %326 = vsyncadd [#allocation33], %s325
      %s328 = sshll.u32 [#allocation34], 4
      %s329 = int_to_ptr.vmem [resolvable:$true] %s328
      %331 = dma.hbm_to_vmem [thread:$0]  %s41, 16, %s329, [#allocation33]
    $region85: #{_forward_jit.1} parent=1 // pred_fallthru
      _
    // Predicated region
    $region86: #{_forward_jit.1} parent=1 // pred_check
      _
    $region87: #{_forward_jit.1} parent=1 // pred_check_branch
      %333 = sbr.rel (0) target = $region89
    $region88: #{_forward_jit.1} parent=1 // pred_region
      %s335 = ssub.s32 16, 16
      %336 = vsyncadd [#allocation36], %s335
      %s338 = sshll.u32 [#allocation35], 4
      %s339 = int_to_ptr.vmem [resolvable:$true] %s338
      %341 = dma.hbm_to_vmem [thread:$0]  %s43, 16, %s339, [#allocation36]
    $region89: #{_forward_jit.1} parent=1 // pred_fallthru
      _
    // Predicated region
    $region90: #{_forward_jit.1} parent=1 // pred_check
      _
    $region91: #{_forward_jit.1} parent=1 // pred_check_branch
      %343 = sbr.rel (0) target = $region93
    $region92: #{_forward_jit.1} parent=1 // pred_region
      %s345 = ssub.s32 16, 16
      %346 = vsyncadd [#allocation36], %s345
      %s348 = sshll.u32 [#allocation37], 4
      %s349 = int_to_ptr.vmem [resolvable:$true] %s348
      %351 = dma.hbm_to_vmem [thread:$0]  %s45, 16, %s349, [#allocation36]
    $region93: #{_forward_jit.1} parent=1 // pred_fallthru
      _
    // Predicated region
    $region94: #{_forward_jit.1} parent=1 // pred_check
      _
    $region95: #{_forward_jit.1} parent=1 // pred_check_branch
      %353 = sbr.rel (0) target = $region97
    $region96: #{_forward_jit.1} parent=1 // pred_region
      %s355 = ssub.s32 512, 512
      %356 = vsyncadd [#allocation39], %s355
      %s357 = sshll.u32 [#allocation38], 4
      %s358 = int_to_ptr.vmem [resolvable:$true] %s357
      %363 = dma.hbm_to_vmem [thread:$0]  %s47, 512, %s358, [#allocation39], 128, 128, 8
    $region97: #{_forward_jit.1} parent=1 // pred_fallthru
      _
    // Predicated region
    $region98: #{_forward_jit.1} parent=1 // pred_check
      _
    $region99: #{_forward_jit.1} parent=1 // pred_check_branch
      %365 = sbr.rel (0) target = $region101
    $region100: #{_forward_jit.1} parent=1 // pred_region
      %s367 = ssub.s32 16, 16
      %368 = vsyncadd [#allocation39], %s367
      %s370 = sshll.u32 [#allocation40], 4
      %s371 = int_to_ptr.vmem [resolvable:$true] %s370
      %373 = dma.hbm_to_vmem [thread:$0]  %s49, 16, %s371, [#allocation39]
    $region101: #{_forward_jit.1} parent=1 // pred_fallthru
      _
    // Predicated region
    $region102: #{_forward_jit.1} parent=1 // pred_check
      _
    $region103: #{_forward_jit.1} parent=1 // pred_check_branch
      %375 = sbr.rel (0) target = $region105
    $region104: #{_forward_jit.1} parent=1 // pred_region
      %s377 = ssub.s32 2048, 2048
      %378 = vsyncadd [#allocation42], %s377
      %s379 = sshll.u32 [#allocation41], 4
      %s380 = int_to_ptr.vmem [resolvable:$true] %s379
      %385 = dma.hbm_to_vmem [thread:$0]  %s51, 2048, %s380, [#allocation42], 128, 128, 8
    $region105: #{_forward_jit.1} parent=1 // pred_fallthru
      _
    // Predicated region
    $region106: #{_forward_jit.1} parent=1 // pred_check
      _
    $region107: #{_forward_jit.1} parent=1 // pred_check_branch
      %387 = sbr.rel (0) target = $region109
    $region108: #{_forward_jit.1} parent=1 // pred_region
      %s389 = ssub.s32 16, 16
      %390 = vsyncadd [#allocation42], %s389
      %s392 = sshll.u32 [#allocation43], 4
      %s393 = int_to_ptr.vmem [resolvable:$true] %s392
      %395 = dma.hbm_to_vmem [thread:$0]  %s53, 16, %s393, [#allocation42]
    $region109: #{_forward_jit.1} parent=1 // pred_fallthru
      _
    // Predicated region
    $region110: #{_forward_jit.1} parent=1 // pred_check
      _
    $region111: #{_forward_jit.1} parent=1 // pred_check_branch
      %397 = sbr.rel (0) target = $region113
    $region112: #{_forward_jit.1} parent=1 // pred_region
      %s399 = ssub.s32 16, 16
      %400 = vsyncadd [#allocation45], %s399
      %s402 = sshll.u32 [#allocation44], 4
      %s403 = int_to_ptr.vmem [resolvable:$true] %s402
      %405 = dma.hbm_to_vmem [thread:$0]  %s55, 16, %s403, [#allocation45]
    $region113: #{_forward_jit.1} parent=1 // pred_fallthru
      _
    // Predicated region
    $region114: #{_forward_jit.1} parent=1 // pred_check
      _
    $region115: #{_forward_jit.1} parent=1 // pred_check_branch
      %407 = sbr.rel (0) target = $region117
    $region116: #{_forward_jit.1} parent=1 // pred_region
      %s409 = ssub.s32 16, 16
      %410 = vsyncadd [#allocation45], %s409
      %s412 = sshll.u32 [#allocation46], 4
      %s413 = int_to_ptr.vmem [resolvable:$true] %s412
      %415 = dma.hbm_to_vmem [thread:$0]  %s57, 16, %s413, [#allocation45]
    $region117: #{_forward_jit.1} parent=1 // pred_fallthru
      _
    // Predicated region
    $region118: #{_forward_jit.1} parent=1 // pred_check
      _
    $region119: #{_forward_jit.1} parent=1 // pred_check_branch
      %417 = sbr.rel (0) target = $region121
    $region120: #{_forward_jit.1} parent=1 // pred_region
      %s419 = ssub.s32 512, 512
      %420 = vsyncadd [#allocation48], %s419
      %s421 = sshll.u32 [#allocation47], 4
      %s422 = int_to_ptr.vmem [resolvable:$true] %s421
      %427 = dma.hbm_to_vmem [thread:$0]  %s59, 512, %s422, [#allocation48], 128, 128, 8
    $region121: #{_forward_jit.1} parent=1 // pred_fallthru
      _
    // Predicated region
    $region122: #{_forward_jit.1} parent=1 // pred_check
      _
    $region123: #{_forward_jit.1} parent=1 // pred_check_branch
      %429 = sbr.rel (0) target = $region125
    $region124: #{_forward_jit.1} parent=1 // pred_region
      %s431 = ssub.s32 512, 512
      %432 = vsyncadd [#allocation48], %s431
      %s433 = sshll.u32 [#allocation49], 4
      %s434 = int_to_ptr.vmem [resolvable:$true] %s433
      %439 = dma.hbm_to_vmem [thread:$0]  %s61, 512, %s434, [#allocation48], 128, 128, 8
    $region125: #{_forward_jit.1} parent=1 // pred_fallthru
      _
    // Predicated region
    $region126: #{_forward_jit.1} parent=1 // pred_check
      _
    $region127: #{_forward_jit.1} parent=1 // pred_check_branch
      %441 = sbr.rel (0) target = $region129
    $region128: #{_forward_jit.1} parent=1 // pred_region
      %s443 = ssub.s32 16, 16
      %444 = vsyncadd [#allocation51], %s443
      %s446 = sshll.u32 [#allocation50], 4
      %s447 = int_to_ptr.vmem [resolvable:$true] %s446
      %449 = dma.hbm_to_vmem [thread:$0]  %s63, 16, %s447, [#allocation51]
    $region129: #{_forward_jit.1} parent=1 // pred_fallthru
      _
    // Predicated region
    $region130: #{_forward_jit.1} parent=1 // pred_check
      _
    $region131: #{_forward_jit.1} parent=1 // pred_check_branch
      %451 = sbr.rel (0) target = $region133
    $region132: #{_forward_jit.1} parent=1 // pred_region
      %s453 = ssub.s32 512, 512
      %454 = vsyncadd [#allocation51], %s453
      %s455 = sshll.u32 [#allocation52], 4
      %s456 = int_to_ptr.vmem [resolvable:$true] %s455
      %461 = dma.hbm_to_vmem [thread:$0]  %s65, 512, %s456, [#allocation51], 128, 128, 8
    $region133: #{_forward_jit.1} parent=1 // pred_fallthru
      _
    // Predicated region
    $region134: #{_forward_jit.1} parent=1 // pred_check
      _
    $region135: #{_forward_jit.1} parent=1 // pred_check_branch
      %463 = sbr.rel (0) target = $region137
    $region136: #{_forward_jit.1} parent=1 // pred_region
      %s465 = ssub.s32 512, 512
      %466 = vsyncadd [#allocation54], %s465
      %s467 = sshll.u32 [#allocation53], 4
      %s468 = int_to_ptr.vmem [resolvable:$true] %s467
      %473 = dma.hbm_to_vmem [thread:$0]  %s67, 512, %s468, [#allocation54], 128, 128, 8
    $region137: #{_forward_jit.1} parent=1 // pred_fallthru
      _
    // Predicated region
    $region138: #{_forward_jit.1} parent=1 // pred_check
      _
    $region139: #{_forward_jit.1} parent=1 // pred_check_branch
      %475 = sbr.rel (0) target = $region141
    $region140: #{_forward_jit.1} parent=1 // pred_region
      %s477 = ssub.s32 16, 16
      %478 = vsyncadd [#allocation54], %s477
      %s480 = sshll.u32 [#allocation55], 4
      %s481 = int_to_ptr.vmem [resolvable:$true] %s480
      %483 = dma.hbm_to_vmem [thread:$0]  %s69, 16, %s481, [#allocation54]
    $region141: #{_forward_jit.1} parent=1 // pred_fallthru
      _
    // Predicated region
    $region142: #{_forward_jit.1} parent=1 // pred_check
      _
    $region143: #{_forward_jit.1} parent=1 // pred_check_branch
      %485 = sbr.rel (0) target = $region145
    $region144: #{_forward_jit.1} parent=1 // pred_region
      %s487 = ssub.s32 512, 512
      %488 = vsyncadd [#allocation57], %s487
      %s489 = sshll.u32 [#allocation56], 4
      %s490 = int_to_ptr.vmem [resolvable:$true] %s489
      %495 = dma.hbm_to_vmem [thread:$0]  %s71, 512, %s490, [#allocation57], 128, 128, 8
    $region145: #{_forward_jit.1} parent=1 // pred_fallthru
      _
    // Predicated region
    $region146: #{_forward_jit.1} parent=1 // pred_check
      _
    $region147: #{_forward_jit.1} parent=1 // pred_check_branch
      %497 = sbr.rel (0) target = $region149
    $region148: #{_forward_jit.1} parent=1 // pred_region
      %s499 = ssub.s32 16, 16
      %500 = vsyncadd [#allocation57], %s499
      %s502 = sshll.u32 [#allocation58], 4
      %s503 = int_to_ptr.vmem [resolvable:$true] %s502
      %505 = dma.hbm_to_vmem [thread:$0]  %s73, 16, %s503, [#allocation57]
    $region149: #{_forward_jit.1} parent=1 // pred_fallthru
      _
    // Predicated region
    $region150: #{_forward_jit.1} parent=1 // pred_check
      _
    $region151: #{_forward_jit.1} parent=1 // pred_check_branch
      %507 = sbr.rel (0) target = $region153
    $region152: #{_forward_jit.1} parent=1 // pred_region
      %508 = dma.done [#allocation3], 512
    $region153: #{_forward_jit.1} parent=1 // pred_fallthru
      _
    // Predicated region
    $region154: #{_forward_jit.1} parent=1 // pred_check
      _
    $region155: #{_forward_jit.1} parent=1 // pred_check_branch
      %510 = sbr.rel (0) target = $region157
    $region156: #{_forward_jit.1} parent=1 // pred_region
      %511 = dma.done [#allocation6], 512
    $region157: #{_forward_jit.1} parent=1 // pred_fallthru
      _
    // Predicated region
    $region158: #{_forward_jit.1} parent=1 // pred_check
      _
    $region159: #{_forward_jit.1} parent=1 // pred_check_branch
      %513 = sbr.rel (0) target = $region161
    $region160: #{_forward_jit.1} parent=1 // pred_region
      %514 = dma.done [#allocation6], 64
    $region161: #{_forward_jit.1} parent=1 // pred_fallthru
      _
    // Predicated region
    $region162: #{_forward_jit.1} parent=1 // pred_check
      _
    $region163: #{_forward_jit.1} parent=1 // pred_check_branch
      %516 = sbr.rel (0) target = $region165
    $region164: #{_forward_jit.1} parent=1 // pred_region
      %517 = dma.done [#allocation9], 64
    $region165: #{_forward_jit.1} parent=1 // pred_fallthru
      _
    // Predicated region
    $region166: #{_forward_jit.1} parent=1 // pred_check
      _
    $region167: #{_forward_jit.1} parent=1 // pred_check_branch
      %519 = sbr.rel (0) target = $region169
    $region168: #{_forward_jit.1} parent=1 // pred_region
      %520 = dma.done [#allocation9], 512
    $region169: #{_forward_jit.1} parent=1 // pred_fallthru
      _
    // Predicated region
    $region170: #{_forward_jit.1} parent=1 // pred_check
      _
    $region171: #{_forward_jit.1} parent=1 // pred_check_branch
      %522 = sbr.rel (0) target = $region173
    $region172: #{_forward_jit.1} parent=1 // pred_region
      %523 = dma.done [#allocation12], 512
    $region173: #{_forward_jit.1} parent=1 // pred_fallthru
      _
    // Predicated region
    $region174: #{_forward_jit.1} parent=1 // pred_check
      _
    $region175: #{_forward_jit.1} parent=1 // pred_check_branch
      %525 = sbr.rel (0) target = $region177
    $region176: #{_forward_jit.1} parent=1 // pred_region
      %526 = dma.done [#allocation12], 16
    $region177: #{_forward_jit.1} parent=1 // pred_fallthru
      _
    // Predicated region
    $region178: #{_forward_jit.1} parent=1 // pred_check
      _
    $region179: #{_forward_jit.1} parent=1 // pred_check_branch
      %528 = sbr.rel (0) target = $region181
    $region180: #{_forward_jit.1} parent=1 // pred_region
      %529 = dma.done [#allocation15], 512
    $region181: #{_forward_jit.1} parent=1 // pred_fallthru
      _
    // Predicated region
    $region182: #{_forward_jit.1} parent=1 // pred_check
      _
    $region183: #{_forward_jit.1} parent=1 // pred_check_branch
      %531 = sbr.rel (0) target = $region185
    $region184: #{_forward_jit.1} parent=1 // pred_region
      %532 = dma.done [#allocation15], 16
    $region185: #{_forward_jit.1} parent=1 // pred_fallthru
      _
    // Predicated region
    $region186: #{_forward_jit.1} parent=1 // pred_check
      _
    $region187: #{_forward_jit.1} parent=1 // pred_check_branch
      %534 = sbr.rel (0) target = $region189
    $region188: #{_forward_jit.1} parent=1 // pred_region
      %535 = dma.done [#allocation18], 16
    $region189: #{_forward_jit.1} parent=1 // pred_fallthru
      _
    // Predicated region
    $region190: #{_forward_jit.1} parent=1 // pred_check
      _
    $region191: #{_forward_jit.1} parent=1 // pred_check_branch
      %537 = sbr.rel (0) target = $region193
    $region192: #{_forward_jit.1} parent=1 // pred_region
      %538 = dma.done [#allocation18], 16
    $region193: #{_forward_jit.1} parent=1 // pred_fallthru
      _
    // Predicated region
    $region194: #{_forward_jit.1} parent=1 // pred_check
      _
    $region195: #{_forward_jit.1} parent=1 // pred_check_branch
      %540 = sbr.rel (0) target = $region197
    $region196: #{_forward_jit.1} parent=1 // pred_region
      %541 = dma.done [#allocation21], 512
    $region197: #{_forward_jit.1} parent=1 // pred_fallthru
      _
    // Predicated region
    $region198: #{_forward_jit.1} parent=1 // pred_check
      _
    $region199: #{_forward_jit.1} parent=1 // pred_check_branch
      %543 = sbr.rel (0) target = $region201
    $region200: #{_forward_jit.1} parent=1 // pred_region
      %544 = dma.done [#allocation21], 16
    $region201: #{_forward_jit.1} parent=1 // pred_fallthru
      _
    // Predicated region
    $region202: #{_forward_jit.1} parent=1 // pred_check
      _
    $region203: #{_forward_jit.1} parent=1 // pred_check_branch
      %546 = sbr.rel (0) target = $region205
    $region204: #{_forward_jit.1} parent=1 // pred_region
      %547 = dma.done [#allocation24], 2048
    $region205: #{_forward_jit.1} parent=1 // pred_fallthru
      _
    // Predicated region
    $region206: #{_forward_jit.1} parent=1 // pred_check
      _
    $region207: #{_forward_jit.1} parent=1 // pred_check_branch
      %549 = sbr.rel (0) target = $region209
    $region208: #{_forward_jit.1} parent=1 // pred_region
      %550 = dma.done [#allocation24], 16
    $region209: #{_forward_jit.1} parent=1 // pred_fallthru
      _
    // Predicated region
    $region210: #{_forward_jit.1} parent=1 // pred_check
      _
    $region211: #{_forward_jit.1} parent=1 // pred_check_branch
      %552 = sbr.rel (0) target = $region213
    $region212: #{_forward_jit.1} parent=1 // pred_region
      %553 = dma.done [#allocation27], 16
    $region213: #{_forward_jit.1} parent=1 // pred_fallthru
      _
    // Predicated region
    $region214: #{_forward_jit.1} parent=1 // pred_check
      _
    $region215: #{_forward_jit.1} parent=1 // pred_check_branch
      %555 = sbr.rel (0) target = $region217
    $region216: #{_forward_jit.1} parent=1 // pred_region
      %556 = dma.done [#allocation27], 16
    $region217: #{_forward_jit.1} parent=1 // pred_fallthru
      _
    // Predicated region
    $region218: #{_forward_jit.1} parent=1 // pred_check
      _
    $region219: #{_forward_jit.1} parent=1 // pred_check_branch
      %558 = sbr.rel (0) target = $region221
    $region220: #{_forward_jit.1} parent=1 // pred_region
      %559 = dma.done [#allocation30], 512
    $region221: #{_forward_jit.1} parent=1 // pred_fallthru
      _
    // Predicated region
    $region222: #{_forward_jit.1} parent=1 // pred_check
      _
    $region223: #{_forward_jit.1} parent=1 // pred_check_branch
      %561 = sbr.rel (0) target = $region225
    $region224: #{_forward_jit.1} parent=1 // pred_region
      %562 = dma.done [#allocation30], 16
    $region225: #{_forward_jit.1} parent=1 // pred_fallthru
      _
    // Predicated region
    $region226: #{_forward_jit.1} parent=1 // pred_check
      _
    $region227: #{_forward_jit.1} parent=1 // pred_check_branch
      %564 = sbr.rel (0) target = $region229
    $region228: #{_forward_jit.1} parent=1 // pred_region
      %565 = dma.done [#allocation33], 512
    $region229: #{_forward_jit.1} parent=1 // pred_fallthru
      _
    // Predicated region
    $region230: #{_forward_jit.1} parent=1 // pred_check
      _
    $region231: #{_forward_jit.1} parent=1 // pred_check_branch
      %567 = sbr.rel (0) target = $region233
    $region232: #{_forward_jit.1} parent=1 // pred_region
      %568 = dma.done [#allocation33], 16
    $region233: #{_forward_jit.1} parent=1 // pred_fallthru
      _
    // Predicated region
    $region234: #{_forward_jit.1} parent=1 // pred_check
      _
    $region235: #{_forward_jit.1} parent=1 // pred_check_branch
      %570 = sbr.rel (0) target = $region237
    $region236: #{_forward_jit.1} parent=1 // pred_region
      %571 = dma.done [#allocation36], 16
    $region237: #{_forward_jit.1} parent=1 // pred_fallthru
      _
    // Predicated region
    $region238: #{_forward_jit.1} parent=1 // pred_check
      _
    $region239: #{_forward_jit.1} parent=1 // pred_check_branch
      %573 = sbr.rel (0) target = $region241
    $region240: #{_forward_jit.1} parent=1 // pred_region
      %574 = dma.done [#allocation36], 16
    $region241: #{_forward_jit.1} parent=1 // pred_fallthru
      _
    // Predicated region
    $region242: #{_forward_jit.1} parent=1 // pred_check
      _
    $region243: #{_forward_jit.1} parent=1 // pred_check_branch
      %576 = sbr.rel (0) target = $region245
    $region244: #{_forward_jit.1} parent=1 // pred_region
      %577 = dma.done [#allocation39], 512
    $region245: #{_forward_jit.1} parent=1 // pred_fallthru
      _
    // Predicated region
    $region246: #{_forward_jit.1} parent=1 // pred_check
      _
    $region247: #{_forward_jit.1} parent=1 // pred_check_branch
      %579 = sbr.rel (0) target = $region249
    $region248: #{_forward_jit.1} parent=1 // pred_region
      %580 = dma.done [#allocation39], 16
    $region249: #{_forward_jit.1} parent=1 // pred_fallthru
      _
    // Predicated region
    $region250: #{_forward_jit.1} parent=1 // pred_check
      _
    $region251: #{_forward_jit.1} parent=1 // pred_check_branch
      %582 = sbr.rel (0) target = $region253
    $region252: #{_forward_jit.1} parent=1 // pred_region
      %583 = dma.done [#allocation42], 2048
    $region253: #{_forward_jit.1} parent=1 // pred_fallthru
      _
    // Predicated region
    $region254: #{_forward_jit.1} parent=1 // pred_check
      _
    $region255: #{_forward_jit.1} parent=1 // pred_check_branch
      %585 = sbr.rel (0) target = $region257
    $region256: #{_forward_jit.1} parent=1 // pred_region
      %586 = dma.done [#allocation42], 16
    $region257: #{_forward_jit.1} parent=1 // pred_fallthru
      _
    // Predicated region
    $region258: #{_forward_jit.1} parent=1 // pred_check
      _
    $region259: #{_forward_jit.1} parent=1 // pred_check_branch
      %588 = sbr.rel (0) target = $region261
    $region260: #{_forward_jit.1} parent=1 // pred_region
      %589 = dma.done [#allocation45], 16
    $region261: #{_forward_jit.1} parent=1 // pred_fallthru
      _
    // Predicated region
    $region262: #{_forward_jit.1} parent=1 // pred_check
      _
    $region263: #{_forward_jit.1} parent=1 // pred_check_branch
      %591 = sbr.rel (0) target = $region265
    $region264: #{_forward_jit.1} parent=1 // pred_region
      %592 = dma.done [#allocation45], 16
    $region265: #{_forward_jit.1} parent=1 // pred_fallthru
      _
    // Predicated region
    $region266: #{_forward_jit.1} parent=1 // pred_check
      _
    $region267: #{_forward_jit.1} parent=1 // pred_check_branch
      %594 = sbr.rel (0) target = $region269
    $region268: #{_forward_jit.1} parent=1 // pred_region
      %595 = dma.done [#allocation48], 512
    $region269: #{_forward_jit.1} parent=1 // pred_fallthru
      _
    // Predicated region
    $region270: #{_forward_jit.1} parent=1 // pred_check
      _
    $region271: #{_forward_jit.1} parent=1 // pred_check_branch
      %597 = sbr.rel (0) target = $region273
    $region272: #{_forward_jit.1} parent=1 // pred_region
      %598 = dma.done [#allocation48], 512
    $region273: #{_forward_jit.1} parent=1 // pred_fallthru
      _
    // Predicated region
    $region274: #{_forward_jit.1} parent=1 // pred_check
      _
    $region275: #{_forward_jit.1} parent=1 // pred_check_branch
      %600 = sbr.rel (0) target = $region277
    $region276: #{_forward_jit.1} parent=1 // pred_region
      %601 = dma.done [#allocation51], 16
    $region277: #{_forward_jit.1} parent=1 // pred_fallthru
      _
    // Predicated region
    $region278: #{_forward_jit.1} parent=1 // pred_check
      _
    $region279: #{_forward_jit.1} parent=1 // pred_check_branch
      %603 = sbr.rel (0) target = $region281
    $region280: #{_forward_jit.1} parent=1 // pred_region
      %604 = dma.done [#allocation51], 512
    $region281: #{_forward_jit.1} parent=1 // pred_fallthru
      _
    // Predicated region
    $region282: #{_forward_jit.1} parent=1 // pred_check
      _
    $region283: #{_forward_jit.1} parent=1 // pred_check_branch
      %606 = sbr.rel (0) target = $region285
    $region284: #{_forward_jit.1} parent=1 // pred_region
      %607 = dma.done [#allocation54], 512
    $region285: #{_forward_jit.1} parent=1 // pred_fallthru
      _
    // Predicated region
    $region286: #{_forward_jit.1} parent=1 // pred_check
      _
    $region287: #{_forward_jit.1} parent=1 // pred_check_branch
      %609 = sbr.rel (0) target = $region289
    $region288: #{_forward_jit.1} parent=1 // pred_region
      %610 = dma.done [#allocation54], 16
    $region289: #{_forward_jit.1} parent=1 // pred_fallthru
      _
    // Predicated region
    $region290: #{_forward_jit.1} parent=1 // pred_check
      _
    $region291: #{_forward_jit.1} parent=1 // pred_check_branch
      %612 = sbr.rel (0) target = $region293
    $region292: #{_forward_jit.1} parent=1 // pred_region
      %613 = dma.done [#allocation57], 512
    $region293: #{_forward_jit.1} parent=1 // pred_fallthru
      _
    // Predicated region
    $region294: #{_forward_jit.1} parent=1 // pred_check
      _
    $region295: #{_forward_jit.1} parent=1 // pred_check_branch
      %615 = sbr.rel (0) target = $region297
    $region296: #{_forward_jit.1} parent=1 // pred_region
      %616 = dma.done [#allocation57], 16
    $region297: #{_forward_jit.1} parent=1 // pred_fallthru
      _
    %v617 = vld [vmem:[#allocation7] sm:$0xf]
    %v618 = vld [vmem:[#allocation8] sm:$0xf]
    %v619 = vld [vmem:[#allocation47] sm:$0xff]
    %v620 = vld [vmem:[#allocation47 + $0x8] sm:$0xff]
    %v621 = vld [vmem:[#allocation47 + $0x10] sm:$0xff]
    %v622 = vld [vmem:[#allocation47 + $0x18] sm:$0xff]
    %v623 = vld [vmem:[#allocation49] sm:$0xff]
    %v624 = vld [vmem:[#allocation49 + $0x8] sm:$0xff]
    %v625 = vld [vmem:[#allocation49 + $0x10] sm:$0xff]
    %v626 = vld [vmem:[#allocation49 + $0x18] sm:$0xff]
    %v627 = vld [vmem:[#allocation50] sm:$0x1]
    %vm628 = vcmask 261120
    %v630 = vsel %vm628, %v617, 0
    %632 = vmatprep.subr.mxu0 0.0
    %633 = vmatpush1.msra.mxu0 %v619
    %634 = vmatprep.subr.mxu0 0.0
    %635 = vmatpush1.msra.mxu0 %v620
    %636 = vmatprep.subr.mxu0 0.0
    %637 = vmatpush1.msra.mxu0 %v621
    %638 = vmatprep.subr.mxu0 0.0
    %639 = vmatpush1.msra.mxu0 %v622
    %640 = vmatprep.subr.mxu0 0.0
    %641 = vmatpush1.msra.mxu0 0.0
    %642 = vmatprep.subr.mxu0 0.0
    %643 = vmatpush1.msra.mxu0 0.0
    %644 = vmatprep.subr.mxu0 0.0
    %645 = vmatpush1.msra.mxu0 0.0
    %646 = vmatprep.subr.mxu0 0.0
    %647 = vmatpush1.msra.mxu0 0.0
    %648 = vmatprep.subr.mxu0 0.0
    %649 = vmatpush1.msra.mxu0 0.0
    %650 = vmatprep.subr.mxu0 0.0
    %651 = vmatpush1.msra.mxu0 0.0
    %652 = vmatprep.subr.mxu0 0.0
    %653 = vmatpush1.msra.mxu0 0.0
    %654 = vmatprep.subr.mxu0 0.0
    %655 = vmatpush1.msra.mxu0 0.0
    %656 = vmatprep.subr.mxu0 0.0
    %657 = vmatpush1.msra.mxu0 0.0
    %658 = vmatprep.subr.mxu0 0.0
    %659 = vmatpush1.msra.mxu0 0.0
    %660 = vmatprep.subr.mxu0 0.0
    %661 = vmatpush1.msra.mxu0 0.0
    %662 = vmatprep.subr.mxu0 0.0
    %663 = vmatpush1.msra.mxu0 0.0
    %664 = vmatprep.subr.mxu0 0.0
    %665 = vmatpush1.msra.mxu0 0.0
    %666 = vmatprep.subr.mxu0 0.0
    %667 = vmatpush1.msra.mxu0 0.0
    %668 = vmatprep.subr.mxu0 0.0
    %669 = vmatpush1.msra.mxu0 0.0
    %670 = vmatprep.subr.mxu0 0.0
    %671 = vmatpush1.msra.mxu0 0.0
    %672 = vmatprep.subr.mxu0 0.0
    %673 = vmatpush1.msra.mxu0 0.0
    %674 = vmatprep.subr.mxu0 0.0
    %675 = vmatpush1.msra.mxu0 0.0
    %676 = vmatprep.subr.mxu0 0.0
    %677 = vmatpush1.msra.mxu0 0.0
    %678 = vmatprep.subr.mxu0 0.0
    %679 = vmatpush1.msra.mxu0 0.0
    %680 = vmatprep.subr.mxu0 0.0
    %681 = vmatpush1.msra.mxu0 0.0
    %682 = vmatprep.subr.mxu0 0.0
    %683 = vmatpush1.msra.mxu0 0.0
    %684 = vmatprep.subr.mxu0 0.0
    %685 = vmatpush1.msra.mxu0 0.0
    %686 = vmatprep.subr.mxu0 0.0
    %687 = vmatpush1.msra.mxu0 0.0
    %688 = vmatprep.subr.mxu0 0.0
    %689 = vmatpush1.msra.mxu0 0.0
    %690 = vmatprep.subr.mxu0 0.0
    %691 = vmatpush1.msra.mxu0 0.0
    %692 = vmatprep.subr.mxu0 0.0
    %693 = vmatpush1.msra.mxu0 0.0
    %694 = vmatprep.subr.mxu0 0.0
    %695 = vmatpush1.msra.mxu0 0.0
    %696 = vmatprep.mubr.f32.mxu0 0.0
    %697 = vmatmul.mubr.f32.gmra.mrb[0].mxu0 %v630
    %v698 = vpop.f32.mrb[0].mxu0
    %v699 = vadd.f32 0.0, %v698
    %v700 = vpop.f32.mrb[0].mxu0
    %701 = vdwg.mxu0
    %v702 = vmul.f32 %v699, 0.5
    %704 = vrot.lane.b32.xlu0 %v699, 96
    %v705 = vpop.permute.xlu0 %704
    %vm706 = vcmask 31744
    %v708 = vsel %vm706, %v702, 0
    %v710 = vsel %vm706, %v705, 0
    %712 = vmatprep.subr.mxu0 0.0
    %713 = vmatpush1.xpose.msra.mxu0 %v710
    %714 = vmatprep.subr.mxu0 0.0
    %715 = vmatpush1.xpose.msra.mxu0 0.0
    %716 = vmatprep.subr.mxu0 0.0
    %717 = vmatpush1.xpose.msra.mxu0 0.0
    %718 = vmatprep.subr.mxu0 0.0
    %719 = vmatpush1.xpose.msra.mxu0 0.0
    %720 = vmatprep.subr.mxu0 0.0
    %721 = vmatpush1.xpose.msra.mxu0 0.0
    %722 = vmatprep.subr.mxu0 0.0
    %723 = vmatpush1.xpose.msra.mxu0 0.0
    %724 = vmatprep.subr.mxu0 0.0
    %725 = vmatpush1.xpose.msra.mxu0 0.0
    %726 = vmatprep.subr.mxu0 0.0
    %727 = vmatpush1.xpose.msra.mxu0 0.0
    %728 = vmatprep.subr.mxu0 0.0
    %729 = vmatpush1.xpose.msra.mxu0 0.0
    %730 = vmatprep.subr.mxu0 0.0
    %731 = vmatpush1.xpose.msra.mxu0 0.0
    %732 = vmatprep.subr.mxu0 0.0
    %733 = vmatpush1.xpose.msra.mxu0 0.0
    %734 = vmatprep.subr.mxu0 0.0
    %735 = vmatpush1.xpose.msra.mxu0 0.0
    %736 = vmatprep.subr.mxu0 0.0
    %737 = vmatpush1.xpose.msra.mxu0 0.0
    %738 = vmatprep.subr.mxu0 0.0
    %739 = vmatpush1.xpose.msra.mxu0 0.0
    %740 = vmatprep.subr.mxu0 0.0
    %741 = vmatpush1.xpose.msra.mxu0 0.0
    %742 = vmatprep.subr.mxu0 0.0
    %743 = vmatpush1.xpose.msra.mxu0 0.0
    %744 = vmatprep.subr.mxu0 0.0
    %745 = vmatpush1.xpose.msra.mxu0 0.0
    %746 = vmatprep.subr.mxu0 0.0
    %747 = vmatpush1.xpose.msra.mxu0 0.0
    %748 = vmatprep.subr.mxu0 0.0
    %749 = vmatpush1.xpose.msra.mxu0 0.0
    %750 = vmatprep.subr.mxu0 0.0
    %751 = vmatpush1.xpose.msra.mxu0 0.0
    %752 = vmatprep.subr.mxu0 0.0
    %753 = vmatpush1.xpose.msra.mxu0 0.0
    %754 = vmatprep.subr.mxu0 0.0
    %755 = vmatpush1.xpose.msra.mxu0 0.0
    %756 = vmatprep.subr.mxu0 0.0
    %757 = vmatpush1.xpose.msra.mxu0 0.0
    %758 = vmatprep.subr.mxu0 0.0
    %759 = vmatpush1.xpose.msra.mxu0 0.0
    %760 = vmatprep.subr.mxu0 0.0
    %761 = vmatpush1.xpose.msra.mxu0 0.0
    %762 = vmatprep.subr.mxu0 0.0
    %763 = vmatpush1.xpose.msra.mxu0 0.0
    %764 = vmatprep.subr.mxu0 0.0
    %765 = vmatpush1.xpose.msra.mxu0 0.0
    %766 = vmatprep.subr.mxu0 0.0
    %767 = vmatpush1.xpose.msra.mxu0 0.0
    %768 = vmatprep.subr.mxu0 0.0
    %769 = vmatpush1.xpose.msra.mxu0 0.0
    %770 = vmatprep.subr.mxu0 0.0
    %771 = vmatpush1.xpose.msra.mxu0 0.0
    %772 = vmatprep.subr.mxu0 0.0
    %773 = vmatpush1.xpose.msra.mxu0 0.0
    %774 = vmatprep.subr.mxu0 0.0
    %775 = vmatpush1.xpose.msra.mxu0 0.0
    %776 = vmatprep.mubr.f32.mxu0 0.0
    %777 = vmatmul.mubr.f32.gmra.mrb[0].mxu0 %v708
    %v778 = vpop.f32.mrb[0].mxu0
    %v779 = vadd.f32 %v618, %v778
    %v780 = vpop.f32.mrb[0].mxu0
    %781 = vdwg.mxu0
    %vm782 = vcmask 27648
    %v783 = vsel %vm782, %v779, -inf
    %784 = vmax.xlane.f32.xlu0 %v783
    %v785 = vpop.xlane.xlu0 %784
    %v786 = vsub.f32 %v779, %v785
    %v787 = vmul.f32 %v786, 1.442695
    %v788 = vpow.pop %v787
    %v789 = vsel %vm782, %v788, 0.0
    %790 = vadd.xlane.f32.xlu0 %v789
    %v791 = vpop.xlane.xlu0 %790
    %v792 = vrcp.pop %v791
    %v793 = vmul.f32 %v788, %v792
    %v794 = vadd.f32 %v793, 0.0
    %795 = vrot.lane.b32.xlu0 %v699, 64
    %v796 = vpop.permute.xlu0 %795
    %v798 = vsel %vm706, %v793, 0
    %vm800 = vcmask 1043456
    %v801 = vsel %vm800, %v796, 0
    %803 = vmatprep.subr.mxu0 0.0
    %804 = vmatpush1.msra.mxu0 %v801
    %805 = vmatprep.subr.mxu0 0.0
    %806 = vmatpush1.msra.mxu0 0.0
    %807 = vmatprep.subr.mxu0 0.0
    %808 = vmatpush1.msra.mxu0 0.0
    %809 = vmatprep.subr.mxu0 0.0
    %810 = vmatpush1.msra.mxu0 0.0
    %811 = vmatprep.subr.mxu0 0.0
    %812 = vmatpush1.msra.mxu0 0.0
    %813 = vmatprep.subr.mxu0 0.0
    %814 = vmatpush1.msra.mxu0 0.0
    %815 = vmatprep.subr.mxu0 0.0
    %816 = vmatpush1.msra.mxu0 0.0
    %817 = vmatprep.subr.mxu0 0.0
    %818 = vmatpush1.msra.mxu0 0.0
    %819 = vmatprep.subr.mxu0 0.0
    %820 = vmatpush1.msra.mxu0 0.0
    %821 = vmatprep.subr.mxu0 0.0
    %822 = vmatpush1.msra.mxu0 0.0
    %823 = vmatprep.subr.mxu0 0.0
    %824 = vmatpush1.msra.mxu0 0.0
    %825 = vmatprep.subr.mxu0 0.0
    %826 = vmatpush1.msra.mxu0 0.0
    %827 = vmatprep.subr.mxu0 0.0
    %828 = vmatpush1.msra.mxu0 0.0
    %829 = vmatprep.subr.mxu0 0.0
    %830 = vmatpush1.msra.mxu0 0.0
    %831 = vmatprep.subr.mxu0 0.0
    %832 = vmatpush1.msra.mxu0 0.0
    %833 = vmatprep.subr.mxu0 0.0
    %834 = vmatpush1.msra.mxu0 0.0
    %835 = vmatprep.subr.mxu0 0.0
    %836 = vmatpush1.msra.mxu0 0.0
    %837 = vmatprep.subr.mxu0 0.0
    %838 = vmatpush1.msra.mxu0 0.0
    %839 = vmatprep.subr.mxu0 0.0
    %840 = vmatpush1.msra.mxu0 0.0
    %841 = vmatprep.subr.mxu0 0.0
    %842 = vmatpush1.msra.mxu0 0.0
    %843 = vmatprep.subr.mxu0 0.0
    %844 = vmatpush1.msra.mxu0 0.0
    %845 = vmatprep.subr.mxu0 0.0
    %846 = vmatpush1.msra.mxu0 0.0
    %847 = vmatprep.subr.mxu0 0.0
    %848 = vmatpush1.msra.mxu0 0.0
    %849 = vmatprep.subr.mxu0 0.0
    %850 = vmatpush1.msra.mxu0 0.0
    %851 = vmatprep.subr.mxu0 0.0
    %852 = vmatpush1.msra.mxu0 0.0
    %853 = vmatprep.subr.mxu0 0.0
    %854 = vmatpush1.msra.mxu0 0.0
    %855 = vmatprep.subr.mxu0 0.0
    %856 = vmatpush1.msra.mxu0 0.0
    %857 = vmatprep.subr.mxu0 0.0
    %858 = vmatpush1.msra.mxu0 0.0
    %859 = vmatprep.subr.mxu0 0.0
    %860 = vmatpush1.msra.mxu0 0.0
    %861 = vmatprep.subr.mxu0 0.0
    %862 = vmatpush1.msra.mxu0 0.0
    %863 = vmatprep.subr.mxu0 0.0
    %864 = vmatpush1.msra.mxu0 0.0
    %865 = vmatprep.subr.mxu0 0.0
    %866 = vmatpush1.msra.mxu0 0.0
    %867 = vmatprep.mubr.f32.mxu0 0.0
    %868 = vmatmul.mubr.f32.gmra.mrb[0].mxu0 %v798
    %v869 = vpop.f32.mrb[0].mxu0
    %v870 = vadd.f32 0.0, %v869
    %v871 = vpop.f32.mrb[0].mxu0
    %872 = vdwg.mxu0
    %873 = vrot.lane.b32.xlu0 %v702, 124
    %v874 = vpop.permute.xlu0 %873
    %875 = vrot.lane.b32.xlu0 %v699, 92
    %v876 = vpop.permute.xlu0 %875
    %v877 = vsel %vm706, %v874, 0
    %v879 = vsel %vm706, %v876, 0
    %881 = vmatprep.subr.mxu0 0.0
    %882 = vmatpush1.xpose.msra.mxu0 %v879
    %883 = vmatprep.subr.mxu0 0.0
    %884 = vmatpush1.xpose.msra.mxu0 0.0
    %885 = vmatprep.subr.mxu0 0.0
    %886 = vmatpush1.xpose.msra.mxu0 0.0
    %887 = vmatprep.subr.mxu0 0.0
    %888 = vmatpush1.xpose.msra.mxu0 0.0
    %889 = vmatprep.subr.mxu0 0.0
    %890 = vmatpush1.xpose.msra.mxu0 0.0
    %891 = vmatprep.subr.mxu0 0.0
    %892 = vmatpush1.xpose.msra.mxu0 0.0
    %893 = vmatprep.subr.mxu0 0.0
    %894 = vmatpush1.xpose.msra.mxu0 0.0
    %895 = vmatprep.subr.mxu0 0.0
    %896 = vmatpush1.xpose.msra.mxu0 0.0
    %897 = vmatprep.subr.mxu0 0.0
    %898 = vmatpush1.xpose.msra.mxu0 0.0
    %899 = vmatprep.subr.mxu0 0.0
    %900 = vmatpush1.xpose.msra.mxu0 0.0
    %901 = vmatprep.subr.mxu0 0.0
    %902 = vmatpush1.xpose.msra.mxu0 0.0
    %903 = vmatprep.subr.mxu0 0.0
    %904 = vmatpush1.xpose.msra.mxu0 0.0
    %905 = vmatprep.subr.mxu0 0.0
    %906 = vmatpush1.xpose.msra.mxu0 0.0
    %907 = vmatprep.subr.mxu0 0.0
    %908 = vmatpush1.xpose.msra.mxu0 0.0
    %909 = vmatprep.subr.mxu0 0.0
    %910 = vmatpush1.xpose.msra.mxu0 0.0
    %911 = vmatprep.subr.mxu0 0.0
    %912 = vmatpush1.xpose.msra.mxu0 0.0
    %913 = vmatprep.subr.mxu0 0.0
    %914 = vmatpush1.xpose.msra.mxu0 0.0
    %915 = vmatprep.subr.mxu0 0.0
    %916 = vmatpush1.xpose.msra.mxu0 0.0
    %917 = vmatprep.subr.mxu0 0.0
    %918 = vmatpush1.xpose.msra.mxu0 0.0
    %919 = vmatprep.subr.mxu0 0.0
    %920 = vmatpush1.xpose.msra.mxu0 0.0
    %921 = vmatprep.subr.mxu0 0.0
    %922 = vmatpush1.xpose.msra.mxu0 0.0
    %923 = vmatprep.subr.mxu0 0.0
    %924 = vmatpush1.xpose.msra.mxu0 0.0
    %925 = vmatprep.subr.mxu0 0.0
    %926 = vmatpush1.xpose.msra.mxu0 0.0
    %927 = vmatprep.subr.mxu0 0.0
    %928 = vmatpush1.xpose.msra.mxu0 0.0
    %929 = vmatprep.subr.mxu0 0.0
    %930 = vmatpush1.xpose.msra.mxu0 0.0
    %931 = vmatprep.subr.mxu0 0.0
    %932 = vmatpush1.xpose.msra.mxu0 0.0
    %933 = vmatprep.subr.mxu0 0.0
    %934 = vmatpush1.xpose.msra.mxu0 0.0
    %935 = vmatprep.subr.mxu0 0.0
    %936 = vmatpush1.xpose.msra.mxu0 0.0
    %937 = vmatprep.subr.mxu0 0.0
    %938 = vmatpush1.xpose.msra.mxu0 0.0
    %939 = vmatprep.subr.mxu0 0.0
    %940 = vmatpush1.xpose.msra.mxu0 0.0
    %941 = vmatprep.subr.mxu0 0.0
    %942 = vmatpush1.xpose.msra.mxu0 0.0
    %943 = vmatprep.subr.mxu0 0.0
    %944 = vmatpush1.xpose.msra.mxu0 0.0
    %945 = vmatprep.mubr.f32.mxu0 0.0
    %946 = vmatmul.mubr.f32.gmra.mrb[0].mxu0 %v877
    %v947 = vpop.f32.mrb[0].mxu0
    %v948 = vadd.f32 %v618, %v947
    %v949 = vpop.f32.mrb[0].mxu0
    %950 = vdwg.mxu0
    %v951 = vsel %vm782, %v948, -inf
    %952 = vmax.xlane.f32.xlu0 %v951
    %v953 = vpop.xlane.xlu0 %952
    %v954 = vsub.f32 %v948, %v953
    %v955 = vmul.f32 %v954, 1.442695
    %v956 = vpow.pop %v955
    %v957 = vsel %vm782, %v956, 0.0
    %958 = vadd.xlane.f32.xlu0 %v957
    %v959 = vpop.xlane.xlu0 %958
    %v960 = vrcp.pop %v959
    %v961 = vmul.f32 %v956, %v960
    %v962 = vadd.f32 %v794, %v961
    %963 = vrot.lane.b32.xlu0 %v699, 60
    %v964 = vpop.permute.xlu0 %963
    %v966 = vsel %vm706, %v961, 0
    %v968 = vsel %vm800, %v964, 0
    %970 = vmatprep.subr.mxu0 0.0
    %971 = vmatpush1.msra.mxu0 %v968
    %972 = vmatprep.subr.mxu0 0.0
    %973 = vmatpush1.msra.mxu0 0.0
    %974 = vmatprep.subr.mxu0 0.0
    %975 = vmatpush1.msra.mxu0 0.0
    %976 = vmatprep.subr.mxu0 0.0
    %977 = vmatpush1.msra.mxu0 0.0
    %978 = vmatprep.subr.mxu0 0.0
    %979 = vmatpush1.msra.mxu0 0.0
    %980 = vmatprep.subr.mxu0 0.0
    %981 = vmatpush1.msra.mxu0 0.0
    %982 = vmatprep.subr.mxu0 0.0
    %983 = vmatpush1.msra.mxu0 0.0
    %984 = vmatprep.subr.mxu0 0.0
    %985 = vmatpush1.msra.mxu0 0.0
    %986 = vmatprep.subr.mxu0 0.0
    %987 = vmatpush1.msra.mxu0 0.0
    %988 = vmatprep.subr.mxu0 0.0
    %989 = vmatpush1.msra.mxu0 0.0
    %990 = vmatprep.subr.mxu0 0.0
    %991 = vmatpush1.msra.mxu0 0.0
    %992 = vmatprep.subr.mxu0 0.0
    %993 = vmatpush1.msra.mxu0 0.0
    %994 = vmatprep.subr.mxu0 0.0
    %995 = vmatpush1.msra.mxu0 0.0
    %996 = vmatprep.subr.mxu0 0.0
    %997 = vmatpush1.msra.mxu0 0.0
    %998 = vmatprep.subr.mxu0 0.0
    %999 = vmatpush1.msra.mxu0 0.0
    %1000 = vmatprep.subr.mxu0 0.0
    %1001 = vmatpush1.msra.mxu0 0.0
    %1002 = vmatprep.subr.mxu0 0.0
    %1003 = vmatpush1.msra.mxu0 0.0
    %1004 = vmatprep.subr.mxu0 0.0
    %1005 = vmatpush1.msra.mxu0 0.0
    %1006 = vmatprep.subr.mxu0 0.0
    %1007 = vmatpush1.msra.mxu0 0.0
    %1008 = vmatprep.subr.mxu0 0.0
    %1009 = vmatpush1.msra.mxu0 0.0
    %1010 = vmatprep.subr.mxu0 0.0
    %1011 = vmatpush1.msra.mxu0 0.0
    %1012 = vmatprep.subr.mxu0 0.0
    %1013 = vmatpush1.msra.mxu0 0.0
    %1014 = vmatprep.subr.mxu0 0.0
    %1015 = vmatpush1.msra.mxu0 0.0
    %1016 = vmatprep.subr.mxu0 0.0
    %1017 = vmatpush1.msra.mxu0 0.0
    %1018 = vmatprep.subr.mxu0 0.0
    %1019 = vmatpush1.msra.mxu0 0.0
    %1020 = vmatprep.subr.mxu0 0.0
    %1021 = vmatpush1.msra.mxu0 0.0
    %1022 = vmatprep.subr.mxu0 0.0
    %1023 = vmatpush1.msra.mxu0 0.0
    %1024 = vmatprep.subr.mxu0 0.0
    %1025 = vmatpush1.msra.mxu0 0.0
    %1026 = vmatprep.subr.mxu0 0.0
    %1027 = vmatpush1.msra.mxu0 0.0
    %1028 = vmatprep.subr.mxu0 0.0
    %1029 = vmatpush1.msra.mxu0 0.0
    %1030 = vmatprep.subr.mxu0 0.0
    %1031 = vmatpush1.msra.mxu0 0.0
    %1032 = vmatprep.subr.mxu0 0.0
    %1033 = vmatpush1.msra.mxu0 0.0
    %1034 = vmatprep.mubr.f32.mxu0 0.0
    %1035 = vmatmul.mubr.f32.gmra.mrb[0].mxu0 %v966
    %v1036 = vpop.f32.mrb[0].mxu0
    %v1037 = vadd.f32 0.0, %v1036
    %v1038 = vpop.f32.mrb[0].mxu0
    %1039 = vdwg.mxu0
    %v1041 = vrot.slane %v623, 4
    %v1043 = vsel %vm706, %v1037, 0
    %v1045 = vsel %vm800, %v1041, 0
    %1047 = vmatprep.subr.mxu0 0.0
    %1048 = vmatpush1.msra.mxu0 %v1045
    %1049 = vmatprep.subr.mxu0 0.0
    %1050 = vmatpush1.msra.mxu0 0.0
    %1051 = vmatprep.subr.mxu0 0.0
    %1052 = vmatpush1.msra.mxu0 0.0
    %1053 = vmatprep.subr.mxu0 0.0
    %1054 = vmatpush1.msra.mxu0 0.0
    %1055 = vmatprep.subr.mxu0 0.0
    %1056 = vmatpush1.msra.mxu0 0.0
    %1057 = vmatprep.subr.mxu0 0.0
    %1058 = vmatpush1.msra.mxu0 0.0
    %1059 = vmatprep.subr.mxu0 0.0
    %1060 = vmatpush1.msra.mxu0 0.0
    %1061 = vmatprep.subr.mxu0 0.0
    %1062 = vmatpush1.msra.mxu0 0.0
    %1063 = vmatprep.subr.mxu0 0.0
    %1064 = vmatpush1.msra.mxu0 0.0
    %1065 = vmatprep.subr.mxu0 0.0
    %1066 = vmatpush1.msra.mxu0 0.0
    %1067 = vmatprep.subr.mxu0 0.0
    %1068 = vmatpush1.msra.mxu0 0.0
    %1069 = vmatprep.subr.mxu0 0.0
    %1070 = vmatpush1.msra.mxu0 0.0
    %1071 = vmatprep.subr.mxu0 0.0
    %1072 = vmatpush1.msra.mxu0 0.0
    %1073 = vmatprep.subr.mxu0 0.0
    %1074 = vmatpush1.msra.mxu0 0.0
    %1075 = vmatprep.subr.mxu0 0.0
    %1076 = vmatpush1.msra.mxu0 0.0
    %1077 = vmatprep.subr.mxu0 0.0
    %1078 = vmatpush1.msra.mxu0 0.0
    %1079 = vmatprep.subr.mxu0 0.0
    %1080 = vmatpush1.msra.mxu0 0.0
    %1081 = vmatprep.subr.mxu0 0.0
    %1082 = vmatpush1.msra.mxu0 0.0
    %1083 = vmatprep.subr.mxu0 0.0
    %1084 = vmatpush1.msra.mxu0 0.0
    %1085 = vmatprep.subr.mxu0 0.0
    %1086 = vmatpush1.msra.mxu0 0.0
    %1087 = vmatprep.subr.mxu0 0.0
    %1088 = vmatpush1.msra.mxu0 0.0
    %1089 = vmatprep.subr.mxu0 0.0
    %1090 = vmatpush1.msra.mxu0 0.0
    %1091 = vmatprep.subr.mxu0 0.0
    %1092 = vmatpush1.msra.mxu0 0.0
    %1093 = vmatprep.subr.mxu0 0.0
    %1094 = vmatpush1.msra.mxu0 0.0
    %1095 = vmatprep.subr.mxu0 0.0
    %1096 = vmatpush1.msra.mxu0 0.0
    %1097 = vmatprep.subr.mxu0 0.0
    %1098 = vmatpush1.msra.mxu0 0.0
    %1099 = vmatprep.subr.mxu0 0.0
    %1100 = vmatpush1.msra.mxu0 0.0
    %1101 = vmatprep.subr.mxu0 0.0
    %1102 = vmatpush1.msra.mxu0 0.0
    %1103 = vmatprep.subr.mxu0 0.0
    %1104 = vmatpush1.msra.mxu0 0.0
    %1105 = vmatprep.subr.mxu0 0.0
    %1106 = vmatpush1.msra.mxu0 0.0
    %1107 = vmatprep.subr.mxu0 0.0
    %1108 = vmatpush1.msra.mxu0 0.0
    %1109 = vmatprep.subr.mxu0 0.0
    %1110 = vmatpush1.msra.mxu0 0.0
    %1111 = vmatprep.mubr.f32.mxu0 0.0
    %1112 = vmatmul.mubr.f32.gmra.mrb[0].mxu0 %v1043
    %v1113 = vpop.f32.mrb[0].mxu0
    %v1114 = vadd.f32 0.0, %v1113
    %v1115 = vpop.f32.mrb[0].mxu0
    %1116 = vdwg.mxu0
    %v1118 = vsel %vm706, %v870, 0
    %v1120 = vsel %vm800, %v623, 0
    %1122 = vmatprep.subr.mxu0 0.0
    %1123 = vmatpush1.msra.mxu0 %v1120
    %1124 = vmatprep.subr.mxu0 0.0
    %1125 = vmatpush1.msra.mxu0 0.0
    %1126 = vmatprep.subr.mxu0 0.0
    %1127 = vmatpush1.msra.mxu0 0.0
    %1128 = vmatprep.subr.mxu0 0.0
    %1129 = vmatpush1.msra.mxu0 0.0
    %1130 = vmatprep.subr.mxu0 0.0
    %1131 = vmatpush1.msra.mxu0 0.0
    %1132 = vmatprep.subr.mxu0 0.0
    %1133 = vmatpush1.msra.mxu0 0.0
    %1134 = vmatprep.subr.mxu0 0.0
    %1135 = vmatpush1.msra.mxu0 0.0
    %1136 = vmatprep.subr.mxu0 0.0
    %1137 = vmatpush1.msra.mxu0 0.0
    %1138 = vmatprep.subr.mxu0 0.0
    %1139 = vmatpush1.msra.mxu0 0.0
    %1140 = vmatprep.subr.mxu0 0.0
    %1141 = vmatpush1.msra.mxu0 0.0
    %1142 = vmatprep.subr.mxu0 0.0
    %1143 = vmatpush1.msra.mxu0 0.0
    %1144 = vmatprep.subr.mxu0 0.0
    %1145 = vmatpush1.msra.mxu0 0.0
    %1146 = vmatprep.subr.mxu0 0.0
    %1147 = vmatpush1.msra.mxu0 0.0
    %1148 = vmatprep.subr.mxu0 0.0
    %1149 = vmatpush1.msra.mxu0 0.0
    %1150 = vmatprep.subr.mxu0 0.0
    %1151 = vmatpush1.msra.mxu0 0.0
    %1152 = vmatprep.subr.mxu0 0.0
    %1153 = vmatpush1.msra.mxu0 0.0
    %1154 = vmatprep.subr.mxu0 0.0
    %1155 = vmatpush1.msra.mxu0 0.0
    %1156 = vmatprep.subr.mxu0 0.0
    %1157 = vmatpush1.msra.mxu0 0.0
    %1158 = vmatprep.subr.mxu0 0.0
    %1159 = vmatpush1.msra.mxu0 0.0
    %1160 = vmatprep.subr.mxu0 0.0
    %1161 = vmatpush1.msra.mxu0 0.0
    %1162 = vmatprep.subr.mxu0 0.0
    %1163 = vmatpush1.msra.mxu0 0.0
    %1164 = vmatprep.subr.mxu0 0.0
    %1165 = vmatpush1.msra.mxu0 0.0
    %1166 = vmatprep.subr.mxu0 0.0
    %1167 = vmatpush1.msra.mxu0 0.0
    %1168 = vmatprep.subr.mxu0 0.0
    %1169 = vmatpush1.msra.mxu0 0.0
    %1170 = vmatprep.subr.mxu0 0.0
    %1171 = vmatpush1.msra.mxu0 0.0
    %1172 = vmatprep.subr.mxu0 0.0
    %1173 = vmatpush1.msra.mxu0 0.0
    %1174 = vmatprep.subr.mxu0 0.0
    %1175 = vmatpush1.msra.mxu0 0.0
    %1176 = vmatprep.subr.mxu0 0.0
    %1177 = vmatpush1.msra.mxu0 0.0
    %1178 = vmatprep.subr.mxu0 0.0
    %1179 = vmatpush1.msra.mxu0 0.0
    %1180 = vmatprep.subr.mxu0 0.0
    %1181 = vmatpush1.msra.mxu0 0.0
    %1182 = vmatprep.subr.mxu0 0.0
    %1183 = vmatpush1.msra.mxu0 0.0
    %1184 = vmatprep.subr.mxu0 0.0
    %1185 = vmatpush1.msra.mxu0 0.0
    %1186 = vmatprep.mubr.f32.mxu0 0.0
    %1187 = vmatmul.mubr.f32.gmra.mrb[0].mxu0 %v1118
    %v1188 = vpop.f32.mrb[0].mxu0
    %v1189 = vadd.f32 %v1114, %v1188
    %v1190 = vpop.f32.mrb[0].mxu0
    %1191 = vdwg.mxu0
    %1192 = vrot.lane.b32.xlu0 %v702, 120
    %v1193 = vpop.permute.xlu0 %1192
    %1194 = vrot.lane.b32.xlu0 %v699, 88
    %v1195 = vpop.permute.xlu0 %1194
    %v1196 = vsel %vm706, %v1193, 0
    %v1198 = vsel %vm706, %v1195, 0
    %1200 = vmatprep.subr.mxu0 0.0
    %1201 = vmatpush1.xpose.msra.mxu0 %v1198
    %1202 = vmatprep.subr.mxu0 0.0
    %1203 = vmatpush1.xpose.msra.mxu0 0.0
    %1204 = vmatprep.subr.mxu0 0.0
    %1205 = vmatpush1.xpose.msra.mxu0 0.0
    %1206 = vmatprep.subr.mxu0 0.0
    %1207 = vmatpush1.xpose.msra.mxu0 0.0
    %1208 = vmatprep.subr.mxu0 0.0
    %1209 = vmatpush1.xpose.msra.mxu0 0.0
    %1210 = vmatprep.subr.mxu0 0.0
    %1211 = vmatpush1.xpose.msra.mxu0 0.0
    %1212 = vmatprep.subr.mxu0 0.0
    %1213 = vmatpush1.xpose.msra.mxu0 0.0
    %1214 = vmatprep.subr.mxu0 0.0
    %1215 = vmatpush1.xpose.msra.mxu0 0.0
    %1216 = vmatprep.subr.mxu0 0.0
    %1217 = vmatpush1.xpose.msra.mxu0 0.0
    %1218 = vmatprep.subr.mxu0 0.0
    %1219 = vmatpush1.xpose.msra.mxu0 0.0
    %1220 = vmatprep.subr.mxu0 0.0
    %1221 = vmatpush1.xpose.msra.mxu0 0.0
    %1222 = vmatprep.subr.mxu0 0.0
    %1223 = vmatpush1.xpose.msra.mxu0 0.0
    %1224 = vmatprep.subr.mxu0 0.0
    %1225 = vmatpush1.xpose.msra.mxu0 0.0
    %1226 = vmatprep.subr.mxu0 0.0
    %1227 = vmatpush1.xpose.msra.mxu0 0.0
    %1228 = vmatprep.subr.mxu0 0.0
    %1229 = vmatpush1.xpose.msra.mxu0 0.0
    %1230 = vmatprep.subr.mxu0 0.0
    %1231 = vmatpush1.xpose.msra.mxu0 0.0
    %1232 = vmatprep.subr.mxu0 0.0
    %1233 = vmatpush1.xpose.msra.mxu0 0.0
    %1234 = vmatprep.subr.mxu0 0.0
    %1235 = vmatpush1.xpose.msra.mxu0 0.0
    %1236 = vmatprep.subr.mxu0 0.0
    %1237 = vmatpush1.xpose.msra.mxu0 0.0
    %1238 = vmatprep.subr.mxu0 0.0
    %1239 = vmatpush1.xpose.msra.mxu0 0.0
    %1240 = vmatprep.subr.mxu0 0.0
    %1241 = vmatpush1.xpose.msra.mxu0 0.0
    %1242 = vmatprep.subr.mxu0 0.0
    %1243 = vmatpush1.xpose.msra.mxu0 0.0
    %1244 = vmatprep.subr.mxu0 0.0
    %1245 = vmatpush1.xpose.msra.mxu0 0.0
    %1246 = vmatprep.subr.mxu0 0.0
    %1247 = vmatpush1.xpose.msra.mxu0 0.0
    %1248 = vmatprep.subr.mxu0 0.0
    %1249 = vmatpush1.xpose.msra.mxu0 0.0
    %1250 = vmatprep.subr.mxu0 0.0
    %1251 = vmatpush1.xpose.msra.mxu0 0.0
    %1252 = vmatprep.subr.mxu0 0.0
    %1253 = vmatpush1.xpose.msra.mxu0 0.0
    %1254 = vmatprep.subr.mxu0 0.0
    %1255 = vmatpush1.xpose.msra.mxu0 0.0
    %1256 = vmatprep.subr.mxu0 0.0
    %1257 = vmatpush1.xpose.msra.mxu0 0.0
    %1258 = vmatprep.subr.mxu0 0.0
    %1259 = vmatpush1.xpose.msra.mxu0 0.0
    %1260 = vmatprep.subr.mxu0 0.0
    %1261 = vmatpush1.xpose.msra.mxu0 0.0
    %1262 = vmatprep.subr.mxu0 0.0
    %1263 = vmatpush1.xpose.msra.mxu0 0.0
    %1264 = vmatprep.mubr.f32.mxu0 0.0
    %1265 = vmatmul.mubr.f32.gmra.mrb[0].mxu0 %v1196
    %v1266 = vpop.f32.mrb[0].mxu0
    %v1267 = vadd.f32 %v618, %v1266
    %v1268 = vpop.f32.mrb[0].mxu0
    %1269 = vdwg.mxu0
    %v1270 = vsel %vm782, %v1267, -inf
    %1271 = vmax.xlane.f32.xlu0 %v1270
    %v1272 = vpop.xlane.xlu0 %1271
    %v1273 = vsub.f32 %v1267, %v1272
    %v1274 = vmul.f32 %v1273, 1.442695
    %v1275 = vpow.pop %v1274
    %v1276 = vsel %vm782, %v1275, 0.0
    %1277 = vadd.xlane.f32.xlu0 %v1276
    %v1278 = vpop.xlane.xlu0 %1277
    %v1279 = vrcp.pop %v1278
    %v1280 = vmul.f32 %v1275, %v1279
    %v1281 = vadd.f32 %v962, %v1280
    %1282 = vrot.lane.b32.xlu0 %v699, 56
    %v1283 = vpop.permute.xlu0 %1282
    %v1285 = vsel %vm706, %v1280, 0
    %v1287 = vsel %vm800, %v1283, 0
    %1289 = vmatprep.subr.mxu0 0.0
    %1290 = vmatpush1.msra.mxu0 %v1287
    %1291 = vmatprep.subr.mxu0 0.0
    %1292 = vmatpush1.msra.mxu0 0.0
    %1293 = vmatprep.subr.mxu0 0.0
    %1294 = vmatpush1.msra.mxu0 0.0
    %1295 = vmatprep.subr.mxu0 0.0
    %1296 = vmatpush1.msra.mxu0 0.0
    %1297 = vmatprep.subr.mxu0 0.0
    %1298 = vmatpush1.msra.mxu0 0.0
    %1299 = vmatprep.subr.mxu0 0.0
    %1300 = vmatpush1.msra.mxu0 0.0
    %1301 = vmatprep.subr.mxu0 0.0
    %1302 = vmatpush1.msra.mxu0 0.0
    %1303 = vmatprep.subr.mxu0 0.0
    %1304 = vmatpush1.msra.mxu0 0.0
    %1305 = vmatprep.subr.mxu0 0.0
    %1306 = vmatpush1.msra.mxu0 0.0
    %1307 = vmatprep.subr.mxu0 0.0
    %1308 = vmatpush1.msra.mxu0 0.0
    %1309 = vmatprep.subr.mxu0 0.0
    %1310 = vmatpush1.msra.mxu0 0.0
    %1311 = vmatprep.subr.mxu0 0.0
    %1312 = vmatpush1.msra.mxu0 0.0
    %1313 = vmatprep.subr.mxu0 0.0
    %1314 = vmatpush1.msra.mxu0 0.0
    %1315 = vmatprep.subr.mxu0 0.0
    %1316 = vmatpush1.msra.mxu0 0.0
    %1317 = vmatprep.subr.mxu0 0.0
    %1318 = vmatpush1.msra.mxu0 0.0
    %1319 = vmatprep.subr.mxu0 0.0
    %1320 = vmatpush1.msra.mxu0 0.0
    %1321 = vmatprep.subr.mxu0 0.0
    %1322 = vmatpush1.msra.mxu0 0.0
    %1323 = vmatprep.subr.mxu0 0.0
    %1324 = vmatpush1.msra.mxu0 0.0
    %1325 = vmatprep.subr.mxu0 0.0
    %1326 = vmatpush1.msra.mxu0 0.0
    %1327 = vmatprep.subr.mxu0 0.0
    %1328 = vmatpush1.msra.mxu0 0.0
    %1329 = vmatprep.subr.mxu0 0.0
    %1330 = vmatpush1.msra.mxu0 0.0
    %1331 = vmatprep.subr.mxu0 0.0
    %1332 = vmatpush1.msra.mxu0 0.0
    %1333 = vmatprep.subr.mxu0 0.0
    %1334 = vmatpush1.msra.mxu0 0.0
    %1335 = vmatprep.subr.mxu0 0.0
    %1336 = vmatpush1.msra.mxu0 0.0
    %1337 = vmatprep.subr.mxu0 0.0
    %1338 = vmatpush1.msra.mxu0 0.0
    %1339 = vmatprep.subr.mxu0 0.0
    %1340 = vmatpush1.msra.mxu0 0.0
    %1341 = vmatprep.subr.mxu0 0.0
    %1342 = vmatpush1.msra.mxu0 0.0
    %1343 = vmatprep.subr.mxu0 0.0
    %1344 = vmatpush1.msra.mxu0 0.0
    %1345 = vmatprep.subr.mxu0 0.0
    %1346 = vmatpush1.msra.mxu0 0.0
    %1347 = vmatprep.subr.mxu0 0.0
    %1348 = vmatpush1.msra.mxu0 0.0
    %1349 = vmatprep.subr.mxu0 0.0
    %1350 = vmatpush1.msra.mxu0 0.0
    %1351 = vmatprep.subr.mxu0 0.0
    %1352 = vmatpush1.msra.mxu0 0.0
    %1353 = vmatprep.mubr.f32.mxu0 0.0
    %1354 = vmatmul.mubr.f32.gmra.mrb[0].mxu0 %v1285
    %v1355 = vpop.f32.mrb[0].mxu0
    %v1356 = vadd.f32 0.0, %v1355
    %v1357 = vpop.f32.mrb[0].mxu0
    %1358 = vdwg.mxu0
    %v1360 = vsel %vm706, %v1356, 0
    %v1363 = vsel %vm800, %v624, 0
    %1365 = vmatprep.subr.mxu0 0.0
    %1366 = vmatpush1.msra.mxu0 %v1363
    %1367 = vmatprep.subr.mxu0 0.0
    %1368 = vmatpush1.msra.mxu0 0.0
    %1369 = vmatprep.subr.mxu0 0.0
    %1370 = vmatpush1.msra.mxu0 0.0
    %1371 = vmatprep.subr.mxu0 0.0
    %1372 = vmatpush1.msra.mxu0 0.0
    %1373 = vmatprep.subr.mxu0 0.0
    %1374 = vmatpush1.msra.mxu0 0.0
    %1375 = vmatprep.subr.mxu0 0.0
    %1376 = vmatpush1.msra.mxu0 0.0
    %1377 = vmatprep.subr.mxu0 0.0
    %1378 = vmatpush1.msra.mxu0 0.0
    %1379 = vmatprep.subr.mxu0 0.0
    %1380 = vmatpush1.msra.mxu0 0.0
    %1381 = vmatprep.subr.mxu0 0.0
    %1382 = vmatpush1.msra.mxu0 0.0
    %1383 = vmatprep.subr.mxu0 0.0
    %1384 = vmatpush1.msra.mxu0 0.0
    %1385 = vmatprep.subr.mxu0 0.0
    %1386 = vmatpush1.msra.mxu0 0.0
    %1387 = vmatprep.subr.mxu0 0.0
    %1388 = vmatpush1.msra.mxu0 0.0
    %1389 = vmatprep.subr.mxu0 0.0
    %1390 = vmatpush1.msra.mxu0 0.0
    %1391 = vmatprep.subr.mxu0 0.0
    %1392 = vmatpush1.msra.mxu0 0.0
    %1393 = vmatprep.subr.mxu0 0.0
    %1394 = vmatpush1.msra.mxu0 0.0
    %1395 = vmatprep.subr.mxu0 0.0
    %1396 = vmatpush1.msra.mxu0 0.0
    %1397 = vmatprep.subr.mxu0 0.0
    %1398 = vmatpush1.msra.mxu0 0.0
    %1399 = vmatprep.subr.mxu0 0.0
    %1400 = vmatpush1.msra.mxu0 0.0
    %1401 = vmatprep.subr.mxu0 0.0
    %1402 = vmatpush1.msra.mxu0 0.0
    %1403 = vmatprep.subr.mxu0 0.0
    %1404 = vmatpush1.msra.mxu0 0.0
    %1405 = vmatprep.subr.mxu0 0.0
    %1406 = vmatpush1.msra.mxu0 0.0
    %1407 = vmatprep.subr.mxu0 0.0
    %1408 = vmatpush1.msra.mxu0 0.0
    %1409 = vmatprep.subr.mxu0 0.0
    %1410 = vmatpush1.msra.mxu0 0.0
    %1411 = vmatprep.subr.mxu0 0.0
    %1412 = vmatpush1.msra.mxu0 0.0
    %1413 = vmatprep.subr.mxu0 0.0
    %1414 = vmatpush1.msra.mxu0 0.0
    %1415 = vmatprep.subr.mxu0 0.0
    %1416 = vmatpush1.msra.mxu0 0.0
    %1417 = vmatprep.subr.mxu0 0.0
    %1418 = vmatpush1.msra.mxu0 0.0
    %1419 = vmatprep.subr.mxu0 0.0
    %1420 = vmatpush1.msra.mxu0 0.0
    %1421 = vmatprep.subr.mxu0 0.0
    %1422 = vmatpush1.msra.mxu0 0.0
    %1423 = vmatprep.subr.mxu0 0.0
    %1424 = vmatpush1.msra.mxu0 0.0
    %1425 = vmatprep.subr.mxu0 0.0
    %1426 = vmatpush1.msra.mxu0 0.0
    %1427 = vmatprep.subr.mxu0 0.0
    %1428 = vmatpush1.msra.mxu0 0.0
    %1429 = vmatprep.mubr.f32.mxu0 0.0
    %1430 = vmatmul.mubr.f32.gmra.mrb[0].mxu0 %v1360
    %v1431 = vpop.f32.mrb[0].mxu0
    %v1432 = vadd.f32 0.0, %v1431
    %v1433 = vpop.f32.mrb[0].mxu0
    %1434 = vdwg.mxu0
    %v1435 = vadd.f32 %v1189, %v1432
    %1436 = vrot.lane.b32.xlu0 %v702, 116
    %v1437 = vpop.permute.xlu0 %1436
    %1438 = vrot.lane.b32.xlu0 %v699, 84
    %v1439 = vpop.permute.xlu0 %1438
    %v1440 = vsel %vm706, %v1437, 0
    %v1442 = vsel %vm706, %v1439, 0
    %1444 = vmatprep.subr.mxu0 0.0
    %1445 = vmatpush1.xpose.msra.mxu0 %v1442
    %1446 = vmatprep.subr.mxu0 0.0
    %1447 = vmatpush1.xpose.msra.mxu0 0.0
    %1448 = vmatprep.subr.mxu0 0.0
    %1449 = vmatpush1.xpose.msra.mxu0 0.0
    %1450 = vmatprep.subr.mxu0 0.0
    %1451 = vmatpush1.xpose.msra.mxu0 0.0
    %1452 = vmatprep.subr.mxu0 0.0
    %1453 = vmatpush1.xpose.msra.mxu0 0.0
    %1454 = vmatprep.subr.mxu0 0.0
    %1455 = vmatpush1.xpose.msra.mxu0 0.0
    %1456 = vmatprep.subr.mxu0 0.0
    %1457 = vmatpush1.xpose.msra.mxu0 0.0
    %1458 = vmatprep.subr.mxu0 0.0
    %1459 = vmatpush1.xpose.msra.mxu0 0.0
    %1460 = vmatprep.subr.mxu0 0.0
    %1461 = vmatpush1.xpose.msra.mxu0 0.0
    %1462 = vmatprep.subr.mxu0 0.0
    %1463 = vmatpush1.xpose.msra.mxu0 0.0
    %1464 = vmatprep.subr.mxu0 0.0
    %1465 = vmatpush1.xpose.msra.mxu0 0.0
    %1466 = vmatprep.subr.mxu0 0.0
    %1467 = vmatpush1.xpose.msra.mxu0 0.0
    %1468 = vmatprep.subr.mxu0 0.0
    %1469 = vmatpush1.xpose.msra.mxu0 0.0
    %1470 = vmatprep.subr.mxu0 0.0
    %1471 = vmatpush1.xpose.msra.mxu0 0.0
    %1472 = vmatprep.subr.mxu0 0.0
    %1473 = vmatpush1.xpose.msra.mxu0 0.0
    %1474 = vmatprep.subr.mxu0 0.0
    %1475 = vmatpush1.xpose.msra.mxu0 0.0
    %1476 = vmatprep.subr.mxu0 0.0
    %1477 = vmatpush1.xpose.msra.mxu0 0.0
    %1478 = vmatprep.subr.mxu0 0.0
    %1479 = vmatpush1.xpose.msra.mxu0 0.0
    %1480 = vmatprep.subr.mxu0 0.0
    %1481 = vmatpush1.xpose.msra.mxu0 0.0
    %1482 = vmatprep.subr.mxu0 0.0
    %1483 = vmatpush1.xpose.msra.mxu0 0.0
    %1484 = vmatprep.subr.mxu0 0.0
    %1485 = vmatpush1.xpose.msra.mxu0 0.0
    %1486 = vmatprep.subr.mxu0 0.0
    %1487 = vmatpush1.xpose.msra.mxu0 0.0
    %1488 = vmatprep.subr.mxu0 0.0
    %1489 = vmatpush1.xpose.msra.mxu0 0.0
    %1490 = vmatprep.subr.mxu0 0.0
    %1491 = vmatpush1.xpose.msra.mxu0 0.0
    %1492 = vmatprep.subr.mxu0 0.0
    %1493 = vmatpush1.xpose.msra.mxu0 0.0
    %1494 = vmatprep.subr.mxu0 0.0
    %1495 = vmatpush1.xpose.msra.mxu0 0.0
    %1496 = vmatprep.subr.mxu0 0.0
    %1497 = vmatpush1.xpose.msra.mxu0 0.0
    %1498 = vmatprep.subr.mxu0 0.0
    %1499 = vmatpush1.xpose.msra.mxu0 0.0
    %1500 = vmatprep.subr.mxu0 0.0
    %1501 = vmatpush1.xpose.msra.mxu0 0.0
    %1502 = vmatprep.subr.mxu0 0.0
    %1503 = vmatpush1.xpose.msra.mxu0 0.0
    %1504 = vmatprep.subr.mxu0 0.0
    %1505 = vmatpush1.xpose.msra.mxu0 0.0
    %1506 = vmatprep.subr.mxu0 0.0
    %1507 = vmatpush1.xpose.msra.mxu0 0.0
    %1508 = vmatprep.mubr.f32.mxu0 0.0
    %1509 = vmatmul.mubr.f32.gmra.mrb[0].mxu0 %v1440
    %v1510 = vpop.f32.mrb[0].mxu0
    %v1511 = vadd.f32 %v618, %v1510
    %v1512 = vpop.f32.mrb[0].mxu0
    %1513 = vdwg.mxu0
    %v1514 = vsel %vm782, %v1511, -inf
    %1515 = vmax.xlane.f32.xlu0 %v1514
    %v1516 = vpop.xlane.xlu0 %1515
    %v1517 = vsub.f32 %v1511, %v1516
    %v1518 = vmul.f32 %v1517, 1.442695
    %v1519 = vpow.pop %v1518
    %v1520 = vsel %vm782, %v1519, 0.0
    %1521 = vadd.xlane.f32.xlu0 %v1520
    %v1522 = vpop.xlane.xlu0 %1521
    %v1523 = vrcp.pop %v1522
    %v1524 = vmul.f32 %v1519, %v1523
    %v1525 = vadd.f32 %v1281, %v1524
    %1526 = vrot.lane.b32.xlu0 %v699, 52
    %v1527 = vpop.permute.xlu0 %1526
    %v1529 = vsel %vm706, %v1524, 0
    %v1531 = vsel %vm800, %v1527, 0
    %1533 = vmatprep.subr.mxu0 0.0
    %1534 = vmatpush1.msra.mxu0 %v1531
    %1535 = vmatprep.subr.mxu0 0.0
    %1536 = vmatpush1.msra.mxu0 0.0
    %1537 = vmatprep.subr.mxu0 0.0
    %1538 = vmatpush1.msra.mxu0 0.0
    %1539 = vmatprep.subr.mxu0 0.0
    %1540 = vmatpush1.msra.mxu0 0.0
    %1541 = vmatprep.subr.mxu0 0.0
    %1542 = vmatpush1.msra.mxu0 0.0
    %1543 = vmatprep.subr.mxu0 0.0
    %1544 = vmatpush1.msra.mxu0 0.0
    %1545 = vmatprep.subr.mxu0 0.0
    %1546 = vmatpush1.msra.mxu0 0.0
    %1547 = vmatprep.subr.mxu0 0.0
    %1548 = vmatpush1.msra.mxu0 0.0
    %1549 = vmatprep.subr.mxu0 0.0
    %1550 = vmatpush1.msra.mxu0 0.0
    %1551 = vmatprep.subr.mxu0 0.0
    %1552 = vmatpush1.msra.mxu0 0.0
    %1553 = vmatprep.subr.mxu0 0.0
    %1554 = vmatpush1.msra.mxu0 0.0
    %1555 = vmatprep.subr.mxu0 0.0
    %1556 = vmatpush1.msra.mxu0 0.0
    %1557 = vmatprep.subr.mxu0 0.0
    %1558 = vmatpush1.msra.mxu0 0.0
    %1559 = vmatprep.subr.mxu0 0.0
    %1560 = vmatpush1.msra.mxu0 0.0
    %1561 = vmatprep.subr.mxu0 0.0
    %1562 = vmatpush1.msra.mxu0 0.0
    %1563 = vmatprep.subr.mxu0 0.0
    %1564 = vmatpush1.msra.mxu0 0.0
    %1565 = vmatprep.subr.mxu0 0.0
    %1566 = vmatpush1.msra.mxu0 0.0
    %1567 = vmatprep.subr.mxu0 0.0
    %1568 = vmatpush1.msra.mxu0 0.0
    %1569 = vmatprep.subr.mxu0 0.0
    %1570 = vmatpush1.msra.mxu0 0.0
    %1571 = vmatprep.subr.mxu0 0.0
    %1572 = vmatpush1.msra.mxu0 0.0
    %1573 = vmatprep.subr.mxu0 0.0
    %1574 = vmatpush1.msra.mxu0 0.0
    %1575 = vmatprep.subr.mxu0 0.0
    %1576 = vmatpush1.msra.mxu0 0.0
    %1577 = vmatprep.subr.mxu0 0.0
    %1578 = vmatpush1.msra.mxu0 0.0
    %1579 = vmatprep.subr.mxu0 0.0
    %1580 = vmatpush1.msra.mxu0 0.0
    %1581 = vmatprep.subr.mxu0 0.0
    %1582 = vmatpush1.msra.mxu0 0.0
    %1583 = vmatprep.subr.mxu0 0.0
    %1584 = vmatpush1.msra.mxu0 0.0
    %1585 = vmatprep.subr.mxu0 0.0
    %1586 = vmatpush1.msra.mxu0 0.0
    %1587 = vmatprep.subr.mxu0 0.0
    %1588 = vmatpush1.msra.mxu0 0.0
    %1589 = vmatprep.subr.mxu0 0.0
    %1590 = vmatpush1.msra.mxu0 0.0
    %1591 = vmatprep.subr.mxu0 0.0
    %1592 = vmatpush1.msra.mxu0 0.0
    %1593 = vmatprep.subr.mxu0 0.0
    %1594 = vmatpush1.msra.mxu0 0.0
    %1595 = vmatprep.subr.mxu0 0.0
    %1596 = vmatpush1.msra.mxu0 0.0
    %1597 = vmatprep.mubr.f32.mxu0 0.0
    %1598 = vmatmul.mubr.f32.gmra.mrb[0].mxu0 %v1529
    %v1599 = vpop.f32.mrb[0].mxu0
    %v1600 = vadd.f32 0.0, %v1599
    %v1601 = vpop.f32.mrb[0].mxu0
    %1602 = vdwg.mxu0
    %v1603 = vrot.slane %v624, 4
    %v1605 = vsel %vm706, %v1600, 0
    %v1607 = vsel %vm800, %v1603, 0
    %1609 = vmatprep.subr.mxu0 0.0
    %1610 = vmatpush1.msra.mxu0 %v1607
    %1611 = vmatprep.subr.mxu0 0.0
    %1612 = vmatpush1.msra.mxu0 0.0
    %1613 = vmatprep.subr.mxu0 0.0
    %1614 = vmatpush1.msra.mxu0 0.0
    %1615 = vmatprep.subr.mxu0 0.0
    %1616 = vmatpush1.msra.mxu0 0.0
    %1617 = vmatprep.subr.mxu0 0.0
    %1618 = vmatpush1.msra.mxu0 0.0
    %1619 = vmatprep.subr.mxu0 0.0
    %1620 = vmatpush1.msra.mxu0 0.0
    %1621 = vmatprep.subr.mxu0 0.0
    %1622 = vmatpush1.msra.mxu0 0.0
    %1623 = vmatprep.subr.mxu0 0.0
    %1624 = vmatpush1.msra.mxu0 0.0
    %1625 = vmatprep.subr.mxu0 0.0
    %1626 = vmatpush1.msra.mxu0 0.0
    %1627 = vmatprep.subr.mxu0 0.0
    %1628 = vmatpush1.msra.mxu0 0.0
    %1629 = vmatprep.subr.mxu0 0.0
    %1630 = vmatpush1.msra.mxu0 0.0
    %1631 = vmatprep.subr.mxu0 0.0
    %1632 = vmatpush1.msra.mxu0 0.0
    %1633 = vmatprep.subr.mxu0 0.0
    %1634 = vmatpush1.msra.mxu0 0.0
    %1635 = vmatprep.subr.mxu0 0.0
    %1636 = vmatpush1.msra.mxu0 0.0
    %1637 = vmatprep.subr.mxu0 0.0
    %1638 = vmatpush1.msra.mxu0 0.0
    %1639 = vmatprep.subr.mxu0 0.0
    %1640 = vmatpush1.msra.mxu0 0.0
    %1641 = vmatprep.subr.mxu0 0.0
    %1642 = vmatpush1.msra.mxu0 0.0
    %1643 = vmatprep.subr.mxu0 0.0
    %1644 = vmatpush1.msra.mxu0 0.0
    %1645 = vmatprep.subr.mxu0 0.0
    %1646 = vmatpush1.msra.mxu0 0.0
    %1647 = vmatprep.subr.mxu0 0.0
    %1648 = vmatpush1.msra.mxu0 0.0
    %1649 = vmatprep.subr.mxu0 0.0
    %1650 = vmatpush1.msra.mxu0 0.0
    %1651 = vmatprep.subr.mxu0 0.0
    %1652 = vmatpush1.msra.mxu0 0.0
    %1653 = vmatprep.subr.mxu0 0.0
    %1654 = vmatpush1.msra.mxu0 0.0
    %1655 = vmatprep.subr.mxu0 0.0
    %1656 = vmatpush1.msra.mxu0 0.0
    %1657 = vmatprep.subr.mxu0 0.0
    %1658 = vmatpush1.msra.mxu0 0.0
    %1659 = vmatprep.subr.mxu0 0.0
    %1660 = vmatpush1.msra.mxu0 0.0
    %1661 = vmatprep.subr.mxu0 0.0
    %1662 = vmatpush1.msra.mxu0 0.0
    %1663 = vmatprep.subr.mxu0 0.0
    %1664 = vmatpush1.msra.mxu0 0.0
    %1665 = vmatprep.subr.mxu0 0.0
    %1666 = vmatpush1.msra.mxu0 0.0
    %1667 = vmatprep.subr.mxu0 0.0
    %1668 = vmatpush1.msra.mxu0 0.0
    %1669 = vmatprep.subr.mxu0 0.0
    %1670 = vmatpush1.msra.mxu0 0.0
    %1671 = vmatprep.subr.mxu0 0.0
    %1672 = vmatpush1.msra.mxu0 0.0
    %1673 = vmatprep.mubr.f32.mxu0 0.0
    %1674 = vmatmul.mubr.f32.gmra.mrb[0].mxu0 %v1605
    %v1675 = vpop.f32.mrb[0].mxu0
    %v1676 = vadd.f32 0.0, %v1675
    %v1677 = vpop.f32.mrb[0].mxu0
    %1678 = vdwg.mxu0
    %v1679 = vadd.f32 %v1435, %v1676
    %1680 = vrot.lane.b32.xlu0 %v702, 112
    %v1681 = vpop.permute.xlu0 %1680
    %1682 = vrot.lane.b32.xlu0 %v699, 80
    %v1683 = vpop.permute.xlu0 %1682
    %v1684 = vsel %vm706, %v1681, 0
    %v1686 = vsel %vm706, %v1683, 0
    %1688 = vmatprep.subr.mxu0 0.0
    %1689 = vmatpush1.xpose.msra.mxu0 %v1686
    %1690 = vmatprep.subr.mxu0 0.0
    %1691 = vmatpush1.xpose.msra.mxu0 0.0
    %1692 = vmatprep.subr.mxu0 0.0
    %1693 = vmatpush1.xpose.msra.mxu0 0.0
    %1694 = vmatprep.subr.mxu0 0.0
    %1695 = vmatpush1.xpose.msra.mxu0 0.0
    %1696 = vmatprep.subr.mxu0 0.0
    %1697 = vmatpush1.xpose.msra.mxu0 0.0
    %1698 = vmatprep.subr.mxu0 0.0
    %1699 = vmatpush1.xpose.msra.mxu0 0.0
    %1700 = vmatprep.subr.mxu0 0.0
    %1701 = vmatpush1.xpose.msra.mxu0 0.0
    %1702 = vmatprep.subr.mxu0 0.0
    %1703 = vmatpush1.xpose.msra.mxu0 0.0
    %1704 = vmatprep.subr.mxu0 0.0
    %1705 = vmatpush1.xpose.msra.mxu0 0.0
    %1706 = vmatprep.subr.mxu0 0.0
    %1707 = vmatpush1.xpose.msra.mxu0 0.0
    %1708 = vmatprep.subr.mxu0 0.0
    %1709 = vmatpush1.xpose.msra.mxu0 0.0
    %1710 = vmatprep.subr.mxu0 0.0
    %1711 = vmatpush1.xpose.msra.mxu0 0.0
    %1712 = vmatprep.subr.mxu0 0.0
    %1713 = vmatpush1.xpose.msra.mxu0 0.0
    %1714 = vmatprep.subr.mxu0 0.0
    %1715 = vmatpush1.xpose.msra.mxu0 0.0
    %1716 = vmatprep.subr.mxu0 0.0
    %1717 = vmatpush1.xpose.msra.mxu0 0.0
    %1718 = vmatprep.subr.mxu0 0.0
    %1719 = vmatpush1.xpose.msra.mxu0 0.0
    %1720 = vmatprep.subr.mxu0 0.0
    %1721 = vmatpush1.xpose.msra.mxu0 0.0
    %1722 = vmatprep.subr.mxu0 0.0
    %1723 = vmatpush1.xpose.msra.mxu0 0.0
    %1724 = vmatprep.subr.mxu0 0.0
    %1725 = vmatpush1.xpose.msra.mxu0 0.0
    %1726 = vmatprep.subr.mxu0 0.0
    %1727 = vmatpush1.xpose.msra.mxu0 0.0
    %1728 = vmatprep.subr.mxu0 0.0
    %1729 = vmatpush1.xpose.msra.mxu0 0.0
    %1730 = vmatprep.subr.mxu0 0.0
    %1731 = vmatpush1.xpose.msra.mxu0 0.0
    %1732 = vmatprep.subr.mxu0 0.0
    %1733 = vmatpush1.xpose.msra.mxu0 0.0
    %1734 = vmatprep.subr.mxu0 0.0
    %1735 = vmatpush1.xpose.msra.mxu0 0.0
    %1736 = vmatprep.subr.mxu0 0.0
    %1737 = vmatpush1.xpose.msra.mxu0 0.0
    %1738 = vmatprep.subr.mxu0 0.0
    %1739 = vmatpush1.xpose.msra.mxu0 0.0
    %1740 = vmatprep.subr.mxu0 0.0
    %1741 = vmatpush1.xpose.msra.mxu0 0.0
    %1742 = vmatprep.subr.mxu0 0.0
    %1743 = vmatpush1.xpose.msra.mxu0 0.0
    %1744 = vmatprep.subr.mxu0 0.0
    %1745 = vmatpush1.xpose.msra.mxu0 0.0
    %1746 = vmatprep.subr.mxu0 0.0
    %1747 = vmatpush1.xpose.msra.mxu0 0.0
    %1748 = vmatprep.subr.mxu0 0.0
    %1749 = vmatpush1.xpose.msra.mxu0 0.0
    %1750 = vmatprep.subr.mxu0 0.0
    %1751 = vmatpush1.xpose.msra.mxu0 0.0
    %1752 = vmatprep.mubr.f32.mxu0 0.0
    %1753 = vmatmul.mubr.f32.gmra.mrb[0].mxu0 %v1684
    %v1754 = vpop.f32.mrb[0].mxu0
    %v1755 = vadd.f32 %v618, %v1754
    %v1756 = vpop.f32.mrb[0].mxu0
    %1757 = vdwg.mxu0
    %v1758 = vsel %vm782, %v1755, -inf
    %1759 = vmax.xlane.f32.xlu0 %v1758
    %v1760 = vpop.xlane.xlu0 %1759
    %v1761 = vsub.f32 %v1755, %v1760
    %v1762 = vmul.f32 %v1761, 1.442695
    %v1763 = vpow.pop %v1762
    %v1764 = vsel %vm782, %v1763, 0.0
    %1765 = vadd.xlane.f32.xlu0 %v1764
    %v1766 = vpop.xlane.xlu0 %1765
    %v1767 = vrcp.pop %v1766
    %v1768 = vmul.f32 %v1763, %v1767
    %v1769 = vadd.f32 %v1525, %v1768
    %1770 = vrot.lane.b32.xlu0 %v699, 48
    %v1771 = vpop.permute.xlu0 %1770
    %v1773 = vsel %vm706, %v1768, 0
    %v1775 = vsel %vm800, %v1771, 0
    %1777 = vmatprep.subr.mxu0 0.0
    %1778 = vmatpush1.msra.mxu0 %v1775
    %1779 = vmatprep.subr.mxu0 0.0
    %1780 = vmatpush1.msra.mxu0 0.0
    %1781 = vmatprep.subr.mxu0 0.0
    %1782 = vmatpush1.msra.mxu0 0.0
    %1783 = vmatprep.subr.mxu0 0.0
    %1784 = vmatpush1.msra.mxu0 0.0
    %1785 = vmatprep.subr.mxu0 0.0
    %1786 = vmatpush1.msra.mxu0 0.0
    %1787 = vmatprep.subr.mxu0 0.0
    %1788 = vmatpush1.msra.mxu0 0.0
    %1789 = vmatprep.subr.mxu0 0.0
    %1790 = vmatpush1.msra.mxu0 0.0
    %1791 = vmatprep.subr.mxu0 0.0
    %1792 = vmatpush1.msra.mxu0 0.0
    %1793 = vmatprep.subr.mxu0 0.0
    %1794 = vmatpush1.msra.mxu0 0.0
    %1795 = vmatprep.subr.mxu0 0.0
    %1796 = vmatpush1.msra.mxu0 0.0
    %1797 = vmatprep.subr.mxu0 0.0
    %1798 = vmatpush1.msra.mxu0 0.0
    %1799 = vmatprep.subr.mxu0 0.0
    %1800 = vmatpush1.msra.mxu0 0.0
    %1801 = vmatprep.subr.mxu0 0.0
    %1802 = vmatpush1.msra.mxu0 0.0
    %1803 = vmatprep.subr.mxu0 0.0
    %1804 = vmatpush1.msra.mxu0 0.0
    %1805 = vmatprep.subr.mxu0 0.0
    %1806 = vmatpush1.msra.mxu0 0.0
    %1807 = vmatprep.subr.mxu0 0.0
    %1808 = vmatpush1.msra.mxu0 0.0
    %1809 = vmatprep.subr.mxu0 0.0
    %1810 = vmatpush1.msra.mxu0 0.0
    %1811 = vmatprep.subr.mxu0 0.0
    %1812 = vmatpush1.msra.mxu0 0.0
    %1813 = vmatprep.subr.mxu0 0.0
    %1814 = vmatpush1.msra.mxu0 0.0
    %1815 = vmatprep.subr.mxu0 0.0
    %1816 = vmatpush1.msra.mxu0 0.0
    %1817 = vmatprep.subr.mxu0 0.0
    %1818 = vmatpush1.msra.mxu0 0.0
    %1819 = vmatprep.subr.mxu0 0.0
    %1820 = vmatpush1.msra.mxu0 0.0
    %1821 = vmatprep.subr.mxu0 0.0
    %1822 = vmatpush1.msra.mxu0 0.0
    %1823 = vmatprep.subr.mxu0 0.0
    %1824 = vmatpush1.msra.mxu0 0.0
    %1825 = vmatprep.subr.mxu0 0.0
    %1826 = vmatpush1.msra.mxu0 0.0
    %1827 = vmatprep.subr.mxu0 0.0
    %1828 = vmatpush1.msra.mxu0 0.0
    %1829 = vmatprep.subr.mxu0 0.0
    %1830 = vmatpush1.msra.mxu0 0.0
    %1831 = vmatprep.subr.mxu0 0.0
    %1832 = vmatpush1.msra.mxu0 0.0
    %1833 = vmatprep.subr.mxu0 0.0
    %1834 = vmatpush1.msra.mxu0 0.0
    %1835 = vmatprep.subr.mxu0 0.0
    %1836 = vmatpush1.msra.mxu0 0.0
    %1837 = vmatprep.subr.mxu0 0.0
    %1838 = vmatpush1.msra.mxu0 0.0
    %1839 = vmatprep.subr.mxu0 0.0
    %1840 = vmatpush1.msra.mxu0 0.0
    %1841 = vmatprep.mubr.f32.mxu0 0.0
    %1842 = vmatmul.mubr.f32.gmra.mrb[0].mxu0 %v1773
    %v1843 = vpop.f32.mrb[0].mxu0
    %v1844 = vadd.f32 0.0, %v1843
    %v1845 = vpop.f32.mrb[0].mxu0
    %1846 = vdwg.mxu0
    %v1848 = vsel %vm706, %v1844, 0
    %v1851 = vsel %vm800, %v625, 0
    %1853 = vmatprep.subr.mxu0 0.0
    %1854 = vmatpush1.msra.mxu0 %v1851
    %1855 = vmatprep.subr.mxu0 0.0
    %1856 = vmatpush1.msra.mxu0 0.0
    %1857 = vmatprep.subr.mxu0 0.0
    %1858 = vmatpush1.msra.mxu0 0.0
    %1859 = vmatprep.subr.mxu0 0.0
    %1860 = vmatpush1.msra.mxu0 0.0
    %1861 = vmatprep.subr.mxu0 0.0
    %1862 = vmatpush1.msra.mxu0 0.0
    %1863 = vmatprep.subr.mxu0 0.0
    %1864 = vmatpush1.msra.mxu0 0.0
    %1865 = vmatprep.subr.mxu0 0.0
    %1866 = vmatpush1.msra.mxu0 0.0
    %1867 = vmatprep.subr.mxu0 0.0
    %1868 = vmatpush1.msra.mxu0 0.0
    %1869 = vmatprep.subr.mxu0 0.0
    %1870 = vmatpush1.msra.mxu0 0.0
    %1871 = vmatprep.subr.mxu0 0.0
    %1872 = vmatpush1.msra.mxu0 0.0
    %1873 = vmatprep.subr.mxu0 0.0
    %1874 = vmatpush1.msra.mxu0 0.0
    %1875 = vmatprep.subr.mxu0 0.0
    %1876 = vmatpush1.msra.mxu0 0.0
    %1877 = vmatprep.subr.mxu0 0.0
    %1878 = vmatpush1.msra.mxu0 0.0
    %1879 = vmatprep.subr.mxu0 0.0
    %1880 = vmatpush1.msra.mxu0 0.0
    %1881 = vmatprep.subr.mxu0 0.0
    %1882 = vmatpush1.msra.mxu0 0.0
    %1883 = vmatprep.subr.mxu0 0.0
    %1884 = vmatpush1.msra.mxu0 0.0
    %1885 = vmatprep.subr.mxu0 0.0
    %1886 = vmatpush1.msra.mxu0 0.0
    %1887 = vmatprep.subr.mxu0 0.0
    %1888 = vmatpush1.msra.mxu0 0.0
    %1889 = vmatprep.subr.mxu0 0.0
    %1890 = vmatpush1.msra.mxu0 0.0
    %1891 = vmatprep.subr.mxu0 0.0
    %1892 = vmatpush1.msra.mxu0 0.0
    %1893 = vmatprep.subr.mxu0 0.0
    %1894 = vmatpush1.msra.mxu0 0.0
    %1895 = vmatprep.subr.mxu0 0.0
    %1896 = vmatpush1.msra.mxu0 0.0
    %1897 = vmatprep.subr.mxu0 0.0
    %1898 = vmatpush1.msra.mxu0 0.0
    %1899 = vmatprep.subr.mxu0 0.0
    %1900 = vmatpush1.msra.mxu0 0.0
    %1901 = vmatprep.subr.mxu0 0.0
    %1902 = vmatpush1.msra.mxu0 0.0
    %1903 = vmatprep.subr.mxu0 0.0
    %1904 = vmatpush1.msra.mxu0 0.0
    %1905 = vmatprep.subr.mxu0 0.0
    %1906 = vmatpush1.msra.mxu0 0.0
    %1907 = vmatprep.subr.mxu0 0.0
    %1908 = vmatpush1.msra.mxu0 0.0
    %1909 = vmatprep.subr.mxu0 0.0
    %1910 = vmatpush1.msra.mxu0 0.0
    %1911 = vmatprep.subr.mxu0 0.0
    %1912 = vmatpush1.msra.mxu0 0.0
    %1913 = vmatprep.subr.mxu0 0.0
    %1914 = vmatpush1.msra.mxu0 0.0
    %1915 = vmatprep.subr.mxu0 0.0
    %1916 = vmatpush1.msra.mxu0 0.0
    %1917 = vmatprep.mubr.f32.mxu0 0.0
    %1918 = vmatmul.mubr.f32.gmra.mrb[0].mxu0 %v1848
    %v1919 = vpop.f32.mrb[0].mxu0
    %v1920 = vadd.f32 0.0, %v1919
    %v1921 = vpop.f32.mrb[0].mxu0
    %1922 = vdwg.mxu0
    %v1923 = vadd.f32 %v1679, %v1920
    %1924 = vrot.lane.b32.xlu0 %v702, 108
    %v1925 = vpop.permute.xlu0 %1924
    %1926 = vrot.lane.b32.xlu0 %v699, 76
    %v1927 = vpop.permute.xlu0 %1926
    %v1928 = vsel %vm706, %v1925, 0
    %v1930 = vsel %vm706, %v1927, 0
    %1932 = vmatprep.subr.mxu0 0.0
    %1933 = vmatpush1.xpose.msra.mxu0 %v1930
    %1934 = vmatprep.subr.mxu0 0.0
    %1935 = vmatpush1.xpose.msra.mxu0 0.0
    %1936 = vmatprep.subr.mxu0 0.0
    %1937 = vmatpush1.xpose.msra.mxu0 0.0
    %1938 = vmatprep.subr.mxu0 0.0
    %1939 = vmatpush1.xpose.msra.mxu0 0.0
    %1940 = vmatprep.subr.mxu0 0.0
    %1941 = vmatpush1.xpose.msra.mxu0 0.0
    %1942 = vmatprep.subr.mxu0 0.0
    %1943 = vmatpush1.xpose.msra.mxu0 0.0
    %1944 = vmatprep.subr.mxu0 0.0
    %1945 = vmatpush1.xpose.msra.mxu0 0.0
    %1946 = vmatprep.subr.mxu0 0.0
    %1947 = vmatpush1.xpose.msra.mxu0 0.0
    %1948 = vmatprep.subr.mxu0 0.0
    %1949 = vmatpush1.xpose.msra.mxu0 0.0
    %1950 = vmatprep.subr.mxu0 0.0
    %1951 = vmatpush1.xpose.msra.mxu0 0.0
    %1952 = vmatprep.subr.mxu0 0.0
    %1953 = vmatpush1.xpose.msra.mxu0 0.0
    %1954 = vmatprep.subr.mxu0 0.0
    %1955 = vmatpush1.xpose.msra.mxu0 0.0
    %1956 = vmatprep.subr.mxu0 0.0
    %1957 = vmatpush1.xpose.msra.mxu0 0.0
    %1958 = vmatprep.subr.mxu0 0.0
    %1959 = vmatpush1.xpose.msra.mxu0 0.0
    %1960 = vmatprep.subr.mxu0 0.0
    %1961 = vmatpush1.xpose.msra.mxu0 0.0
    %1962 = vmatprep.subr.mxu0 0.0
    %1963 = vmatpush1.xpose.msra.mxu0 0.0
    %1964 = vmatprep.subr.mxu0 0.0
    %1965 = vmatpush1.xpose.msra.mxu0 0.0
    %1966 = vmatprep.subr.mxu0 0.0
    %1967 = vmatpush1.xpose.msra.mxu0 0.0
    %1968 = vmatprep.subr.mxu0 0.0
    %1969 = vmatpush1.xpose.msra.mxu0 0.0
    %1970 = vmatprep.subr.mxu0 0.0
    %1971 = vmatpush1.xpose.msra.mxu0 0.0
    %1972 = vmatprep.subr.mxu0 0.0
    %1973 = vmatpush1.xpose.msra.mxu0 0.0
    %1974 = vmatprep.subr.mxu0 0.0
    %1975 = vmatpush1.xpose.msra.mxu0 0.0
    %1976 = vmatprep.subr.mxu0 0.0
    %1977 = vmatpush1.xpose.msra.mxu0 0.0
    %1978 = vmatprep.subr.mxu0 0.0
    %1979 = vmatpush1.xpose.msra.mxu0 0.0
    %1980 = vmatprep.subr.mxu0 0.0
    %1981 = vmatpush1.xpose.msra.mxu0 0.0
    %1982 = vmatprep.subr.mxu0 0.0
    %1983 = vmatpush1.xpose.msra.mxu0 0.0
    %1984 = vmatprep.subr.mxu0 0.0
    %1985 = vmatpush1.xpose.msra.mxu0 0.0
    %1986 = vmatprep.subr.mxu0 0.0
    %1987 = vmatpush1.xpose.msra.mxu0 0.0
    %1988 = vmatprep.subr.mxu0 0.0
    %1989 = vmatpush1.xpose.msra.mxu0 0.0
    %1990 = vmatprep.subr.mxu0 0.0
    %1991 = vmatpush1.xpose.msra.mxu0 0.0
    %1992 = vmatprep.subr.mxu0 0.0
    %1993 = vmatpush1.xpose.msra.mxu0 0.0
    %1994 = vmatprep.subr.mxu0 0.0
    %1995 = vmatpush1.xpose.msra.mxu0 0.0
    %1996 = vmatprep.mubr.f32.mxu0 0.0
    %1997 = vmatmul.mubr.f32.gmra.mrb[0].mxu0 %v1928
    %v1998 = vpop.f32.mrb[0].mxu0
    %v1999 = vadd.f32 %v618, %v1998
    %v2000 = vpop.f32.mrb[0].mxu0
    %2001 = vdwg.mxu0
    %v2002 = vsel %vm782, %v1999, -inf
    %2003 = vmax.xlane.f32.xlu0 %v2002
    %v2004 = vpop.xlane.xlu0 %2003
    %v2005 = vsub.f32 %v1999, %v2004
    %v2006 = vmul.f32 %v2005, 1.442695
    %v2007 = vpow.pop %v2006
    %v2008 = vsel %vm782, %v2007, 0.0
    %2009 = vadd.xlane.f32.xlu0 %v2008
    %v2010 = vpop.xlane.xlu0 %2009
    %v2011 = vrcp.pop %v2010
    %v2012 = vmul.f32 %v2007, %v2011
    %v2013 = vadd.f32 %v1769, %v2012
    %2014 = vrot.lane.b32.xlu0 %v699, 44
    %v2015 = vpop.permute.xlu0 %2014
    %v2017 = vsel %vm706, %v2012, 0
    %v2019 = vsel %vm800, %v2015, 0
    %2021 = vmatprep.subr.mxu0 0.0
    %2022 = vmatpush1.msra.mxu0 %v2019
    %2023 = vmatprep.subr.mxu0 0.0
    %2024 = vmatpush1.msra.mxu0 0.0
    %2025 = vmatprep.subr.mxu0 0.0
    %2026 = vmatpush1.msra.mxu0 0.0
    %2027 = vmatprep.subr.mxu0 0.0
    %2028 = vmatpush1.msra.mxu0 0.0
    %2029 = vmatprep.subr.mxu0 0.0
    %2030 = vmatpush1.msra.mxu0 0.0
    %2031 = vmatprep.subr.mxu0 0.0
    %2032 = vmatpush1.msra.mxu0 0.0
    %2033 = vmatprep.subr.mxu0 0.0
    %2034 = vmatpush1.msra.mxu0 0.0
    %2035 = vmatprep.subr.mxu0 0.0
    %2036 = vmatpush1.msra.mxu0 0.0
    %2037 = vmatprep.subr.mxu0 0.0
    %2038 = vmatpush1.msra.mxu0 0.0
    %2039 = vmatprep.subr.mxu0 0.0
    %2040 = vmatpush1.msra.mxu0 0.0
    %2041 = vmatprep.subr.mxu0 0.0
    %2042 = vmatpush1.msra.mxu0 0.0
    %2043 = vmatprep.subr.mxu0 0.0
    %2044 = vmatpush1.msra.mxu0 0.0
    %2045 = vmatprep.subr.mxu0 0.0
    %2046 = vmatpush1.msra.mxu0 0.0
    %2047 = vmatprep.subr.mxu0 0.0
    %2048 = vmatpush1.msra.mxu0 0.0
    %2049 = vmatprep.subr.mxu0 0.0
    %2050 = vmatpush1.msra.mxu0 0.0
    %2051 = vmatprep.subr.mxu0 0.0
    %2052 = vmatpush1.msra.mxu0 0.0
    %2053 = vmatprep.subr.mxu0 0.0
    %2054 = vmatpush1.msra.mxu0 0.0
    %2055 = vmatprep.subr.mxu0 0.0
    %2056 = vmatpush1.msra.mxu0 0.0
    %2057 = vmatprep.subr.mxu0 0.0
    %2058 = vmatpush1.msra.mxu0 0.0
    %2059 = vmatprep.subr.mxu0 0.0
    %2060 = vmatpush1.msra.mxu0 0.0
    %2061 = vmatprep.subr.mxu0 0.0
    %2062 = vmatpush1.msra.mxu0 0.0
    %2063 = vmatprep.subr.mxu0 0.0
    %2064 = vmatpush1.msra.mxu0 0.0
    %2065 = vmatprep.subr.mxu0 0.0
    %2066 = vmatpush1.msra.mxu0 0.0
    %2067 = vmatprep.subr.mxu0 0.0
    %2068 = vmatpush1.msra.mxu0 0.0
    %2069 = vmatprep.subr.mxu0 0.0
    %2070 = vmatpush1.msra.mxu0 0.0
    %2071 = vmatprep.subr.mxu0 0.0
    %2072 = vmatpush1.msra.mxu0 0.0
    %2073 = vmatprep.subr.mxu0 0.0
    %2074 = vmatpush1.msra.mxu0 0.0
    %2075 = vmatprep.subr.mxu0 0.0
    %2076 = vmatpush1.msra.mxu0 0.0
    %2077 = vmatprep.subr.mxu0 0.0
    %2078 = vmatpush1.msra.mxu0 0.0
    %2079 = vmatprep.subr.mxu0 0.0
    %2080 = vmatpush1.msra.mxu0 0.0
    %2081 = vmatprep.subr.mxu0 0.0
    %2082 = vmatpush1.msra.mxu0 0.0
    %2083 = vmatprep.subr.mxu0 0.0
    %2084 = vmatpush1.msra.mxu0 0.0
    %2085 = vmatprep.mubr.f32.mxu0 0.0
    %2086 = vmatmul.mubr.f32.gmra.mrb[0].mxu0 %v2017
    %v2087 = vpop.f32.mrb[0].mxu0
    %v2088 = vadd.f32 0.0, %v2087
    %v2089 = vpop.f32.mrb[0].mxu0
    %2090 = vdwg.mxu0
    %v2091 = vrot.slane %v625, 4
    %v2093 = vsel %vm706, %v2088, 0
    %v2095 = vsel %vm800, %v2091, 0
    %2097 = vmatprep.subr.mxu0 0.0
    %2098 = vmatpush1.msra.mxu0 %v2095
    %2099 = vmatprep.subr.mxu0 0.0
    %2100 = vmatpush1.msra.mxu0 0.0
    %2101 = vmatprep.subr.mxu0 0.0
    %2102 = vmatpush1.msra.mxu0 0.0
    %2103 = vmatprep.subr.mxu0 0.0
    %2104 = vmatpush1.msra.mxu0 0.0
    %2105 = vmatprep.subr.mxu0 0.0
    %2106 = vmatpush1.msra.mxu0 0.0
    %2107 = vmatprep.subr.mxu0 0.0
    %2108 = vmatpush1.msra.mxu0 0.0
    %2109 = vmatprep.subr.mxu0 0.0
    %2110 = vmatpush1.msra.mxu0 0.0
    %2111 = vmatprep.subr.mxu0 0.0
    %2112 = vmatpush1.msra.mxu0 0.0
    %2113 = vmatprep.subr.mxu0 0.0
    %2114 = vmatpush1.msra.mxu0 0.0
    %2115 = vmatprep.subr.mxu0 0.0
    %2116 = vmatpush1.msra.mxu0 0.0
    %2117 = vmatprep.subr.mxu0 0.0
    %2118 = vmatpush1.msra.mxu0 0.0
    %2119 = vmatprep.subr.mxu0 0.0
    %2120 = vmatpush1.msra.mxu0 0.0
    %2121 = vmatprep.subr.mxu0 0.0
    %2122 = vmatpush1.msra.mxu0 0.0
    %2123 = vmatprep.subr.mxu0 0.0
    %2124 = vmatpush1.msra.mxu0 0.0
    %2125 = vmatprep.subr.mxu0 0.0
    %2126 = vmatpush1.msra.mxu0 0.0
    %2127 = vmatprep.subr.mxu0 0.0
    %2128 = vmatpush1.msra.mxu0 0.0
    %2129 = vmatprep.subr.mxu0 0.0
    %2130 = vmatpush1.msra.mxu0 0.0
    %2131 = vmatprep.subr.mxu0 0.0
    %2132 = vmatpush1.msra.mxu0 0.0
    %2133 = vmatprep.subr.mxu0 0.0
    %2134 = vmatpush1.msra.mxu0 0.0
    %2135 = vmatprep.subr.mxu0 0.0
    %2136 = vmatpush1.msra.mxu0 0.0
    %2137 = vmatprep.subr.mxu0 0.0
    %2138 = vmatpush1.msra.mxu0 0.0
    %2139 = vmatprep.subr.mxu0 0.0
    %2140 = vmatpush1.msra.mxu0 0.0
    %2141 = vmatprep.subr.mxu0 0.0
    %2142 = vmatpush1.msra.mxu0 0.0
    %2143 = vmatprep.subr.mxu0 0.0
    %2144 = vmatpush1.msra.mxu0 0.0
    %2145 = vmatprep.subr.mxu0 0.0
    %2146 = vmatpush1.msra.mxu0 0.0
    %2147 = vmatprep.subr.mxu0 0.0
    %2148 = vmatpush1.msra.mxu0 0.0
    %2149 = vmatprep.subr.mxu0 0.0
    %2150 = vmatpush1.msra.mxu0 0.0
    %2151 = vmatprep.subr.mxu0 0.0
    %2152 = vmatpush1.msra.mxu0 0.0
    %2153 = vmatprep.subr.mxu0 0.0
    %2154 = vmatpush1.msra.mxu0 0.0
    %2155 = vmatprep.subr.mxu0 0.0
    %2156 = vmatpush1.msra.mxu0 0.0
    %2157 = vmatprep.subr.mxu0 0.0
    %2158 = vmatpush1.msra.mxu0 0.0
    %2159 = vmatprep.subr.mxu0 0.0
    %2160 = vmatpush1.msra.mxu0 0.0
    %2161 = vmatprep.mubr.f32.mxu0 0.0
    %2162 = vmatmul.mubr.f32.gmra.mrb[0].mxu0 %v2093
    %v2163 = vpop.f32.mrb[0].mxu0
    %v2164 = vadd.f32 0.0, %v2163
    %v2165 = vpop.f32.mrb[0].mxu0
    %2166 = vdwg.mxu0
    %v2167 = vadd.f32 %v1923, %v2164
    %2168 = vrot.lane.b32.xlu0 %v702, 104
    %v2169 = vpop.permute.xlu0 %2168
    %2170 = vrot.lane.b32.xlu0 %v699, 72
    %v2171 = vpop.permute.xlu0 %2170
    %v2172 = vsel %vm706, %v2169, 0
    %v2174 = vsel %vm706, %v2171, 0
    %2176 = vmatprep.subr.mxu0 0.0
    %2177 = vmatpush1.xpose.msra.mxu0 %v2174
    %2178 = vmatprep.subr.mxu0 0.0
    %2179 = vmatpush1.xpose.msra.mxu0 0.0
    %2180 = vmatprep.subr.mxu0 0.0
    %2181 = vmatpush1.xpose.msra.mxu0 0.0
    %2182 = vmatprep.subr.mxu0 0.0
    %2183 = vmatpush1.xpose.msra.mxu0 0.0
    %2184 = vmatprep.subr.mxu0 0.0
    %2185 = vmatpush1.xpose.msra.mxu0 0.0
    %2186 = vmatprep.subr.mxu0 0.0
    %2187 = vmatpush1.xpose.msra.mxu0 0.0
    %2188 = vmatprep.subr.mxu0 0.0
    %2189 = vmatpush1.xpose.msra.mxu0 0.0
    %2190 = vmatprep.subr.mxu0 0.0
    %2191 = vmatpush1.xpose.msra.mxu0 0.0
    %2192 = vmatprep.subr.mxu0 0.0
    %2193 = vmatpush1.xpose.msra.mxu0 0.0
    %2194 = vmatprep.subr.mxu0 0.0
    %2195 = vmatpush1.xpose.msra.mxu0 0.0
    %2196 = vmatprep.subr.mxu0 0.0
    %2197 = vmatpush1.xpose.msra.mxu0 0.0
    %2198 = vmatprep.subr.mxu0 0.0
    %2199 = vmatpush1.xpose.msra.mxu0 0.0
    %2200 = vmatprep.subr.mxu0 0.0
    %2201 = vmatpush1.xpose.msra.mxu0 0.0
    %2202 = vmatprep.subr.mxu0 0.0
    %2203 = vmatpush1.xpose.msra.mxu0 0.0
    %2204 = vmatprep.subr.mxu0 0.0
    %2205 = vmatpush1.xpose.msra.mxu0 0.0
    %2206 = vmatprep.subr.mxu0 0.0
    %2207 = vmatpush1.xpose.msra.mxu0 0.0
    %2208 = vmatprep.subr.mxu0 0.0
    %2209 = vmatpush1.xpose.msra.mxu0 0.0
    %2210 = vmatprep.subr.mxu0 0.0
    %2211 = vmatpush1.xpose.msra.mxu0 0.0
    %2212 = vmatprep.subr.mxu0 0.0
    %2213 = vmatpush1.xpose.msra.mxu0 0.0
    %2214 = vmatprep.subr.mxu0 0.0
    %2215 = vmatpush1.xpose.msra.mxu0 0.0
    %2216 = vmatprep.subr.mxu0 0.0
    %2217 = vmatpush1.xpose.msra.mxu0 0.0
    %2218 = vmatprep.subr.mxu0 0.0
    %2219 = vmatpush1.xpose.msra.mxu0 0.0
    %2220 = vmatprep.subr.mxu0 0.0
    %2221 = vmatpush1.xpose.msra.mxu0 0.0
    %2222 = vmatprep.subr.mxu0 0.0
    %2223 = vmatpush1.xpose.msra.mxu0 0.0
    %2224 = vmatprep.subr.mxu0 0.0
    %2225 = vmatpush1.xpose.msra.mxu0 0.0
    %2226 = vmatprep.subr.mxu0 0.0
    %2227 = vmatpush1.xpose.msra.mxu0 0.0
    %2228 = vmatprep.subr.mxu0 0.0
    %2229 = vmatpush1.xpose.msra.mxu0 0.0
    %2230 = vmatprep.subr.mxu0 0.0
    %2231 = vmatpush1.xpose.msra.mxu0 0.0
    %2232 = vmatprep.subr.mxu0 0.0
    %2233 = vmatpush1.xpose.msra.mxu0 0.0
    %2234 = vmatprep.subr.mxu0 0.0
    %2235 = vmatpush1.xpose.msra.mxu0 0.0
    %2236 = vmatprep.subr.mxu0 0.0
    %2237 = vmatpush1.xpose.msra.mxu0 0.0
    %2238 = vmatprep.subr.mxu0 0.0
    %2239 = vmatpush1.xpose.msra.mxu0 0.0
    %2240 = vmatprep.mubr.f32.mxu0 0.0
    %2241 = vmatmul.mubr.f32.gmra.mrb[0].mxu0 %v2172
    %v2242 = vpop.f32.mrb[0].mxu0
    %v2243 = vadd.f32 %v618, %v2242
    %v2244 = vpop.f32.mrb[0].mxu0
    %2245 = vdwg.mxu0
    %v2246 = vsel %vm782, %v2243, -inf
    %2247 = vmax.xlane.f32.xlu0 %v2246
    %v2248 = vpop.xlane.xlu0 %2247
    %v2249 = vsub.f32 %v2243, %v2248
    %v2250 = vmul.f32 %v2249, 1.442695
    %v2251 = vpow.pop %v2250
    %v2252 = vsel %vm782, %v2251, 0.0
    %2253 = vadd.xlane.f32.xlu0 %v2252
    %v2254 = vpop.xlane.xlu0 %2253
    %v2255 = vrcp.pop %v2254
    %v2256 = vmul.f32 %v2251, %v2255
    %v2257 = vadd.f32 %v2013, %v2256
    %2258 = vrot.lane.b32.xlu0 %v699, 40
    %v2259 = vpop.permute.xlu0 %2258
    %v2261 = vsel %vm706, %v2256, 0
    %v2263 = vsel %vm800, %v2259, 0
    %2265 = vmatprep.subr.mxu0 0.0
    %2266 = vmatpush1.msra.mxu0 %v2263
    %2267 = vmatprep.subr.mxu0 0.0
    %2268 = vmatpush1.msra.mxu0 0.0
    %2269 = vmatprep.subr.mxu0 0.0
    %2270 = vmatpush1.msra.mxu0 0.0
    %2271 = vmatprep.subr.mxu0 0.0
    %2272 = vmatpush1.msra.mxu0 0.0
    %2273 = vmatprep.subr.mxu0 0.0
    %2274 = vmatpush1.msra.mxu0 0.0
    %2275 = vmatprep.subr.mxu0 0.0
    %2276 = vmatpush1.msra.mxu0 0.0
    %2277 = vmatprep.subr.mxu0 0.0
    %2278 = vmatpush1.msra.mxu0 0.0
    %2279 = vmatprep.subr.mxu0 0.0
    %2280 = vmatpush1.msra.mxu0 0.0
    %2281 = vmatprep.subr.mxu0 0.0
    %2282 = vmatpush1.msra.mxu0 0.0
    %2283 = vmatprep.subr.mxu0 0.0
    %2284 = vmatpush1.msra.mxu0 0.0
    %2285 = vmatprep.subr.mxu0 0.0
    %2286 = vmatpush1.msra.mxu0 0.0
    %2287 = vmatprep.subr.mxu0 0.0
    %2288 = vmatpush1.msra.mxu0 0.0
    %2289 = vmatprep.subr.mxu0 0.0
    %2290 = vmatpush1.msra.mxu0 0.0
    %2291 = vmatprep.subr.mxu0 0.0
    %2292 = vmatpush1.msra.mxu0 0.0
    %2293 = vmatprep.subr.mxu0 0.0
    %2294 = vmatpush1.msra.mxu0 0.0
    %2295 = vmatprep.subr.mxu0 0.0
    %2296 = vmatpush1.msra.mxu0 0.0
    %2297 = vmatprep.subr.mxu0 0.0
    %2298 = vmatpush1.msra.mxu0 0.0
    %2299 = vmatprep.subr.mxu0 0.0
    %2300 = vmatpush1.msra.mxu0 0.0
    %2301 = vmatprep.subr.mxu0 0.0
    %2302 = vmatpush1.msra.mxu0 0.0
    %2303 = vmatprep.subr.mxu0 0.0
    %2304 = vmatpush1.msra.mxu0 0.0
    %2305 = vmatprep.subr.mxu0 0.0
    %2306 = vmatpush1.msra.mxu0 0.0
    %2307 = vmatprep.subr.mxu0 0.0
    %2308 = vmatpush1.msra.mxu0 0.0
    %2309 = vmatprep.subr.mxu0 0.0
    %2310 = vmatpush1.msra.mxu0 0.0
    %2311 = vmatprep.subr.mxu0 0.0
    %2312 = vmatpush1.msra.mxu0 0.0
    %2313 = vmatprep.subr.mxu0 0.0
    %2314 = vmatpush1.msra.mxu0 0.0
    %2315 = vmatprep.subr.mxu0 0.0
    %2316 = vmatpush1.msra.mxu0 0.0
    %2317 = vmatprep.subr.mxu0 0.0
    %2318 = vmatpush1.msra.mxu0 0.0
    %2319 = vmatprep.subr.mxu0 0.0
    %2320 = vmatpush1.msra.mxu0 0.0
    %2321 = vmatprep.subr.mxu0 0.0
    %2322 = vmatpush1.msra.mxu0 0.0
    %2323 = vmatprep.subr.mxu0 0.0
    %2324 = vmatpush1.msra.mxu0 0.0
    %2325 = vmatprep.subr.mxu0 0.0
    %2326 = vmatpush1.msra.mxu0 0.0
    %2327 = vmatprep.subr.mxu0 0.0
    %2328 = vmatpush1.msra.mxu0 0.0
    %2329 = vmatprep.mubr.f32.mxu0 0.0
    %2330 = vmatmul.mubr.f32.gmra.mrb[0].mxu0 %v2261
    %v2331 = vpop.f32.mrb[0].mxu0
    %v2332 = vadd.f32 0.0, %v2331
    %v2333 = vpop.f32.mrb[0].mxu0
    %2334 = vdwg.mxu0
    %v2336 = vsel %vm706, %v2332, 0
    %v2339 = vsel %vm800, %v626, 0
    %2341 = vmatprep.subr.mxu0 0.0
    %2342 = vmatpush1.msra.mxu0 %v2339
    %2343 = vmatprep.subr.mxu0 0.0
    %2344 = vmatpush1.msra.mxu0 0.0
    %2345 = vmatprep.subr.mxu0 0.0
    %2346 = vmatpush1.msra.mxu0 0.0
    %2347 = vmatprep.subr.mxu0 0.0
    %2348 = vmatpush1.msra.mxu0 0.0
    %2349 = vmatprep.subr.mxu0 0.0
    %2350 = vmatpush1.msra.mxu0 0.0
    %2351 = vmatprep.subr.mxu0 0.0
    %2352 = vmatpush1.msra.mxu0 0.0
    %2353 = vmatprep.subr.mxu0 0.0
    %2354 = vmatpush1.msra.mxu0 0.0
    %2355 = vmatprep.subr.mxu0 0.0
    %2356 = vmatpush1.msra.mxu0 0.0
    %2357 = vmatprep.subr.mxu0 0.0
    %2358 = vmatpush1.msra.mxu0 0.0
    %2359 = vmatprep.subr.mxu0 0.0
    %2360 = vmatpush1.msra.mxu0 0.0
    %2361 = vmatprep.subr.mxu0 0.0
    %2362 = vmatpush1.msra.mxu0 0.0
    %2363 = vmatprep.subr.mxu0 0.0
    %2364 = vmatpush1.msra.mxu0 0.0
    %2365 = vmatprep.subr.mxu0 0.0
    %2366 = vmatpush1.msra.mxu0 0.0
    %2367 = vmatprep.subr.mxu0 0.0
    %2368 = vmatpush1.msra.mxu0 0.0
    %2369 = vmatprep.subr.mxu0 0.0
    %2370 = vmatpush1.msra.mxu0 0.0
    %2371 = vmatprep.subr.mxu0 0.0
    %2372 = vmatpush1.msra.mxu0 0.0
    %2373 = vmatprep.subr.mxu0 0.0
    %2374 = vmatpush1.msra.mxu0 0.0
    %2375 = vmatprep.subr.mxu0 0.0
    %2376 = vmatpush1.msra.mxu0 0.0
    %2377 = vmatprep.subr.mxu0 0.0
    %2378 = vmatpush1.msra.mxu0 0.0
    %2379 = vmatprep.subr.mxu0 0.0
    %2380 = vmatpush1.msra.mxu0 0.0
    %2381 = vmatprep.subr.mxu0 0.0
    %2382 = vmatpush1.msra.mxu0 0.0
    %2383 = vmatprep.subr.mxu0 0.0
    %2384 = vmatpush1.msra.mxu0 0.0
    %2385 = vmatprep.subr.mxu0 0.0
    %2386 = vmatpush1.msra.mxu0 0.0
    %2387 = vmatprep.subr.mxu0 0.0
    %2388 = vmatpush1.msra.mxu0 0.0
    %2389 = vmatprep.subr.mxu0 0.0
    %2390 = vmatpush1.msra.mxu0 0.0
    %2391 = vmatprep.subr.mxu0 0.0
    %2392 = vmatpush1.msra.mxu0 0.0
    %2393 = vmatprep.subr.mxu0 0.0
    %2394 = vmatpush1.msra.mxu0 0.0
    %2395 = vmatprep.subr.mxu0 0.0
    %2396 = vmatpush1.msra.mxu0 0.0
    %2397 = vmatprep.subr.mxu0 0.0
    %2398 = vmatpush1.msra.mxu0 0.0
    %2399 = vmatprep.subr.mxu0 0.0
    %2400 = vmatpush1.msra.mxu0 0.0
    %2401 = vmatprep.subr.mxu0 0.0
    %2402 = vmatpush1.msra.mxu0 0.0
    %2403 = vmatprep.subr.mxu0 0.0
    %2404 = vmatpush1.msra.mxu0 0.0
    %2405 = vmatprep.mubr.f32.mxu0 0.0
    %2406 = vmatmul.mubr.f32.gmra.mrb[0].mxu0 %v2336
    %v2407 = vpop.f32.mrb[0].mxu0
    %v2408 = vadd.f32 0.0, %v2407
    %v2409 = vpop.f32.mrb[0].mxu0
    %2410 = vdwg.mxu0
    %v2411 = vadd.f32 %v2167, %v2408
    %2412 = vrot.lane.b32.xlu0 %v702, 100
    %v2413 = vpop.permute.xlu0 %2412
    %2414 = vrot.lane.b32.xlu0 %v699, 68
    %v2415 = vpop.permute.xlu0 %2414
    %v2416 = vsel %vm706, %v2413, 0
    %v2418 = vsel %vm706, %v2415, 0
    %2420 = vmatprep.subr.mxu0 0.0
    %2421 = vmatpush1.xpose.msra.mxu0 %v2418
    %2422 = vmatprep.subr.mxu0 0.0
    %2423 = vmatpush1.xpose.msra.mxu0 0.0
    %2424 = vmatprep.subr.mxu0 0.0
    %2425 = vmatpush1.xpose.msra.mxu0 0.0
    %2426 = vmatprep.subr.mxu0 0.0
    %2427 = vmatpush1.xpose.msra.mxu0 0.0
    %2428 = vmatprep.subr.mxu0 0.0
    %2429 = vmatpush1.xpose.msra.mxu0 0.0
    %2430 = vmatprep.subr.mxu0 0.0
    %2431 = vmatpush1.xpose.msra.mxu0 0.0
    %2432 = vmatprep.subr.mxu0 0.0
    %2433 = vmatpush1.xpose.msra.mxu0 0.0
    %2434 = vmatprep.subr.mxu0 0.0
    %2435 = vmatpush1.xpose.msra.mxu0 0.0
    %2436 = vmatprep.subr.mxu0 0.0
    %2437 = vmatpush1.xpose.msra.mxu0 0.0
    %2438 = vmatprep.subr.mxu0 0.0
    %2439 = vmatpush1.xpose.msra.mxu0 0.0
    %2440 = vmatprep.subr.mxu0 0.0
    %2441 = vmatpush1.xpose.msra.mxu0 0.0
    %2442 = vmatprep.subr.mxu0 0.0
    %2443 = vmatpush1.xpose.msra.mxu0 0.0
    %2444 = vmatprep.subr.mxu0 0.0
    %2445 = vmatpush1.xpose.msra.mxu0 0.0
    %2446 = vmatprep.subr.mxu0 0.0
    %2447 = vmatpush1.xpose.msra.mxu0 0.0
    %2448 = vmatprep.subr.mxu0 0.0
    %2449 = vmatpush1.xpose.msra.mxu0 0.0
    %2450 = vmatprep.subr.mxu0 0.0
    %2451 = vmatpush1.xpose.msra.mxu0 0.0
    %2452 = vmatprep.subr.mxu0 0.0
    %2453 = vmatpush1.xpose.msra.mxu0 0.0
    %2454 = vmatprep.subr.mxu0 0.0
    %2455 = vmatpush1.xpose.msra.mxu0 0.0
    %2456 = vmatprep.subr.mxu0 0.0
    %2457 = vmatpush1.xpose.msra.mxu0 0.0
    %2458 = vmatprep.subr.mxu0 0.0
    %2459 = vmatpush1.xpose.msra.mxu0 0.0
    %2460 = vmatprep.subr.mxu0 0.0
    %2461 = vmatpush1.xpose.msra.mxu0 0.0
    %2462 = vmatprep.subr.mxu0 0.0
    %2463 = vmatpush1.xpose.msra.mxu0 0.0
    %2464 = vmatprep.subr.mxu0 0.0
    %2465 = vmatpush1.xpose.msra.mxu0 0.0
    %2466 = vmatprep.subr.mxu0 0.0
    %2467 = vmatpush1.xpose.msra.mxu0 0.0
    %2468 = vmatprep.subr.mxu0 0.0
    %2469 = vmatpush1.xpose.msra.mxu0 0.0
    %2470 = vmatprep.subr.mxu0 0.0
    %2471 = vmatpush1.xpose.msra.mxu0 0.0
    %2472 = vmatprep.subr.mxu0 0.0
    %2473 = vmatpush1.xpose.msra.mxu0 0.0
    %2474 = vmatprep.subr.mxu0 0.0
    %2475 = vmatpush1.xpose.msra.mxu0 0.0
    %2476 = vmatprep.subr.mxu0 0.0
    %2477 = vmatpush1.xpose.msra.mxu0 0.0
    %2478 = vmatprep.subr.mxu0 0.0
    %2479 = vmatpush1.xpose.msra.mxu0 0.0
    %2480 = vmatprep.subr.mxu0 0.0
    %2481 = vmatpush1.xpose.msra.mxu0 0.0
    %2482 = vmatprep.subr.mxu0 0.0
    %2483 = vmatpush1.xpose.msra.mxu0 0.0
    %2484 = vmatprep.mubr.f32.mxu0 0.0
    %2485 = vmatmul.mubr.f32.gmra.mrb[0].mxu0 %v2416
    %v2486 = vpop.f32.mrb[0].mxu0
    %v2487 = vadd.f32 %v618, %v2486
    %v2488 = vpop.f32.mrb[0].mxu0
    %2489 = vdwg.mxu0
    %v2490 = vsel %vm782, %v2487, -inf
    %2491 = vmax.xlane.f32.xlu0 %v2490
    %v2492 = vpop.xlane.xlu0 %2491
    %v2493 = vsub.f32 %v2487, %v2492
    %v2494 = vmul.f32 %v2493, 1.442695
    %v2495 = vpow.pop %v2494
    %v2496 = vsel %vm782, %v2495, 0.0
    %2497 = vadd.xlane.f32.xlu0 %v2496
    %v2498 = vpop.xlane.xlu0 %2497
    %v2499 = vrcp.pop %v2498
    %v2500 = vmul.f32 %v2495, %v2499
    %v2501 = vadd.f32 %v2257, %v2500
    %2502 = vrot.lane.b32.xlu0 %v699, 36
    %v2503 = vpop.permute.xlu0 %2502
    %v2505 = vsel %vm706, %v2500, 0
    %v2507 = vsel %vm800, %v2503, 0
    %2509 = vmatprep.subr.mxu0 0.0
    %2510 = vmatpush1.msra.mxu0 %v2507
    %2511 = vmatprep.subr.mxu0 0.0
    %2512 = vmatpush1.msra.mxu0 0.0
    %2513 = vmatprep.subr.mxu0 0.0
    %2514 = vmatpush1.msra.mxu0 0.0
    %2515 = vmatprep.subr.mxu0 0.0
    %2516 = vmatpush1.msra.mxu0 0.0
    %2517 = vmatprep.subr.mxu0 0.0
    %2518 = vmatpush1.msra.mxu0 0.0
    %2519 = vmatprep.subr.mxu0 0.0
    %2520 = vmatpush1.msra.mxu0 0.0
    %2521 = vmatprep.subr.mxu0 0.0
    %2522 = vmatpush1.msra.mxu0 0.0
    %2523 = vmatprep.subr.mxu0 0.0
    %2524 = vmatpush1.msra.mxu0 0.0
    %2525 = vmatprep.subr.mxu0 0.0
    %2526 = vmatpush1.msra.mxu0 0.0
    %2527 = vmatprep.subr.mxu0 0.0
    %2528 = vmatpush1.msra.mxu0 0.0
    %2529 = vmatprep.subr.mxu0 0.0
    %2530 = vmatpush1.msra.mxu0 0.0
    %2531 = vmatprep.subr.mxu0 0.0
    %2532 = vmatpush1.msra.mxu0 0.0
    %2533 = vmatprep.subr.mxu0 0.0
    %2534 = vmatpush1.msra.mxu0 0.0
    %2535 = vmatprep.subr.mxu0 0.0
    %2536 = vmatpush1.msra.mxu0 0.0
    %2537 = vmatprep.subr.mxu0 0.0
    %2538 = vmatpush1.msra.mxu0 0.0
    %2539 = vmatprep.subr.mxu0 0.0
    %2540 = vmatpush1.msra.mxu0 0.0
    %2541 = vmatprep.subr.mxu0 0.0
    %2542 = vmatpush1.msra.mxu0 0.0
    %2543 = vmatprep.subr.mxu0 0.0
    %2544 = vmatpush1.msra.mxu0 0.0
    %2545 = vmatprep.subr.mxu0 0.0
    %2546 = vmatpush1.msra.mxu0 0.0
    %2547 = vmatprep.subr.mxu0 0.0
    %2548 = vmatpush1.msra.mxu0 0.0
    %2549 = vmatprep.subr.mxu0 0.0
    %2550 = vmatpush1.msra.mxu0 0.0
    %2551 = vmatprep.subr.mxu0 0.0
    %2552 = vmatpush1.msra.mxu0 0.0
    %2553 = vmatprep.subr.mxu0 0.0
    %2554 = vmatpush1.msra.mxu0 0.0
    %2555 = vmatprep.subr.mxu0 0.0
    %2556 = vmatpush1.msra.mxu0 0.0
    %2557 = vmatprep.subr.mxu0 0.0
    %2558 = vmatpush1.msra.mxu0 0.0
    %2559 = vmatprep.subr.mxu0 0.0
    %2560 = vmatpush1.msra.mxu0 0.0
    %2561 = vmatprep.subr.mxu0 0.0
    %2562 = vmatpush1.msra.mxu0 0.0
    %2563 = vmatprep.subr.mxu0 0.0
    %2564 = vmatpush1.msra.mxu0 0.0
    %2565 = vmatprep.subr.mxu0 0.0
    %2566 = vmatpush1.msra.mxu0 0.0
    %2567 = vmatprep.subr.mxu0 0.0
    %2568 = vmatpush1.msra.mxu0 0.0
    %2569 = vmatprep.subr.mxu0 0.0
    %2570 = vmatpush1.msra.mxu0 0.0
    %2571 = vmatprep.subr.mxu0 0.0
    %2572 = vmatpush1.msra.mxu0 0.0
    %2573 = vmatprep.mubr.f32.mxu0 0.0
    %2574 = vmatmul.mubr.f32.gmra.mrb[0].mxu0 %v2505
    %v2575 = vpop.f32.mrb[0].mxu0
    %v2576 = vadd.f32 0.0, %v2575
    %v2577 = vpop.f32.mrb[0].mxu0
    %2578 = vdwg.mxu0
    %v2579 = vrot.slane %v626, 4
    %v2581 = vsel %vm706, %v2576, 0
    %v2583 = vsel %vm800, %v2579, 0
    %2585 = vmatprep.subr.mxu0 0.0
    %2586 = vmatpush1.msra.mxu0 %v2583
    %2587 = vmatprep.subr.mxu0 0.0
    %2588 = vmatpush1.msra.mxu0 0.0
    %2589 = vmatprep.subr.mxu0 0.0
    %2590 = vmatpush1.msra.mxu0 0.0
    %2591 = vmatprep.subr.mxu0 0.0
    %2592 = vmatpush1.msra.mxu0 0.0
    %2593 = vmatprep.subr.mxu0 0.0
    %2594 = vmatpush1.msra.mxu0 0.0
    %2595 = vmatprep.subr.mxu0 0.0
    %2596 = vmatpush1.msra.mxu0 0.0
    %2597 = vmatprep.subr.mxu0 0.0
    %2598 = vmatpush1.msra.mxu0 0.0
    %2599 = vmatprep.subr.mxu0 0.0
    %2600 = vmatpush1.msra.mxu0 0.0
    %2601 = vmatprep.subr.mxu0 0.0
    %2602 = vmatpush1.msra.mxu0 0.0
    %2603 = vmatprep.subr.mxu0 0.0
    %2604 = vmatpush1.msra.mxu0 0.0
    %2605 = vmatprep.subr.mxu0 0.0
    %2606 = vmatpush1.msra.mxu0 0.0
    %2607 = vmatprep.subr.mxu0 0.0
    %2608 = vmatpush1.msra.mxu0 0.0
    %2609 = vmatprep.subr.mxu0 0.0
    %2610 = vmatpush1.msra.mxu0 0.0
    %2611 = vmatprep.subr.mxu0 0.0
    %2612 = vmatpush1.msra.mxu0 0.0
    %2613 = vmatprep.subr.mxu0 0.0
    %2614 = vmatpush1.msra.mxu0 0.0
    %2615 = vmatprep.subr.mxu0 0.0
    %2616 = vmatpush1.msra.mxu0 0.0
    %2617 = vmatprep.subr.mxu0 0.0
    %2618 = vmatpush1.msra.mxu0 0.0
    %2619 = vmatprep.subr.mxu0 0.0
    %2620 = vmatpush1.msra.mxu0 0.0
    %2621 = vmatprep.subr.mxu0 0.0
    %2622 = vmatpush1.msra.mxu0 0.0
    %2623 = vmatprep.subr.mxu0 0.0
    %2624 = vmatpush1.msra.mxu0 0.0
    %2625 = vmatprep.subr.mxu0 0.0
    %2626 = vmatpush1.msra.mxu0 0.0
    %2627 = vmatprep.subr.mxu0 0.0
    %2628 = vmatpush1.msra.mxu0 0.0
    %2629 = vmatprep.subr.mxu0 0.0
    %2630 = vmatpush1.msra.mxu0 0.0
    %2631 = vmatprep.subr.mxu0 0.0
    %2632 = vmatpush1.msra.mxu0 0.0
    %2633 = vmatprep.subr.mxu0 0.0
    %2634 = vmatpush1.msra.mxu0 0.0
    %2635 = vmatprep.subr.mxu0 0.0
    %2636 = vmatpush1.msra.mxu0 0.0
    %2637 = vmatprep.subr.mxu0 0.0
    %2638 = vmatpush1.msra.mxu0 0.0
    %2639 = vmatprep.subr.mxu0 0.0
    %2640 = vmatpush1.msra.mxu0 0.0
    %2641 = vmatprep.subr.mxu0 0.0
    %2642 = vmatpush1.msra.mxu0 0.0
    %2643 = vmatprep.subr.mxu0 0.0
    %2644 = vmatpush1.msra.mxu0 0.0
    %2645 = vmatprep.subr.mxu0 0.0
    %2646 = vmatpush1.msra.mxu0 0.0
    %2647 = vmatprep.subr.mxu0 0.0
    %2648 = vmatpush1.msra.mxu0 0.0
    %2649 = vmatprep.mubr.f32.mxu0 0.0
    %2650 = vmatmul.mubr.f32.gmra.mrb[0].mxu0 %v2581
    %v2651 = vpop.f32.mrb[0].mxu0
    %v2652 = vadd.f32 0.0, %v2651
    %v2653 = vpop.f32.mrb[0].mxu0
    %2654 = vdwg.mxu0
    %v2655 = vadd.f32 %v2411, %v2652
    %v2657 = vlaneseq
    %v2658 = vshrl.u32 %v2657, 7
    %v2659 = vsub.s32 0, %v2658
    %v2660 = vrot.slane %v627, %v2659
    %v2662 = vadd.f32 %v2655, %v2660
    %v2663 = vmul.f32 %v2501, 0.125
    %2664 = vst.msk [vmem:[#allocation60] sm:$0xf] %vm782, %v2663
    %v2665 = vld [vmem:[#allocation2] sm:$0xff]
    %v2666 = vld [vmem:[#allocation2 + $0x8] sm:$0xff]
    %v2667 = vld [vmem:[#allocation2 + $0x10] sm:$0xff]
    %v2668 = vld [vmem:[#allocation2 + $0x18] sm:$0xff]
    %v2669 = vld [vmem:[#allocation5] sm:$0xff]
    %v2670 = vld [vmem:[#allocation5 + $0x8] sm:$0xff]
    %v2671 = vld [vmem:[#allocation5 + $0x10] sm:$0xff]
    %v2672 = vld [vmem:[#allocation5 + $0x18] sm:$0xff]
    %v2673 = vld [vmem:[#allocation11] sm:$0xff]
    %v2674 = vld [vmem:[#allocation11 + $0x8] sm:$0xff]
    %v2675 = vld [vmem:[#allocation11 + $0x10] sm:$0xff]
    %v2676 = vld [vmem:[#allocation11 + $0x18] sm:$0xff]
    %v2677 = vld [vmem:[#allocation13] sm:$0x1]
    %v2678 = vld [vmem:[#allocation14] sm:$0xff]
    %v2679 = vld [vmem:[#allocation14 + $0x8] sm:$0xff]
    %v2680 = vld [vmem:[#allocation14 + $0x10] sm:$0xff]
    %v2681 = vld [vmem:[#allocation14 + $0x18] sm:$0xff]
    %v2682 = vld [vmem:[#allocation16] sm:$0x1]
    %v2683 = vld [vmem:[#allocation17] sm:$0x1]
    %v2684 = vld [vmem:[#allocation19] sm:$0x1]
    %v2685 = vld [vmem:[#allocation20] sm:$0xff]
    %v2686 = vld [vmem:[#allocation20 + $0x8] sm:$0xff]
    %v2687 = vld [vmem:[#allocation20 + $0x10] sm:$0xff]
    %v2688 = vld [vmem:[#allocation20 + $0x18] sm:$0xff]
    %v2689 = vld [vmem:[#allocation22] sm:$0x1]
    %v2690 = vld [vmem:[#allocation23] sm:$0xff]
    %v2691 = vld [vmem:[#allocation23 + $0x8] sm:$0xff]
    %v2692 = vld [vmem:[#allocation23 + $0x10] sm:$0xff]
    %v2693 = vld [vmem:[#allocation23 + $0x18] sm:$0xff]
    %v2694 = vld [vmem:[#allocation23 + $0x20] sm:$0xff]
    %v2695 = vld [vmem:[#allocation23 + $0x28] sm:$0xff]
    %v2696 = vld [vmem:[#allocation23 + $0x30] sm:$0xff]
    %v2697 = vld [vmem:[#allocation23 + $0x38] sm:$0xff]
    %v2698 = vld [vmem:[#allocation23 + $0x40] sm:$0xff]
    %v2699 = vld [vmem:[#allocation23 + $0x48] sm:$0xff]
    %v2700 = vld [vmem:[#allocation23 + $0x50] sm:$0xff]
    %v2701 = vld [vmem:[#allocation23 + $0x58] sm:$0xff]
    %v2702 = vld [vmem:[#allocation23 + $0x60] sm:$0xff]
    %v2703 = vld [vmem:[#allocation23 + $0x68] sm:$0xff]
    %v2704 = vld [vmem:[#allocation23 + $0x70] sm:$0xff]
    %v2705 = vld [vmem:[#allocation23 + $0x78] sm:$0xff]
    %v2706 = vld [vmem:[#allocation25] sm:$0x1]
    %v2707 = vld [vmem:[#allocation26] sm:$0x1]
    %v2708 = vld [vmem:[#allocation28] sm:$0x1]
    %v2710 = vlaneseq
    %v2711 = vshrl.u32 %v2710, 7
    %v2712 = vsub.s32 0, %v2711
    %v2713 = vrot.slane %v2677, %v2712
    %v2716 = vsel %vm628, %v2665, 0
    %v2719 = vsel %vm628, %v2666, 0
    %v2722 = vsel %vm628, %v2667, 0
    %v2725 = vsel %vm628, %v2668, 0
    %2727 = vmatprep.subr.mxu0 0.0
    %2728 = vmatpush1.msra.mxu0 %v2673
    %2729 = vmatprep.subr.mxu0 0.0
    %2730 = vmatpush1.msra.mxu0 %v2674
    %2731 = vmatprep.subr.mxu0 0.0
    %2732 = vmatpush1.msra.mxu0 %v2675
    %2733 = vmatprep.subr.mxu0 0.0
    %2734 = vmatpush1.msra.mxu0 %v2676
    %2735 = vmatprep.subr.mxu0 0.0
    %2736 = vmatpush1.msra.mxu0 0.0
    %2737 = vmatprep.subr.mxu0 0.0
    %2738 = vmatpush1.msra.mxu0 0.0
    %2739 = vmatprep.subr.mxu0 0.0
    %2740 = vmatpush1.msra.mxu0 0.0
    %2741 = vmatprep.subr.mxu0 0.0
    %2742 = vmatpush1.msra.mxu0 0.0
    %2743 = vmatprep.subr.mxu0 0.0
    %2744 = vmatpush1.msra.mxu0 0.0
    %2745 = vmatprep.subr.mxu0 0.0
    %2746 = vmatpush1.msra.mxu0 0.0
    %2747 = vmatprep.subr.mxu0 0.0
    %2748 = vmatpush1.msra.mxu0 0.0
    %2749 = vmatprep.subr.mxu0 0.0
    %2750 = vmatpush1.msra.mxu0 0.0
    %2751 = vmatprep.subr.mxu0 0.0
    %2752 = vmatpush1.msra.mxu0 0.0
    %2753 = vmatprep.subr.mxu0 0.0
    %2754 = vmatpush1.msra.mxu0 0.0
    %2755 = vmatprep.subr.mxu0 0.0
    %2756 = vmatpush1.msra.mxu0 0.0
    %2757 = vmatprep.subr.mxu0 0.0
    %2758 = vmatpush1.msra.mxu0 0.0
    %2759 = vmatprep.subr.mxu0 0.0
    %2760 = vmatpush1.msra.mxu0 0.0
    %2761 = vmatprep.subr.mxu0 0.0
    %2762 = vmatpush1.msra.mxu0 0.0
    %2763 = vmatprep.subr.mxu0 0.0
    %2764 = vmatpush1.msra.mxu0 0.0
    %2765 = vmatprep.subr.mxu0 0.0
    %2766 = vmatpush1.msra.mxu0 0.0
    %2767 = vmatprep.subr.mxu0 0.0
    %2768 = vmatpush1.msra.mxu0 0.0
    %2769 = vmatprep.subr.mxu0 0.0
    %2770 = vmatpush1.msra.mxu0 0.0
    %2771 = vmatprep.subr.mxu0 0.0
    %2772 = vmatpush1.msra.mxu0 0.0
    %2773 = vmatprep.subr.mxu0 0.0
    %2774 = vmatpush1.msra.mxu0 0.0
    %2775 = vmatprep.subr.mxu0 0.0
    %2776 = vmatpush1.msra.mxu0 0.0
    %2777 = vmatprep.subr.mxu0 0.0
    %2778 = vmatpush1.msra.mxu0 0.0
    %2779 = vmatprep.subr.mxu0 0.0
    %2780 = vmatpush1.msra.mxu0 0.0
    %2781 = vmatprep.subr.mxu0 0.0
    %2782 = vmatpush1.msra.mxu0 0.0
    %2783 = vmatprep.subr.mxu0 0.0
    %2784 = vmatpush1.msra.mxu0 0.0
    %2785 = vmatprep.subr.mxu0 0.0
    %2786 = vmatpush1.msra.mxu0 0.0
    %2787 = vmatprep.subr.mxu0 0.0
    %2788 = vmatpush1.msra.mxu0 0.0
    %2789 = vmatprep.subr.mxu0 0.0
    %2790 = vmatpush1.msra.mxu0 0.0
    %2791 = vmatprep.mubr.f32.mxu0 0.0
    %2792 = vmatmul.mubr.f32.gmra.mrb[0].mxu0 %v2716
    %v2793 = vpop.f32.mrb[0].mxu0
    %v2794 = vadd.f32 %v2713, %v2793
    %v2795 = vpop.f32.mrb[0].mxu0
    %2796 = vmatprep.mubr.f32.mxu0 0.0
    %2797 = vmatmul.mubr.f32.gmra.mrb[0].mxu0 %v2719
    %v2798 = vpop.f32.mrb[0].mxu0
    %v2799 = vadd.f32 %v2713, %v2798
    %v2800 = vpop.f32.mrb[0].mxu0
    %2801 = vmatprep.mubr.f32.mxu0 0.0
    %2802 = vmatmul.mubr.f32.gmra.mrb[0].mxu0 %v2722
    %v2803 = vpop.f32.mrb[0].mxu0
    %v2804 = vadd.f32 %v2713, %v2803
    %v2805 = vpop.f32.mrb[0].mxu0
    %2806 = vmatprep.mubr.f32.mxu0 0.0
    %2807 = vmatmul.mubr.f32.gmra.mrb[0].mxu0 %v2725
    %v2808 = vpop.f32.mrb[0].mxu0
    %v2809 = vadd.f32 %v2713, %v2808
    %v2810 = vpop.f32.mrb[0].mxu0
    %2811 = vdwg.mxu0
    %v2812 = vmul.f32 %v2794, 0.5
    %v2813 = vmul.f32 %v2799, 0.5
    %v2814 = vmul.f32 %v2804, 0.5
    %v2815 = vmul.f32 %v2809, 0.5
    %2820 = vrot.lane.b32.xlu0 %v2794, 96
    %v2821 = vpop.permute.xlu0 %2820
    %2822 = vrot.lane.b32.xlu0 %v2799, 96
    %v2823 = vpop.permute.xlu0 %2822
    %2824 = vrot.lane.b32.xlu0 %v2804, 96
    %v2825 = vpop.permute.xlu0 %2824
    %2826 = vrot.lane.b32.xlu0 %v2809, 96
    %v2827 = vpop.permute.xlu0 %2826
    %v2829 = vsel %vm706, %v2812, 0
    %v2832 = vsel %vm706, %v2813, 0
    %v2835 = vsel %vm706, %v2814, 0
    %v2838 = vsel %vm706, %v2815, 0
    %v2840 = vsel %vm706, %v2821, 0
    %v2842 = vsel %vm706, %v2823, 0
    %v2844 = vsel %vm706, %v2825, 0
    %v2846 = vsel %vm706, %v2827, 0
    %2848 = vmatprep.subr.mxu0 0.0
    %2849 = vmatpush1.xpose.msra.mxu0 %v2840
    %2850 = vmatprep.subr.mxu0 0.0
    %2851 = vmatpush1.xpose.msra.mxu0 %v2842
    %2852 = vmatprep.subr.mxu0 0.0
    %2853 = vmatpush1.xpose.msra.mxu0 %v2844
    %2854 = vmatprep.subr.mxu0 0.0
    %2855 = vmatpush1.xpose.msra.mxu0 %v2846
    %2856 = vmatprep.subr.mxu0 0.0
    %2857 = vmatpush1.xpose.msra.mxu0 0.0
    %2858 = vmatprep.subr.mxu0 0.0
    %2859 = vmatpush1.xpose.msra.mxu0 0.0
    %2860 = vmatprep.subr.mxu0 0.0
    %2861 = vmatpush1.xpose.msra.mxu0 0.0
    %2862 = vmatprep.subr.mxu0 0.0
    %2863 = vmatpush1.xpose.msra.mxu0 0.0
    %2864 = vmatprep.subr.mxu0 0.0
    %2865 = vmatpush1.xpose.msra.mxu0 0.0
    %2866 = vmatprep.subr.mxu0 0.0
    %2867 = vmatpush1.xpose.msra.mxu0 0.0
    %2868 = vmatprep.subr.mxu0 0.0
    %2869 = vmatpush1.xpose.msra.mxu0 0.0
    %2870 = vmatprep.subr.mxu0 0.0
    %2871 = vmatpush1.xpose.msra.mxu0 0.0
    %2872 = vmatprep.subr.mxu0 0.0
    %2873 = vmatpush1.xpose.msra.mxu0 0.0
    %2874 = vmatprep.subr.mxu0 0.0
    %2875 = vmatpush1.xpose.msra.mxu0 0.0
    %2876 = vmatprep.subr.mxu0 0.0
    %2877 = vmatpush1.xpose.msra.mxu0 0.0
    %2878 = vmatprep.subr.mxu0 0.0
    %2879 = vmatpush1.xpose.msra.mxu0 0.0
    %2880 = vmatprep.subr.mxu0 0.0
    %2881 = vmatpush1.xpose.msra.mxu0 0.0
    %2882 = vmatprep.subr.mxu0 0.0
    %2883 = vmatpush1.xpose.msra.mxu0 0.0
    %2884 = vmatprep.subr.mxu0 0.0
    %2885 = vmatpush1.xpose.msra.mxu0 0.0
    %2886 = vmatprep.subr.mxu0 0.0
    %2887 = vmatpush1.xpose.msra.mxu0 0.0
    %2888 = vmatprep.subr.mxu0 0.0
    %2889 = vmatpush1.xpose.msra.mxu0 0.0
    %2890 = vmatprep.subr.mxu0 0.0
    %2891 = vmatpush1.xpose.msra.mxu0 0.0
    %2892 = vmatprep.subr.mxu0 0.0
    %2893 = vmatpush1.xpose.msra.mxu0 0.0
    %2894 = vmatprep.subr.mxu0 0.0
    %2895 = vmatpush1.xpose.msra.mxu0 0.0
    %2896 = vmatprep.subr.mxu0 0.0
    %2897 = vmatpush1.xpose.msra.mxu0 0.0
    %2898 = vmatprep.subr.mxu0 0.0
    %2899 = vmatpush1.xpose.msra.mxu0 0.0
    %2900 = vmatprep.subr.mxu0 0.0
    %2901 = vmatpush1.xpose.msra.mxu0 0.0
    %2902 = vmatprep.subr.mxu0 0.0
    %2903 = vmatpush1.xpose.msra.mxu0 0.0
    %2904 = vmatprep.subr.mxu0 0.0
    %2905 = vmatpush1.xpose.msra.mxu0 0.0
    %2906 = vmatprep.subr.mxu0 0.0
    %2907 = vmatpush1.xpose.msra.mxu0 0.0
    %2908 = vmatprep.subr.mxu0 0.0
    %2909 = vmatpush1.xpose.msra.mxu0 0.0
    %2910 = vmatprep.subr.mxu0 0.0
    %2911 = vmatpush1.xpose.msra.mxu0 0.0
    %2912 = vmatprep.mubr.f32.mxu0 0.0
    %2913 = vmatmul.mubr.f32.gmra.mrb[0].mxu0 %v2829
    %v2914 = vpop.f32.mrb[0].mxu0
    %v2915 = vadd.f32 %v2669, %v2914
    %v2916 = vpop.f32.mrb[0].mxu0
    %2917 = vmatprep.mubr.f32.mxu0 0.0
    %2918 = vmatmul.mubr.f32.gmra.mrb[0].mxu0 %v2832
    %v2919 = vpop.f32.mrb[0].mxu0
    %v2920 = vadd.f32 %v2670, %v2919
    %v2921 = vpop.f32.mrb[0].mxu0
    %2922 = vmatprep.mubr.f32.mxu0 0.0
    %2923 = vmatmul.mubr.f32.gmra.mrb[0].mxu0 %v2835
    %v2924 = vpop.f32.mrb[0].mxu0
    %v2925 = vadd.f32 %v2671, %v2924
    %v2926 = vpop.f32.mrb[0].mxu0
    %2927 = vmatprep.mubr.f32.mxu0 0.0
    %2928 = vmatmul.mubr.f32.gmra.mrb[0].mxu0 %v2838
    %v2929 = vpop.f32.mrb[0].mxu0
    %v2930 = vadd.f32 %v2672, %v2929
    %v2931 = vpop.f32.mrb[0].mxu0
    %2932 = vdwg.mxu0
    %v2933 = vsel %vm628, %v2915, -inf
    %2934 = vmax.xlane.f32.xlu0 %v2933
    %v2935 = vpop.xlane.xlu0 %2934
    %v2936 = vsel %vm628, %v2920, -inf
    %2937 = vmax.xlane.f32.xlu0 %v2936
    %v2938 = vpop.xlane.xlu0 %2937
    %v2939 = vsel %vm628, %v2925, -inf
    %2940 = vmax.xlane.f32.xlu0 %v2939
    %v2941 = vpop.xlane.xlu0 %2940
    %v2942 = vsel %vm628, %v2930, -inf
    %2943 = vmax.xlane.f32.xlu0 %v2942
    %v2944 = vpop.xlane.xlu0 %2943
    %v2945 = vsub.f32 %v2915, %v2935
    %v2946 = vsub.f32 %v2920, %v2938
    %v2947 = vsub.f32 %v2925, %v2941
    %v2948 = vsub.f32 %v2930, %v2944
    %v2949 = vmul.f32 %v2945, 1.442695
    %v2950 = vpow.pop %v2949
    %v2951 = vmul.f32 %v2946, 1.442695
    %v2952 = vpow.pop %v2951
    %v2953 = vmul.f32 %v2947, 1.442695
    %v2954 = vpow.pop %v2953
    %v2955 = vmul.f32 %v2948, 1.442695
    %v2956 = vpow.pop %v2955
    %v2957 = vsel %vm628, %v2950, 0.0
    %2958 = vadd.xlane.f32.xlu0 %v2957
    %v2959 = vpop.xlane.xlu0 %2958
    %v2960 = vsel %vm628, %v2952, 0.0
    %2961 = vadd.xlane.f32.xlu0 %v2960
    %v2962 = vpop.xlane.xlu0 %2961
    %v2963 = vsel %vm628, %v2954, 0.0
    %2964 = vadd.xlane.f32.xlu0 %v2963
    %v2965 = vpop.xlane.xlu0 %2964
    %v2966 = vsel %vm628, %v2956, 0.0
    %2967 = vadd.xlane.f32.xlu0 %v2966
    %v2968 = vpop.xlane.xlu0 %2967
    %v2969 = vrcp.pop %v2959
    %v2970 = vrcp.pop %v2962
    %v2971 = vrcp.pop %v2965
    %v2972 = vrcp.pop %v2968
    %v2973 = vmul.f32 %v2950, %v2969
    %v2974 = vmul.f32 %v2952, %v2970
    %v2975 = vmul.f32 %v2954, %v2971
    %v2976 = vmul.f32 %v2956, %v2972
    %2977 = vrot.lane.b32.xlu0 %v2794, 64
    %v2978 = vpop.permute.xlu0 %2977
    %2979 = vrot.lane.b32.xlu0 %v2799, 64
    %v2980 = vpop.permute.xlu0 %2979
    %2981 = vrot.lane.b32.xlu0 %v2804, 64
    %v2982 = vpop.permute.xlu0 %2981
    %2983 = vrot.lane.b32.xlu0 %v2809, 64
    %v2984 = vpop.permute.xlu0 %2983
    %v2990 = vsel %vm628, %v2973, 0
    %v2993 = vsel %vm628, %v2974, 0
    %v2996 = vsel %vm628, %v2975, 0
    %v2999 = vsel %vm628, %v2976, 0
    %3001 = vmatprep.subr.mxu0 0.0
    %3002 = vmatpush1.msra.mxu0 %v2978
    %3003 = vmatprep.subr.mxu0 0.0
    %3004 = vmatpush1.msra.mxu0 %v2980
    %3005 = vmatprep.subr.mxu0 0.0
    %3006 = vmatpush1.msra.mxu0 %v2982
    %3007 = vmatprep.subr.mxu0 0.0
    %3008 = vmatpush1.msra.mxu0 %v2984
    %3009 = vmatprep.subr.mxu0 0.0
    %3010 = vmatpush1.msra.mxu0 0.0
    %3011 = vmatprep.subr.mxu0 0.0
    %3012 = vmatpush1.msra.mxu0 0.0
    %3013 = vmatprep.subr.mxu0 0.0
    %3014 = vmatpush1.msra.mxu0 0.0
    %3015 = vmatprep.subr.mxu0 0.0
    %3016 = vmatpush1.msra.mxu0 0.0
    %3017 = vmatprep.subr.mxu0 0.0
    %3018 = vmatpush1.msra.mxu0 0.0
    %3019 = vmatprep.subr.mxu0 0.0
    %3020 = vmatpush1.msra.mxu0 0.0
    %3021 = vmatprep.subr.mxu0 0.0
    %3022 = vmatpush1.msra.mxu0 0.0
    %3023 = vmatprep.subr.mxu0 0.0
    %3024 = vmatpush1.msra.mxu0 0.0
    %3025 = vmatprep.subr.mxu0 0.0
    %3026 = vmatpush1.msra.mxu0 0.0
    %3027 = vmatprep.subr.mxu0 0.0
    %3028 = vmatpush1.msra.mxu0 0.0
    %3029 = vmatprep.subr.mxu0 0.0
    %3030 = vmatpush1.msra.mxu0 0.0
    %3031 = vmatprep.subr.mxu0 0.0
    %3032 = vmatpush1.msra.mxu0 0.0
    %3033 = vmatprep.subr.mxu0 0.0
    %3034 = vmatpush1.msra.mxu0 0.0
    %3035 = vmatprep.subr.mxu0 0.0
    %3036 = vmatpush1.msra.mxu0 0.0
    %3037 = vmatprep.subr.mxu0 0.0
    %3038 = vmatpush1.msra.mxu0 0.0
    %3039 = vmatprep.subr.mxu0 0.0
    %3040 = vmatpush1.msra.mxu0 0.0
    %3041 = vmatprep.subr.mxu0 0.0
    %3042 = vmatpush1.msra.mxu0 0.0
    %3043 = vmatprep.subr.mxu0 0.0
    %3044 = vmatpush1.msra.mxu0 0.0
    %3045 = vmatprep.subr.mxu0 0.0
    %3046 = vmatpush1.msra.mxu0 0.0
    %3047 = vmatprep.subr.mxu0 0.0
    %3048 = vmatpush1.msra.mxu0 0.0
    %3049 = vmatprep.subr.mxu0 0.0
    %3050 = vmatpush1.msra.mxu0 0.0
    %3051 = vmatprep.subr.mxu0 0.0
    %3052 = vmatpush1.msra.mxu0 0.0
    %3053 = vmatprep.subr.mxu0 0.0
    %3054 = vmatpush1.msra.mxu0 0.0
    %3055 = vmatprep.subr.mxu0 0.0
    %3056 = vmatpush1.msra.mxu0 0.0
    %3057 = vmatprep.subr.mxu0 0.0
    %3058 = vmatpush1.msra.mxu0 0.0
    %3059 = vmatprep.subr.mxu0 0.0
    %3060 = vmatpush1.msra.mxu0 0.0
    %3061 = vmatprep.subr.mxu0 0.0
    %3062 = vmatpush1.msra.mxu0 0.0
    %3063 = vmatprep.subr.mxu0 0.0
    %3064 = vmatpush1.msra.mxu0 0.0
    %3065 = vmatprep.mubr.f32.mxu0 0.0
    %3066 = vmatmul.mubr.f32.gmra.mrb[0].mxu0 %v2990
    %v3067 = vpop.f32.mrb[0].mxu0
    %v3068 = vadd.f32 0.0, %v3067
    %v3069 = vpop.f32.mrb[0].mxu0
    %3070 = vmatprep.mubr.f32.mxu0 0.0
    %3071 = vmatmul.mubr.f32.gmra.mrb[0].mxu0 %v2993
    %v3072 = vpop.f32.mrb[0].mxu0
    %v3073 = vadd.f32 0.0, %v3072
    %v3074 = vpop.f32.mrb[0].mxu0
    %3075 = vmatprep.mubr.f32.mxu0 0.0
    %3076 = vmatmul.mubr.f32.gmra.mrb[0].mxu0 %v2996
    %v3077 = vpop.f32.mrb[0].mxu0
    %v3078 = vadd.f32 0.0, %v3077
    %v3079 = vpop.f32.mrb[0].mxu0
    %3080 = vmatprep.mubr.f32.mxu0 0.0
    %3081 = vmatmul.mubr.f32.gmra.mrb[0].mxu0 %v2999
    %v3082 = vpop.f32.mrb[0].mxu0
    %v3083 = vadd.f32 0.0, %v3082
    %v3084 = vpop.f32.mrb[0].mxu0
    %3085 = vdwg.mxu0
    %3086 = vrot.lane.b32.xlu0 %v2812, 124
    %v3087 = vpop.permute.xlu0 %3086
    %3088 = vrot.lane.b32.xlu0 %v2813, 124
    %v3089 = vpop.permute.xlu0 %3088
    %3090 = vrot.lane.b32.xlu0 %v2814, 124
    %v3091 = vpop.permute.xlu0 %3090
    %3092 = vrot.lane.b32.xlu0 %v2815, 124
    %v3093 = vpop.permute.xlu0 %3092
    %3094 = vrot.lane.b32.xlu0 %v2794, 92
    %v3095 = vpop.permute.xlu0 %3094
    %3096 = vrot.lane.b32.xlu0 %v2799, 92
    %v3097 = vpop.permute.xlu0 %3096
    %3098 = vrot.lane.b32.xlu0 %v2804, 92
    %v3099 = vpop.permute.xlu0 %3098
    %3100 = vrot.lane.b32.xlu0 %v2809, 92
    %v3101 = vpop.permute.xlu0 %3100
    %v3102 = vsel %vm706, %v3087, 0
    %v3104 = vsel %vm706, %v3089, 0
    %v3106 = vsel %vm706, %v3091, 0
    %v3108 = vsel %vm706, %v3093, 0
    %v3110 = vsel %vm706, %v3095, 0
    %v3112 = vsel %vm706, %v3097, 0
    %v3114 = vsel %vm706, %v3099, 0
    %v3116 = vsel %vm706, %v3101, 0
    %3118 = vmatprep.subr.mxu0 0.0
    %3119 = vmatpush1.xpose.msra.mxu0 %v3110
    %3120 = vmatprep.subr.mxu0 0.0
    %3121 = vmatpush1.xpose.msra.mxu0 %v3112
    %3122 = vmatprep.subr.mxu0 0.0
    %3123 = vmatpush1.xpose.msra.mxu0 %v3114
    %3124 = vmatprep.subr.mxu0 0.0
    %3125 = vmatpush1.xpose.msra.mxu0 %v3116
    %3126 = vmatprep.subr.mxu0 0.0
    %3127 = vmatpush1.xpose.msra.mxu0 0.0
    %3128 = vmatprep.subr.mxu0 0.0
    %3129 = vmatpush1.xpose.msra.mxu0 0.0
    %3130 = vmatprep.subr.mxu0 0.0
    %3131 = vmatpush1.xpose.msra.mxu0 0.0
    %3132 = vmatprep.subr.mxu0 0.0
    %3133 = vmatpush1.xpose.msra.mxu0 0.0
    %3134 = vmatprep.subr.mxu0 0.0
    %3135 = vmatpush1.xpose.msra.mxu0 0.0
    %3136 = vmatprep.subr.mxu0 0.0
    %3137 = vmatpush1.xpose.msra.mxu0 0.0
    %3138 = vmatprep.subr.mxu0 0.0
    %3139 = vmatpush1.xpose.msra.mxu0 0.0
    %3140 = vmatprep.subr.mxu0 0.0
    %3141 = vmatpush1.xpose.msra.mxu0 0.0
    %3142 = vmatprep.subr.mxu0 0.0
    %3143 = vmatpush1.xpose.msra.mxu0 0.0
    %3144 = vmatprep.subr.mxu0 0.0
    %3145 = vmatpush1.xpose.msra.mxu0 0.0
    %3146 = vmatprep.subr.mxu0 0.0
    %3147 = vmatpush1.xpose.msra.mxu0 0.0
    %3148 = vmatprep.subr.mxu0 0.0
    %3149 = vmatpush1.xpose.msra.mxu0 0.0
    %3150 = vmatprep.subr.mxu0 0.0
    %3151 = vmatpush1.xpose.msra.mxu0 0.0
    %3152 = vmatprep.subr.mxu0 0.0
    %3153 = vmatpush1.xpose.msra.mxu0 0.0
    %3154 = vmatprep.subr.mxu0 0.0
    %3155 = vmatpush1.xpose.msra.mxu0 0.0
    %3156 = vmatprep.subr.mxu0 0.0
    %3157 = vmatpush1.xpose.msra.mxu0 0.0
    %3158 = vmatprep.subr.mxu0 0.0
    %3159 = vmatpush1.xpose.msra.mxu0 0.0
    %3160 = vmatprep.subr.mxu0 0.0
    %3161 = vmatpush1.xpose.msra.mxu0 0.0
    %3162 = vmatprep.subr.mxu0 0.0
    %3163 = vmatpush1.xpose.msra.mxu0 0.0
    %3164 = vmatprep.subr.mxu0 0.0
    %3165 = vmatpush1.xpose.msra.mxu0 0.0
    %3166 = vmatprep.subr.mxu0 0.0
    %3167 = vmatpush1.xpose.msra.mxu0 0.0
    %3168 = vmatprep.subr.mxu0 0.0
    %3169 = vmatpush1.xpose.msra.mxu0 0.0
    %3170 = vmatprep.subr.mxu0 0.0
    %3171 = vmatpush1.xpose.msra.mxu0 0.0
    %3172 = vmatprep.subr.mxu0 0.0
    %3173 = vmatpush1.xpose.msra.mxu0 0.0
    %3174 = vmatprep.subr.mxu0 0.0
    %3175 = vmatpush1.xpose.msra.mxu0 0.0
    %3176 = vmatprep.subr.mxu0 0.0
    %3177 = vmatpush1.xpose.msra.mxu0 0.0
    %3178 = vmatprep.subr.mxu0 0.0
    %3179 = vmatpush1.xpose.msra.mxu0 0.0
    %3180 = vmatprep.subr.mxu0 0.0
    %3181 = vmatpush1.xpose.msra.mxu0 0.0
    %3182 = vmatprep.mubr.f32.mxu0 0.0
    %3183 = vmatmul.mubr.f32.gmra.mrb[0].mxu0 %v3102
    %v3184 = vpop.f32.mrb[0].mxu0
    %v3185 = vadd.f32 %v2669, %v3184
    %v3186 = vpop.f32.mrb[0].mxu0
    %3187 = vmatprep.mubr.f32.mxu0 0.0
    %3188 = vmatmul.mubr.f32.gmra.mrb[0].mxu0 %v3104
    %v3189 = vpop.f32.mrb[0].mxu0
    %v3190 = vadd.f32 %v2670, %v3189
    %v3191 = vpop.f32.mrb[0].mxu0
    %3192 = vmatprep.mubr.f32.mxu0 0.0
    %3193 = vmatmul.mubr.f32.gmra.mrb[0].mxu0 %v3106
    %v3194 = vpop.f32.mrb[0].mxu0
    %v3195 = vadd.f32 %v2671, %v3194
    %v3196 = vpop.f32.mrb[0].mxu0
    %3197 = vmatprep.mubr.f32.mxu0 0.0
    %3198 = vmatmul.mubr.f32.gmra.mrb[0].mxu0 %v3108
    %v3199 = vpop.f32.mrb[0].mxu0
    %v3200 = vadd.f32 %v2672, %v3199
    %v3201 = vpop.f32.mrb[0].mxu0
    %3202 = vdwg.mxu0
    %v3203 = vsel %vm628, %v3185, -inf
    %3204 = vmax.xlane.f32.xlu0 %v3203
    %v3205 = vpop.xlane.xlu0 %3204
    %v3206 = vsel %vm628, %v3190, -inf
    %3207 = vmax.xlane.f32.xlu0 %v3206
    %v3208 = vpop.xlane.xlu0 %3207
    %v3209 = vsel %vm628, %v3195, -inf
    %3210 = vmax.xlane.f32.xlu0 %v3209
    %v3211 = vpop.xlane.xlu0 %3210
    %v3212 = vsel %vm628, %v3200, -inf
    %3213 = vmax.xlane.f32.xlu0 %v3212
    %v3214 = vpop.xlane.xlu0 %3213
    %v3215 = vsub.f32 %v3185, %v3205
    %v3216 = vsub.f32 %v3190, %v3208
    %v3217 = vsub.f32 %v3195, %v3211
    %v3218 = vsub.f32 %v3200, %v3214
    %v3219 = vmul.f32 %v3215, 1.442695
    %v3220 = vpow.pop %v3219
    %v3221 = vmul.f32 %v3216, 1.442695
    %v3222 = vpow.pop %v3221
    %v3223 = vmul.f32 %v3217, 1.442695
    %v3224 = vpow.pop %v3223
    %v3225 = vmul.f32 %v3218, 1.442695
    %v3226 = vpow.pop %v3225
    %v3227 = vsel %vm628, %v3220, 0.0
    %3228 = vadd.xlane.f32.xlu0 %v3227
    %v3229 = vpop.xlane.xlu0 %3228
    %v3230 = vsel %vm628, %v3222, 0.0
    %3231 = vadd.xlane.f32.xlu0 %v3230
    %v3232 = vpop.xlane.xlu0 %3231
    %v3233 = vsel %vm628, %v3224, 0.0
    %3234 = vadd.xlane.f32.xlu0 %v3233
    %v3235 = vpop.xlane.xlu0 %3234
    %v3236 = vsel %vm628, %v3226, 0.0
    %3237 = vadd.xlane.f32.xlu0 %v3236
    %v3238 = vpop.xlane.xlu0 %3237
    %v3239 = vrcp.pop %v3229
    %v3240 = vrcp.pop %v3232
    %v3241 = vrcp.pop %v3235
    %v3242 = vrcp.pop %v3238
    %v3243 = vmul.f32 %v3220, %v3239
    %v3244 = vmul.f32 %v3222, %v3240
    %v3245 = vmul.f32 %v3224, %v3241
    %v3246 = vmul.f32 %v3226, %v3242
    %3247 = vrot.lane.b32.xlu0 %v2794, 60
    %v3248 = vpop.permute.xlu0 %3247
    %3249 = vrot.lane.b32.xlu0 %v2799, 60
    %v3250 = vpop.permute.xlu0 %3249
    %3251 = vrot.lane.b32.xlu0 %v2804, 60
    %v3252 = vpop.permute.xlu0 %3251
    %3253 = vrot.lane.b32.xlu0 %v2809, 60
    %v3254 = vpop.permute.xlu0 %3253
    %v3260 = vsel %vm628, %v3243, 0
    %v3263 = vsel %vm628, %v3244, 0
    %v3266 = vsel %vm628, %v3245, 0
    %v3269 = vsel %vm628, %v3246, 0
    %3271 = vmatprep.subr.mxu0 0.0
    %3272 = vmatpush1.msra.mxu0 %v3248
    %3273 = vmatprep.subr.mxu0 0.0
    %3274 = vmatpush1.msra.mxu0 %v3250
    %3275 = vmatprep.subr.mxu0 0.0
    %3276 = vmatpush1.msra.mxu0 %v3252
    %3277 = vmatprep.subr.mxu0 0.0
    %3278 = vmatpush1.msra.mxu0 %v3254
    %3279 = vmatprep.subr.mxu0 0.0
    %3280 = vmatpush1.msra.mxu0 0.0
    %3281 = vmatprep.subr.mxu0 0.0
    %3282 = vmatpush1.msra.mxu0 0.0
    %3283 = vmatprep.subr.mxu0 0.0
    %3284 = vmatpush1.msra.mxu0 0.0
    %3285 = vmatprep.subr.mxu0 0.0
    %3286 = vmatpush1.msra.mxu0 0.0
    %3287 = vmatprep.subr.mxu0 0.0
    %3288 = vmatpush1.msra.mxu0 0.0
    %3289 = vmatprep.subr.mxu0 0.0
    %3290 = vmatpush1.msra.mxu0 0.0
    %3291 = vmatprep.subr.mxu0 0.0
    %3292 = vmatpush1.msra.mxu0 0.0
    %3293 = vmatprep.subr.mxu0 0.0
    %3294 = vmatpush1.msra.mxu0 0.0
    %3295 = vmatprep.subr.mxu0 0.0
    %3296 = vmatpush1.msra.mxu0 0.0
    %3297 = vmatprep.subr.mxu0 0.0
    %3298 = vmatpush1.msra.mxu0 0.0
    %3299 = vmatprep.subr.mxu0 0.0
    %3300 = vmatpush1.msra.mxu0 0.0
    %3301 = vmatprep.subr.mxu0 0.0
    %3302 = vmatpush1.msra.mxu0 0.0
    %3303 = vmatprep.subr.mxu0 0.0
    %3304 = vmatpush1.msra.mxu0 0.0
    %3305 = vmatprep.subr.mxu0 0.0
    %3306 = vmatpush1.msra.mxu0 0.0
    %3307 = vmatprep.subr.mxu0 0.0
    %3308 = vmatpush1.msra.mxu0 0.0
    %3309 = vmatprep.subr.mxu0 0.0
    %3310 = vmatpush1.msra.mxu0 0.0
    %3311 = vmatprep.subr.mxu0 0.0
    %3312 = vmatpush1.msra.mxu0 0.0
    %3313 = vmatprep.subr.mxu0 0.0
    %3314 = vmatpush1.msra.mxu0 0.0
    %3315 = vmatprep.subr.mxu0 0.0
    %3316 = vmatpush1.msra.mxu0 0.0
    %3317 = vmatprep.subr.mxu0 0.0
    %3318 = vmatpush1.msra.mxu0 0.0
    %3319 = vmatprep.subr.mxu0 0.0
    %3320 = vmatpush1.msra.mxu0 0.0
    %3321 = vmatprep.subr.mxu0 0.0
    %3322 = vmatpush1.msra.mxu0 0.0
    %3323 = vmatprep.subr.mxu0 0.0
    %3324 = vmatpush1.msra.mxu0 0.0
    %3325 = vmatprep.subr.mxu0 0.0
    %3326 = vmatpush1.msra.mxu0 0.0
    %3327 = vmatprep.subr.mxu0 0.0
    %3328 = vmatpush1.msra.mxu0 0.0
    %3329 = vmatprep.subr.mxu0 0.0
    %3330 = vmatpush1.msra.mxu0 0.0
    %3331 = vmatprep.subr.mxu0 0.0
    %3332 = vmatpush1.msra.mxu0 0.0
    %3333 = vmatprep.subr.mxu0 0.0
    %3334 = vmatpush1.msra.mxu0 0.0
    %3335 = vmatprep.mubr.f32.mxu0 0.0
    %3336 = vmatmul.mubr.f32.gmra.mrb[0].mxu0 %v3260
    %v3337 = vpop.f32.mrb[0].mxu0
    %v3338 = vadd.f32 0.0, %v3337
    %v3339 = vpop.f32.mrb[0].mxu0
    %3340 = vmatprep.mubr.f32.mxu0 0.0
    %3341 = vmatmul.mubr.f32.gmra.mrb[0].mxu0 %v3263
    %v3342 = vpop.f32.mrb[0].mxu0
    %v3343 = vadd.f32 0.0, %v3342
    %v3344 = vpop.f32.mrb[0].mxu0
    %3345 = vmatprep.mubr.f32.mxu0 0.0
    %3346 = vmatmul.mubr.f32.gmra.mrb[0].mxu0 %v3266
    %v3347 = vpop.f32.mrb[0].mxu0
    %v3348 = vadd.f32 0.0, %v3347
    %v3349 = vpop.f32.mrb[0].mxu0
    %3350 = vmatprep.mubr.f32.mxu0 0.0
    %3351 = vmatmul.mubr.f32.gmra.mrb[0].mxu0 %v3269
    %v3352 = vpop.f32.mrb[0].mxu0
    %v3353 = vadd.f32 0.0, %v3352
    %v3354 = vpop.f32.mrb[0].mxu0
    %3355 = vdwg.mxu0
    %v3357 = vrot.slane %v2678, 4
    %v3359 = vsel %vm706, %v3338, 0
    %v3362 = vsel %vm706, %v3343, 0
    %v3365 = vsel %vm706, %v3348, 0
    %v3368 = vsel %vm706, %v3353, 0
    %v3370 = vsel %vm800, %v3357, 0
    %3372 = vmatprep.subr.mxu0 0.0
    %3373 = vmatpush1.msra.mxu0 %v3370
    %3374 = vmatprep.subr.mxu0 0.0
    %3375 = vmatpush1.msra.mxu0 0.0
    %3376 = vmatprep.subr.mxu0 0.0
    %3377 = vmatpush1.msra.mxu0 0.0
    %3378 = vmatprep.subr.mxu0 0.0
    %3379 = vmatpush1.msra.mxu0 0.0
    %3380 = vmatprep.subr.mxu0 0.0
    %3381 = vmatpush1.msra.mxu0 0.0
    %3382 = vmatprep.subr.mxu0 0.0
    %3383 = vmatpush1.msra.mxu0 0.0
    %3384 = vmatprep.subr.mxu0 0.0
    %3385 = vmatpush1.msra.mxu0 0.0
    %3386 = vmatprep.subr.mxu0 0.0
    %3387 = vmatpush1.msra.mxu0 0.0
    %3388 = vmatprep.subr.mxu0 0.0
    %3389 = vmatpush1.msra.mxu0 0.0
    %3390 = vmatprep.subr.mxu0 0.0
    %3391 = vmatpush1.msra.mxu0 0.0
    %3392 = vmatprep.subr.mxu0 0.0
    %3393 = vmatpush1.msra.mxu0 0.0
    %3394 = vmatprep.subr.mxu0 0.0
    %3395 = vmatpush1.msra.mxu0 0.0
    %3396 = vmatprep.subr.mxu0 0.0
    %3397 = vmatpush1.msra.mxu0 0.0
    %3398 = vmatprep.subr.mxu0 0.0
    %3399 = vmatpush1.msra.mxu0 0.0
    %3400 = vmatprep.subr.mxu0 0.0
    %3401 = vmatpush1.msra.mxu0 0.0
    %3402 = vmatprep.subr.mxu0 0.0
    %3403 = vmatpush1.msra.mxu0 0.0
    %3404 = vmatprep.subr.mxu0 0.0
    %3405 = vmatpush1.msra.mxu0 0.0
    %3406 = vmatprep.subr.mxu0 0.0
    %3407 = vmatpush1.msra.mxu0 0.0
    %3408 = vmatprep.subr.mxu0 0.0
    %3409 = vmatpush1.msra.mxu0 0.0
    %3410 = vmatprep.subr.mxu0 0.0
    %3411 = vmatpush1.msra.mxu0 0.0
    %3412 = vmatprep.subr.mxu0 0.0
    %3413 = vmatpush1.msra.mxu0 0.0
    %3414 = vmatprep.subr.mxu0 0.0
    %3415 = vmatpush1.msra.mxu0 0.0
    %3416 = vmatprep.subr.mxu0 0.0
    %3417 = vmatpush1.msra.mxu0 0.0
    %3418 = vmatprep.subr.mxu0 0.0
    %3419 = vmatpush1.msra.mxu0 0.0
    %3420 = vmatprep.subr.mxu0 0.0
    %3421 = vmatpush1.msra.mxu0 0.0
    %3422 = vmatprep.subr.mxu0 0.0
    %3423 = vmatpush1.msra.mxu0 0.0
    %3424 = vmatprep.subr.mxu0 0.0
    %3425 = vmatpush1.msra.mxu0 0.0
    %3426 = vmatprep.subr.mxu0 0.0
    %3427 = vmatpush1.msra.mxu0 0.0
    %3428 = vmatprep.subr.mxu0 0.0
    %3429 = vmatpush1.msra.mxu0 0.0
    %3430 = vmatprep.subr.mxu0 0.0
    %3431 = vmatpush1.msra.mxu0 0.0
    %3432 = vmatprep.subr.mxu0 0.0
    %3433 = vmatpush1.msra.mxu0 0.0
    %3434 = vmatprep.subr.mxu0 0.0
    %3435 = vmatpush1.msra.mxu0 0.0
    %3436 = vmatprep.mubr.f32.mxu0 0.0
    %3437 = vmatmul.mubr.f32.gmra.mrb[0].mxu0 %v3359
    %v3438 = vpop.f32.mrb[0].mxu0
    %v3439 = vadd.f32 0.0, %v3438
    %v3440 = vpop.f32.mrb[0].mxu0
    %3441 = vmatprep.mubr.f32.mxu0 0.0
    %3442 = vmatmul.mubr.f32.gmra.mrb[0].mxu0 %v3362
    %v3443 = vpop.f32.mrb[0].mxu0
    %v3444 = vadd.f32 0.0, %v3443
    %v3445 = vpop.f32.mrb[0].mxu0
    %3446 = vmatprep.mubr.f32.mxu0 0.0
    %3447 = vmatmul.mubr.f32.gmra.mrb[0].mxu0 %v3365
    %v3448 = vpop.f32.mrb[0].mxu0
    %v3449 = vadd.f32 0.0, %v3448
    %v3450 = vpop.f32.mrb[0].mxu0
    %3451 = vmatprep.mubr.f32.mxu0 0.0
    %3452 = vmatmul.mubr.f32.gmra.mrb[0].mxu0 %v3368
    %v3453 = vpop.f32.mrb[0].mxu0
    %v3454 = vadd.f32 0.0, %v3453
    %v3455 = vpop.f32.mrb[0].mxu0
    %3456 = vdwg.mxu0
    %v3458 = vsel %vm706, %v3068, 0
    %v3461 = vsel %vm706, %v3073, 0
    %v3464 = vsel %vm706, %v3078, 0
    %v3467 = vsel %vm706, %v3083, 0
    %v3469 = vsel %vm800, %v2678, 0
    %3471 = vmatprep.subr.mxu0 0.0
    %3472 = vmatpush1.msra.mxu0 %v3469
    %3473 = vmatprep.subr.mxu0 0.0
    %3474 = vmatpush1.msra.mxu0 0.0
    %3475 = vmatprep.subr.mxu0 0.0
    %3476 = vmatpush1.msra.mxu0 0.0
    %3477 = vmatprep.subr.mxu0 0.0
    %3478 = vmatpush1.msra.mxu0 0.0
    %3479 = vmatprep.subr.mxu0 0.0
    %3480 = vmatpush1.msra.mxu0 0.0
    %3481 = vmatprep.subr.mxu0 0.0
    %3482 = vmatpush1.msra.mxu0 0.0
    %3483 = vmatprep.subr.mxu0 0.0
    %3484 = vmatpush1.msra.mxu0 0.0
    %3485 = vmatprep.subr.mxu0 0.0
    %3486 = vmatpush1.msra.mxu0 0.0
    %3487 = vmatprep.subr.mxu0 0.0
    %3488 = vmatpush1.msra.mxu0 0.0
    %3489 = vmatprep.subr.mxu0 0.0
    %3490 = vmatpush1.msra.mxu0 0.0
    %3491 = vmatprep.subr.mxu0 0.0
    %3492 = vmatpush1.msra.mxu0 0.0
    %3493 = vmatprep.subr.mxu0 0.0
    %3494 = vmatpush1.msra.mxu0 0.0
    %3495 = vmatprep.subr.mxu0 0.0
    %3496 = vmatpush1.msra.mxu0 0.0
    %3497 = vmatprep.subr.mxu0 0.0
    %3498 = vmatpush1.msra.mxu0 0.0
    %3499 = vmatprep.subr.mxu0 0.0
    %3500 = vmatpush1.msra.mxu0 0.0
    %3501 = vmatprep.subr.mxu0 0.0
    %3502 = vmatpush1.msra.mxu0 0.0
    %3503 = vmatprep.subr.mxu0 0.0
    %3504 = vmatpush1.msra.mxu0 0.0
    %3505 = vmatprep.subr.mxu0 0.0
    %3506 = vmatpush1.msra.mxu0 0.0
    %3507 = vmatprep.subr.mxu0 0.0
    %3508 = vmatpush1.msra.mxu0 0.0
    %3509 = vmatprep.subr.mxu0 0.0
    %3510 = vmatpush1.msra.mxu0 0.0
    %3511 = vmatprep.subr.mxu0 0.0
    %3512 = vmatpush1.msra.mxu0 0.0
    %3513 = vmatprep.subr.mxu0 0.0
    %3514 = vmatpush1.msra.mxu0 0.0
    %3515 = vmatprep.subr.mxu0 0.0
    %3516 = vmatpush1.msra.mxu0 0.0
    %3517 = vmatprep.subr.mxu0 0.0
    %3518 = vmatpush1.msra.mxu0 0.0
    %3519 = vmatprep.subr.mxu0 0.0
    %3520 = vmatpush1.msra.mxu0 0.0
    %3521 = vmatprep.subr.mxu0 0.0
    %3522 = vmatpush1.msra.mxu0 0.0
    %3523 = vmatprep.subr.mxu0 0.0
    %3524 = vmatpush1.msra.mxu0 0.0
    %3525 = vmatprep.subr.mxu0 0.0
    %3526 = vmatpush1.msra.mxu0 0.0
    %3527 = vmatprep.subr.mxu0 0.0
    %3528 = vmatpush1.msra.mxu0 0.0
    %3529 = vmatprep.subr.mxu0 0.0
    %3530 = vmatpush1.msra.mxu0 0.0
    %3531 = vmatprep.subr.mxu0 0.0
    %3532 = vmatpush1.msra.mxu0 0.0
    %3533 = vmatprep.subr.mxu0 0.0
    %3534 = vmatpush1.msra.mxu0 0.0
    %3535 = vmatprep.mubr.f32.mxu0 0.0
    %3536 = vmatmul.mubr.f32.gmra.mrb[0].mxu0 %v3458
    %v3537 = vpop.f32.mrb[0].mxu0
    %v3538 = vadd.f32 %v3439, %v3537
    %v3539 = vpop.f32.mrb[0].mxu0
    %3540 = vmatprep.mubr.f32.mxu0 0.0
    %3541 = vmatmul.mubr.f32.gmra.mrb[0].mxu0 %v3461
    %v3542 = vpop.f32.mrb[0].mxu0
    %v3543 = vadd.f32 %v3444, %v3542
    %v3544 = vpop.f32.mrb[0].mxu0
    %3545 = vmatprep.mubr.f32.mxu0 0.0
    %3546 = vmatmul.mubr.f32.gmra.mrb[0].mxu0 %v3464
    %v3547 = vpop.f32.mrb[0].mxu0
    %v3548 = vadd.f32 %v3449, %v3547
    %v3549 = vpop.f32.mrb[0].mxu0
    %3550 = vmatprep.mubr.f32.mxu0 0.0
    %3551 = vmatmul.mubr.f32.gmra.mrb[0].mxu0 %v3467
    %v3552 = vpop.f32.mrb[0].mxu0
    %v3553 = vadd.f32 %v3454, %v3552
    %v3554 = vpop.f32.mrb[0].mxu0
    %3555 = vdwg.mxu0
    %3556 = vrot.lane.b32.xlu0 %v2812, 120
    %v3557 = vpop.permute.xlu0 %3556
    %3558 = vrot.lane.b32.xlu0 %v2813, 120
    %v3559 = vpop.permute.xlu0 %3558
    %3560 = vrot.lane.b32.xlu0 %v2814, 120
    %v3561 = vpop.permute.xlu0 %3560
    %3562 = vrot.lane.b32.xlu0 %v2815, 120
    %v3563 = vpop.permute.xlu0 %3562
    %3564 = vrot.lane.b32.xlu0 %v2794, 88
    %v3565 = vpop.permute.xlu0 %3564
    %3566 = vrot.lane.b32.xlu0 %v2799, 88
    %v3567 = vpop.permute.xlu0 %3566
    %3568 = vrot.lane.b32.xlu0 %v2804, 88
    %v3569 = vpop.permute.xlu0 %3568
    %3570 = vrot.lane.b32.xlu0 %v2809, 88
    %v3571 = vpop.permute.xlu0 %3570
    %v3572 = vsel %vm706, %v3557, 0
    %v3574 = vsel %vm706, %v3559, 0
    %v3576 = vsel %vm706, %v3561, 0
    %v3578 = vsel %vm706, %v3563, 0
    %v3580 = vsel %vm706, %v3565, 0
    %v3582 = vsel %vm706, %v3567, 0
    %v3584 = vsel %vm706, %v3569, 0
    %v3586 = vsel %vm706, %v3571, 0
    %3588 = vmatprep.subr.mxu0 0.0
    %3589 = vmatpush1.xpose.msra.mxu0 %v3580
    %3590 = vmatprep.subr.mxu0 0.0
    %3591 = vmatpush1.xpose.msra.mxu0 %v3582
    %3592 = vmatprep.subr.mxu0 0.0
    %3593 = vmatpush1.xpose.msra.mxu0 %v3584
    %3594 = vmatprep.subr.mxu0 0.0
    %3595 = vmatpush1.xpose.msra.mxu0 %v3586
    %3596 = vmatprep.subr.mxu0 0.0
    %3597 = vmatpush1.xpose.msra.mxu0 0.0
    %3598 = vmatprep.subr.mxu0 0.0
    %3599 = vmatpush1.xpose.msra.mxu0 0.0
    %3600 = vmatprep.subr.mxu0 0.0
    %3601 = vmatpush1.xpose.msra.mxu0 0.0
    %3602 = vmatprep.subr.mxu0 0.0
    %3603 = vmatpush1.xpose.msra.mxu0 0.0
    %3604 = vmatprep.subr.mxu0 0.0
    %3605 = vmatpush1.xpose.msra.mxu0 0.0
    %3606 = vmatprep.subr.mxu0 0.0
    %3607 = vmatpush1.xpose.msra.mxu0 0.0
    %3608 = vmatprep.subr.mxu0 0.0
    %3609 = vmatpush1.xpose.msra.mxu0 0.0
    %3610 = vmatprep.subr.mxu0 0.0
    %3611 = vmatpush1.xpose.msra.mxu0 0.0
    %3612 = vmatprep.subr.mxu0 0.0
    %3613 = vmatpush1.xpose.msra.mxu0 0.0
    %3614 = vmatprep.subr.mxu0 0.0
    %3615 = vmatpush1.xpose.msra.mxu0 0.0
    %3616 = vmatprep.subr.mxu0 0.0
    %3617 = vmatpush1.xpose.msra.mxu0 0.0
    %3618 = vmatprep.subr.mxu0 0.0
    %3619 = vmatpush1.xpose.msra.mxu0 0.0
    %3620 = vmatprep.subr.mxu0 0.0
    %3621 = vmatpush1.xpose.msra.mxu0 0.0
    %3622 = vmatprep.subr.mxu0 0.0
    %3623 = vmatpush1.xpose.msra.mxu0 0.0
    %3624 = vmatprep.subr.mxu0 0.0
    %3625 = vmatpush1.xpose.msra.mxu0 0.0
    %3626 = vmatprep.subr.mxu0 0.0
    %3627 = vmatpush1.xpose.msra.mxu0 0.0
    %3628 = vmatprep.subr.mxu0 0.0
    %3629 = vmatpush1.xpose.msra.mxu0 0.0
    %3630 = vmatprep.subr.mxu0 0.0
    %3631 = vmatpush1.xpose.msra.mxu0 0.0
    %3632 = vmatprep.subr.mxu0 0.0
    %3633 = vmatpush1.xpose.msra.mxu0 0.0
    %3634 = vmatprep.subr.mxu0 0.0
    %3635 = vmatpush1.xpose.msra.mxu0 0.0
    %3636 = vmatprep.subr.mxu0 0.0
    %3637 = vmatpush1.xpose.msra.mxu0 0.0
    %3638 = vmatprep.subr.mxu0 0.0
    %3639 = vmatpush1.xpose.msra.mxu0 0.0
    %3640 = vmatprep.subr.mxu0 0.0
    %3641 = vmatpush1.xpose.msra.mxu0 0.0
    %3642 = vmatprep.subr.mxu0 0.0
    %3643 = vmatpush1.xpose.msra.mxu0 0.0
    %3644 = vmatprep.subr.mxu0 0.0
    %3645 = vmatpush1.xpose.msra.mxu0 0.0
    %3646 = vmatprep.subr.mxu0 0.0
    %3647 = vmatpush1.xpose.msra.mxu0 0.0
    %3648 = vmatprep.subr.mxu0 0.0
    %3649 = vmatpush1.xpose.msra.mxu0 0.0
    %3650 = vmatprep.subr.mxu0 0.0
    %3651 = vmatpush1.xpose.msra.mxu0 0.0
    %3652 = vmatprep.mubr.f32.mxu0 0.0
    %3653 = vmatmul.mubr.f32.gmra.mrb[0].mxu0 %v3572
    %v3654 = vpop.f32.mrb[0].mxu0
    %v3655 = vadd.f32 %v2669, %v3654
    %v3656 = vpop.f32.mrb[0].mxu0
    %3657 = vmatprep.mubr.f32.mxu0 0.0
    %3658 = vmatmul.mubr.f32.gmra.mrb[0].mxu0 %v3574
    %v3659 = vpop.f32.mrb[0].mxu0
    %v3660 = vadd.f32 %v2670, %v3659
    %v3661 = vpop.f32.mrb[0].mxu0
    %3662 = vmatprep.mubr.f32.mxu0 0.0
    %3663 = vmatmul.mubr.f32.gmra.mrb[0].mxu0 %v3576
    %v3664 = vpop.f32.mrb[0].mxu0
    %v3665 = vadd.f32 %v2671, %v3664
    %v3666 = vpop.f32.mrb[0].mxu0
    %3667 = vmatprep.mubr.f32.mxu0 0.0
    %3668 = vmatmul.mubr.f32.gmra.mrb[0].mxu0 %v3578
    %v3669 = vpop.f32.mrb[0].mxu0
    %v3670 = vadd.f32 %v2672, %v3669
    %v3671 = vpop.f32.mrb[0].mxu0
    %3672 = vdwg.mxu0
    %v3673 = vsel %vm628, %v3655, -inf
    %3674 = vmax.xlane.f32.xlu0 %v3673
    %v3675 = vpop.xlane.xlu0 %3674
    %v3676 = vsel %vm628, %v3660, -inf
    %3677 = vmax.xlane.f32.xlu0 %v3676
    %v3678 = vpop.xlane.xlu0 %3677
    %v3679 = vsel %vm628, %v3665, -inf
    %3680 = vmax.xlane.f32.xlu0 %v3679
    %v3681 = vpop.xlane.xlu0 %3680
    %v3682 = vsel %vm628, %v3670, -inf
    %3683 = vmax.xlane.f32.xlu0 %v3682
    %v3684 = vpop.xlane.xlu0 %3683
    %v3685 = vsub.f32 %v3655, %v3675
    %v3686 = vsub.f32 %v3660, %v3678
    %v3687 = vsub.f32 %v3665, %v3681
    %v3688 = vsub.f32 %v3670, %v3684
    %v3689 = vmul.f32 %v3685, 1.442695
    %v3690 = vpow.pop %v3689
    %v3691 = vmul.f32 %v3686, 1.442695
    %v3692 = vpow.pop %v3691
    %v3693 = vmul.f32 %v3687, 1.442695
    %v3694 = vpow.pop %v3693
    %v3695 = vmul.f32 %v3688, 1.442695
    %v3696 = vpow.pop %v3695
    %v3697 = vsel %vm628, %v3690, 0.0
    %3698 = vadd.xlane.f32.xlu0 %v3697
    %v3699 = vpop.xlane.xlu0 %3698
    %v3700 = vsel %vm628, %v3692, 0.0
    %3701 = vadd.xlane.f32.xlu0 %v3700
    %v3702 = vpop.xlane.xlu0 %3701
    %v3703 = vsel %vm628, %v3694, 0.0
    %3704 = vadd.xlane.f32.xlu0 %v3703
    %v3705 = vpop.xlane.xlu0 %3704
    %v3706 = vsel %vm628, %v3696, 0.0
    %3707 = vadd.xlane.f32.xlu0 %v3706
    %v3708 = vpop.xlane.xlu0 %3707
    %v3709 = vrcp.pop %v3699
    %v3710 = vrcp.pop %v3702
    %v3711 = vrcp.pop %v3705
    %v3712 = vrcp.pop %v3708
    %v3713 = vmul.f32 %v3690, %v3709
    %v3714 = vmul.f32 %v3692, %v3710
    %v3715 = vmul.f32 %v3694, %v3711
    %v3716 = vmul.f32 %v3696, %v3712
    %3717 = vrot.lane.b32.xlu0 %v2794, 56
    %v3718 = vpop.permute.xlu0 %3717
    %3719 = vrot.lane.b32.xlu0 %v2799, 56
    %v3720 = vpop.permute.xlu0 %3719
    %3721 = vrot.lane.b32.xlu0 %v2804, 56
    %v3722 = vpop.permute.xlu0 %3721
    %3723 = vrot.lane.b32.xlu0 %v2809, 56
    %v3724 = vpop.permute.xlu0 %3723
    %v3730 = vsel %vm628, %v3713, 0
    %v3733 = vsel %vm628, %v3714, 0
    %v3736 = vsel %vm628, %v3715, 0
    %v3739 = vsel %vm628, %v3716, 0
    %3741 = vmatprep.subr.mxu0 0.0
    %3742 = vmatpush1.msra.mxu0 %v3718
    %3743 = vmatprep.subr.mxu0 0.0
    %3744 = vmatpush1.msra.mxu0 %v3720
    %3745 = vmatprep.subr.mxu0 0.0
    %3746 = vmatpush1.msra.mxu0 %v3722
    %3747 = vmatprep.subr.mxu0 0.0
    %3748 = vmatpush1.msra.mxu0 %v3724
    %3749 = vmatprep.subr.mxu0 0.0
    %3750 = vmatpush1.msra.mxu0 0.0
    %3751 = vmatprep.subr.mxu0 0.0
    %3752 = vmatpush1.msra.mxu0 0.0
    %3753 = vmatprep.subr.mxu0 0.0
    %3754 = vmatpush1.msra.mxu0 0.0
    %3755 = vmatprep.subr.mxu0 0.0
    %3756 = vmatpush1.msra.mxu0 0.0
    %3757 = vmatprep.subr.mxu0 0.0
    %3758 = vmatpush1.msra.mxu0 0.0
    %3759 = vmatprep.subr.mxu0 0.0
    %3760 = vmatpush1.msra.mxu0 0.0
    %3761 = vmatprep.subr.mxu0 0.0
    %3762 = vmatpush1.msra.mxu0 0.0
    %3763 = vmatprep.subr.mxu0 0.0
    %3764 = vmatpush1.msra.mxu0 0.0
    %3765 = vmatprep.subr.mxu0 0.0
    %3766 = vmatpush1.msra.mxu0 0.0
    %3767 = vmatprep.subr.mxu0 0.0
    %3768 = vmatpush1.msra.mxu0 0.0
    %3769 = vmatprep.subr.mxu0 0.0
    %3770 = vmatpush1.msra.mxu0 0.0
    %3771 = vmatprep.subr.mxu0 0.0
    %3772 = vmatpush1.msra.mxu0 0.0
    %3773 = vmatprep.subr.mxu0 0.0
    %3774 = vmatpush1.msra.mxu0 0.0
    %3775 = vmatprep.subr.mxu0 0.0
    %3776 = vmatpush1.msra.mxu0 0.0
    %3777 = vmatprep.subr.mxu0 0.0
    %3778 = vmatpush1.msra.mxu0 0.0
    %3779 = vmatprep.subr.mxu0 0.0
    %3780 = vmatpush1.msra.mxu0 0.0
    %3781 = vmatprep.subr.mxu0 0.0
    %3782 = vmatpush1.msra.mxu0 0.0
    %3783 = vmatprep.subr.mxu0 0.0
    %3784 = vmatpush1.msra.mxu0 0.0
    %3785 = vmatprep.subr.mxu0 0.0
    %3786 = vmatpush1.msra.mxu0 0.0
    %3787 = vmatprep.subr.mxu0 0.0
    %3788 = vmatpush1.msra.mxu0 0.0
    %3789 = vmatprep.subr.mxu0 0.0
    %3790 = vmatpush1.msra.mxu0 0.0
    %3791 = vmatprep.subr.mxu0 0.0
    %3792 = vmatpush1.msra.mxu0 0.0
    %3793 = vmatprep.subr.mxu0 0.0
    %3794 = vmatpush1.msra.mxu0 0.0
    %3795 = vmatprep.subr.mxu0 0.0
    %3796 = vmatpush1.msra.mxu0 0.0
    %3797 = vmatprep.subr.mxu0 0.0
    %3798 = vmatpush1.msra.mxu0 0.0
    %3799 = vmatprep.subr.mxu0 0.0
    %3800 = vmatpush1.msra.mxu0 0.0
    %3801 = vmatprep.subr.mxu0 0.0
    %3802 = vmatpush1.msra.mxu0 0.0
    %3803 = vmatprep.subr.mxu0 0.0
    %3804 = vmatpush1.msra.mxu0 0.0
    %3805 = vmatprep.mubr.f32.mxu0 0.0
    %3806 = vmatmul.mubr.f32.gmra.mrb[0].mxu0 %v3730
    %v3807 = vpop.f32.mrb[0].mxu0
    %v3808 = vadd.f32 0.0, %v3807
    %v3809 = vpop.f32.mrb[0].mxu0
    %3810 = vmatprep.mubr.f32.mxu0 0.0
    %3811 = vmatmul.mubr.f32.gmra.mrb[0].mxu0 %v3733
    %v3812 = vpop.f32.mrb[0].mxu0
    %v3813 = vadd.f32 0.0, %v3812
    %v3814 = vpop.f32.mrb[0].mxu0
    %3815 = vmatprep.mubr.f32.mxu0 0.0
    %3816 = vmatmul.mubr.f32.gmra.mrb[0].mxu0 %v3736
    %v3817 = vpop.f32.mrb[0].mxu0
    %v3818 = vadd.f32 0.0, %v3817
    %v3819 = vpop.f32.mrb[0].mxu0
    %3820 = vmatprep.mubr.f32.mxu0 0.0
    %3821 = vmatmul.mubr.f32.gmra.mrb[0].mxu0 %v3739
    %v3822 = vpop.f32.mrb[0].mxu0
    %v3823 = vadd.f32 0.0, %v3822
    %v3824 = vpop.f32.mrb[0].mxu0
    %3825 = vdwg.mxu0
    %v3827 = vsel %vm706, %v3808, 0
    %v3830 = vsel %vm706, %v3813, 0
    %v3833 = vsel %vm706, %v3818, 0
    %v3836 = vsel %vm706, %v3823, 0
    %v3839 = vsel %vm800, %v2679, 0
    %3841 = vmatprep.subr.mxu0 0.0
    %3842 = vmatpush1.msra.mxu0 %v3839
    %3843 = vmatprep.subr.mxu0 0.0
    %3844 = vmatpush1.msra.mxu0 0.0
    %3845 = vmatprep.subr.mxu0 0.0
    %3846 = vmatpush1.msra.mxu0 0.0
    %3847 = vmatprep.subr.mxu0 0.0
    %3848 = vmatpush1.msra.mxu0 0.0
    %3849 = vmatprep.subr.mxu0 0.0
    %3850 = vmatpush1.msra.mxu0 0.0
    %3851 = vmatprep.subr.mxu0 0.0
    %3852 = vmatpush1.msra.mxu0 0.0
    %3853 = vmatprep.subr.mxu0 0.0
    %3854 = vmatpush1.msra.mxu0 0.0
    %3855 = vmatprep.subr.mxu0 0.0
    %3856 = vmatpush1.msra.mxu0 0.0
    %3857 = vmatprep.subr.mxu0 0.0
    %3858 = vmatpush1.msra.mxu0 0.0
    %3859 = vmatprep.subr.mxu0 0.0
    %3860 = vmatpush1.msra.mxu0 0.0
    %3861 = vmatprep.subr.mxu0 0.0
    %3862 = vmatpush1.msra.mxu0 0.0
    %3863 = vmatprep.subr.mxu0 0.0
    %3864 = vmatpush1.msra.mxu0 0.0
    %3865 = vmatprep.subr.mxu0 0.0
    %3866 = vmatpush1.msra.mxu0 0.0
    %3867 = vmatprep.subr.mxu0 0.0
    %3868 = vmatpush1.msra.mxu0 0.0
    %3869 = vmatprep.subr.mxu0 0.0
    %3870 = vmatpush1.msra.mxu0 0.0
    %3871 = vmatprep.subr.mxu0 0.0
    %3872 = vmatpush1.msra.mxu0 0.0
    %3873 = vmatprep.subr.mxu0 0.0
    %3874 = vmatpush1.msra.mxu0 0.0
    %3875 = vmatprep.subr.mxu0 0.0
    %3876 = vmatpush1.msra.mxu0 0.0
    %3877 = vmatprep.subr.mxu0 0.0
    %3878 = vmatpush1.msra.mxu0 0.0
    %3879 = vmatprep.subr.mxu0 0.0
    %3880 = vmatpush1.msra.mxu0 0.0
    %3881 = vmatprep.subr.mxu0 0.0
    %3882 = vmatpush1.msra.mxu0 0.0
    %3883 = vmatprep.subr.mxu0 0.0
    %3884 = vmatpush1.msra.mxu0 0.0
    %3885 = vmatprep.subr.mxu0 0.0
    %3886 = vmatpush1.msra.mxu0 0.0
    %3887 = vmatprep.subr.mxu0 0.0
    %3888 = vmatpush1.msra.mxu0 0.0
    %3889 = vmatprep.subr.mxu0 0.0
    %3890 = vmatpush1.msra.mxu0 0.0
    %3891 = vmatprep.subr.mxu0 0.0
    %3892 = vmatpush1.msra.mxu0 0.0
    %3893 = vmatprep.subr.mxu0 0.0
    %3894 = vmatpush1.msra.mxu0 0.0
    %3895 = vmatprep.subr.mxu0 0.0
    %3896 = vmatpush1.msra.mxu0 0.0
    %3897 = vmatprep.subr.mxu0 0.0
    %3898 = vmatpush1.msra.mxu0 0.0
    %3899 = vmatprep.subr.mxu0 0.0
    %3900 = vmatpush1.msra.mxu0 0.0
    %3901 = vmatprep.subr.mxu0 0.0
    %3902 = vmatpush1.msra.mxu0 0.0
    %3903 = vmatprep.subr.mxu0 0.0
    %3904 = vmatpush1.msra.mxu0 0.0
    %3905 = vmatprep.mubr.f32.mxu0 0.0
    %3906 = vmatmul.mubr.f32.gmra.mrb[0].mxu0 %v3827
    %v3907 = vpop.f32.mrb[0].mxu0
    %v3908 = vadd.f32 0.0, %v3907
    %v3909 = vpop.f32.mrb[0].mxu0
    %3910 = vmatprep.mubr.f32.mxu0 0.0
    %3911 = vmatmul.mubr.f32.gmra.mrb[0].mxu0 %v3830
    %v3912 = vpop.f32.mrb[0].mxu0
    %v3913 = vadd.f32 0.0, %v3912
    %v3914 = vpop.f32.mrb[0].mxu0
    %3915 = vmatprep.mubr.f32.mxu0 0.0
    %3916 = vmatmul.mubr.f32.gmra.mrb[0].mxu0 %v3833
    %v3917 = vpop.f32.mrb[0].mxu0
    %v3918 = vadd.f32 0.0, %v3917
    %v3919 = vpop.f32.mrb[0].mxu0
    %3920 = vmatprep.mubr.f32.mxu0 0.0
    %3921 = vmatmul.mubr.f32.gmra.mrb[0].mxu0 %v3836
    %v3922 = vpop.f32.mrb[0].mxu0
    %v3923 = vadd.f32 0.0, %v3922
    %v3924 = vpop.f32.mrb[0].mxu0
    %3925 = vdwg.mxu0
    %v3926 = vadd.f32 %v3538, %v3908
    %v3927 = vadd.f32 %v3543, %v3913
    %v3928 = vadd.f32 %v3548, %v3918
    %v3929 = vadd.f32 %v3553, %v3923
    %3930 = vrot.lane.b32.xlu0 %v2812, 116
    %v3931 = vpop.permute.xlu0 %3930
    %3932 = vrot.lane.b32.xlu0 %v2813, 116
    %v3933 = vpop.permute.xlu0 %3932
    %3934 = vrot.lane.b32.xlu0 %v2814, 116
    %v3935 = vpop.permute.xlu0 %3934
    %3936 = vrot.lane.b32.xlu0 %v2815, 116
    %v3937 = vpop.permute.xlu0 %3936
    %3938 = vrot.lane.b32.xlu0 %v2794, 84
    %v3939 = vpop.permute.xlu0 %3938
    %3940 = vrot.lane.b32.xlu0 %v2799, 84
    %v3941 = vpop.permute.xlu0 %3940
    %3942 = vrot.lane.b32.xlu0 %v2804, 84
    %v3943 = vpop.permute.xlu0 %3942
    %3944 = vrot.lane.b32.xlu0 %v2809, 84
    %v3945 = vpop.permute.xlu0 %3944
    %v3946 = vsel %vm706, %v3931, 0
    %v3948 = vsel %vm706, %v3933, 0
    %v3950 = vsel %vm706, %v3935, 0
    %v3952 = vsel %vm706, %v3937, 0
    %v3954 = vsel %vm706, %v3939, 0
    %v3956 = vsel %vm706, %v3941, 0
    %v3958 = vsel %vm706, %v3943, 0
    %v3960 = vsel %vm706, %v3945, 0
    %3962 = vmatprep.subr.mxu0 0.0
    %3963 = vmatpush1.xpose.msra.mxu0 %v3954
    %3964 = vmatprep.subr.mxu0 0.0
    %3965 = vmatpush1.xpose.msra.mxu0 %v3956
    %3966 = vmatprep.subr.mxu0 0.0
    %3967 = vmatpush1.xpose.msra.mxu0 %v3958
    %3968 = vmatprep.subr.mxu0 0.0
    %3969 = vmatpush1.xpose.msra.mxu0 %v3960
    %3970 = vmatprep.subr.mxu0 0.0
    %3971 = vmatpush1.xpose.msra.mxu0 0.0
    %3972 = vmatprep.subr.mxu0 0.0
    %3973 = vmatpush1.xpose.msra.mxu0 0.0
    %3974 = vmatprep.subr.mxu0 0.0
    %3975 = vmatpush1.xpose.msra.mxu0 0.0
    %3976 = vmatprep.subr.mxu0 0.0
    %3977 = vmatpush1.xpose.msra.mxu0 0.0
    %3978 = vmatprep.subr.mxu0 0.0
    %3979 = vmatpush1.xpose.msra.mxu0 0.0
    %3980 = vmatprep.subr.mxu0 0.0
    %3981 = vmatpush1.xpose.msra.mxu0 0.0
    %3982 = vmatprep.subr.mxu0 0.0
    %3983 = vmatpush1.xpose.msra.mxu0 0.0
    %3984 = vmatprep.subr.mxu0 0.0
    %3985 = vmatpush1.xpose.msra.mxu0 0.0
    %3986 = vmatprep.subr.mxu0 0.0
    %3987 = vmatpush1.xpose.msra.mxu0 0.0
    %3988 = vmatprep.subr.mxu0 0.0
    %3989 = vmatpush1.xpose.msra.mxu0 0.0
    %3990 = vmatprep.subr.mxu0 0.0
    %3991 = vmatpush1.xpose.msra.mxu0 0.0
    %3992 = vmatprep.subr.mxu0 0.0
    %3993 = vmatpush1.xpose.msra.mxu0 0.0
    %3994 = vmatprep.subr.mxu0 0.0
    %3995 = vmatpush1.xpose.msra.mxu0 0.0
    %3996 = vmatprep.subr.mxu0 0.0
    %3997 = vmatpush1.xpose.msra.mxu0 0.0
    %3998 = vmatprep.subr.mxu0 0.0
    %3999 = vmatpush1.xpose.msra.mxu0 0.0
    %4000 = vmatprep.subr.mxu0 0.0
    %4001 = vmatpush1.xpose.msra.mxu0 0.0
    %4002 = vmatprep.subr.mxu0 0.0
    %4003 = vmatpush1.xpose.msra.mxu0 0.0
    %4004 = vmatprep.subr.mxu0 0.0
    %4005 = vmatpush1.xpose.msra.mxu0 0.0
    %4006 = vmatprep.subr.mxu0 0.0
    %4007 = vmatpush1.xpose.msra.mxu0 0.0
    %4008 = vmatprep.subr.mxu0 0.0
    %4009 = vmatpush1.xpose.msra.mxu0 0.0
    %4010 = vmatprep.subr.mxu0 0.0
    %4011 = vmatpush1.xpose.msra.mxu0 0.0
    %4012 = vmatprep.subr.mxu0 0.0
    %4013 = vmatpush1.xpose.msra.mxu0 0.0
    %4014 = vmatprep.subr.mxu0 0.0
    %4015 = vmatpush1.xpose.msra.mxu0 0.0
    %4016 = vmatprep.subr.mxu0 0.0
    %4017 = vmatpush1.xpose.msra.mxu0 0.0
    %4018 = vmatprep.subr.mxu0 0.0
    %4019 = vmatpush1.xpose.msra.mxu0 0.0
    %4020 = vmatprep.subr.mxu0 0.0
    %4021 = vmatpush1.xpose.msra.mxu0 0.0
    %4022 = vmatprep.subr.mxu0 0.0
    %4023 = vmatpush1.xpose.msra.mxu0 0.0
    %4024 = vmatprep.subr.mxu0 0.0
    %4025 = vmatpush1.xpose.msra.mxu0 0.0
    %4026 = vmatprep.mubr.f32.mxu0 0.0
    %4027 = vmatmul.mubr.f32.gmra.mrb[0].mxu0 %v3946
    %v4028 = vpop.f32.mrb[0].mxu0
    %v4029 = vadd.f32 %v2669, %v4028
    %v4030 = vpop.f32.mrb[0].mxu0
    %4031 = vmatprep.mubr.f32.mxu0 0.0
    %4032 = vmatmul.mubr.f32.gmra.mrb[0].mxu0 %v3948
    %v4033 = vpop.f32.mrb[0].mxu0
    %v4034 = vadd.f32 %v2670, %v4033
    %v4035 = vpop.f32.mrb[0].mxu0
    %4036 = vmatprep.mubr.f32.mxu0 0.0
    %4037 = vmatmul.mubr.f32.gmra.mrb[0].mxu0 %v3950
    %v4038 = vpop.f32.mrb[0].mxu0
    %v4039 = vadd.f32 %v2671, %v4038
    %v4040 = vpop.f32.mrb[0].mxu0
    %4041 = vmatprep.mubr.f32.mxu0 0.0
    %4042 = vmatmul.mubr.f32.gmra.mrb[0].mxu0 %v3952
    %v4043 = vpop.f32.mrb[0].mxu0
    %v4044 = vadd.f32 %v2672, %v4043
    %v4045 = vpop.f32.mrb[0].mxu0
    %4046 = vdwg.mxu0
    %v4047 = vsel %vm628, %v4029, -inf
    %4048 = vmax.xlane.f32.xlu0 %v4047
    %v4049 = vpop.xlane.xlu0 %4048
    %v4050 = vsel %vm628, %v4034, -inf
    %4051 = vmax.xlane.f32.xlu0 %v4050
    %v4052 = vpop.xlane.xlu0 %4051
    %v4053 = vsel %vm628, %v4039, -inf
    %4054 = vmax.xlane.f32.xlu0 %v4053
    %v4055 = vpop.xlane.xlu0 %4054
    %v4056 = vsel %vm628, %v4044, -inf
    %4057 = vmax.xlane.f32.xlu0 %v4056
    %v4058 = vpop.xlane.xlu0 %4057
    %v4059 = vsub.f32 %v4029, %v4049
    %v4060 = vsub.f32 %v4034, %v4052
    %v4061 = vsub.f32 %v4039, %v4055
    %v4062 = vsub.f32 %v4044, %v4058
    %v4063 = vmul.f32 %v4059, 1.442695
    %v4064 = vpow.pop %v4063
    %v4065 = vmul.f32 %v4060, 1.442695
    %v4066 = vpow.pop %v4065
    %v4067 = vmul.f32 %v4061, 1.442695
    %v4068 = vpow.pop %v4067
    %v4069 = vmul.f32 %v4062, 1.442695
    %v4070 = vpow.pop %v4069
    %v4071 = vsel %vm628, %v4064, 0.0
    %4072 = vadd.xlane.f32.xlu0 %v4071
    %v4073 = vpop.xlane.xlu0 %4072
    %v4074 = vsel %vm628, %v4066, 0.0
    %4075 = vadd.xlane.f32.xlu0 %v4074
    %v4076 = vpop.xlane.xlu0 %4075
    %v4077 = vsel %vm628, %v4068, 0.0
    %4078 = vadd.xlane.f32.xlu0 %v4077
    %v4079 = vpop.xlane.xlu0 %4078
    %v4080 = vsel %vm628, %v4070, 0.0
    %4081 = vadd.xlane.f32.xlu0 %v4080
    %v4082 = vpop.xlane.xlu0 %4081
    %v4083 = vrcp.pop %v4073
    %v4084 = vrcp.pop %v4076
    %v4085 = vrcp.pop %v4079
    %v4086 = vrcp.pop %v4082
    %v4087 = vmul.f32 %v4064, %v4083
    %v4088 = vmul.f32 %v4066, %v4084
    %v4089 = vmul.f32 %v4068, %v4085
    %v4090 = vmul.f32 %v4070, %v4086
    %4091 = vrot.lane.b32.xlu0 %v2794, 52
    %v4092 = vpop.permute.xlu0 %4091
    %4093 = vrot.lane.b32.xlu0 %v2799, 52
    %v4094 = vpop.permute.xlu0 %4093
    %4095 = vrot.lane.b32.xlu0 %v2804, 52
    %v4096 = vpop.permute.xlu0 %4095
    %4097 = vrot.lane.b32.xlu0 %v2809, 52
    %v4098 = vpop.permute.xlu0 %4097
    %v4104 = vsel %vm628, %v4087, 0
    %v4107 = vsel %vm628, %v4088, 0
    %v4110 = vsel %vm628, %v4089, 0
    %v4113 = vsel %vm628, %v4090, 0
    %4115 = vmatprep.subr.mxu0 0.0
    %4116 = vmatpush1.msra.mxu0 %v4092
    %4117 = vmatprep.subr.mxu0 0.0
    %4118 = vmatpush1.msra.mxu0 %v4094
    %4119 = vmatprep.subr.mxu0 0.0
    %4120 = vmatpush1.msra.mxu0 %v4096
    %4121 = vmatprep.subr.mxu0 0.0
    %4122 = vmatpush1.msra.mxu0 %v4098
    %4123 = vmatprep.subr.mxu0 0.0
    %4124 = vmatpush1.msra.mxu0 0.0
    %4125 = vmatprep.subr.mxu0 0.0
    %4126 = vmatpush1.msra.mxu0 0.0
    %4127 = vmatprep.subr.mxu0 0.0
    %4128 = vmatpush1.msra.mxu0 0.0
    %4129 = vmatprep.subr.mxu0 0.0
    %4130 = vmatpush1.msra.mxu0 0.0
    %4131 = vmatprep.subr.mxu0 0.0
    %4132 = vmatpush1.msra.mxu0 0.0
    %4133 = vmatprep.subr.mxu0 0.0
    %4134 = vmatpush1.msra.mxu0 0.0
    %4135 = vmatprep.subr.mxu0 0.0
    %4136 = vmatpush1.msra.mxu0 0.0
    %4137 = vmatprep.subr.mxu0 0.0
    %4138 = vmatpush1.msra.mxu0 0.0
    %4139 = vmatprep.subr.mxu0 0.0
    %4140 = vmatpush1.msra.mxu0 0.0
    %4141 = vmatprep.subr.mxu0 0.0
    %4142 = vmatpush1.msra.mxu0 0.0
    %4143 = vmatprep.subr.mxu0 0.0
    %4144 = vmatpush1.msra.mxu0 0.0
    %4145 = vmatprep.subr.mxu0 0.0
    %4146 = vmatpush1.msra.mxu0 0.0
    %4147 = vmatprep.subr.mxu0 0.0
    %4148 = vmatpush1.msra.mxu0 0.0
    %4149 = vmatprep.subr.mxu0 0.0
    %4150 = vmatpush1.msra.mxu0 0.0
    %4151 = vmatprep.subr.mxu0 0.0
    %4152 = vmatpush1.msra.mxu0 0.0
    %4153 = vmatprep.subr.mxu0 0.0
    %4154 = vmatpush1.msra.mxu0 0.0
    %4155 = vmatprep.subr.mxu0 0.0
    %4156 = vmatpush1.msra.mxu0 0.0
    %4157 = vmatprep.subr.mxu0 0.0
    %4158 = vmatpush1.msra.mxu0 0.0
    %4159 = vmatprep.subr.mxu0 0.0
    %4160 = vmatpush1.msra.mxu0 0.0
    %4161 = vmatprep.subr.mxu0 0.0
    %4162 = vmatpush1.msra.mxu0 0.0
    %4163 = vmatprep.subr.mxu0 0.0
    %4164 = vmatpush1.msra.mxu0 0.0
    %4165 = vmatprep.subr.mxu0 0.0
    %4166 = vmatpush1.msra.mxu0 0.0
    %4167 = vmatprep.subr.mxu0 0.0
    %4168 = vmatpush1.msra.mxu0 0.0
    %4169 = vmatprep.subr.mxu0 0.0
    %4170 = vmatpush1.msra.mxu0 0.0
    %4171 = vmatprep.subr.mxu0 0.0
    %4172 = vmatpush1.msra.mxu0 0.0
    %4173 = vmatprep.subr.mxu0 0.0
    %4174 = vmatpush1.msra.mxu0 0.0
    %4175 = vmatprep.subr.mxu0 0.0
    %4176 = vmatpush1.msra.mxu0 0.0
    %4177 = vmatprep.subr.mxu0 0.0
    %4178 = vmatpush1.msra.mxu0 0.0
    %4179 = vmatprep.mubr.f32.mxu0 0.0
    %4180 = vmatmul.mubr.f32.gmra.mrb[0].mxu0 %v4104
    %v4181 = vpop.f32.mrb[0].mxu0
    %v4182 = vadd.f32 0.0, %v4181
    %v4183 = vpop.f32.mrb[0].mxu0
    %4184 = vmatprep.mubr.f32.mxu0 0.0
    %4185 = vmatmul.mubr.f32.gmra.mrb[0].mxu0 %v4107
    %v4186 = vpop.f32.mrb[0].mxu0
    %v4187 = vadd.f32 0.0, %v4186
    %v4188 = vpop.f32.mrb[0].mxu0
    %4189 = vmatprep.mubr.f32.mxu0 0.0
    %4190 = vmatmul.mubr.f32.gmra.mrb[0].mxu0 %v4110
    %v4191 = vpop.f32.mrb[0].mxu0
    %v4192 = vadd.f32 0.0, %v4191
    %v4193 = vpop.f32.mrb[0].mxu0
    %4194 = vmatprep.mubr.f32.mxu0 0.0
    %4195 = vmatmul.mubr.f32.gmra.mrb[0].mxu0 %v4113
    %v4196 = vpop.f32.mrb[0].mxu0
    %v4197 = vadd.f32 0.0, %v4196
    %v4198 = vpop.f32.mrb[0].mxu0
    %4199 = vdwg.mxu0
    %v4200 = vrot.slane %v2679, 4
    %v4202 = vsel %vm706, %v4182, 0
    %v4205 = vsel %vm706, %v4187, 0
    %v4208 = vsel %vm706, %v4192, 0
    %v4211 = vsel %vm706, %v4197, 0
    %v4213 = vsel %vm800, %v4200, 0
    %4215 = vmatprep.subr.mxu0 0.0
    %4216 = vmatpush1.msra.mxu0 %v4213
    %4217 = vmatprep.subr.mxu0 0.0
    %4218 = vmatpush1.msra.mxu0 0.0
    %4219 = vmatprep.subr.mxu0 0.0
    %4220 = vmatpush1.msra.mxu0 0.0
    %4221 = vmatprep.subr.mxu0 0.0
    %4222 = vmatpush1.msra.mxu0 0.0
    %4223 = vmatprep.subr.mxu0 0.0
    %4224 = vmatpush1.msra.mxu0 0.0
    %4225 = vmatprep.subr.mxu0 0.0
    %4226 = vmatpush1.msra.mxu0 0.0
    %4227 = vmatprep.subr.mxu0 0.0
    %4228 = vmatpush1.msra.mxu0 0.0
    %4229 = vmatprep.subr.mxu0 0.0
    %4230 = vmatpush1.msra.mxu0 0.0
    %4231 = vmatprep.subr.mxu0 0.0
    %4232 = vmatpush1.msra.mxu0 0.0
    %4233 = vmatprep.subr.mxu0 0.0
    %4234 = vmatpush1.msra.mxu0 0.0
    %4235 = vmatprep.subr.mxu0 0.0
    %4236 = vmatpush1.msra.mxu0 0.0
    %4237 = vmatprep.subr.mxu0 0.0
    %4238 = vmatpush1.msra.mxu0 0.0
    %4239 = vmatprep.subr.mxu0 0.0
    %4240 = vmatpush1.msra.mxu0 0.0
    %4241 = vmatprep.subr.mxu0 0.0
    %4242 = vmatpush1.msra.mxu0 0.0
    %4243 = vmatprep.subr.mxu0 0.0
    %4244 = vmatpush1.msra.mxu0 0.0
    %4245 = vmatprep.subr.mxu0 0.0
    %4246 = vmatpush1.msra.mxu0 0.0
    %4247 = vmatprep.subr.mxu0 0.0
    %4248 = vmatpush1.msra.mxu0 0.0
    %4249 = vmatprep.subr.mxu0 0.0
    %4250 = vmatpush1.msra.mxu0 0.0
    %4251 = vmatprep.subr.mxu0 0.0
    %4252 = vmatpush1.msra.mxu0 0.0
    %4253 = vmatprep.subr.mxu0 0.0
    %4254 = vmatpush1.msra.mxu0 0.0
    %4255 = vmatprep.subr.mxu0 0.0
    %4256 = vmatpush1.msra.mxu0 0.0
    %4257 = vmatprep.subr.mxu0 0.0
    %4258 = vmatpush1.msra.mxu0 0.0
    %4259 = vmatprep.subr.mxu0 0.0
    %4260 = vmatpush1.msra.mxu0 0.0
    %4261 = vmatprep.subr.mxu0 0.0
    %4262 = vmatpush1.msra.mxu0 0.0
    %4263 = vmatprep.subr.mxu0 0.0
    %4264 = vmatpush1.msra.mxu0 0.0
    %4265 = vmatprep.subr.mxu0 0.0
    %4266 = vmatpush1.msra.mxu0 0.0
    %4267 = vmatprep.subr.mxu0 0.0
    %4268 = vmatpush1.msra.mxu0 0.0
    %4269 = vmatprep.subr.mxu0 0.0
    %4270 = vmatpush1.msra.mxu0 0.0
    %4271 = vmatprep.subr.mxu0 0.0
    %4272 = vmatpush1.msra.mxu0 0.0
    %4273 = vmatprep.subr.mxu0 0.0
    %4274 = vmatpush1.msra.mxu0 0.0
    %4275 = vmatprep.subr.mxu0 0.0
    %4276 = vmatpush1.msra.mxu0 0.0
    %4277 = vmatprep.subr.mxu0 0.0
    %4278 = vmatpush1.msra.mxu0 0.0
    %4279 = vmatprep.mubr.f32.mxu0 0.0
    %4280 = vmatmul.mubr.f32.gmra.mrb[0].mxu0 %v4202
    %v4281 = vpop.f32.mrb[0].mxu0
    %v4282 = vadd.f32 0.0, %v4281
    %v4283 = vpop.f32.mrb[0].mxu0
    %4284 = vmatprep.mubr.f32.mxu0 0.0
    %4285 = vmatmul.mubr.f32.gmra.mrb[0].mxu0 %v4205
    %v4286 = vpop.f32.mrb[0].mxu0
    %v4287 = vadd.f32 0.0, %v4286
    %v4288 = vpop.f32.mrb[0].mxu0
    %4289 = vmatprep.mubr.f32.mxu0 0.0
    %4290 = vmatmul.mubr.f32.gmra.mrb[0].mxu0 %v4208
    %v4291 = vpop.f32.mrb[0].mxu0
    %v4292 = vadd.f32 0.0, %v4291
    %v4293 = vpop.f32.mrb[0].mxu0
    %4294 = vmatprep.mubr.f32.mxu0 0.0
    %4295 = vmatmul.mubr.f32.gmra.mrb[0].mxu0 %v4211
    %v4296 = vpop.f32.mrb[0].mxu0
    %v4297 = vadd.f32 0.0, %v4296
    %v4298 = vpop.f32.mrb[0].mxu0
    %4299 = vdwg.mxu0
    %v4300 = vadd.f32 %v3926, %v4282
    %v4301 = vadd.f32 %v3927, %v4287
    %v4302 = vadd.f32 %v3928, %v4292
    %v4303 = vadd.f32 %v3929, %v4297
    %4304 = vrot.lane.b32.xlu0 %v2812, 112
    %v4305 = vpop.permute.xlu0 %4304
    %4306 = vrot.lane.b32.xlu0 %v2813, 112
    %v4307 = vpop.permute.xlu0 %4306
    %4308 = vrot.lane.b32.xlu0 %v2814, 112
    %v4309 = vpop.permute.xlu0 %4308
    %4310 = vrot.lane.b32.xlu0 %v2815, 112
    %v4311 = vpop.permute.xlu0 %4310
    %4312 = vrot.lane.b32.xlu0 %v2794, 80
    %v4313 = vpop.permute.xlu0 %4312
    %4314 = vrot.lane.b32.xlu0 %v2799, 80
    %v4315 = vpop.permute.xlu0 %4314
    %4316 = vrot.lane.b32.xlu0 %v2804, 80
    %v4317 = vpop.permute.xlu0 %4316
    %4318 = vrot.lane.b32.xlu0 %v2809, 80
    %v4319 = vpop.permute.xlu0 %4318
    %v4320 = vsel %vm706, %v4305, 0
    %v4322 = vsel %vm706, %v4307, 0
    %v4324 = vsel %vm706, %v4309, 0
    %v4326 = vsel %vm706, %v4311, 0
    %v4328 = vsel %vm706, %v4313, 0
    %v4330 = vsel %vm706, %v4315, 0
    %v4332 = vsel %vm706, %v4317, 0
    %v4334 = vsel %vm706, %v4319, 0
    %4336 = vmatprep.subr.mxu0 0.0
    %4337 = vmatpush1.xpose.msra.mxu0 %v4328
    %4338 = vmatprep.subr.mxu0 0.0
    %4339 = vmatpush1.xpose.msra.mxu0 %v4330
    %4340 = vmatprep.subr.mxu0 0.0
    %4341 = vmatpush1.xpose.msra.mxu0 %v4332
    %4342 = vmatprep.subr.mxu0 0.0
    %4343 = vmatpush1.xpose.msra.mxu0 %v4334
    %4344 = vmatprep.subr.mxu0 0.0
    %4345 = vmatpush1.xpose.msra.mxu0 0.0
    %4346 = vmatprep.subr.mxu0 0.0
    %4347 = vmatpush1.xpose.msra.mxu0 0.0
    %4348 = vmatprep.subr.mxu0 0.0
    %4349 = vmatpush1.xpose.msra.mxu0 0.0
    %4350 = vmatprep.subr.mxu0 0.0
    %4351 = vmatpush1.xpose.msra.mxu0 0.0
    %4352 = vmatprep.subr.mxu0 0.0
    %4353 = vmatpush1.xpose.msra.mxu0 0.0
    %4354 = vmatprep.subr.mxu0 0.0
    %4355 = vmatpush1.xpose.msra.mxu0 0.0
    %4356 = vmatprep.subr.mxu0 0.0
    %4357 = vmatpush1.xpose.msra.mxu0 0.0
    %4358 = vmatprep.subr.mxu0 0.0
    %4359 = vmatpush1.xpose.msra.mxu0 0.0
    %4360 = vmatprep.subr.mxu0 0.0
    %4361 = vmatpush1.xpose.msra.mxu0 0.0
    %4362 = vmatprep.subr.mxu0 0.0
    %4363 = vmatpush1.xpose.msra.mxu0 0.0
    %4364 = vmatprep.subr.mxu0 0.0
    %4365 = vmatpush1.xpose.msra.mxu0 0.0
    %4366 = vmatprep.subr.mxu0 0.0
    %4367 = vmatpush1.xpose.msra.mxu0 0.0
    %4368 = vmatprep.subr.mxu0 0.0
    %4369 = vmatpush1.xpose.msra.mxu0 0.0
    %4370 = vmatprep.subr.mxu0 0.0
    %4371 = vmatpush1.xpose.msra.mxu0 0.0
    %4372 = vmatprep.subr.mxu0 0.0
    %4373 = vmatpush1.xpose.msra.mxu0 0.0
    %4374 = vmatprep.subr.mxu0 0.0
    %4375 = vmatpush1.xpose.msra.mxu0 0.0
    %4376 = vmatprep.subr.mxu0 0.0
    %4377 = vmatpush1.xpose.msra.mxu0 0.0
    %4378 = vmatprep.subr.mxu0 0.0
    %4379 = vmatpush1.xpose.msra.mxu0 0.0
    %4380 = vmatprep.subr.mxu0 0.0
    %4381 = vmatpush1.xpose.msra.mxu0 0.0
    %4382 = vmatprep.subr.mxu0 0.0
    %4383 = vmatpush1.xpose.msra.mxu0 0.0
    %4384 = vmatprep.subr.mxu0 0.0
    %4385 = vmatpush1.xpose.msra.mxu0 0.0
    %4386 = vmatprep.subr.mxu0 0.0
    %4387 = vmatpush1.xpose.msra.mxu0 0.0
    %4388 = vmatprep.subr.mxu0 0.0
    %4389 = vmatpush1.xpose.msra.mxu0 0.0
    %4390 = vmatprep.subr.mxu0 0.0
    %4391 = vmatpush1.xpose.msra.mxu0 0.0
    %4392 = vmatprep.subr.mxu0 0.0
    %4393 = vmatpush1.xpose.msra.mxu0 0.0
    %4394 = vmatprep.subr.mxu0 0.0
    %4395 = vmatpush1.xpose.msra.mxu0 0.0
    %4396 = vmatprep.subr.mxu0 0.0
    %4397 = vmatpush1.xpose.msra.mxu0 0.0
    %4398 = vmatprep.subr.mxu0 0.0
    %4399 = vmatpush1.xpose.msra.mxu0 0.0
    %4400 = vmatprep.mubr.f32.mxu0 0.0
    %4401 = vmatmul.mubr.f32.gmra.mrb[0].mxu0 %v4320
    %v4402 = vpop.f32.mrb[0].mxu0
    %v4403 = vadd.f32 %v2669, %v4402
    %v4404 = vpop.f32.mrb[0].mxu0
    %4405 = vmatprep.mubr.f32.mxu0 0.0
    %4406 = vmatmul.mubr.f32.gmra.mrb[0].mxu0 %v4322
    %v4407 = vpop.f32.mrb[0].mxu0
    %v4408 = vadd.f32 %v2670, %v4407
    %v4409 = vpop.f32.mrb[0].mxu0
    %4410 = vmatprep.mubr.f32.mxu0 0.0
    %4411 = vmatmul.mubr.f32.gmra.mrb[0].mxu0 %v4324
    %v4412 = vpop.f32.mrb[0].mxu0
    %v4413 = vadd.f32 %v2671, %v4412
    %v4414 = vpop.f32.mrb[0].mxu0
    %4415 = vmatprep.mubr.f32.mxu0 0.0
    %4416 = vmatmul.mubr.f32.gmra.mrb[0].mxu0 %v4326
    %v4417 = vpop.f32.mrb[0].mxu0
    %v4418 = vadd.f32 %v2672, %v4417
    %v4419 = vpop.f32.mrb[0].mxu0
    %4420 = vdwg.mxu0
    %v4421 = vsel %vm628, %v4403, -inf
    %4422 = vmax.xlane.f32.xlu0 %v4421
    %v4423 = vpop.xlane.xlu0 %4422
    %v4424 = vsel %vm628, %v4408, -inf
    %4425 = vmax.xlane.f32.xlu0 %v4424
    %v4426 = vpop.xlane.xlu0 %4425
    %v4427 = vsel %vm628, %v4413, -inf
    %4428 = vmax.xlane.f32.xlu0 %v4427
    %v4429 = vpop.xlane.xlu0 %4428
    %v4430 = vsel %vm628, %v4418, -inf
    %4431 = vmax.xlane.f32.xlu0 %v4430
    %v4432 = vpop.xlane.xlu0 %4431
    %v4433 = vsub.f32 %v4403, %v4423
    %v4434 = vsub.f32 %v4408, %v4426
    %v4435 = vsub.f32 %v4413, %v4429
    %v4436 = vsub.f32 %v4418, %v4432
    %v4437 = vmul.f32 %v4433, 1.442695
    %v4438 = vpow.pop %v4437
    %v4439 = vmul.f32 %v4434, 1.442695
    %v4440 = vpow.pop %v4439
    %v4441 = vmul.f32 %v4435, 1.442695
    %v4442 = vpow.pop %v4441
    %v4443 = vmul.f32 %v4436, 1.442695
    %v4444 = vpow.pop %v4443
    %v4445 = vsel %vm628, %v4438, 0.0
    %4446 = vadd.xlane.f32.xlu0 %v4445
    %v4447 = vpop.xlane.xlu0 %4446
    %v4448 = vsel %vm628, %v4440, 0.0
    %4449 = vadd.xlane.f32.xlu0 %v4448
    %v4450 = vpop.xlane.xlu0 %4449
    %v4451 = vsel %vm628, %v4442, 0.0
    %4452 = vadd.xlane.f32.xlu0 %v4451
    %v4453 = vpop.xlane.xlu0 %4452
    %v4454 = vsel %vm628, %v4444, 0.0
    %4455 = vadd.xlane.f32.xlu0 %v4454
    %v4456 = vpop.xlane.xlu0 %4455
    %v4457 = vrcp.pop %v4447
    %v4458 = vrcp.pop %v4450
    %v4459 = vrcp.pop %v4453
    %v4460 = vrcp.pop %v4456
    %v4461 = vmul.f32 %v4438, %v4457
    %v4462 = vmul.f32 %v4440, %v4458
    %v4463 = vmul.f32 %v4442, %v4459
    %v4464 = vmul.f32 %v4444, %v4460
    %4465 = vrot.lane.b32.xlu0 %v2794, 48
    %v4466 = vpop.permute.xlu0 %4465
    %4467 = vrot.lane.b32.xlu0 %v2799, 48
    %v4468 = vpop.permute.xlu0 %4467
    %4469 = vrot.lane.b32.xlu0 %v2804, 48
    %v4470 = vpop.permute.xlu0 %4469
    %4471 = vrot.lane.b32.xlu0 %v2809, 48
    %v4472 = vpop.permute.xlu0 %4471
    %v4478 = vsel %vm628, %v4461, 0
    %v4481 = vsel %vm628, %v4462, 0
    %v4484 = vsel %vm628, %v4463, 0
    %v4487 = vsel %vm628, %v4464, 0
    %4489 = vmatprep.subr.mxu0 0.0
    %4490 = vmatpush1.msra.mxu0 %v4466
    %4491 = vmatprep.subr.mxu0 0.0
    %4492 = vmatpush1.msra.mxu0 %v4468
    %4493 = vmatprep.subr.mxu0 0.0
    %4494 = vmatpush1.msra.mxu0 %v4470
    %4495 = vmatprep.subr.mxu0 0.0
    %4496 = vmatpush1.msra.mxu0 %v4472
    %4497 = vmatprep.subr.mxu0 0.0
    %4498 = vmatpush1.msra.mxu0 0.0
    %4499 = vmatprep.subr.mxu0 0.0
    %4500 = vmatpush1.msra.mxu0 0.0
    %4501 = vmatprep.subr.mxu0 0.0
    %4502 = vmatpush1.msra.mxu0 0.0
    %4503 = vmatprep.subr.mxu0 0.0
    %4504 = vmatpush1.msra.mxu0 0.0
    %4505 = vmatprep.subr.mxu0 0.0
    %4506 = vmatpush1.msra.mxu0 0.0
    %4507 = vmatprep.subr.mxu0 0.0
    %4508 = vmatpush1.msra.mxu0 0.0
    %4509 = vmatprep.subr.mxu0 0.0
    %4510 = vmatpush1.msra.mxu0 0.0
    %4511 = vmatprep.subr.mxu0 0.0
    %4512 = vmatpush1.msra.mxu0 0.0
    %4513 = vmatprep.subr.mxu0 0.0
    %4514 = vmatpush1.msra.mxu0 0.0
    %4515 = vmatprep.subr.mxu0 0.0
    %4516 = vmatpush1.msra.mxu0 0.0
    %4517 = vmatprep.subr.mxu0 0.0
    %4518 = vmatpush1.msra.mxu0 0.0
    %4519 = vmatprep.subr.mxu0 0.0
    %4520 = vmatpush1.msra.mxu0 0.0
    %4521 = vmatprep.subr.mxu0 0.0
    %4522 = vmatpush1.msra.mxu0 0.0
    %4523 = vmatprep.subr.mxu0 0.0
    %4524 = vmatpush1.msra.mxu0 0.0
    %4525 = vmatprep.subr.mxu0 0.0
    %4526 = vmatpush1.msra.mxu0 0.0
    %4527 = vmatprep.subr.mxu0 0.0
    %4528 = vmatpush1.msra.mxu0 0.0
    %4529 = vmatprep.subr.mxu0 0.0
    %4530 = vmatpush1.msra.mxu0 0.0
    %4531 = vmatprep.subr.mxu0 0.0
    %4532 = vmatpush1.msra.mxu0 0.0
    %4533 = vmatprep.subr.mxu0 0.0
    %4534 = vmatpush1.msra.mxu0 0.0
    %4535 = vmatprep.subr.mxu0 0.0
    %4536 = vmatpush1.msra.mxu0 0.0
    %4537 = vmatprep.subr.mxu0 0.0
    %4538 = vmatpush1.msra.mxu0 0.0
    %4539 = vmatprep.subr.mxu0 0.0
    %4540 = vmatpush1.msra.mxu0 0.0
    %4541 = vmatprep.subr.mxu0 0.0
    %4542 = vmatpush1.msra.mxu0 0.0
    %4543 = vmatprep.subr.mxu0 0.0
    %4544 = vmatpush1.msra.mxu0 0.0
    %4545 = vmatprep.subr.mxu0 0.0
    %4546 = vmatpush1.msra.mxu0 0.0
    %4547 = vmatprep.subr.mxu0 0.0
    %4548 = vmatpush1.msra.mxu0 0.0
    %4549 = vmatprep.subr.mxu0 0.0
    %4550 = vmatpush1.msra.mxu0 0.0
    %4551 = vmatprep.subr.mxu0 0.0
    %4552 = vmatpush1.msra.mxu0 0.0
    %4553 = vmatprep.mubr.f32.mxu0 0.0
    %4554 = vmatmul.mubr.f32.gmra.mrb[0].mxu0 %v4478
    %v4555 = vpop.f32.mrb[0].mxu0
    %v4556 = vadd.f32 0.0, %v4555
    %v4557 = vpop.f32.mrb[0].mxu0
    %4558 = vmatprep.mubr.f32.mxu0 0.0
    %4559 = vmatmul.mubr.f32.gmra.mrb[0].mxu0 %v4481
    %v4560 = vpop.f32.mrb[0].mxu0
    %v4561 = vadd.f32 0.0, %v4560
    %v4562 = vpop.f32.mrb[0].mxu0
    %4563 = vmatprep.mubr.f32.mxu0 0.0
    %4564 = vmatmul.mubr.f32.gmra.mrb[0].mxu0 %v4484
    %v4565 = vpop.f32.mrb[0].mxu0
    %v4566 = vadd.f32 0.0, %v4565
    %v4567 = vpop.f32.mrb[0].mxu0
    %4568 = vmatprep.mubr.f32.mxu0 0.0
    %4569 = vmatmul.mubr.f32.gmra.mrb[0].mxu0 %v4487
    %v4570 = vpop.f32.mrb[0].mxu0
    %v4571 = vadd.f32 0.0, %v4570
    %v4572 = vpop.f32.mrb[0].mxu0
    %4573 = vdwg.mxu0
    %v4575 = vsel %vm706, %v4556, 0
    %v4578 = vsel %vm706, %v4561, 0
    %v4581 = vsel %vm706, %v4566, 0
    %v4584 = vsel %vm706, %v4571, 0
    %v4587 = vsel %vm800, %v2680, 0
    %4589 = vmatprep.subr.mxu0 0.0
    %4590 = vmatpush1.msra.mxu0 %v4587
    %4591 = vmatprep.subr.mxu0 0.0
    %4592 = vmatpush1.msra.mxu0 0.0
    %4593 = vmatprep.subr.mxu0 0.0
    %4594 = vmatpush1.msra.mxu0 0.0
    %4595 = vmatprep.subr.mxu0 0.0
    %4596 = vmatpush1.msra.mxu0 0.0
    %4597 = vmatprep.subr.mxu0 0.0
    %4598 = vmatpush1.msra.mxu0 0.0
    %4599 = vmatprep.subr.mxu0 0.0
    %4600 = vmatpush1.msra.mxu0 0.0
    %4601 = vmatprep.subr.mxu0 0.0
    %4602 = vmatpush1.msra.mxu0 0.0
    %4603 = vmatprep.subr.mxu0 0.0
    %4604 = vmatpush1.msra.mxu0 0.0
    %4605 = vmatprep.subr.mxu0 0.0
    %4606 = vmatpush1.msra.mxu0 0.0
    %4607 = vmatprep.subr.mxu0 0.0
    %4608 = vmatpush1.msra.mxu0 0.0
    %4609 = vmatprep.subr.mxu0 0.0
    %4610 = vmatpush1.msra.mxu0 0.0
    %4611 = vmatprep.subr.mxu0 0.0
    %4612 = vmatpush1.msra.mxu0 0.0
    %4613 = vmatprep.subr.mxu0 0.0
    %4614 = vmatpush1.msra.mxu0 0.0
    %4615 = vmatprep.subr.mxu0 0.0
    %4616 = vmatpush1.msra.mxu0 0.0
    %4617 = vmatprep.subr.mxu0 0.0
    %4618 = vmatpush1.msra.mxu0 0.0
    %4619 = vmatprep.subr.mxu0 0.0
    %4620 = vmatpush1.msra.mxu0 0.0
    %4621 = vmatprep.subr.mxu0 0.0
    %4622 = vmatpush1.msra.mxu0 0.0
    %4623 = vmatprep.subr.mxu0 0.0
    %4624 = vmatpush1.msra.mxu0 0.0
    %4625 = vmatprep.subr.mxu0 0.0
    %4626 = vmatpush1.msra.mxu0 0.0
    %4627 = vmatprep.subr.mxu0 0.0
    %4628 = vmatpush1.msra.mxu0 0.0
    %4629 = vmatprep.subr.mxu0 0.0
    %4630 = vmatpush1.msra.mxu0 0.0
    %4631 = vmatprep.subr.mxu0 0.0
    %4632 = vmatpush1.msra.mxu0 0.0
    %4633 = vmatprep.subr.mxu0 0.0
    %4634 = vmatpush1.msra.mxu0 0.0
    %4635 = vmatprep.subr.mxu0 0.0
    %4636 = vmatpush1.msra.mxu0 0.0
    %4637 = vmatprep.subr.mxu0 0.0
    %4638 = vmatpush1.msra.mxu0 0.0
    %4639 = vmatprep.subr.mxu0 0.0
    %4640 = vmatpush1.msra.mxu0 0.0
    %4641 = vmatprep.subr.mxu0 0.0
    %4642 = vmatpush1.msra.mxu0 0.0
    %4643 = vmatprep.subr.mxu0 0.0
    %4644 = vmatpush1.msra.mxu0 0.0
    %4645 = vmatprep.subr.mxu0 0.0
    %4646 = vmatpush1.msra.mxu0 0.0
    %4647 = vmatprep.subr.mxu0 0.0
    %4648 = vmatpush1.msra.mxu0 0.0
    %4649 = vmatprep.subr.mxu0 0.0
    %4650 = vmatpush1.msra.mxu0 0.0
    %4651 = vmatprep.subr.mxu0 0.0
    %4652 = vmatpush1.msra.mxu0 0.0
    %4653 = vmatprep.mubr.f32.mxu0 0.0
    %4654 = vmatmul.mubr.f32.gmra.mrb[0].mxu0 %v4575
    %v4655 = vpop.f32.mrb[0].mxu0
    %v4656 = vadd.f32 0.0, %v4655
    %v4657 = vpop.f32.mrb[0].mxu0
    %4658 = vmatprep.mubr.f32.mxu0 0.0
    %4659 = vmatmul.mubr.f32.gmra.mrb[0].mxu0 %v4578
    %v4660 = vpop.f32.mrb[0].mxu0
    %v4661 = vadd.f32 0.0, %v4660
    %v4662 = vpop.f32.mrb[0].mxu0
    %4663 = vmatprep.mubr.f32.mxu0 0.0
    %4664 = vmatmul.mubr.f32.gmra.mrb[0].mxu0 %v4581
    %v4665 = vpop.f32.mrb[0].mxu0
    %v4666 = vadd.f32 0.0, %v4665
    %v4667 = vpop.f32.mrb[0].mxu0
    %4668 = vmatprep.mubr.f32.mxu0 0.0
    %4669 = vmatmul.mubr.f32.gmra.mrb[0].mxu0 %v4584
    %v4670 = vpop.f32.mrb[0].mxu0
    %v4671 = vadd.f32 0.0, %v4670
    %v4672 = vpop.f32.mrb[0].mxu0
    %4673 = vdwg.mxu0
    %v4674 = vadd.f32 %v4300, %v4656
    %v4675 = vadd.f32 %v4301, %v4661
    %v4676 = vadd.f32 %v4302, %v4666
    %v4677 = vadd.f32 %v4303, %v4671
    %4678 = vrot.lane.b32.xlu0 %v2812, 108
    %v4679 = vpop.permute.xlu0 %4678
    %4680 = vrot.lane.b32.xlu0 %v2813, 108
    %v4681 = vpop.permute.xlu0 %4680
    %4682 = vrot.lane.b32.xlu0 %v2814, 108
    %v4683 = vpop.permute.xlu0 %4682
    %4684 = vrot.lane.b32.xlu0 %v2815, 108
    %v4685 = vpop.permute.xlu0 %4684
    %4686 = vrot.lane.b32.xlu0 %v2794, 76
    %v4687 = vpop.permute.xlu0 %4686
    %4688 = vrot.lane.b32.xlu0 %v2799, 76
    %v4689 = vpop.permute.xlu0 %4688
    %4690 = vrot.lane.b32.xlu0 %v2804, 76
    %v4691 = vpop.permute.xlu0 %4690
    %4692 = vrot.lane.b32.xlu0 %v2809, 76
    %v4693 = vpop.permute.xlu0 %4692
    %v4694 = vsel %vm706, %v4679, 0
    %v4696 = vsel %vm706, %v4681, 0
    %v4698 = vsel %vm706, %v4683, 0
    %v4700 = vsel %vm706, %v4685, 0
    %v4702 = vsel %vm706, %v4687, 0
    %v4704 = vsel %vm706, %v4689, 0
    %v4706 = vsel %vm706, %v4691, 0
    %v4708 = vsel %vm706, %v4693, 0
    %4710 = vmatprep.subr.mxu0 0.0
    %4711 = vmatpush1.xpose.msra.mxu0 %v4702
    %4712 = vmatprep.subr.mxu0 0.0
    %4713 = vmatpush1.xpose.msra.mxu0 %v4704
    %4714 = vmatprep.subr.mxu0 0.0
    %4715 = vmatpush1.xpose.msra.mxu0 %v4706
    %4716 = vmatprep.subr.mxu0 0.0
    %4717 = vmatpush1.xpose.msra.mxu0 %v4708
    %4718 = vmatprep.subr.mxu0 0.0
    %4719 = vmatpush1.xpose.msra.mxu0 0.0
    %4720 = vmatprep.subr.mxu0 0.0
    %4721 = vmatpush1.xpose.msra.mxu0 0.0
    %4722 = vmatprep.subr.mxu0 0.0
    %4723 = vmatpush1.xpose.msra.mxu0 0.0
    %4724 = vmatprep.subr.mxu0 0.0
    %4725 = vmatpush1.xpose.msra.mxu0 0.0
    %4726 = vmatprep.subr.mxu0 0.0
    %4727 = vmatpush1.xpose.msra.mxu0 0.0
    %4728 = vmatprep.subr.mxu0 0.0
    %4729 = vmatpush1.xpose.msra.mxu0 0.0
    %4730 = vmatprep.subr.mxu0 0.0
    %4731 = vmatpush1.xpose.msra.mxu0 0.0
    %4732 = vmatprep.subr.mxu0 0.0
    %4733 = vmatpush1.xpose.msra.mxu0 0.0
    %4734 = vmatprep.subr.mxu0 0.0
    %4735 = vmatpush1.xpose.msra.mxu0 0.0
    %4736 = vmatprep.subr.mxu0 0.0
    %4737 = vmatpush1.xpose.msra.mxu0 0.0
    %4738 = vmatprep.subr.mxu0 0.0
    %4739 = vmatpush1.xpose.msra.mxu0 0.0
    %4740 = vmatprep.subr.mxu0 0.0
    %4741 = vmatpush1.xpose.msra.mxu0 0.0
    %4742 = vmatprep.subr.mxu0 0.0
    %4743 = vmatpush1.xpose.msra.mxu0 0.0
    %4744 = vmatprep.subr.mxu0 0.0
    %4745 = vmatpush1.xpose.msra.mxu0 0.0
    %4746 = vmatprep.subr.mxu0 0.0
    %4747 = vmatpush1.xpose.msra.mxu0 0.0
    %4748 = vmatprep.subr.mxu0 0.0
    %4749 = vmatpush1.xpose.msra.mxu0 0.0
    %4750 = vmatprep.subr.mxu0 0.0
    %4751 = vmatpush1.xpose.msra.mxu0 0.0
    %4752 = vmatprep.subr.mxu0 0.0
    %4753 = vmatpush1.xpose.msra.mxu0 0.0
    %4754 = vmatprep.subr.mxu0 0.0
    %4755 = vmatpush1.xpose.msra.mxu0 0.0
    %4756 = vmatprep.subr.mxu0 0.0
    %4757 = vmatpush1.xpose.msra.mxu0 0.0
    %4758 = vmatprep.subr.mxu0 0.0
    %4759 = vmatpush1.xpose.msra.mxu0 0.0
    %4760 = vmatprep.subr.mxu0 0.0
    %4761 = vmatpush1.xpose.msra.mxu0 0.0
    %4762 = vmatprep.subr.mxu0 0.0
    %4763 = vmatpush1.xpose.msra.mxu0 0.0
    %4764 = vmatprep.subr.mxu0 0.0
    %4765 = vmatpush1.xpose.msra.mxu0 0.0
    %4766 = vmatprep.subr.mxu0 0.0
    %4767 = vmatpush1.xpose.msra.mxu0 0.0
    %4768 = vmatprep.subr.mxu0 0.0
    %4769 = vmatpush1.xpose.msra.mxu0 0.0
    %4770 = vmatprep.subr.mxu0 0.0
    %4771 = vmatpush1.xpose.msra.mxu0 0.0
    %4772 = vmatprep.subr.mxu0 0.0
    %4773 = vmatpush1.xpose.msra.mxu0 0.0
    %4774 = vmatprep.mubr.f32.mxu0 0.0
    %4775 = vmatmul.mubr.f32.gmra.mrb[0].mxu0 %v4694
    %v4776 = vpop.f32.mrb[0].mxu0
    %v4777 = vadd.f32 %v2669, %v4776
    %v4778 = vpop.f32.mrb[0].mxu0
    %4779 = vmatprep.mubr.f32.mxu0 0.0
    %4780 = vmatmul.mubr.f32.gmra.mrb[0].mxu0 %v4696
    %v4781 = vpop.f32.mrb[0].mxu0
    %v4782 = vadd.f32 %v2670, %v4781
    %v4783 = vpop.f32.mrb[0].mxu0
    %4784 = vmatprep.mubr.f32.mxu0 0.0
    %4785 = vmatmul.mubr.f32.gmra.mrb[0].mxu0 %v4698
    %v4786 = vpop.f32.mrb[0].mxu0
    %v4787 = vadd.f32 %v2671, %v4786
    %v4788 = vpop.f32.mrb[0].mxu0
    %4789 = vmatprep.mubr.f32.mxu0 0.0
    %4790 = vmatmul.mubr.f32.gmra.mrb[0].mxu0 %v4700
    %v4791 = vpop.f32.mrb[0].mxu0
    %v4792 = vadd.f32 %v2672, %v4791
    %v4793 = vpop.f32.mrb[0].mxu0
    %4794 = vdwg.mxu0
    %v4795 = vsel %vm628, %v4777, -inf
    %4796 = vmax.xlane.f32.xlu0 %v4795
    %v4797 = vpop.xlane.xlu0 %4796
    %v4798 = vsel %vm628, %v4782, -inf
    %4799 = vmax.xlane.f32.xlu0 %v4798
    %v4800 = vpop.xlane.xlu0 %4799
    %v4801 = vsel %vm628, %v4787, -inf
    %4802 = vmax.xlane.f32.xlu0 %v4801
    %v4803 = vpop.xlane.xlu0 %4802
    %v4804 = vsel %vm628, %v4792, -inf
    %4805 = vmax.xlane.f32.xlu0 %v4804
    %v4806 = vpop.xlane.xlu0 %4805
    %v4807 = vsub.f32 %v4777, %v4797
    %v4808 = vsub.f32 %v4782, %v4800
    %v4809 = vsub.f32 %v4787, %v4803
    %v4810 = vsub.f32 %v4792, %v4806
    %v4811 = vmul.f32 %v4807, 1.442695
    %v4812 = vpow.pop %v4811
    %v4813 = vmul.f32 %v4808, 1.442695
    %v4814 = vpow.pop %v4813
    %v4815 = vmul.f32 %v4809, 1.442695
    %v4816 = vpow.pop %v4815
    %v4817 = vmul.f32 %v4810, 1.442695
    %v4818 = vpow.pop %v4817
    %v4819 = vsel %vm628, %v4812, 0.0
    %4820 = vadd.xlane.f32.xlu0 %v4819
    %v4821 = vpop.xlane.xlu0 %4820
    %v4822 = vsel %vm628, %v4814, 0.0
    %4823 = vadd.xlane.f32.xlu0 %v4822
    %v4824 = vpop.xlane.xlu0 %4823
    %v4825 = vsel %vm628, %v4816, 0.0
    %4826 = vadd.xlane.f32.xlu0 %v4825
    %v4827 = vpop.xlane.xlu0 %4826
    %v4828 = vsel %vm628, %v4818, 0.0
    %4829 = vadd.xlane.f32.xlu0 %v4828
    %v4830 = vpop.xlane.xlu0 %4829
    %v4831 = vrcp.pop %v4821
    %v4832 = vrcp.pop %v4824
    %v4833 = vrcp.pop %v4827
    %v4834 = vrcp.pop %v4830
    %v4835 = vmul.f32 %v4812, %v4831
    %v4836 = vmul.f32 %v4814, %v4832
    %v4837 = vmul.f32 %v4816, %v4833
    %v4838 = vmul.f32 %v4818, %v4834
    %4839 = vrot.lane.b32.xlu0 %v2794, 44
    %v4840 = vpop.permute.xlu0 %4839
    %4841 = vrot.lane.b32.xlu0 %v2799, 44
    %v4842 = vpop.permute.xlu0 %4841
    %4843 = vrot.lane.b32.xlu0 %v2804, 44
    %v4844 = vpop.permute.xlu0 %4843
    %4845 = vrot.lane.b32.xlu0 %v2809, 44
    %v4846 = vpop.permute.xlu0 %4845
    %v4852 = vsel %vm628, %v4835, 0
    %v4855 = vsel %vm628, %v4836, 0
    %v4858 = vsel %vm628, %v4837, 0
    %v4861 = vsel %vm628, %v4838, 0
    %4863 = vmatprep.subr.mxu0 0.0
    %4864 = vmatpush1.msra.mxu0 %v4840
    %4865 = vmatprep.subr.mxu0 0.0
    %4866 = vmatpush1.msra.mxu0 %v4842
    %4867 = vmatprep.subr.mxu0 0.0
    %4868 = vmatpush1.msra.mxu0 %v4844
    %4869 = vmatprep.subr.mxu0 0.0
    %4870 = vmatpush1.msra.mxu0 %v4846
    %4871 = vmatprep.subr.mxu0 0.0
    %4872 = vmatpush1.msra.mxu0 0.0
    %4873 = vmatprep.subr.mxu0 0.0
    %4874 = vmatpush1.msra.mxu0 0.0
    %4875 = vmatprep.subr.mxu0 0.0
    %4876 = vmatpush1.msra.mxu0 0.0
    %4877 = vmatprep.subr.mxu0 0.0
    %4878 = vmatpush1.msra.mxu0 0.0
    %4879 = vmatprep.subr.mxu0 0.0
    %4880 = vmatpush1.msra.mxu0 0.0
    %4881 = vmatprep.subr.mxu0 0.0
    %4882 = vmatpush1.msra.mxu0 0.0
    %4883 = vmatprep.subr.mxu0 0.0
    %4884 = vmatpush1.msra.mxu0 0.0
    %4885 = vmatprep.subr.mxu0 0.0
    %4886 = vmatpush1.msra.mxu0 0.0
    %4887 = vmatprep.subr.mxu0 0.0
    %4888 = vmatpush1.msra.mxu0 0.0
    %4889 = vmatprep.subr.mxu0 0.0
    %4890 = vmatpush1.msra.mxu0 0.0
    %4891 = vmatprep.subr.mxu0 0.0
    %4892 = vmatpush1.msra.mxu0 0.0
    %4893 = vmatprep.subr.mxu0 0.0
    %4894 = vmatpush1.msra.mxu0 0.0
    %4895 = vmatprep.subr.mxu0 0.0
    %4896 = vmatpush1.msra.mxu0 0.0
    %4897 = vmatprep.subr.mxu0 0.0
    %4898 = vmatpush1.msra.mxu0 0.0
    %4899 = vmatprep.subr.mxu0 0.0
    %4900 = vmatpush1.msra.mxu0 0.0
    %4901 = vmatprep.subr.mxu0 0.0
    %4902 = vmatpush1.msra.mxu0 0.0
    %4903 = vmatprep.subr.mxu0 0.0
    %4904 = vmatpush1.msra.mxu0 0.0
    %4905 = vmatprep.subr.mxu0 0.0
    %4906 = vmatpush1.msra.mxu0 0.0
    %4907 = vmatprep.subr.mxu0 0.0
    %4908 = vmatpush1.msra.mxu0 0.0
    %4909 = vmatprep.subr.mxu0 0.0
    %4910 = vmatpush1.msra.mxu0 0.0
    %4911 = vmatprep.subr.mxu0 0.0
    %4912 = vmatpush1.msra.mxu0 0.0
    %4913 = vmatprep.subr.mxu0 0.0
    %4914 = vmatpush1.msra.mxu0 0.0
    %4915 = vmatprep.subr.mxu0 0.0
    %4916 = vmatpush1.msra.mxu0 0.0
    %4917 = vmatprep.subr.mxu0 0.0
    %4918 = vmatpush1.msra.mxu0 0.0
    %4919 = vmatprep.subr.mxu0 0.0
    %4920 = vmatpush1.msra.mxu0 0.0
    %4921 = vmatprep.subr.mxu0 0.0
    %4922 = vmatpush1.msra.mxu0 0.0
    %4923 = vmatprep.subr.mxu0 0.0
    %4924 = vmatpush1.msra.mxu0 0.0
    %4925 = vmatprep.subr.mxu0 0.0
    %4926 = vmatpush1.msra.mxu0 0.0
    %4927 = vmatprep.mubr.f32.mxu0 0.0
    %4928 = vmatmul.mubr.f32.gmra.mrb[0].mxu0 %v4852
    %v4929 = vpop.f32.mrb[0].mxu0
    %v4930 = vadd.f32 0.0, %v4929
    %v4931 = vpop.f32.mrb[0].mxu0
    %4932 = vmatprep.mubr.f32.mxu0 0.0
    %4933 = vmatmul.mubr.f32.gmra.mrb[0].mxu0 %v4855
    %v4934 = vpop.f32.mrb[0].mxu0
    %v4935 = vadd.f32 0.0, %v4934
    %v4936 = vpop.f32.mrb[0].mxu0
    %4937 = vmatprep.mubr.f32.mxu0 0.0
    %4938 = vmatmul.mubr.f32.gmra.mrb[0].mxu0 %v4858
    %v4939 = vpop.f32.mrb[0].mxu0
    %v4940 = vadd.f32 0.0, %v4939
    %v4941 = vpop.f32.mrb[0].mxu0
    %4942 = vmatprep.mubr.f32.mxu0 0.0
    %4943 = vmatmul.mubr.f32.gmra.mrb[0].mxu0 %v4861
    %v4944 = vpop.f32.mrb[0].mxu0
    %v4945 = vadd.f32 0.0, %v4944
    %v4946 = vpop.f32.mrb[0].mxu0
    %4947 = vdwg.mxu0
    %v4948 = vrot.slane %v2680, 4
    %v4950 = vsel %vm706, %v4930, 0
    %v4953 = vsel %vm706, %v4935, 0
    %v4956 = vsel %vm706, %v4940, 0
    %v4959 = vsel %vm706, %v4945, 0
    %v4961 = vsel %vm800, %v4948, 0
    %4963 = vmatprep.subr.mxu0 0.0
    %4964 = vmatpush1.msra.mxu0 %v4961
    %4965 = vmatprep.subr.mxu0 0.0
    %4966 = vmatpush1.msra.mxu0 0.0
    %4967 = vmatprep.subr.mxu0 0.0
    %4968 = vmatpush1.msra.mxu0 0.0
    %4969 = vmatprep.subr.mxu0 0.0
    %4970 = vmatpush1.msra.mxu0 0.0
    %4971 = vmatprep.subr.mxu0 0.0
    %4972 = vmatpush1.msra.mxu0 0.0
    %4973 = vmatprep.subr.mxu0 0.0
    %4974 = vmatpush1.msra.mxu0 0.0
    %4975 = vmatprep.subr.mxu0 0.0
    %4976 = vmatpush1.msra.mxu0 0.0
    %4977 = vmatprep.subr.mxu0 0.0
    %4978 = vmatpush1.msra.mxu0 0.0
    %4979 = vmatprep.subr.mxu0 0.0
    %4980 = vmatpush1.msra.mxu0 0.0
    %4981 = vmatprep.subr.mxu0 0.0
    %4982 = vmatpush1.msra.mxu0 0.0
    %4983 = vmatprep.subr.mxu0 0.0
    %4984 = vmatpush1.msra.mxu0 0.0
    %4985 = vmatprep.subr.mxu0 0.0
    %4986 = vmatpush1.msra.mxu0 0.0
    %4987 = vmatprep.subr.mxu0 0.0
    %4988 = vmatpush1.msra.mxu0 0.0
    %4989 = vmatprep.subr.mxu0 0.0
    %4990 = vmatpush1.msra.mxu0 0.0
    %4991 = vmatprep.subr.mxu0 0.0
    %4992 = vmatpush1.msra.mxu0 0.0
    %4993 = vmatprep.subr.mxu0 0.0
    %4994 = vmatpush1.msra.mxu0 0.0
    %4995 = vmatprep.subr.mxu0 0.0
    %4996 = vmatpush1.msra.mxu0 0.0
    %4997 = vmatprep.subr.mxu0 0.0
    %4998 = vmatpush1.msra.mxu0 0.0
    %4999 = vmatprep.subr.mxu0 0.0
    %5000 = vmatpush1.msra.mxu0 0.0
    %5001 = vmatprep.subr.mxu0 0.0
    %5002 = vmatpush1.msra.mxu0 0.0
    %5003 = vmatprep.subr.mxu0 0.0
    %5004 = vmatpush1.msra.mxu0 0.0
    %5005 = vmatprep.subr.mxu0 0.0
    %5006 = vmatpush1.msra.mxu0 0.0
    %5007 = vmatprep.subr.mxu0 0.0
    %5008 = vmatpush1.msra.mxu0 0.0
    %5009 = vmatprep.subr.mxu0 0.0
    %5010 = vmatpush1.msra.mxu0 0.0
    %5011 = vmatprep.subr.mxu0 0.0
    %5012 = vmatpush1.msra.mxu0 0.0
    %5013 = vmatprep.subr.mxu0 0.0
    %5014 = vmatpush1.msra.mxu0 0.0
    %5015 = vmatprep.subr.mxu0 0.0
    %5016 = vmatpush1.msra.mxu0 0.0
    %5017 = vmatprep.subr.mxu0 0.0
    %5018 = vmatpush1.msra.mxu0 0.0
    %5019 = vmatprep.subr.mxu0 0.0
    %5020 = vmatpush1.msra.mxu0 0.0
    %5021 = vmatprep.subr.mxu0 0.0
    %5022 = vmatpush1.msra.mxu0 0.0
    %5023 = vmatprep.subr.mxu0 0.0
    %5024 = vmatpush1.msra.mxu0 0.0
    %5025 = vmatprep.subr.mxu0 0.0
    %5026 = vmatpush1.msra.mxu0 0.0
    %5027 = vmatprep.mubr.f32.mxu0 0.0
    %5028 = vmatmul.mubr.f32.gmra.mrb[0].mxu0 %v4950
    %v5029 = vpop.f32.mrb[0].mxu0
    %v5030 = vadd.f32 0.0, %v5029
    %v5031 = vpop.f32.mrb[0].mxu0
    %5032 = vmatprep.mubr.f32.mxu0 0.0
    %5033 = vmatmul.mubr.f32.gmra.mrb[0].mxu0 %v4953
    %v5034 = vpop.f32.mrb[0].mxu0
    %v5035 = vadd.f32 0.0, %v5034
    %v5036 = vpop.f32.mrb[0].mxu0
    %5037 = vmatprep.mubr.f32.mxu0 0.0
    %5038 = vmatmul.mubr.f32.gmra.mrb[0].mxu0 %v4956
    %v5039 = vpop.f32.mrb[0].mxu0
    %v5040 = vadd.f32 0.0, %v5039
    %v5041 = vpop.f32.mrb[0].mxu0
    %5042 = vmatprep.mubr.f32.mxu0 0.0
    %5043 = vmatmul.mubr.f32.gmra.mrb[0].mxu0 %v4959
    %v5044 = vpop.f32.mrb[0].mxu0
    %v5045 = vadd.f32 0.0, %v5044
    %v5046 = vpop.f32.mrb[0].mxu0
    %5047 = vdwg.mxu0
    %v5048 = vadd.f32 %v4674, %v5030
    %v5049 = vadd.f32 %v4675, %v5035
    %v5050 = vadd.f32 %v4676, %v5040
    %v5051 = vadd.f32 %v4677, %v5045
    %5052 = vrot.lane.b32.xlu0 %v2812, 104
    %v5053 = vpop.permute.xlu0 %5052
    %5054 = vrot.lane.b32.xlu0 %v2813, 104
    %v5055 = vpop.permute.xlu0 %5054
    %5056 = vrot.lane.b32.xlu0 %v2814, 104
    %v5057 = vpop.permute.xlu0 %5056
    %5058 = vrot.lane.b32.xlu0 %v2815, 104
    %v5059 = vpop.permute.xlu0 %5058
    %5060 = vrot.lane.b32.xlu0 %v2794, 72
    %v5061 = vpop.permute.xlu0 %5060
    %5062 = vrot.lane.b32.xlu0 %v2799, 72
    %v5063 = vpop.permute.xlu0 %5062
    %5064 = vrot.lane.b32.xlu0 %v2804, 72
    %v5065 = vpop.permute.xlu0 %5064
    %5066 = vrot.lane.b32.xlu0 %v2809, 72
    %v5067 = vpop.permute.xlu0 %5066
    %v5068 = vsel %vm706, %v5053, 0
    %v5070 = vsel %vm706, %v5055, 0
    %v5072 = vsel %vm706, %v5057, 0
    %v5074 = vsel %vm706, %v5059, 0
    %v5076 = vsel %vm706, %v5061, 0
    %v5078 = vsel %vm706, %v5063, 0
    %v5080 = vsel %vm706, %v5065, 0
    %v5082 = vsel %vm706, %v5067, 0
    %5084 = vmatprep.subr.mxu0 0.0
    %5085 = vmatpush1.xpose.msra.mxu0 %v5076
    %5086 = vmatprep.subr.mxu0 0.0
    %5087 = vmatpush1.xpose.msra.mxu0 %v5078
    %5088 = vmatprep.subr.mxu0 0.0
    %5089 = vmatpush1.xpose.msra.mxu0 %v5080
    %5090 = vmatprep.subr.mxu0 0.0
    %5091 = vmatpush1.xpose.msra.mxu0 %v5082
    %5092 = vmatprep.subr.mxu0 0.0
    %5093 = vmatpush1.xpose.msra.mxu0 0.0
    %5094 = vmatprep.subr.mxu0 0.0
    %5095 = vmatpush1.xpose.msra.mxu0 0.0
    %5096 = vmatprep.subr.mxu0 0.0
    %5097 = vmatpush1.xpose.msra.mxu0 0.0
    %5098 = vmatprep.subr.mxu0 0.0
    %5099 = vmatpush1.xpose.msra.mxu0 0.0
    %5100 = vmatprep.subr.mxu0 0.0
    %5101 = vmatpush1.xpose.msra.mxu0 0.0
    %5102 = vmatprep.subr.mxu0 0.0
    %5103 = vmatpush1.xpose.msra.mxu0 0.0
    %5104 = vmatprep.subr.mxu0 0.0
    %5105 = vmatpush1.xpose.msra.mxu0 0.0
    %5106 = vmatprep.subr.mxu0 0.0
    %5107 = vmatpush1.xpose.msra.mxu0 0.0
    %5108 = vmatprep.subr.mxu0 0.0
    %5109 = vmatpush1.xpose.msra.mxu0 0.0
    %5110 = vmatprep.subr.mxu0 0.0
    %5111 = vmatpush1.xpose.msra.mxu0 0.0
    %5112 = vmatprep.subr.mxu0 0.0
    %5113 = vmatpush1.xpose.msra.mxu0 0.0
    %5114 = vmatprep.subr.mxu0 0.0
    %5115 = vmatpush1.xpose.msra.mxu0 0.0
    %5116 = vmatprep.subr.mxu0 0.0
    %5117 = vmatpush1.xpose.msra.mxu0 0.0
    %5118 = vmatprep.subr.mxu0 0.0
    %5119 = vmatpush1.xpose.msra.mxu0 0.0
    %5120 = vmatprep.subr.mxu0 0.0
    %5121 = vmatpush1.xpose.msra.mxu0 0.0
    %5122 = vmatprep.subr.mxu0 0.0
    %5123 = vmatpush1.xpose.msra.mxu0 0.0
    %5124 = vmatprep.subr.mxu0 0.0
    %5125 = vmatpush1.xpose.msra.mxu0 0.0
    %5126 = vmatprep.subr.mxu0 0.0
    %5127 = vmatpush1.xpose.msra.mxu0 0.0
    %5128 = vmatprep.subr.mxu0 0.0
    %5129 = vmatpush1.xpose.msra.mxu0 0.0
    %5130 = vmatprep.subr.mxu0 0.0
    %5131 = vmatpush1.xpose.msra.mxu0 0.0
    %5132 = vmatprep.subr.mxu0 0.0
    %5133 = vmatpush1.xpose.msra.mxu0 0.0
    %5134 = vmatprep.subr.mxu0 0.0
    %5135 = vmatpush1.xpose.msra.mxu0 0.0
    %5136 = vmatprep.subr.mxu0 0.0
    %5137 = vmatpush1.xpose.msra.mxu0 0.0
    %5138 = vmatprep.subr.mxu0 0.0
    %5139 = vmatpush1.xpose.msra.mxu0 0.0
    %5140 = vmatprep.subr.mxu0 0.0
    %5141 = vmatpush1.xpose.msra.mxu0 0.0
    %5142 = vmatprep.subr.mxu0 0.0
    %5143 = vmatpush1.xpose.msra.mxu0 0.0
    %5144 = vmatprep.subr.mxu0 0.0
    %5145 = vmatpush1.xpose.msra.mxu0 0.0
    %5146 = vmatprep.subr.mxu0 0.0
    %5147 = vmatpush1.xpose.msra.mxu0 0.0
    %5148 = vmatprep.mubr.f32.mxu0 0.0
    %5149 = vmatmul.mubr.f32.gmra.mrb[0].mxu0 %v5068
    %v5150 = vpop.f32.mrb[0].mxu0
    %v5151 = vadd.f32 %v2669, %v5150
    %v5152 = vpop.f32.mrb[0].mxu0
    %5153 = vmatprep.mubr.f32.mxu0 0.0
    %5154 = vmatmul.mubr.f32.gmra.mrb[0].mxu0 %v5070
    %v5155 = vpop.f32.mrb[0].mxu0
    %v5156 = vadd.f32 %v2670, %v5155
    %v5157 = vpop.f32.mrb[0].mxu0
    %5158 = vmatprep.mubr.f32.mxu0 0.0
    %5159 = vmatmul.mubr.f32.gmra.mrb[0].mxu0 %v5072
    %v5160 = vpop.f32.mrb[0].mxu0
    %v5161 = vadd.f32 %v2671, %v5160
    %v5162 = vpop.f32.mrb[0].mxu0
    %5163 = vmatprep.mubr.f32.mxu0 0.0
    %5164 = vmatmul.mubr.f32.gmra.mrb[0].mxu0 %v5074
    %v5165 = vpop.f32.mrb[0].mxu0
    %v5166 = vadd.f32 %v2672, %v5165
    %v5167 = vpop.f32.mrb[0].mxu0
    %5168 = vdwg.mxu0
    %v5169 = vsel %vm628, %v5151, -inf
    %5170 = vmax.xlane.f32.xlu0 %v5169
    %v5171 = vpop.xlane.xlu0 %5170
    %v5172 = vsel %vm628, %v5156, -inf
    %5173 = vmax.xlane.f32.xlu0 %v5172
    %v5174 = vpop.xlane.xlu0 %5173
    %v5175 = vsel %vm628, %v5161, -inf
    %5176 = vmax.xlane.f32.xlu0 %v5175
    %v5177 = vpop.xlane.xlu0 %5176
    %v5178 = vsel %vm628, %v5166, -inf
    %5179 = vmax.xlane.f32.xlu0 %v5178
    %v5180 = vpop.xlane.xlu0 %5179
    %v5181 = vsub.f32 %v5151, %v5171
    %v5182 = vsub.f32 %v5156, %v5174
    %v5183 = vsub.f32 %v5161, %v5177
    %v5184 = vsub.f32 %v5166, %v5180
    %v5185 = vmul.f32 %v5181, 1.442695
    %v5186 = vpow.pop %v5185
    %v5187 = vmul.f32 %v5182, 1.442695
    %v5188 = vpow.pop %v5187
    %v5189 = vmul.f32 %v5183, 1.442695
    %v5190 = vpow.pop %v5189
    %v5191 = vmul.f32 %v5184, 1.442695
    %v5192 = vpow.pop %v5191
    %v5193 = vsel %vm628, %v5186, 0.0
    %5194 = vadd.xlane.f32.xlu0 %v5193
    %v5195 = vpop.xlane.xlu0 %5194
    %v5196 = vsel %vm628, %v5188, 0.0
    %5197 = vadd.xlane.f32.xlu0 %v5196
    %v5198 = vpop.xlane.xlu0 %5197
    %v5199 = vsel %vm628, %v5190, 0.0
    %5200 = vadd.xlane.f32.xlu0 %v5199
    %v5201 = vpop.xlane.xlu0 %5200
    %v5202 = vsel %vm628, %v5192, 0.0
    %5203 = vadd.xlane.f32.xlu0 %v5202
    %v5204 = vpop.xlane.xlu0 %5203
    %v5205 = vrcp.pop %v5195
    %v5206 = vrcp.pop %v5198
    %v5207 = vrcp.pop %v5201
    %v5208 = vrcp.pop %v5204
    %v5209 = vmul.f32 %v5186, %v5205
    %v5210 = vmul.f32 %v5188, %v5206
    %v5211 = vmul.f32 %v5190, %v5207
    %v5212 = vmul.f32 %v5192, %v5208
    %5213 = vrot.lane.b32.xlu0 %v2794, 40
    %v5214 = vpop.permute.xlu0 %5213
    %5215 = vrot.lane.b32.xlu0 %v2799, 40
    %v5216 = vpop.permute.xlu0 %5215
    %5217 = vrot.lane.b32.xlu0 %v2804, 40
    %v5218 = vpop.permute.xlu0 %5217
    %5219 = vrot.lane.b32.xlu0 %v2809, 40
    %v5220 = vpop.permute.xlu0 %5219
    %v5226 = vsel %vm628, %v5209, 0
    %v5229 = vsel %vm628, %v5210, 0
    %v5232 = vsel %vm628, %v5211, 0
    %v5235 = vsel %vm628, %v5212, 0
    %5237 = vmatprep.subr.mxu0 0.0
    %5238 = vmatpush1.msra.mxu0 %v5214
    %5239 = vmatprep.subr.mxu0 0.0
    %5240 = vmatpush1.msra.mxu0 %v5216
    %5241 = vmatprep.subr.mxu0 0.0
    %5242 = vmatpush1.msra.mxu0 %v5218
    %5243 = vmatprep.subr.mxu0 0.0
    %5244 = vmatpush1.msra.mxu0 %v5220
    %5245 = vmatprep.subr.mxu0 0.0
    %5246 = vmatpush1.msra.mxu0 0.0
    %5247 = vmatprep.subr.mxu0 0.0
    %5248 = vmatpush1.msra.mxu0 0.0
    %5249 = vmatprep.subr.mxu0 0.0
    %5250 = vmatpush1.msra.mxu0 0.0
    %5251 = vmatprep.subr.mxu0 0.0
    %5252 = vmatpush1.msra.mxu0 0.0
    %5253 = vmatprep.subr.mxu0 0.0
    %5254 = vmatpush1.msra.mxu0 0.0
    %5255 = vmatprep.subr.mxu0 0.0
    %5256 = vmatpush1.msra.mxu0 0.0
    %5257 = vmatprep.subr.mxu0 0.0
    %5258 = vmatpush1.msra.mxu0 0.0
    %5259 = vmatprep.subr.mxu0 0.0
    %5260 = vmatpush1.msra.mxu0 0.0
    %5261 = vmatprep.subr.mxu0 0.0
    %5262 = vmatpush1.msra.mxu0 0.0
    %5263 = vmatprep.subr.mxu0 0.0
    %5264 = vmatpush1.msra.mxu0 0.0
    %5265 = vmatprep.subr.mxu0 0.0
    %5266 = vmatpush1.msra.mxu0 0.0
    %5267 = vmatprep.subr.mxu0 0.0
    %5268 = vmatpush1.msra.mxu0 0.0
    %5269 = vmatprep.subr.mxu0 0.0
    %5270 = vmatpush1.msra.mxu0 0.0
    %5271 = vmatprep.subr.mxu0 0.0
    %5272 = vmatpush1.msra.mxu0 0.0
    %5273 = vmatprep.subr.mxu0 0.0
    %5274 = vmatpush1.msra.mxu0 0.0
    %5275 = vmatprep.subr.mxu0 0.0
    %5276 = vmatpush1.msra.mxu0 0.0
    %5277 = vmatprep.subr.mxu0 0.0
    %5278 = vmatpush1.msra.mxu0 0.0
    %5279 = vmatprep.subr.mxu0 0.0
    %5280 = vmatpush1.msra.mxu0 0.0
    %5281 = vmatprep.subr.mxu0 0.0
    %5282 = vmatpush1.msra.mxu0 0.0
    %5283 = vmatprep.subr.mxu0 0.0
    %5284 = vmatpush1.msra.mxu0 0.0
    %5285 = vmatprep.subr.mxu0 0.0
    %5286 = vmatpush1.msra.mxu0 0.0
    %5287 = vmatprep.subr.mxu0 0.0
    %5288 = vmatpush1.msra.mxu0 0.0
    %5289 = vmatprep.subr.mxu0 0.0
    %5290 = vmatpush1.msra.mxu0 0.0
    %5291 = vmatprep.subr.mxu0 0.0
    %5292 = vmatpush1.msra.mxu0 0.0
    %5293 = vmatprep.subr.mxu0 0.0
    %5294 = vmatpush1.msra.mxu0 0.0
    %5295 = vmatprep.subr.mxu0 0.0
    %5296 = vmatpush1.msra.mxu0 0.0
    %5297 = vmatprep.subr.mxu0 0.0
    %5298 = vmatpush1.msra.mxu0 0.0
    %5299 = vmatprep.subr.mxu0 0.0
    %5300 = vmatpush1.msra.mxu0 0.0
    %5301 = vmatprep.mubr.f32.mxu0 0.0
    %5302 = vmatmul.mubr.f32.gmra.mrb[0].mxu0 %v5226
    %v5303 = vpop.f32.mrb[0].mxu0
    %v5304 = vadd.f32 0.0, %v5303
    %v5305 = vpop.f32.mrb[0].mxu0
    %5306 = vmatprep.mubr.f32.mxu0 0.0
    %5307 = vmatmul.mubr.f32.gmra.mrb[0].mxu0 %v5229
    %v5308 = vpop.f32.mrb[0].mxu0
    %v5309 = vadd.f32 0.0, %v5308
    %v5310 = vpop.f32.mrb[0].mxu0
    %5311 = vmatprep.mubr.f32.mxu0 0.0
    %5312 = vmatmul.mubr.f32.gmra.mrb[0].mxu0 %v5232
    %v5313 = vpop.f32.mrb[0].mxu0
    %v5314 = vadd.f32 0.0, %v5313
    %v5315 = vpop.f32.mrb[0].mxu0
    %5316 = vmatprep.mubr.f32.mxu0 0.0
    %5317 = vmatmul.mubr.f32.gmra.mrb[0].mxu0 %v5235
    %v5318 = vpop.f32.mrb[0].mxu0
    %v5319 = vadd.f32 0.0, %v5318
    %v5320 = vpop.f32.mrb[0].mxu0
    %5321 = vdwg.mxu0
    %v5323 = vsel %vm706, %v5304, 0
    %v5326 = vsel %vm706, %v5309, 0
    %v5329 = vsel %vm706, %v5314, 0
    %v5332 = vsel %vm706, %v5319, 0
    %v5335 = vsel %vm800, %v2681, 0
    %5337 = vmatprep.subr.mxu0 0.0
    %5338 = vmatpush1.msra.mxu0 %v5335
    %5339 = vmatprep.subr.mxu0 0.0
    %5340 = vmatpush1.msra.mxu0 0.0
    %5341 = vmatprep.subr.mxu0 0.0
    %5342 = vmatpush1.msra.mxu0 0.0
    %5343 = vmatprep.subr.mxu0 0.0
    %5344 = vmatpush1.msra.mxu0 0.0
    %5345 = vmatprep.subr.mxu0 0.0
    %5346 = vmatpush1.msra.mxu0 0.0
    %5347 = vmatprep.subr.mxu0 0.0
    %5348 = vmatpush1.msra.mxu0 0.0
    %5349 = vmatprep.subr.mxu0 0.0
    %5350 = vmatpush1.msra.mxu0 0.0
    %5351 = vmatprep.subr.mxu0 0.0
    %5352 = vmatpush1.msra.mxu0 0.0
    %5353 = vmatprep.subr.mxu0 0.0
    %5354 = vmatpush1.msra.mxu0 0.0
    %5355 = vmatprep.subr.mxu0 0.0
    %5356 = vmatpush1.msra.mxu0 0.0
    %5357 = vmatprep.subr.mxu0 0.0
    %5358 = vmatpush1.msra.mxu0 0.0
    %5359 = vmatprep.subr.mxu0 0.0
    %5360 = vmatpush1.msra.mxu0 0.0
    %5361 = vmatprep.subr.mxu0 0.0
    %5362 = vmatpush1.msra.mxu0 0.0
    %5363 = vmatprep.subr.mxu0 0.0
    %5364 = vmatpush1.msra.mxu0 0.0
    %5365 = vmatprep.subr.mxu0 0.0
    %5366 = vmatpush1.msra.mxu0 0.0
    %5367 = vmatprep.subr.mxu0 0.0
    %5368 = vmatpush1.msra.mxu0 0.0
    %5369 = vmatprep.subr.mxu0 0.0
    %5370 = vmatpush1.msra.mxu0 0.0
    %5371 = vmatprep.subr.mxu0 0.0
    %5372 = vmatpush1.msra.mxu0 0.0
    %5373 = vmatprep.subr.mxu0 0.0
    %5374 = vmatpush1.msra.mxu0 0.0
    %5375 = vmatprep.subr.mxu0 0.0
    %5376 = vmatpush1.msra.mxu0 0.0
    %5377 = vmatprep.subr.mxu0 0.0
    %5378 = vmatpush1.msra.mxu0 0.0
    %5379 = vmatprep.subr.mxu0 0.0
    %5380 = vmatpush1.msra.mxu0 0.0
    %5381 = vmatprep.subr.mxu0 0.0
    %5382 = vmatpush1.msra.mxu0 0.0
    %5383 = vmatprep.subr.mxu0 0.0
    %5384 = vmatpush1.msra.mxu0 0.0
    %5385 = vmatprep.subr.mxu0 0.0
    %5386 = vmatpush1.msra.mxu0 0.0
    %5387 = vmatprep.subr.mxu0 0.0
    %5388 = vmatpush1.msra.mxu0 0.0
    %5389 = vmatprep.subr.mxu0 0.0
    %5390 = vmatpush1.msra.mxu0 0.0
    %5391 = vmatprep.subr.mxu0 0.0
    %5392 = vmatpush1.msra.mxu0 0.0
    %5393 = vmatprep.subr.mxu0 0.0
    %5394 = vmatpush1.msra.mxu0 0.0
    %5395 = vmatprep.subr.mxu0 0.0
    %5396 = vmatpush1.msra.mxu0 0.0
    %5397 = vmatprep.subr.mxu0 0.0
    %5398 = vmatpush1.msra.mxu0 0.0
    %5399 = vmatprep.subr.mxu0 0.0
    %5400 = vmatpush1.msra.mxu0 0.0
    %5401 = vmatprep.mubr.f32.mxu0 0.0
    %5402 = vmatmul.mubr.f32.gmra.mrb[0].mxu0 %v5323
    %v5403 = vpop.f32.mrb[0].mxu0
    %v5404 = vadd.f32 0.0, %v5403
    %v5405 = vpop.f32.mrb[0].mxu0
    %5406 = vmatprep.mubr.f32.mxu0 0.0
    %5407 = vmatmul.mubr.f32.gmra.mrb[0].mxu0 %v5326
    %v5408 = vpop.f32.mrb[0].mxu0
    %v5409 = vadd.f32 0.0, %v5408
    %v5410 = vpop.f32.mrb[0].mxu0
    %5411 = vmatprep.mubr.f32.mxu0 0.0
    %5412 = vmatmul.mubr.f32.gmra.mrb[0].mxu0 %v5329
    %v5413 = vpop.f32.mrb[0].mxu0
    %v5414 = vadd.f32 0.0, %v5413
    %v5415 = vpop.f32.mrb[0].mxu0
    %5416 = vmatprep.mubr.f32.mxu0 0.0
    %5417 = vmatmul.mubr.f32.gmra.mrb[0].mxu0 %v5332
    %v5418 = vpop.f32.mrb[0].mxu0
    %v5419 = vadd.f32 0.0, %v5418
    %v5420 = vpop.f32.mrb[0].mxu0
    %5421 = vdwg.mxu0
    %v5422 = vadd.f32 %v5048, %v5404
    %v5423 = vadd.f32 %v5049, %v5409
    %v5424 = vadd.f32 %v5050, %v5414
    %v5425 = vadd.f32 %v5051, %v5419
    %5426 = vrot.lane.b32.xlu0 %v2812, 100
    %v5427 = vpop.permute.xlu0 %5426
    %5428 = vrot.lane.b32.xlu0 %v2813, 100
    %v5429 = vpop.permute.xlu0 %5428
    %5430 = vrot.lane.b32.xlu0 %v2814, 100
    %v5431 = vpop.permute.xlu0 %5430
    %5432 = vrot.lane.b32.xlu0 %v2815, 100
    %v5433 = vpop.permute.xlu0 %5432
    %5434 = vrot.lane.b32.xlu0 %v2794, 68
    %v5435 = vpop.permute.xlu0 %5434
    %5436 = vrot.lane.b32.xlu0 %v2799, 68
    %v5437 = vpop.permute.xlu0 %5436
    %5438 = vrot.lane.b32.xlu0 %v2804, 68
    %v5439 = vpop.permute.xlu0 %5438
    %5440 = vrot.lane.b32.xlu0 %v2809, 68
    %v5441 = vpop.permute.xlu0 %5440
    %v5442 = vsel %vm706, %v5427, 0
    %v5444 = vsel %vm706, %v5429, 0
    %v5446 = vsel %vm706, %v5431, 0
    %v5448 = vsel %vm706, %v5433, 0
    %v5450 = vsel %vm706, %v5435, 0
    %v5452 = vsel %vm706, %v5437, 0
    %v5454 = vsel %vm706, %v5439, 0
    %v5456 = vsel %vm706, %v5441, 0
    %5458 = vmatprep.subr.mxu0 0.0
    %5459 = vmatpush1.xpose.msra.mxu0 %v5450
    %5460 = vmatprep.subr.mxu0 0.0
    %5461 = vmatpush1.xpose.msra.mxu0 %v5452
    %5462 = vmatprep.subr.mxu0 0.0
    %5463 = vmatpush1.xpose.msra.mxu0 %v5454
    %5464 = vmatprep.subr.mxu0 0.0
    %5465 = vmatpush1.xpose.msra.mxu0 %v5456
    %5466 = vmatprep.subr.mxu0 0.0
    %5467 = vmatpush1.xpose.msra.mxu0 0.0
    %5468 = vmatprep.subr.mxu0 0.0
    %5469 = vmatpush1.xpose.msra.mxu0 0.0
    %5470 = vmatprep.subr.mxu0 0.0
    %5471 = vmatpush1.xpose.msra.mxu0 0.0
    %5472 = vmatprep.subr.mxu0 0.0
    %5473 = vmatpush1.xpose.msra.mxu0 0.0
    %5474 = vmatprep.subr.mxu0 0.0
    %5475 = vmatpush1.xpose.msra.mxu0 0.0
    %5476 = vmatprep.subr.mxu0 0.0
    %5477 = vmatpush1.xpose.msra.mxu0 0.0
    %5478 = vmatprep.subr.mxu0 0.0
    %5479 = vmatpush1.xpose.msra.mxu0 0.0
    %5480 = vmatprep.subr.mxu0 0.0
    %5481 = vmatpush1.xpose.msra.mxu0 0.0
    %5482 = vmatprep.subr.mxu0 0.0
    %5483 = vmatpush1.xpose.msra.mxu0 0.0
    %5484 = vmatprep.subr.mxu0 0.0
    %5485 = vmatpush1.xpose.msra.mxu0 0.0
    %5486 = vmatprep.subr.mxu0 0.0
    %5487 = vmatpush1.xpose.msra.mxu0 0.0
    %5488 = vmatprep.subr.mxu0 0.0
    %5489 = vmatpush1.xpose.msra.mxu0 0.0
    %5490 = vmatprep.subr.mxu0 0.0
    %5491 = vmatpush1.xpose.msra.mxu0 0.0
    %5492 = vmatprep.subr.mxu0 0.0
    %5493 = vmatpush1.xpose.msra.mxu0 0.0
    %5494 = vmatprep.subr.mxu0 0.0
    %5495 = vmatpush1.xpose.msra.mxu0 0.0
    %5496 = vmatprep.subr.mxu0 0.0
    %5497 = vmatpush1.xpose.msra.mxu0 0.0
    %5498 = vmatprep.subr.mxu0 0.0
    %5499 = vmatpush1.xpose.msra.mxu0 0.0
    %5500 = vmatprep.subr.mxu0 0.0
    %5501 = vmatpush1.xpose.msra.mxu0 0.0
    %5502 = vmatprep.subr.mxu0 0.0
    %5503 = vmatpush1.xpose.msra.mxu0 0.0
    %5504 = vmatprep.subr.mxu0 0.0
    %5505 = vmatpush1.xpose.msra.mxu0 0.0
    %5506 = vmatprep.subr.mxu0 0.0
    %5507 = vmatpush1.xpose.msra.mxu0 0.0
    %5508 = vmatprep.subr.mxu0 0.0
    %5509 = vmatpush1.xpose.msra.mxu0 0.0
    %5510 = vmatprep.subr.mxu0 0.0
    %5511 = vmatpush1.xpose.msra.mxu0 0.0
    %5512 = vmatprep.subr.mxu0 0.0
    %5513 = vmatpush1.xpose.msra.mxu0 0.0
    %5514 = vmatprep.subr.mxu0 0.0
    %5515 = vmatpush1.xpose.msra.mxu0 0.0
    %5516 = vmatprep.subr.mxu0 0.0
    %5517 = vmatpush1.xpose.msra.mxu0 0.0
    %5518 = vmatprep.subr.mxu0 0.0
    %5519 = vmatpush1.xpose.msra.mxu0 0.0
    %5520 = vmatprep.subr.mxu0 0.0
    %5521 = vmatpush1.xpose.msra.mxu0 0.0
    %5522 = vmatprep.mubr.f32.mxu0 0.0
    %5523 = vmatmul.mubr.f32.gmra.mrb[0].mxu0 %v5442
    %v5524 = vpop.f32.mrb[0].mxu0
    %v5525 = vadd.f32 %v2669, %v5524
    %v5526 = vpop.f32.mrb[0].mxu0
    %5527 = vmatprep.mubr.f32.mxu0 0.0
    %5528 = vmatmul.mubr.f32.gmra.mrb[0].mxu0 %v5444
    %v5529 = vpop.f32.mrb[0].mxu0
    %v5530 = vadd.f32 %v2670, %v5529
    %v5531 = vpop.f32.mrb[0].mxu0
    %5532 = vmatprep.mubr.f32.mxu0 0.0
    %5533 = vmatmul.mubr.f32.gmra.mrb[0].mxu0 %v5446
    %v5534 = vpop.f32.mrb[0].mxu0
    %v5535 = vadd.f32 %v2671, %v5534
    %v5536 = vpop.f32.mrb[0].mxu0
    %5537 = vmatprep.mubr.f32.mxu0 0.0
    %5538 = vmatmul.mubr.f32.gmra.mrb[0].mxu0 %v5448
    %v5539 = vpop.f32.mrb[0].mxu0
    %v5540 = vadd.f32 %v2672, %v5539
    %v5541 = vpop.f32.mrb[0].mxu0
    %5542 = vdwg.mxu0
    %v5543 = vsel %vm628, %v5525, -inf
    %5544 = vmax.xlane.f32.xlu0 %v5543
    %v5545 = vpop.xlane.xlu0 %5544
    %v5546 = vsel %vm628, %v5530, -inf
    %5547 = vmax.xlane.f32.xlu0 %v5546
    %v5548 = vpop.xlane.xlu0 %5547
    %v5549 = vsel %vm628, %v5535, -inf
    %5550 = vmax.xlane.f32.xlu0 %v5549
    %v5551 = vpop.xlane.xlu0 %5550
    %v5552 = vsel %vm628, %v5540, -inf
    %5553 = vmax.xlane.f32.xlu0 %v5552
    %v5554 = vpop.xlane.xlu0 %5553
    %v5555 = vsub.f32 %v5525, %v5545
    %v5556 = vsub.f32 %v5530, %v5548
    %v5557 = vsub.f32 %v5535, %v5551
    %v5558 = vsub.f32 %v5540, %v5554
    %v5559 = vmul.f32 %v5555, 1.442695
    %v5560 = vpow.pop %v5559
    %v5561 = vmul.f32 %v5556, 1.442695
    %v5562 = vpow.pop %v5561
    %v5563 = vmul.f32 %v5557, 1.442695
    %v5564 = vpow.pop %v5563
    %v5565 = vmul.f32 %v5558, 1.442695
    %v5566 = vpow.pop %v5565
    %v5567 = vsel %vm628, %v5560, 0.0
    %5568 = vadd.xlane.f32.xlu0 %v5567
    %v5569 = vpop.xlane.xlu0 %5568
    %v5570 = vsel %vm628, %v5562, 0.0
    %5571 = vadd.xlane.f32.xlu0 %v5570
    %v5572 = vpop.xlane.xlu0 %5571
    %v5573 = vsel %vm628, %v5564, 0.0
    %5574 = vadd.xlane.f32.xlu0 %v5573
    %v5575 = vpop.xlane.xlu0 %5574
    %v5576 = vsel %vm628, %v5566, 0.0
    %5577 = vadd.xlane.f32.xlu0 %v5576
    %v5578 = vpop.xlane.xlu0 %5577
    %v5579 = vrcp.pop %v5569
    %v5580 = vrcp.pop %v5572
    %v5581 = vrcp.pop %v5575
    %v5582 = vrcp.pop %v5578
    %v5583 = vmul.f32 %v5560, %v5579
    %v5584 = vmul.f32 %v5562, %v5580
    %v5585 = vmul.f32 %v5564, %v5581
    %v5586 = vmul.f32 %v5566, %v5582
    %5587 = vrot.lane.b32.xlu0 %v2794, 36
    %v5588 = vpop.permute.xlu0 %5587
    %5589 = vrot.lane.b32.xlu0 %v2799, 36
    %v5590 = vpop.permute.xlu0 %5589
    %5591 = vrot.lane.b32.xlu0 %v2804, 36
    %v5592 = vpop.permute.xlu0 %5591
    %5593 = vrot.lane.b32.xlu0 %v2809, 36
    %v5594 = vpop.permute.xlu0 %5593
    %v5600 = vsel %vm628, %v5583, 0
    %v5603 = vsel %vm628, %v5584, 0
    %v5606 = vsel %vm628, %v5585, 0
    %v5609 = vsel %vm628, %v5586, 0
    %5611 = vmatprep.subr.mxu0 0.0
    %5612 = vmatpush1.msra.mxu0 %v5588
    %5613 = vmatprep.subr.mxu0 0.0
    %5614 = vmatpush1.msra.mxu0 %v5590
    %5615 = vmatprep.subr.mxu0 0.0
    %5616 = vmatpush1.msra.mxu0 %v5592
    %5617 = vmatprep.subr.mxu0 0.0
    %5618 = vmatpush1.msra.mxu0 %v5594
    %5619 = vmatprep.subr.mxu0 0.0
    %5620 = vmatpush1.msra.mxu0 0.0
    %5621 = vmatprep.subr.mxu0 0.0
    %5622 = vmatpush1.msra.mxu0 0.0
    %5623 = vmatprep.subr.mxu0 0.0
    %5624 = vmatpush1.msra.mxu0 0.0
    %5625 = vmatprep.subr.mxu0 0.0
    %5626 = vmatpush1.msra.mxu0 0.0
    %5627 = vmatprep.subr.mxu0 0.0
    %5628 = vmatpush1.msra.mxu0 0.0
    %5629 = vmatprep.subr.mxu0 0.0
    %5630 = vmatpush1.msra.mxu0 0.0
    %5631 = vmatprep.subr.mxu0 0.0
    %5632 = vmatpush1.msra.mxu0 0.0
    %5633 = vmatprep.subr.mxu0 0.0
    %5634 = vmatpush1.msra.mxu0 0.0
    %5635 = vmatprep.subr.mxu0 0.0
    %5636 = vmatpush1.msra.mxu0 0.0
    %5637 = vmatprep.subr.mxu0 0.0
    %5638 = vmatpush1.msra.mxu0 0.0
    %5639 = vmatprep.subr.mxu0 0.0
    %5640 = vmatpush1.msra.mxu0 0.0
    %5641 = vmatprep.subr.mxu0 0.0
    %5642 = vmatpush1.msra.mxu0 0.0
    %5643 = vmatprep.subr.mxu0 0.0
    %5644 = vmatpush1.msra.mxu0 0.0
    %5645 = vmatprep.subr.mxu0 0.0
    %5646 = vmatpush1.msra.mxu0 0.0
    %5647 = vmatprep.subr.mxu0 0.0
    %5648 = vmatpush1.msra.mxu0 0.0
    %5649 = vmatprep.subr.mxu0 0.0
    %5650 = vmatpush1.msra.mxu0 0.0
    %5651 = vmatprep.subr.mxu0 0.0
    %5652 = vmatpush1.msra.mxu0 0.0
    %5653 = vmatprep.subr.mxu0 0.0
    %5654 = vmatpush1.msra.mxu0 0.0
    %5655 = vmatprep.subr.mxu0 0.0
    %5656 = vmatpush1.msra.mxu0 0.0
    %5657 = vmatprep.subr.mxu0 0.0
    %5658 = vmatpush1.msra.mxu0 0.0
    %5659 = vmatprep.subr.mxu0 0.0
    %5660 = vmatpush1.msra.mxu0 0.0
    %5661 = vmatprep.subr.mxu0 0.0
    %5662 = vmatpush1.msra.mxu0 0.0
    %5663 = vmatprep.subr.mxu0 0.0
    %5664 = vmatpush1.msra.mxu0 0.0
    %5665 = vmatprep.subr.mxu0 0.0
    %5666 = vmatpush1.msra.mxu0 0.0
    %5667 = vmatprep.subr.mxu0 0.0
    %5668 = vmatpush1.msra.mxu0 0.0
    %5669 = vmatprep.subr.mxu0 0.0
    %5670 = vmatpush1.msra.mxu0 0.0
    %5671 = vmatprep.subr.mxu0 0.0
    %5672 = vmatpush1.msra.mxu0 0.0
    %5673 = vmatprep.subr.mxu0 0.0
    %5674 = vmatpush1.msra.mxu0 0.0
    %5675 = vmatprep.mubr.f32.mxu0 0.0
    %5676 = vmatmul.mubr.f32.gmra.mrb[0].mxu0 %v5600
    %v5677 = vpop.f32.mrb[0].mxu0
    %v5678 = vadd.f32 0.0, %v5677
    %v5679 = vpop.f32.mrb[0].mxu0
    %5680 = vmatprep.mubr.f32.mxu0 0.0
    %5681 = vmatmul.mubr.f32.gmra.mrb[0].mxu0 %v5603
    %v5682 = vpop.f32.mrb[0].mxu0
    %v5683 = vadd.f32 0.0, %v5682
    %v5684 = vpop.f32.mrb[0].mxu0
    %5685 = vmatprep.mubr.f32.mxu0 0.0
    %5686 = vmatmul.mubr.f32.gmra.mrb[0].mxu0 %v5606
    %v5687 = vpop.f32.mrb[0].mxu0
    %v5688 = vadd.f32 0.0, %v5687
    %v5689 = vpop.f32.mrb[0].mxu0
    %5690 = vmatprep.mubr.f32.mxu0 0.0
    %5691 = vmatmul.mubr.f32.gmra.mrb[0].mxu0 %v5609
    %v5692 = vpop.f32.mrb[0].mxu0
    %v5693 = vadd.f32 0.0, %v5692
    %v5694 = vpop.f32.mrb[0].mxu0
    %5695 = vdwg.mxu0
    %v5696 = vrot.slane %v2681, 4
    %v5698 = vsel %vm706, %v5678, 0
    %v5701 = vsel %vm706, %v5683, 0
    %v5704 = vsel %vm706, %v5688, 0
    %v5707 = vsel %vm706, %v5693, 0
    %v5709 = vsel %vm800, %v5696, 0
    %5711 = vmatprep.subr.mxu0 0.0
    %5712 = vmatpush1.msra.mxu0 %v5709
    %5713 = vmatprep.subr.mxu0 0.0
    %5714 = vmatpush1.msra.mxu0 0.0
    %5715 = vmatprep.subr.mxu0 0.0
    %5716 = vmatpush1.msra.mxu0 0.0
    %5717 = vmatprep.subr.mxu0 0.0
    %5718 = vmatpush1.msra.mxu0 0.0
    %5719 = vmatprep.subr.mxu0 0.0
    %5720 = vmatpush1.msra.mxu0 0.0
    %5721 = vmatprep.subr.mxu0 0.0
    %5722 = vmatpush1.msra.mxu0 0.0
    %5723 = vmatprep.subr.mxu0 0.0
    %5724 = vmatpush1.msra.mxu0 0.0
    %5725 = vmatprep.subr.mxu0 0.0
    %5726 = vmatpush1.msra.mxu0 0.0
    %5727 = vmatprep.subr.mxu0 0.0
    %5728 = vmatpush1.msra.mxu0 0.0
    %5729 = vmatprep.subr.mxu0 0.0
    %5730 = vmatpush1.msra.mxu0 0.0
    %5731 = vmatprep.subr.mxu0 0.0
    %5732 = vmatpush1.msra.mxu0 0.0
    %5733 = vmatprep.subr.mxu0 0.0
    %5734 = vmatpush1.msra.mxu0 0.0
    %5735 = vmatprep.subr.mxu0 0.0
    %5736 = vmatpush1.msra.mxu0 0.0
    %5737 = vmatprep.subr.mxu0 0.0
    %5738 = vmatpush1.msra.mxu0 0.0
    %5739 = vmatprep.subr.mxu0 0.0
    %5740 = vmatpush1.msra.mxu0 0.0
    %5741 = vmatprep.subr.mxu0 0.0
    %5742 = vmatpush1.msra.mxu0 0.0
    %5743 = vmatprep.subr.mxu0 0.0
    %5744 = vmatpush1.msra.mxu0 0.0
    %5745 = vmatprep.subr.mxu0 0.0
    %5746 = vmatpush1.msra.mxu0 0.0
    %5747 = vmatprep.subr.mxu0 0.0
    %5748 = vmatpush1.msra.mxu0 0.0
    %5749 = vmatprep.subr.mxu0 0.0
    %5750 = vmatpush1.msra.mxu0 0.0
    %5751 = vmatprep.subr.mxu0 0.0
    %5752 = vmatpush1.msra.mxu0 0.0
    %5753 = vmatprep.subr.mxu0 0.0
    %5754 = vmatpush1.msra.mxu0 0.0
    %5755 = vmatprep.subr.mxu0 0.0
    %5756 = vmatpush1.msra.mxu0 0.0
    %5757 = vmatprep.subr.mxu0 0.0
    %5758 = vmatpush1.msra.mxu0 0.0
    %5759 = vmatprep.subr.mxu0 0.0
    %5760 = vmatpush1.msra.mxu0 0.0
    %5761 = vmatprep.subr.mxu0 0.0
    %5762 = vmatpush1.msra.mxu0 0.0
    %5763 = vmatprep.subr.mxu0 0.0
    %5764 = vmatpush1.msra.mxu0 0.0
    %5765 = vmatprep.subr.mxu0 0.0
    %5766 = vmatpush1.msra.mxu0 0.0
    %5767 = vmatprep.subr.mxu0 0.0
    %5768 = vmatpush1.msra.mxu0 0.0
    %5769 = vmatprep.subr.mxu0 0.0
    %5770 = vmatpush1.msra.mxu0 0.0
    %5771 = vmatprep.subr.mxu0 0.0
    %5772 = vmatpush1.msra.mxu0 0.0
    %5773 = vmatprep.subr.mxu0 0.0
    %5774 = vmatpush1.msra.mxu0 0.0
    %5775 = vmatprep.mubr.f32.mxu0 0.0
    %5776 = vmatmul.mubr.f32.gmra.mrb[0].mxu0 %v5698
    %v5777 = vpop.f32.mrb[0].mxu0
    %v5778 = vadd.f32 0.0, %v5777
    %v5779 = vpop.f32.mrb[0].mxu0
    %5780 = vmatprep.mubr.f32.mxu0 0.0
    %5781 = vmatmul.mubr.f32.gmra.mrb[0].mxu0 %v5701
    %v5782 = vpop.f32.mrb[0].mxu0
    %v5783 = vadd.f32 0.0, %v5782
    %v5784 = vpop.f32.mrb[0].mxu0
    %5785 = vmatprep.mubr.f32.mxu0 0.0
    %5786 = vmatmul.mubr.f32.gmra.mrb[0].mxu0 %v5704
    %v5787 = vpop.f32.mrb[0].mxu0
    %v5788 = vadd.f32 0.0, %v5787
    %v5789 = vpop.f32.mrb[0].mxu0
    %5790 = vmatprep.mubr.f32.mxu0 0.0
    %5791 = vmatmul.mubr.f32.gmra.mrb[0].mxu0 %v5707
    %v5792 = vpop.f32.mrb[0].mxu0
    %v5793 = vadd.f32 0.0, %v5792
    %v5794 = vpop.f32.mrb[0].mxu0
    %5795 = vdwg.mxu0
    %v5796 = vadd.f32 %v5422, %v5778
    %v5797 = vadd.f32 %v5423, %v5783
    %v5798 = vadd.f32 %v5424, %v5788
    %v5799 = vadd.f32 %v5425, %v5793
    %v5801 = vlaneseq
    %v5802 = vshrl.u32 %v5801, 7
    %v5803 = vsub.s32 0, %v5802
    %v5804 = vrot.slane %v2682, %v5803
    %v5806 = vadd.f32 %v5796, %v5804
    %v5807 = vadd.f32 %v5797, %v5804
    %v5808 = vadd.f32 %v5798, %v5804
    %v5809 = vadd.f32 %v5799, %v5804
    %v5810 = vadd.f32 %v2665, %v5806
    %v5811 = vadd.f32 %v2666, %v5807
    %v5812 = vadd.f32 %v2667, %v5808
    %v5813 = vadd.f32 %v2668, %v5809
    %v5814 = vsel %vm628, %v5810, 0.0
    %5815 = vadd.xlane.f32.xlu0 %v5814
    %v5816 = vpop.xlane.xlu0 %5815
    %v5817 = vsel %vm628, %v5811, 0.0
    %5818 = vadd.xlane.f32.xlu0 %v5817
    %v5819 = vpop.xlane.xlu0 %5818
    %v5820 = vsel %vm628, %v5812, 0.0
    %5821 = vadd.xlane.f32.xlu0 %v5820
    %v5822 = vpop.xlane.xlu0 %5821
    %v5823 = vsel %vm628, %v5813, 0.0
    %5824 = vadd.xlane.f32.xlu0 %v5823
    %v5825 = vpop.xlane.xlu0 %5824
    %v5826 = vrcp.pop 32.0
    %v5827 = vmul.f32 %v5816, %v5826
    %v5828 = vmul.f32 %v5819, %v5826
    %v5829 = vmul.f32 %v5822, %v5826
    %v5830 = vmul.f32 %v5825, %v5826
    %v5831 = vsub.f32 %v5810, %v5827
    %v5832 = vsub.f32 %v5811, %v5828
    %v5833 = vsub.f32 %v5812, %v5829
    %v5834 = vsub.f32 %v5813, %v5830
    %v5835 = vmul.f32 %v5831, %v5831
    %v5836 = vmul.f32 %v5832, %v5832
    %v5837 = vmul.f32 %v5833, %v5833
    %v5838 = vmul.f32 %v5834, %v5834
    %v5839 = vsel %vm628, %v5835, 0.0
    %5840 = vadd.xlane.f32.xlu0 %v5839
    %v5841 = vpop.xlane.xlu0 %5840
    %v5842 = vsel %vm628, %v5836, 0.0
    %5843 = vadd.xlane.f32.xlu0 %v5842
    %v5844 = vpop.xlane.xlu0 %5843
    %v5845 = vsel %vm628, %v5837, 0.0
    %5846 = vadd.xlane.f32.xlu0 %v5845
    %v5847 = vpop.xlane.xlu0 %5846
    %v5848 = vsel %vm628, %v5838, 0.0
    %5849 = vadd.xlane.f32.xlu0 %v5848
    %v5850 = vpop.xlane.xlu0 %5849
    %v5851 = vmul.f32 %v5841, %v5826
    %v5852 = vmul.f32 %v5844, %v5826
    %v5853 = vmul.f32 %v5847, %v5826
    %v5854 = vmul.f32 %v5850, %v5826
    %v5855 = vadd.f32 %v5851, 1e-05
    %v5856 = vadd.f32 %v5852, 1e-05
    %v5857 = vadd.f32 %v5853, 1e-05
    %v5858 = vadd.f32 %v5854, 1e-05
    %v5859 = vrsqrt.pop %v5855
    %v5860 = vrsqrt.pop %v5856
    %v5861 = vrsqrt.pop %v5857
    %v5862 = vrsqrt.pop %v5858
    %v5863 = vmul.f32 %v5831, %v5859
    %v5864 = vmul.f32 %v5832, %v5860
    %v5865 = vmul.f32 %v5833, %v5861
    %v5866 = vmul.f32 %v5834, %v5862
    %v5868 = vlaneseq
    %v5869 = vshrl.u32 %v5868, 7
    %v5870 = vsub.s32 0, %v5869
    %v5871 = vrot.slane %v2683, %v5870
    %v5873 = vmul.f32 %v5863, %v5871
    %v5874 = vmul.f32 %v5864, %v5871
    %v5875 = vmul.f32 %v5865, %v5871
    %v5876 = vmul.f32 %v5866, %v5871
    %v5878 = vlaneseq
    %v5879 = vshrl.u32 %v5878, 7
    %v5880 = vsub.s32 0, %v5879
    %v5881 = vrot.slane %v2684, %v5880
    %v5883 = vadd.f32 %v5873, %v5881
    %v5884 = vadd.f32 %v5874, %v5881
    %v5885 = vadd.f32 %v5875, %v5881
    %v5886 = vadd.f32 %v5876, %v5881
    %v5888 = vlaneseq
    %v5889 = vshrl.u32 %v5888, 7
    %v5890 = vsub.s32 0, %v5889
    %v5891 = vrot.slane %v2689, %v5890
    %v5894 = vsel %vm628, %v5883, 0
    %v5897 = vsel %vm628, %v5884, 0
    %v5900 = vsel %vm628, %v5885, 0
    %v5903 = vsel %vm628, %v5886, 0
    %5905 = vmatprep.subr.mxu0 0.0
    %5906 = vmatpush1.msra.mxu0 %v2685
    %5907 = vmatprep.subr.mxu0 0.0
    %5908 = vmatpush1.msra.mxu0 %v2686
    %5909 = vmatprep.subr.mxu0 0.0
    %5910 = vmatpush1.msra.mxu0 %v2687
    %5911 = vmatprep.subr.mxu0 0.0
    %5912 = vmatpush1.msra.mxu0 %v2688
    %5913 = vmatprep.subr.mxu0 0.0
    %5914 = vmatpush1.msra.mxu0 0.0
    %5915 = vmatprep.subr.mxu0 0.0
    %5916 = vmatpush1.msra.mxu0 0.0
    %5917 = vmatprep.subr.mxu0 0.0
    %5918 = vmatpush1.msra.mxu0 0.0
    %5919 = vmatprep.subr.mxu0 0.0
    %5920 = vmatpush1.msra.mxu0 0.0
    %5921 = vmatprep.subr.mxu0 0.0
    %5922 = vmatpush1.msra.mxu0 0.0
    %5923 = vmatprep.subr.mxu0 0.0
    %5924 = vmatpush1.msra.mxu0 0.0
    %5925 = vmatprep.subr.mxu0 0.0
    %5926 = vmatpush1.msra.mxu0 0.0
    %5927 = vmatprep.subr.mxu0 0.0
    %5928 = vmatpush1.msra.mxu0 0.0
    %5929 = vmatprep.subr.mxu0 0.0
    %5930 = vmatpush1.msra.mxu0 0.0
    %5931 = vmatprep.subr.mxu0 0.0
    %5932 = vmatpush1.msra.mxu0 0.0
    %5933 = vmatprep.subr.mxu0 0.0
    %5934 = vmatpush1.msra.mxu0 0.0
    %5935 = vmatprep.subr.mxu0 0.0
    %5936 = vmatpush1.msra.mxu0 0.0
    %5937 = vmatprep.subr.mxu0 0.0
    %5938 = vmatpush1.msra.mxu0 0.0
    %5939 = vmatprep.subr.mxu0 0.0
    %5940 = vmatpush1.msra.mxu0 0.0
    %5941 = vmatprep.subr.mxu0 0.0
    %5942 = vmatpush1.msra.mxu0 0.0
    %5943 = vmatprep.subr.mxu0 0.0
    %5944 = vmatpush1.msra.mxu0 0.0
    %5945 = vmatprep.subr.mxu0 0.0
    %5946 = vmatpush1.msra.mxu0 0.0
    %5947 = vmatprep.subr.mxu0 0.0
    %5948 = vmatpush1.msra.mxu0 0.0
    %5949 = vmatprep.subr.mxu0 0.0
    %5950 = vmatpush1.msra.mxu0 0.0
    %5951 = vmatprep.subr.mxu0 0.0
    %5952 = vmatpush1.msra.mxu0 0.0
    %5953 = vmatprep.subr.mxu0 0.0
    %5954 = vmatpush1.msra.mxu0 0.0
    %5955 = vmatprep.subr.mxu0 0.0
    %5956 = vmatpush1.msra.mxu0 0.0
    %5957 = vmatprep.subr.mxu0 0.0
    %5958 = vmatpush1.msra.mxu0 0.0
    %5959 = vmatprep.subr.mxu0 0.0
    %5960 = vmatpush1.msra.mxu0 0.0
    %5961 = vmatprep.subr.mxu0 0.0
    %5962 = vmatpush1.msra.mxu0 0.0
    %5963 = vmatprep.subr.mxu0 0.0
    %5964 = vmatpush1.msra.mxu0 0.0
    %5965 = vmatprep.subr.mxu0 0.0
    %5966 = vmatpush1.msra.mxu0 0.0
    %5967 = vmatprep.subr.mxu0 0.0
    %5968 = vmatpush1.msra.mxu0 0.0
    %5969 = vmatprep.mubr.f32.mxu0 0.0
    %5970 = vmatmul.mubr.f32.gmra.mrb[0].mxu0 %v5894
    %v5971 = vpop.f32.mrb[0].mxu0
    %v5972 = vadd.f32 %v5891, %v5971
    %v5973 = vpop.f32.mrb[0].mxu0
    %5974 = vmatprep.mubr.f32.mxu0 0.0
    %5975 = vmatmul.mubr.f32.gmra.mrb[0].mxu0 %v5897
    %v5976 = vpop.f32.mrb[0].mxu0
    %v5977 = vadd.f32 %v5891, %v5976
    %v5978 = vpop.f32.mrb[0].mxu0
    %5979 = vmatprep.mubr.f32.mxu0 0.0
    %5980 = vmatmul.mubr.f32.gmra.mrb[0].mxu0 %v5900
    %v5981 = vpop.f32.mrb[0].mxu0
    %v5982 = vadd.f32 %v5891, %v5981
    %v5983 = vpop.f32.mrb[0].mxu0
    %5984 = vmatprep.mubr.f32.mxu0 0.0
    %5985 = vmatmul.mubr.f32.gmra.mrb[0].mxu0 %v5903
    %v5986 = vpop.f32.mrb[0].mxu0
    %v5987 = vadd.f32 %v5891, %v5986
    %v5988 = vpop.f32.mrb[0].mxu0
    %5989 = vdwg.mxu0
    %v5990 = vmax.f32 %v5972, 0.0
    %v5991 = vmax.f32 %v5977, 0.0
    %v5992 = vmax.f32 %v5982, 0.0
    %v5993 = vmax.f32 %v5987, 0.0
    %v5995 = vlaneseq
    %v5996 = vshrl.u32 %v5995, 7
    %v5997 = vsub.s32 0, %v5996
    %v5998 = vrot.slane %v2706, %v5997
    %6000 = vmatprep.subr.mxu0 0.0
    %6001 = vmatpush1.msra.mxu0 %v2690
    %6002 = vmatprep.subr.mxu0 0.0
    %6003 = vmatpush1.msra.mxu0 %v2691
    %6004 = vmatprep.subr.mxu0 0.0
    %6005 = vmatpush1.msra.mxu0 %v2692
    %6006 = vmatprep.subr.mxu0 0.0
    %6007 = vmatpush1.msra.mxu0 %v2693
    %6008 = vmatprep.subr.mxu0 0.0
    %6009 = vmatpush1.msra.mxu0 %v2694
    %6010 = vmatprep.subr.mxu0 0.0
    %6011 = vmatpush1.msra.mxu0 %v2695
    %6012 = vmatprep.subr.mxu0 0.0
    %6013 = vmatpush1.msra.mxu0 %v2696
    %6014 = vmatprep.subr.mxu0 0.0
    %6015 = vmatpush1.msra.mxu0 %v2697
    %6016 = vmatprep.subr.mxu0 0.0
    %6017 = vmatpush1.msra.mxu0 %v2698
    %6018 = vmatprep.subr.mxu0 0.0
    %6019 = vmatpush1.msra.mxu0 %v2699
    %6020 = vmatprep.subr.mxu0 0.0
    %6021 = vmatpush1.msra.mxu0 %v2700
    %6022 = vmatprep.subr.mxu0 0.0
    %6023 = vmatpush1.msra.mxu0 %v2701
    %6024 = vmatprep.subr.mxu0 0.0
    %6025 = vmatpush1.msra.mxu0 %v2702
    %6026 = vmatprep.subr.mxu0 0.0
    %6027 = vmatpush1.msra.mxu0 %v2703
    %6028 = vmatprep.subr.mxu0 0.0
    %6029 = vmatpush1.msra.mxu0 %v2704
    %6030 = vmatprep.subr.mxu0 0.0
    %6031 = vmatpush1.msra.mxu0 %v2705
    %6032 = vmatprep.subr.mxu0 0.0
    %6033 = vmatpush1.msra.mxu0 0.0
    %6034 = vmatprep.subr.mxu0 0.0
    %6035 = vmatpush1.msra.mxu0 0.0
    %6036 = vmatprep.subr.mxu0 0.0
    %6037 = vmatpush1.msra.mxu0 0.0
    %6038 = vmatprep.subr.mxu0 0.0
    %6039 = vmatpush1.msra.mxu0 0.0
    %6040 = vmatprep.subr.mxu0 0.0
    %6041 = vmatpush1.msra.mxu0 0.0
    %6042 = vmatprep.subr.mxu0 0.0
    %6043 = vmatpush1.msra.mxu0 0.0
    %6044 = vmatprep.subr.mxu0 0.0
    %6045 = vmatpush1.msra.mxu0 0.0
    %6046 = vmatprep.subr.mxu0 0.0
    %6047 = vmatpush1.msra.mxu0 0.0
    %6048 = vmatprep.subr.mxu0 0.0
    %6049 = vmatpush1.msra.mxu0 0.0
    %6050 = vmatprep.subr.mxu0 0.0
    %6051 = vmatpush1.msra.mxu0 0.0
    %6052 = vmatprep.subr.mxu0 0.0
    %6053 = vmatpush1.msra.mxu0 0.0
    %6054 = vmatprep.subr.mxu0 0.0
    %6055 = vmatpush1.msra.mxu0 0.0
    %6056 = vmatprep.subr.mxu0 0.0
    %6057 = vmatpush1.msra.mxu0 0.0
    %6058 = vmatprep.subr.mxu0 0.0
    %6059 = vmatpush1.msra.mxu0 0.0
    %6060 = vmatprep.subr.mxu0 0.0
    %6061 = vmatpush1.msra.mxu0 0.0
    %6062 = vmatprep.subr.mxu0 0.0
    %6063 = vmatpush1.msra.mxu0 0.0
    %6064 = vmatprep.mubr.f32.mxu0 0.0
    %6065 = vmatmul.mubr.f32.gmra.mrb[0].mxu0 %v5990
    %v6066 = vpop.f32.mrb[0].mxu0
    %v6067 = vadd.f32 %v5998, %v6066
    %v6068 = vpop.f32.mrb[0].mxu0
    %6069 = vmatprep.mubr.f32.mxu0 0.0
    %6070 = vmatmul.mubr.f32.gmra.mrb[0].mxu0 %v5991
    %v6071 = vpop.f32.mrb[0].mxu0
    %v6072 = vadd.f32 %v5998, %v6071
    %v6073 = vpop.f32.mrb[0].mxu0
    %6074 = vmatprep.mubr.f32.mxu0 0.0
    %6075 = vmatmul.mubr.f32.gmra.mrb[0].mxu0 %v5992
    %v6076 = vpop.f32.mrb[0].mxu0
    %v6077 = vadd.f32 %v5998, %v6076
    %v6078 = vpop.f32.mrb[0].mxu0
    %6079 = vmatprep.mubr.f32.mxu0 0.0
    %6080 = vmatmul.mubr.f32.gmra.mrb[0].mxu0 %v5993
    %v6081 = vpop.f32.mrb[0].mxu0
    %v6082 = vadd.f32 %v5998, %v6081
    %v6083 = vpop.f32.mrb[0].mxu0
    %6084 = vdwg.mxu0
    %v6085 = vadd.f32 %v5883, %v6067
    %v6086 = vadd.f32 %v5884, %v6072
    %v6087 = vadd.f32 %v5885, %v6077
    %v6088 = vadd.f32 %v5886, %v6082
    %v6089 = vsel %vm628, %v6085, 0.0
    %6090 = vadd.xlane.f32.xlu0 %v6089
    %v6091 = vpop.xlane.xlu0 %6090
    %v6092 = vsel %vm628, %v6086, 0.0
    %6093 = vadd.xlane.f32.xlu0 %v6092
    %v6094 = vpop.xlane.xlu0 %6093
    %v6095 = vsel %vm628, %v6087, 0.0
    %6096 = vadd.xlane.f32.xlu0 %v6095
    %v6097 = vpop.xlane.xlu0 %6096
    %v6098 = vsel %vm628, %v6088, 0.0
    %6099 = vadd.xlane.f32.xlu0 %v6098
    %v6100 = vpop.xlane.xlu0 %6099
    %v6101 = vmul.f32 %v6091, %v5826
    %v6102 = vmul.f32 %v6094, %v5826
    %v6103 = vmul.f32 %v6097, %v5826
    %v6104 = vmul.f32 %v6100, %v5826
    %v6105 = vsub.f32 %v6085, %v6101
    %v6106 = vsub.f32 %v6086, %v6102
    %v6107 = vsub.f32 %v6087, %v6103
    %v6108 = vsub.f32 %v6088, %v6104
    %v6109 = vmul.f32 %v6105, %v6105
    %v6110 = vmul.f32 %v6106, %v6106
    %v6111 = vmul.f32 %v6107, %v6107
    %v6112 = vmul.f32 %v6108, %v6108
    %v6113 = vsel %vm628, %v6109, 0.0
    %6114 = vadd.xlane.f32.xlu0 %v6113
    %v6115 = vpop.xlane.xlu0 %6114
    %v6116 = vsel %vm628, %v6110, 0.0
    %6117 = vadd.xlane.f32.xlu0 %v6116
    %v6118 = vpop.xlane.xlu0 %6117
    %v6119 = vsel %vm628, %v6111, 0.0
    %6120 = vadd.xlane.f32.xlu0 %v6119
    %v6121 = vpop.xlane.xlu0 %6120
    %v6122 = vsel %vm628, %v6112, 0.0
    %6123 = vadd.xlane.f32.xlu0 %v6122
    %v6124 = vpop.xlane.xlu0 %6123
    %v6125 = vmul.f32 %v6115, %v5826
    %v6126 = vmul.f32 %v6118, %v5826
    %v6127 = vmul.f32 %v6121, %v5826
    %v6128 = vmul.f32 %v6124, %v5826
    %v6129 = vadd.f32 %v6125, 1e-05
    %v6130 = vadd.f32 %v6126, 1e-05
    %v6131 = vadd.f32 %v6127, 1e-05
    %v6132 = vadd.f32 %v6128, 1e-05
    %v6133 = vrsqrt.pop %v6129
    %v6134 = vrsqrt.pop %v6130
    %v6135 = vrsqrt.pop %v6131
    %v6136 = vrsqrt.pop %v6132
    %v6137 = vmul.f32 %v6105, %v6133
    %v6138 = vmul.f32 %v6106, %v6134
    %v6139 = vmul.f32 %v6107, %v6135
    %v6140 = vmul.f32 %v6108, %v6136
    %v6142 = vlaneseq
    %v6143 = vshrl.u32 %v6142, 7
    %v6144 = vsub.s32 0, %v6143
    %v6145 = vrot.slane %v2707, %v6144
    %v6147 = vmul.f32 %v6137, %v6145
    %v6148 = vmul.f32 %v6138, %v6145
    %v6149 = vmul.f32 %v6139, %v6145
    %v6150 = vmul.f32 %v6140, %v6145
    %v6152 = vlaneseq
    %v6153 = vshrl.u32 %v6152, 7
    %v6154 = vsub.s32 0, %v6153
    %v6155 = vrot.slane %v2708, %v6154
    %v6157 = vadd.f32 %v6147, %v6155
    %v6158 = vadd.f32 %v6148, %v6155
    %v6159 = vadd.f32 %v6149, %v6155
    %v6160 = vadd.f32 %v6150, %v6155
    %v6161 = vld [vmem:[#allocation29] sm:$0xff]
    %v6162 = vld [vmem:[#allocation29 + $0x8] sm:$0xff]
    %v6163 = vld [vmem:[#allocation29 + $0x10] sm:$0xff]
    %v6164 = vld [vmem:[#allocation29 + $0x18] sm:$0xff]
    %v6165 = vld [vmem:[#allocation31] sm:$0x1]
    %v6166 = vld [vmem:[#allocation32] sm:$0xff]
    %v6167 = vld [vmem:[#allocation32 + $0x8] sm:$0xff]
    %v6168 = vld [vmem:[#allocation32 + $0x10] sm:$0xff]
    %v6169 = vld [vmem:[#allocation32 + $0x18] sm:$0xff]
    %v6170 = vld [vmem:[#allocation34] sm:$0x1]
    %v6171 = vld [vmem:[#allocation35] sm:$0x1]
    %v6172 = vld [vmem:[#allocation37] sm:$0x1]
    %v6173 = vld [vmem:[#allocation38] sm:$0xff]
    %v6174 = vld [vmem:[#allocation38 + $0x8] sm:$0xff]
    %v6175 = vld [vmem:[#allocation38 + $0x10] sm:$0xff]
    %v6176 = vld [vmem:[#allocation38 + $0x18] sm:$0xff]
    %v6177 = vld [vmem:[#allocation40] sm:$0x1]
    %v6178 = vld [vmem:[#allocation41] sm:$0xff]
    %v6179 = vld [vmem:[#allocation41 + $0x8] sm:$0xff]
    %v6180 = vld [vmem:[#allocation41 + $0x10] sm:$0xff]
    %v6181 = vld [vmem:[#allocation41 + $0x18] sm:$0xff]
    %v6182 = vld [vmem:[#allocation41 + $0x20] sm:$0xff]
    %v6183 = vld [vmem:[#allocation41 + $0x28] sm:$0xff]
    %v6184 = vld [vmem:[#allocation41 + $0x30] sm:$0xff]
    %v6185 = vld [vmem:[#allocation41 + $0x38] sm:$0xff]
    %v6186 = vld [vmem:[#allocation41 + $0x40] sm:$0xff]
    %v6187 = vld [vmem:[#allocation41 + $0x48] sm:$0xff]
    %v6188 = vld [vmem:[#allocation41 + $0x50] sm:$0xff]
    %v6189 = vld [vmem:[#allocation41 + $0x58] sm:$0xff]
    %v6190 = vld [vmem:[#allocation41 + $0x60] sm:$0xff]
    %v6191 = vld [vmem:[#allocation41 + $0x68] sm:$0xff]
    %v6192 = vld [vmem:[#allocation41 + $0x70] sm:$0xff]
    %v6193 = vld [vmem:[#allocation41 + $0x78] sm:$0xff]
    %v6194 = vld [vmem:[#allocation43] sm:$0x1]
    %v6195 = vld [vmem:[#allocation44] sm:$0x1]
    %v6196 = vld [vmem:[#allocation46] sm:$0x1]
    %v6198 = vlaneseq
    %v6199 = vshrl.u32 %v6198, 7
    %v6200 = vsub.s32 0, %v6199
    %v6201 = vrot.slane %v6165, %v6200
    %v6204 = vsel %vm628, %v6157, 0
    %v6207 = vsel %vm628, %v6158, 0
    %v6210 = vsel %vm628, %v6159, 0
    %v6213 = vsel %vm628, %v6160, 0
    %6215 = vmatprep.subr.mxu0 0.0
    %6216 = vmatpush1.msra.mxu0 %v6161
    %6217 = vmatprep.subr.mxu0 0.0
    %6218 = vmatpush1.msra.mxu0 %v6162
    %6219 = vmatprep.subr.mxu0 0.0
    %6220 = vmatpush1.msra.mxu0 %v6163
    %6221 = vmatprep.subr.mxu0 0.0
    %6222 = vmatpush1.msra.mxu0 %v6164
    %6223 = vmatprep.subr.mxu0 0.0
    %6224 = vmatpush1.msra.mxu0 0.0
    %6225 = vmatprep.subr.mxu0 0.0
    %6226 = vmatpush1.msra.mxu0 0.0
    %6227 = vmatprep.subr.mxu0 0.0
    %6228 = vmatpush1.msra.mxu0 0.0
    %6229 = vmatprep.subr.mxu0 0.0
    %6230 = vmatpush1.msra.mxu0 0.0
    %6231 = vmatprep.subr.mxu0 0.0
    %6232 = vmatpush1.msra.mxu0 0.0
    %6233 = vmatprep.subr.mxu0 0.0
    %6234 = vmatpush1.msra.mxu0 0.0
    %6235 = vmatprep.subr.mxu0 0.0
    %6236 = vmatpush1.msra.mxu0 0.0
    %6237 = vmatprep.subr.mxu0 0.0
    %6238 = vmatpush1.msra.mxu0 0.0
    %6239 = vmatprep.subr.mxu0 0.0
    %6240 = vmatpush1.msra.mxu0 0.0
    %6241 = vmatprep.subr.mxu0 0.0
    %6242 = vmatpush1.msra.mxu0 0.0
    %6243 = vmatprep.subr.mxu0 0.0
    %6244 = vmatpush1.msra.mxu0 0.0
    %6245 = vmatprep.subr.mxu0 0.0
    %6246 = vmatpush1.msra.mxu0 0.0
    %6247 = vmatprep.subr.mxu0 0.0
    %6248 = vmatpush1.msra.mxu0 0.0
    %6249 = vmatprep.subr.mxu0 0.0
    %6250 = vmatpush1.msra.mxu0 0.0
    %6251 = vmatprep.subr.mxu0 0.0
    %6252 = vmatpush1.msra.mxu0 0.0
    %6253 = vmatprep.subr.mxu0 0.0
    %6254 = vmatpush1.msra.mxu0 0.0
    %6255 = vmatprep.subr.mxu0 0.0
    %6256 = vmatpush1.msra.mxu0 0.0
    %6257 = vmatprep.subr.mxu0 0.0
    %6258 = vmatpush1.msra.mxu0 0.0
    %6259 = vmatprep.subr.mxu0 0.0
    %6260 = vmatpush1.msra.mxu0 0.0
    %6261 = vmatprep.subr.mxu0 0.0
    %6262 = vmatpush1.msra.mxu0 0.0
    %6263 = vmatprep.subr.mxu0 0.0
    %6264 = vmatpush1.msra.mxu0 0.0
    %6265 = vmatprep.subr.mxu0 0.0
    %6266 = vmatpush1.msra.mxu0 0.0
    %6267 = vmatprep.subr.mxu0 0.0
    %6268 = vmatpush1.msra.mxu0 0.0
    %6269 = vmatprep.subr.mxu0 0.0
    %6270 = vmatpush1.msra.mxu0 0.0
    %6271 = vmatprep.subr.mxu0 0.0
    %6272 = vmatpush1.msra.mxu0 0.0
    %6273 = vmatprep.subr.mxu0 0.0
    %6274 = vmatpush1.msra.mxu0 0.0
    %6275 = vmatprep.subr.mxu0 0.0
    %6276 = vmatpush1.msra.mxu0 0.0
    %6277 = vmatprep.subr.mxu0 0.0
    %6278 = vmatpush1.msra.mxu0 0.0
    %6279 = vmatprep.mubr.f32.mxu0 0.0
    %6280 = vmatmul.mubr.f32.gmra.mrb[0].mxu0 %v6204
    %v6281 = vpop.f32.mrb[0].mxu0
    %v6282 = vadd.f32 %v6201, %v6281
    %v6283 = vpop.f32.mrb[0].mxu0
    %6284 = vmatprep.mubr.f32.mxu0 0.0
    %6285 = vmatmul.mubr.f32.gmra.mrb[0].mxu0 %v6207
    %v6286 = vpop.f32.mrb[0].mxu0
    %v6287 = vadd.f32 %v6201, %v6286
    %v6288 = vpop.f32.mrb[0].mxu0
    %6289 = vmatprep.mubr.f32.mxu0 0.0
    %6290 = vmatmul.mubr.f32.gmra.mrb[0].mxu0 %v6210
    %v6291 = vpop.f32.mrb[0].mxu0
    %v6292 = vadd.f32 %v6201, %v6291
    %v6293 = vpop.f32.mrb[0].mxu0
    %6294 = vmatprep.mubr.f32.mxu0 0.0
    %6295 = vmatmul.mubr.f32.gmra.mrb[0].mxu0 %v6213
    %v6296 = vpop.f32.mrb[0].mxu0
    %v6297 = vadd.f32 %v6201, %v6296
    %v6298 = vpop.f32.mrb[0].mxu0
    %6299 = vdwg.mxu0
    %v6300 = vmul.f32 %v6282, 0.5
    %v6301 = vmul.f32 %v6287, 0.5
    %v6302 = vmul.f32 %v6292, 0.5
    %v6303 = vmul.f32 %v6297, 0.5
    %6308 = vrot.lane.b32.xlu0 %v6282, 96
    %v6309 = vpop.permute.xlu0 %6308
    %6310 = vrot.lane.b32.xlu0 %v6287, 96
    %v6311 = vpop.permute.xlu0 %6310
    %6312 = vrot.lane.b32.xlu0 %v6292, 96
    %v6313 = vpop.permute.xlu0 %6312
    %6314 = vrot.lane.b32.xlu0 %v6297, 96
    %v6315 = vpop.permute.xlu0 %6314
    %v6317 = vsel %vm706, %v6300, 0
    %v6320 = vsel %vm706, %v6301, 0
    %v6323 = vsel %vm706, %v6302, 0
    %v6326 = vsel %vm706, %v6303, 0
    %v6328 = vsel %vm706, %v6309, 0
    %v6330 = vsel %vm706, %v6311, 0
    %v6332 = vsel %vm706, %v6313, 0
    %v6334 = vsel %vm706, %v6315, 0
    %6336 = vmatprep.subr.mxu0 0.0
    %6337 = vmatpush1.xpose.msra.mxu0 %v6328
    %6338 = vmatprep.subr.mxu0 0.0
    %6339 = vmatpush1.xpose.msra.mxu0 %v6330
    %6340 = vmatprep.subr.mxu0 0.0
    %6341 = vmatpush1.xpose.msra.mxu0 %v6332
    %6342 = vmatprep.subr.mxu0 0.0
    %6343 = vmatpush1.xpose.msra.mxu0 %v6334
    %6344 = vmatprep.subr.mxu0 0.0
    %6345 = vmatpush1.xpose.msra.mxu0 0.0
    %6346 = vmatprep.subr.mxu0 0.0
    %6347 = vmatpush1.xpose.msra.mxu0 0.0
    %6348 = vmatprep.subr.mxu0 0.0
    %6349 = vmatpush1.xpose.msra.mxu0 0.0
    %6350 = vmatprep.subr.mxu0 0.0
    %6351 = vmatpush1.xpose.msra.mxu0 0.0
    %6352 = vmatprep.subr.mxu0 0.0
    %6353 = vmatpush1.xpose.msra.mxu0 0.0
    %6354 = vmatprep.subr.mxu0 0.0
    %6355 = vmatpush1.xpose.msra.mxu0 0.0
    %6356 = vmatprep.subr.mxu0 0.0
    %6357 = vmatpush1.xpose.msra.mxu0 0.0
    %6358 = vmatprep.subr.mxu0 0.0
    %6359 = vmatpush1.xpose.msra.mxu0 0.0
    %6360 = vmatprep.subr.mxu0 0.0
    %6361 = vmatpush1.xpose.msra.mxu0 0.0
    %6362 = vmatprep.subr.mxu0 0.0
    %6363 = vmatpush1.xpose.msra.mxu0 0.0
    %6364 = vmatprep.subr.mxu0 0.0
    %6365 = vmatpush1.xpose.msra.mxu0 0.0
    %6366 = vmatprep.subr.mxu0 0.0
    %6367 = vmatpush1.xpose.msra.mxu0 0.0
    %6368 = vmatprep.subr.mxu0 0.0
    %6369 = vmatpush1.xpose.msra.mxu0 0.0
    %6370 = vmatprep.subr.mxu0 0.0
    %6371 = vmatpush1.xpose.msra.mxu0 0.0
    %6372 = vmatprep.subr.mxu0 0.0
    %6373 = vmatpush1.xpose.msra.mxu0 0.0
    %6374 = vmatprep.subr.mxu0 0.0
    %6375 = vmatpush1.xpose.msra.mxu0 0.0
    %6376 = vmatprep.subr.mxu0 0.0
    %6377 = vmatpush1.xpose.msra.mxu0 0.0
    %6378 = vmatprep.subr.mxu0 0.0
    %6379 = vmatpush1.xpose.msra.mxu0 0.0
    %6380 = vmatprep.subr.mxu0 0.0
    %6381 = vmatpush1.xpose.msra.mxu0 0.0
    %6382 = vmatprep.subr.mxu0 0.0
    %6383 = vmatpush1.xpose.msra.mxu0 0.0
    %6384 = vmatprep.subr.mxu0 0.0
    %6385 = vmatpush1.xpose.msra.mxu0 0.0
    %6386 = vmatprep.subr.mxu0 0.0
    %6387 = vmatpush1.xpose.msra.mxu0 0.0
    %6388 = vmatprep.subr.mxu0 0.0
    %6389 = vmatpush1.xpose.msra.mxu0 0.0
    %6390 = vmatprep.subr.mxu0 0.0
    %6391 = vmatpush1.xpose.msra.mxu0 0.0
    %6392 = vmatprep.subr.mxu0 0.0
    %6393 = vmatpush1.xpose.msra.mxu0 0.0
    %6394 = vmatprep.subr.mxu0 0.0
    %6395 = vmatpush1.xpose.msra.mxu0 0.0
    %6396 = vmatprep.subr.mxu0 0.0
    %6397 = vmatpush1.xpose.msra.mxu0 0.0
    %6398 = vmatprep.subr.mxu0 0.0
    %6399 = vmatpush1.xpose.msra.mxu0 0.0
    %6400 = vmatprep.mubr.f32.mxu0 0.0
    %6401 = vmatmul.mubr.f32.gmra.mrb[0].mxu0 %v6317
    %v6402 = vpop.f32.mrb[0].mxu0
    %v6403 = vadd.f32 %v2669, %v6402
    %v6404 = vpop.f32.mrb[0].mxu0
    %6405 = vmatprep.mubr.f32.mxu0 0.0
    %6406 = vmatmul.mubr.f32.gmra.mrb[0].mxu0 %v6320
    %v6407 = vpop.f32.mrb[0].mxu0
    %v6408 = vadd.f32 %v2670, %v6407
    %v6409 = vpop.f32.mrb[0].mxu0
    %6410 = vmatprep.mubr.f32.mxu0 0.0
    %6411 = vmatmul.mubr.f32.gmra.mrb[0].mxu0 %v6323
    %v6412 = vpop.f32.mrb[0].mxu0
    %v6413 = vadd.f32 %v2671, %v6412
    %v6414 = vpop.f32.mrb[0].mxu0
    %6415 = vmatprep.mubr.f32.mxu0 0.0
    %6416 = vmatmul.mubr.f32.gmra.mrb[0].mxu0 %v6326
    %v6417 = vpop.f32.mrb[0].mxu0
    %v6418 = vadd.f32 %v2672, %v6417
    %v6419 = vpop.f32.mrb[0].mxu0
    %6420 = vdwg.mxu0
    %v6421 = vsel %vm628, %v6403, -inf
    %6422 = vmax.xlane.f32.xlu0 %v6421
    %v6423 = vpop.xlane.xlu0 %6422
    %v6424 = vsel %vm628, %v6408, -inf
    %6425 = vmax.xlane.f32.xlu0 %v6424
    %v6426 = vpop.xlane.xlu0 %6425
    %v6427 = vsel %vm628, %v6413, -inf
    %6428 = vmax.xlane.f32.xlu0 %v6427
    %v6429 = vpop.xlane.xlu0 %6428
    %v6430 = vsel %vm628, %v6418, -inf
    %6431 = vmax.xlane.f32.xlu0 %v6430
    %v6432 = vpop.xlane.xlu0 %6431
    %v6433 = vsub.f32 %v6403, %v6423
    %v6434 = vsub.f32 %v6408, %v6426
    %v6435 = vsub.f32 %v6413, %v6429
    %v6436 = vsub.f32 %v6418, %v6432
    %v6437 = vmul.f32 %v6433, 1.442695
    %v6438 = vpow.pop %v6437
    %v6439 = vmul.f32 %v6434, 1.442695
    %v6440 = vpow.pop %v6439
    %v6441 = vmul.f32 %v6435, 1.442695
    %v6442 = vpow.pop %v6441
    %v6443 = vmul.f32 %v6436, 1.442695
    %v6444 = vpow.pop %v6443
    %v6445 = vsel %vm628, %v6438, 0.0
    %6446 = vadd.xlane.f32.xlu0 %v6445
    %v6447 = vpop.xlane.xlu0 %6446
    %v6448 = vsel %vm628, %v6440, 0.0
    %6449 = vadd.xlane.f32.xlu0 %v6448
    %v6450 = vpop.xlane.xlu0 %6449
    %v6451 = vsel %vm628, %v6442, 0.0
    %6452 = vadd.xlane.f32.xlu0 %v6451
    %v6453 = vpop.xlane.xlu0 %6452
    %v6454 = vsel %vm628, %v6444, 0.0
    %6455 = vadd.xlane.f32.xlu0 %v6454
    %v6456 = vpop.xlane.xlu0 %6455
    %v6457 = vrcp.pop %v6447
    %v6458 = vrcp.pop %v6450
    %v6459 = vrcp.pop %v6453
    %v6460 = vrcp.pop %v6456
    %v6461 = vmul.f32 %v6438, %v6457
    %v6462 = vmul.f32 %v6440, %v6458
    %v6463 = vmul.f32 %v6442, %v6459
    %v6464 = vmul.f32 %v6444, %v6460
    %6465 = vrot.lane.b32.xlu0 %v6282, 64
    %v6466 = vpop.permute.xlu0 %6465
    %6467 = vrot.lane.b32.xlu0 %v6287, 64
    %v6468 = vpop.permute.xlu0 %6467
    %6469 = vrot.lane.b32.xlu0 %v6292, 64
    %v6470 = vpop.permute.xlu0 %6469
    %6471 = vrot.lane.b32.xlu0 %v6297, 64
    %v6472 = vpop.permute.xlu0 %6471
    %v6478 = vsel %vm628, %v6461, 0
    %v6481 = vsel %vm628, %v6462, 0
    %v6484 = vsel %vm628, %v6463, 0
    %v6487 = vsel %vm628, %v6464, 0
    %6489 = vmatprep.subr.mxu0 0.0
    %6490 = vmatpush1.msra.mxu0 %v6466
    %6491 = vmatprep.subr.mxu0 0.0
    %6492 = vmatpush1.msra.mxu0 %v6468
    %6493 = vmatprep.subr.mxu0 0.0
    %6494 = vmatpush1.msra.mxu0 %v6470
    %6495 = vmatprep.subr.mxu0 0.0
    %6496 = vmatpush1.msra.mxu0 %v6472
    %6497 = vmatprep.subr.mxu0 0.0
    %6498 = vmatpush1.msra.mxu0 0.0
    %6499 = vmatprep.subr.mxu0 0.0
    %6500 = vmatpush1.msra.mxu0 0.0
    %6501 = vmatprep.subr.mxu0 0.0
    %6502 = vmatpush1.msra.mxu0 0.0
    %6503 = vmatprep.subr.mxu0 0.0
    %6504 = vmatpush1.msra.mxu0 0.0
    %6505 = vmatprep.subr.mxu0 0.0
    %6506 = vmatpush1.msra.mxu0 0.0
    %6507 = vmatprep.subr.mxu0 0.0
    %6508 = vmatpush1.msra.mxu0 0.0
    %6509 = vmatprep.subr.mxu0 0.0
    %6510 = vmatpush1.msra.mxu0 0.0
    %6511 = vmatprep.subr.mxu0 0.0
    %6512 = vmatpush1.msra.mxu0 0.0
    %6513 = vmatprep.subr.mxu0 0.0
    %6514 = vmatpush1.msra.mxu0 0.0
    %6515 = vmatprep.subr.mxu0 0.0
    %6516 = vmatpush1.msra.mxu0 0.0
    %6517 = vmatprep.subr.mxu0 0.0
    %6518 = vmatpush1.msra.mxu0 0.0
    %6519 = vmatprep.subr.mxu0 0.0
    %6520 = vmatpush1.msra.mxu0 0.0
    %6521 = vmatprep.subr.mxu0 0.0
    %6522 = vmatpush1.msra.mxu0 0.0
    %6523 = vmatprep.subr.mxu0 0.0
    %6524 = vmatpush1.msra.mxu0 0.0
    %6525 = vmatprep.subr.mxu0 0.0
    %6526 = vmatpush1.msra.mxu0 0.0
    %6527 = vmatprep.subr.mxu0 0.0
    %6528 = vmatpush1.msra.mxu0 0.0
    %6529 = vmatprep.subr.mxu0 0.0
    %6530 = vmatpush1.msra.mxu0 0.0
    %6531 = vmatprep.subr.mxu0 0.0
    %6532 = vmatpush1.msra.mxu0 0.0
    %6533 = vmatprep.subr.mxu0 0.0
    %6534 = vmatpush1.msra.mxu0 0.0
    %6535 = vmatprep.subr.mxu0 0.0
    %6536 = vmatpush1.msra.mxu0 0.0
    %6537 = vmatprep.subr.mxu0 0.0
    %6538 = vmatpush1.msra.mxu0 0.0
    %6539 = vmatprep.subr.mxu0 0.0
    %6540 = vmatpush1.msra.mxu0 0.0
    %6541 = vmatprep.subr.mxu0 0.0
    %6542 = vmatpush1.msra.mxu0 0.0
    %6543 = vmatprep.subr.mxu0 0.0
    %6544 = vmatpush1.msra.mxu0 0.0
    %6545 = vmatprep.subr.mxu0 0.0
    %6546 = vmatpush1.msra.mxu0 0.0
    %6547 = vmatprep.subr.mxu0 0.0
    %6548 = vmatpush1.msra.mxu0 0.0
    %6549 = vmatprep.subr.mxu0 0.0
    %6550 = vmatpush1.msra.mxu0 0.0
    %6551 = vmatprep.subr.mxu0 0.0
    %6552 = vmatpush1.msra.mxu0 0.0
    %6553 = vmatprep.mubr.f32.mxu0 0.0
    %6554 = vmatmul.mubr.f32.gmra.mrb[0].mxu0 %v6478
    %v6555 = vpop.f32.mrb[0].mxu0
    %v6556 = vadd.f32 0.0, %v6555
    %v6557 = vpop.f32.mrb[0].mxu0
    %6558 = vmatprep.mubr.f32.mxu0 0.0
    %6559 = vmatmul.mubr.f32.gmra.mrb[0].mxu0 %v6481
    %v6560 = vpop.f32.mrb[0].mxu0
    %v6561 = vadd.f32 0.0, %v6560
    %v6562 = vpop.f32.mrb[0].mxu0
    %6563 = vmatprep.mubr.f32.mxu0 0.0
    %6564 = vmatmul.mubr.f32.gmra.mrb[0].mxu0 %v6484
    %v6565 = vpop.f32.mrb[0].mxu0
    %v6566 = vadd.f32 0.0, %v6565
    %v6567 = vpop.f32.mrb[0].mxu0
    %6568 = vmatprep.mubr.f32.mxu0 0.0
    %6569 = vmatmul.mubr.f32.gmra.mrb[0].mxu0 %v6487
    %v6570 = vpop.f32.mrb[0].mxu0
    %v6571 = vadd.f32 0.0, %v6570
    %v6572 = vpop.f32.mrb[0].mxu0
    %6573 = vdwg.mxu0
    %6574 = vrot.lane.b32.xlu0 %v6300, 124
    %v6575 = vpop.permute.xlu0 %6574
    %6576 = vrot.lane.b32.xlu0 %v6301, 124
    %v6577 = vpop.permute.xlu0 %6576
    %6578 = vrot.lane.b32.xlu0 %v6302, 124
    %v6579 = vpop.permute.xlu0 %6578
    %6580 = vrot.lane.b32.xlu0 %v6303, 124
    %v6581 = vpop.permute.xlu0 %6580
    %6582 = vrot.lane.b32.xlu0 %v6282, 92
    %v6583 = vpop.permute.xlu0 %6582
    %6584 = vrot.lane.b32.xlu0 %v6287, 92
    %v6585 = vpop.permute.xlu0 %6584
    %6586 = vrot.lane.b32.xlu0 %v6292, 92
    %v6587 = vpop.permute.xlu0 %6586
    %6588 = vrot.lane.b32.xlu0 %v6297, 92
    %v6589 = vpop.permute.xlu0 %6588
    %v6590 = vsel %vm706, %v6575, 0
    %v6592 = vsel %vm706, %v6577, 0
    %v6594 = vsel %vm706, %v6579, 0
    %v6596 = vsel %vm706, %v6581, 0
    %v6598 = vsel %vm706, %v6583, 0
    %v6600 = vsel %vm706, %v6585, 0
    %v6602 = vsel %vm706, %v6587, 0
    %v6604 = vsel %vm706, %v6589, 0
    %6606 = vmatprep.subr.mxu0 0.0
    %6607 = vmatpush1.xpose.msra.mxu0 %v6598
    %6608 = vmatprep.subr.mxu0 0.0
    %6609 = vmatpush1.xpose.msra.mxu0 %v6600
    %6610 = vmatprep.subr.mxu0 0.0
    %6611 = vmatpush1.xpose.msra.mxu0 %v6602
    %6612 = vmatprep.subr.mxu0 0.0
    %6613 = vmatpush1.xpose.msra.mxu0 %v6604
    %6614 = vmatprep.subr.mxu0 0.0
    %6615 = vmatpush1.xpose.msra.mxu0 0.0
    %6616 = vmatprep.subr.mxu0 0.0
    %6617 = vmatpush1.xpose.msra.mxu0 0.0
    %6618 = vmatprep.subr.mxu0 0.0
    %6619 = vmatpush1.xpose.msra.mxu0 0.0
    %6620 = vmatprep.subr.mxu0 0.0
    %6621 = vmatpush1.xpose.msra.mxu0 0.0
    %6622 = vmatprep.subr.mxu0 0.0
    %6623 = vmatpush1.xpose.msra.mxu0 0.0
    %6624 = vmatprep.subr.mxu0 0.0
    %6625 = vmatpush1.xpose.msra.mxu0 0.0
    %6626 = vmatprep.subr.mxu0 0.0
    %6627 = vmatpush1.xpose.msra.mxu0 0.0
    %6628 = vmatprep.subr.mxu0 0.0
    %6629 = vmatpush1.xpose.msra.mxu0 0.0
    %6630 = vmatprep.subr.mxu0 0.0
    %6631 = vmatpush1.xpose.msra.mxu0 0.0
    %6632 = vmatprep.subr.mxu0 0.0
    %6633 = vmatpush1.xpose.msra.mxu0 0.0
    %6634 = vmatprep.subr.mxu0 0.0
    %6635 = vmatpush1.xpose.msra.mxu0 0.0
    %6636 = vmatprep.subr.mxu0 0.0
    %6637 = vmatpush1.xpose.msra.mxu0 0.0
    %6638 = vmatprep.subr.mxu0 0.0
    %6639 = vmatpush1.xpose.msra.mxu0 0.0
    %6640 = vmatprep.subr.mxu0 0.0
    %6641 = vmatpush1.xpose.msra.mxu0 0.0
    %6642 = vmatprep.subr.mxu0 0.0
    %6643 = vmatpush1.xpose.msra.mxu0 0.0
    %6644 = vmatprep.subr.mxu0 0.0
    %6645 = vmatpush1.xpose.msra.mxu0 0.0
    %6646 = vmatprep.subr.mxu0 0.0
    %6647 = vmatpush1.xpose.msra.mxu0 0.0
    %6648 = vmatprep.subr.mxu0 0.0
    %6649 = vmatpush1.xpose.msra.mxu0 0.0
    %6650 = vmatprep.subr.mxu0 0.0
    %6651 = vmatpush1.xpose.msra.mxu0 0.0
    %6652 = vmatprep.subr.mxu0 0.0
    %6653 = vmatpush1.xpose.msra.mxu0 0.0
    %6654 = vmatprep.subr.mxu0 0.0
    %6655 = vmatpush1.xpose.msra.mxu0 0.0
    %6656 = vmatprep.subr.mxu0 0.0
    %6657 = vmatpush1.xpose.msra.mxu0 0.0
    %6658 = vmatprep.subr.mxu0 0.0
    %6659 = vmatpush1.xpose.msra.mxu0 0.0
    %6660 = vmatprep.subr.mxu0 0.0
    %6661 = vmatpush1.xpose.msra.mxu0 0.0
    %6662 = vmatprep.subr.mxu0 0.0
    %6663 = vmatpush1.xpose.msra.mxu0 0.0
    %6664 = vmatprep.subr.mxu0 0.0
    %6665 = vmatpush1.xpose.msra.mxu0 0.0
    %6666 = vmatprep.subr.mxu0 0.0
    %6667 = vmatpush1.xpose.msra.mxu0 0.0
    %6668 = vmatprep.subr.mxu0 0.0
    %6669 = vmatpush1.xpose.msra.mxu0 0.0
    %6670 = vmatprep.mubr.f32.mxu0 0.0
    %6671 = vmatmul.mubr.f32.gmra.mrb[0].mxu0 %v6590
    %v6672 = vpop.f32.mrb[0].mxu0
    %v6673 = vadd.f32 %v2669, %v6672
    %v6674 = vpop.f32.mrb[0].mxu0
    %6675 = vmatprep.mubr.f32.mxu0 0.0
    %6676 = vmatmul.mubr.f32.gmra.mrb[0].mxu0 %v6592
    %v6677 = vpop.f32.mrb[0].mxu0
    %v6678 = vadd.f32 %v2670, %v6677
    %v6679 = vpop.f32.mrb[0].mxu0
    %6680 = vmatprep.mubr.f32.mxu0 0.0
    %6681 = vmatmul.mubr.f32.gmra.mrb[0].mxu0 %v6594
    %v6682 = vpop.f32.mrb[0].mxu0
    %v6683 = vadd.f32 %v2671, %v6682
    %v6684 = vpop.f32.mrb[0].mxu0
    %6685 = vmatprep.mubr.f32.mxu0 0.0
    %6686 = vmatmul.mubr.f32.gmra.mrb[0].mxu0 %v6596
    %v6687 = vpop.f32.mrb[0].mxu0
    %v6688 = vadd.f32 %v2672, %v6687
    %v6689 = vpop.f32.mrb[0].mxu0
    %6690 = vdwg.mxu0
    %v6691 = vsel %vm628, %v6673, -inf
    %6692 = vmax.xlane.f32.xlu0 %v6691
    %v6693 = vpop.xlane.xlu0 %6692
    %v6694 = vsel %vm628, %v6678, -inf
    %6695 = vmax.xlane.f32.xlu0 %v6694
    %v6696 = vpop.xlane.xlu0 %6695
    %v6697 = vsel %vm628, %v6683, -inf
    %6698 = vmax.xlane.f32.xlu0 %v6697
    %v6699 = vpop.xlane.xlu0 %6698
    %v6700 = vsel %vm628, %v6688, -inf
    %6701 = vmax.xlane.f32.xlu0 %v6700
    %v6702 = vpop.xlane.xlu0 %6701
    %v6703 = vsub.f32 %v6673, %v6693
    %v6704 = vsub.f32 %v6678, %v6696
    %v6705 = vsub.f32 %v6683, %v6699
    %v6706 = vsub.f32 %v6688, %v6702
    %v6707 = vmul.f32 %v6703, 1.442695
    %v6708 = vpow.pop %v6707
    %v6709 = vmul.f32 %v6704, 1.442695
    %v6710 = vpow.pop %v6709
    %v6711 = vmul.f32 %v6705, 1.442695
    %v6712 = vpow.pop %v6711
    %v6713 = vmul.f32 %v6706, 1.442695
    %v6714 = vpow.pop %v6713
    %v6715 = vsel %vm628, %v6708, 0.0
    %6716 = vadd.xlane.f32.xlu0 %v6715
    %v6717 = vpop.xlane.xlu0 %6716
    %v6718 = vsel %vm628, %v6710, 0.0
    %6719 = vadd.xlane.f32.xlu0 %v6718
    %v6720 = vpop.xlane.xlu0 %6719
    %v6721 = vsel %vm628, %v6712, 0.0
    %6722 = vadd.xlane.f32.xlu0 %v6721
    %v6723 = vpop.xlane.xlu0 %6722
    %v6724 = vsel %vm628, %v6714, 0.0
    %6725 = vadd.xlane.f32.xlu0 %v6724
    %v6726 = vpop.xlane.xlu0 %6725
    %v6727 = vrcp.pop %v6717
    %v6728 = vrcp.pop %v6720
    %v6729 = vrcp.pop %v6723
    %v6730 = vrcp.pop %v6726
    %v6731 = vmul.f32 %v6708, %v6727
    %v6732 = vmul.f32 %v6710, %v6728
    %v6733 = vmul.f32 %v6712, %v6729
    %v6734 = vmul.f32 %v6714, %v6730
    %6735 = vrot.lane.b32.xlu0 %v6282, 60
    %v6736 = vpop.permute.xlu0 %6735
    %6737 = vrot.lane.b32.xlu0 %v6287, 60
    %v6738 = vpop.permute.xlu0 %6737
    %6739 = vrot.lane.b32.xlu0 %v6292, 60
    %v6740 = vpop.permute.xlu0 %6739
    %6741 = vrot.lane.b32.xlu0 %v6297, 60
    %v6742 = vpop.permute.xlu0 %6741
    %v6748 = vsel %vm628, %v6731, 0
    %v6751 = vsel %vm628, %v6732, 0
    %v6754 = vsel %vm628, %v6733, 0
    %v6757 = vsel %vm628, %v6734, 0
    %6759 = vmatprep.subr.mxu0 0.0
    %6760 = vmatpush1.msra.mxu0 %v6736
    %6761 = vmatprep.subr.mxu0 0.0
    %6762 = vmatpush1.msra.mxu0 %v6738
    %6763 = vmatprep.subr.mxu0 0.0
    %6764 = vmatpush1.msra.mxu0 %v6740
    %6765 = vmatprep.subr.mxu0 0.0
    %6766 = vmatpush1.msra.mxu0 %v6742
    %6767 = vmatprep.subr.mxu0 0.0
    %6768 = vmatpush1.msra.mxu0 0.0
    %6769 = vmatprep.subr.mxu0 0.0
    %6770 = vmatpush1.msra.mxu0 0.0
    %6771 = vmatprep.subr.mxu0 0.0
    %6772 = vmatpush1.msra.mxu0 0.0
    %6773 = vmatprep.subr.mxu0 0.0
    %6774 = vmatpush1.msra.mxu0 0.0
    %6775 = vmatprep.subr.mxu0 0.0
    %6776 = vmatpush1.msra.mxu0 0.0
    %6777 = vmatprep.subr.mxu0 0.0
    %6778 = vmatpush1.msra.mxu0 0.0
    %6779 = vmatprep.subr.mxu0 0.0
    %6780 = vmatpush1.msra.mxu0 0.0
    %6781 = vmatprep.subr.mxu0 0.0
    %6782 = vmatpush1.msra.mxu0 0.0
    %6783 = vmatprep.subr.mxu0 0.0
    %6784 = vmatpush1.msra.mxu0 0.0
    %6785 = vmatprep.subr.mxu0 0.0
    %6786 = vmatpush1.msra.mxu0 0.0
    %6787 = vmatprep.subr.mxu0 0.0
    %6788 = vmatpush1.msra.mxu0 0.0
    %6789 = vmatprep.subr.mxu0 0.0
    %6790 = vmatpush1.msra.mxu0 0.0
    %6791 = vmatprep.subr.mxu0 0.0
    %6792 = vmatpush1.msra.mxu0 0.0
    %6793 = vmatprep.subr.mxu0 0.0
    %6794 = vmatpush1.msra.mxu0 0.0
    %6795 = vmatprep.subr.mxu0 0.0
    %6796 = vmatpush1.msra.mxu0 0.0
    %6797 = vmatprep.subr.mxu0 0.0
    %6798 = vmatpush1.msra.mxu0 0.0
    %6799 = vmatprep.subr.mxu0 0.0
    %6800 = vmatpush1.msra.mxu0 0.0
    %6801 = vmatprep.subr.mxu0 0.0
    %6802 = vmatpush1.msra.mxu0 0.0
    %6803 = vmatprep.subr.mxu0 0.0
    %6804 = vmatpush1.msra.mxu0 0.0
    %6805 = vmatprep.subr.mxu0 0.0
    %6806 = vmatpush1.msra.mxu0 0.0
    %6807 = vmatprep.subr.mxu0 0.0
    %6808 = vmatpush1.msra.mxu0 0.0
    %6809 = vmatprep.subr.mxu0 0.0
    %6810 = vmatpush1.msra.mxu0 0.0
    %6811 = vmatprep.subr.mxu0 0.0
    %6812 = vmatpush1.msra.mxu0 0.0
    %6813 = vmatprep.subr.mxu0 0.0
    %6814 = vmatpush1.msra.mxu0 0.0
    %6815 = vmatprep.subr.mxu0 0.0
    %6816 = vmatpush1.msra.mxu0 0.0
    %6817 = vmatprep.subr.mxu0 0.0
    %6818 = vmatpush1.msra.mxu0 0.0
    %6819 = vmatprep.subr.mxu0 0.0
    %6820 = vmatpush1.msra.mxu0 0.0
    %6821 = vmatprep.subr.mxu0 0.0
    %6822 = vmatpush1.msra.mxu0 0.0
    %6823 = vmatprep.mubr.f32.mxu0 0.0
    %6824 = vmatmul.mubr.f32.gmra.mrb[0].mxu0 %v6748
    %v6825 = vpop.f32.mrb[0].mxu0
    %v6826 = vadd.f32 0.0, %v6825
    %v6827 = vpop.f32.mrb[0].mxu0
    %6828 = vmatprep.mubr.f32.mxu0 0.0
    %6829 = vmatmul.mubr.f32.gmra.mrb[0].mxu0 %v6751
    %v6830 = vpop.f32.mrb[0].mxu0
    %v6831 = vadd.f32 0.0, %v6830
    %v6832 = vpop.f32.mrb[0].mxu0
    %6833 = vmatprep.mubr.f32.mxu0 0.0
    %6834 = vmatmul.mubr.f32.gmra.mrb[0].mxu0 %v6754
    %v6835 = vpop.f32.mrb[0].mxu0
    %v6836 = vadd.f32 0.0, %v6835
    %v6837 = vpop.f32.mrb[0].mxu0
    %6838 = vmatprep.mubr.f32.mxu0 0.0
    %6839 = vmatmul.mubr.f32.gmra.mrb[0].mxu0 %v6757
    %v6840 = vpop.f32.mrb[0].mxu0
    %v6841 = vadd.f32 0.0, %v6840
    %v6842 = vpop.f32.mrb[0].mxu0
    %6843 = vdwg.mxu0
    %v6845 = vrot.slane %v6166, 4
    %v6847 = vsel %vm706, %v6826, 0
    %v6850 = vsel %vm706, %v6831, 0
    %v6853 = vsel %vm706, %v6836, 0
    %v6856 = vsel %vm706, %v6841, 0
    %v6858 = vsel %vm800, %v6845, 0
    %6860 = vmatprep.subr.mxu0 0.0
    %6861 = vmatpush1.msra.mxu0 %v6858
    %6862 = vmatprep.subr.mxu0 0.0
    %6863 = vmatpush1.msra.mxu0 0.0
    %6864 = vmatprep.subr.mxu0 0.0
    %6865 = vmatpush1.msra.mxu0 0.0
    %6866 = vmatprep.subr.mxu0 0.0
    %6867 = vmatpush1.msra.mxu0 0.0
    %6868 = vmatprep.subr.mxu0 0.0
    %6869 = vmatpush1.msra.mxu0 0.0
    %6870 = vmatprep.subr.mxu0 0.0
    %6871 = vmatpush1.msra.mxu0 0.0
    %6872 = vmatprep.subr.mxu0 0.0
    %6873 = vmatpush1.msra.mxu0 0.0
    %6874 = vmatprep.subr.mxu0 0.0
    %6875 = vmatpush1.msra.mxu0 0.0
    %6876 = vmatprep.subr.mxu0 0.0
    %6877 = vmatpush1.msra.mxu0 0.0
    %6878 = vmatprep.subr.mxu0 0.0
    %6879 = vmatpush1.msra.mxu0 0.0
    %6880 = vmatprep.subr.mxu0 0.0
    %6881 = vmatpush1.msra.mxu0 0.0
    %6882 = vmatprep.subr.mxu0 0.0
    %6883 = vmatpush1.msra.mxu0 0.0
    %6884 = vmatprep.subr.mxu0 0.0
    %6885 = vmatpush1.msra.mxu0 0.0
    %6886 = vmatprep.subr.mxu0 0.0
    %6887 = vmatpush1.msra.mxu0 0.0
    %6888 = vmatprep.subr.mxu0 0.0
    %6889 = vmatpush1.msra.mxu0 0.0
    %6890 = vmatprep.subr.mxu0 0.0
    %6891 = vmatpush1.msra.mxu0 0.0
    %6892 = vmatprep.subr.mxu0 0.0
    %6893 = vmatpush1.msra.mxu0 0.0
    %6894 = vmatprep.subr.mxu0 0.0
    %6895 = vmatpush1.msra.mxu0 0.0
    %6896 = vmatprep.subr.mxu0 0.0
    %6897 = vmatpush1.msra.mxu0 0.0
    %6898 = vmatprep.subr.mxu0 0.0
    %6899 = vmatpush1.msra.mxu0 0.0
    %6900 = vmatprep.subr.mxu0 0.0
    %6901 = vmatpush1.msra.mxu0 0.0
    %6902 = vmatprep.subr.mxu0 0.0
    %6903 = vmatpush1.msra.mxu0 0.0
    %6904 = vmatprep.subr.mxu0 0.0
    %6905 = vmatpush1.msra.mxu0 0.0
    %6906 = vmatprep.subr.mxu0 0.0
    %6907 = vmatpush1.msra.mxu0 0.0
    %6908 = vmatprep.subr.mxu0 0.0
    %6909 = vmatpush1.msra.mxu0 0.0
    %6910 = vmatprep.subr.mxu0 0.0
    %6911 = vmatpush1.msra.mxu0 0.0
    %6912 = vmatprep.subr.mxu0 0.0
    %6913 = vmatpush1.msra.mxu0 0.0
    %6914 = vmatprep.subr.mxu0 0.0
    %6915 = vmatpush1.msra.mxu0 0.0
    %6916 = vmatprep.subr.mxu0 0.0
    %6917 = vmatpush1.msra.mxu0 0.0
    %6918 = vmatprep.subr.mxu0 0.0
    %6919 = vmatpush1.msra.mxu0 0.0
    %6920 = vmatprep.subr.mxu0 0.0
    %6921 = vmatpush1.msra.mxu0 0.0
    %6922 = vmatprep.subr.mxu0 0.0
    %6923 = vmatpush1.msra.mxu0 0.0
    %6924 = vmatprep.mubr.f32.mxu0 0.0
    %6925 = vmatmul.mubr.f32.gmra.mrb[0].mxu0 %v6847
    %v6926 = vpop.f32.mrb[0].mxu0
    %v6927 = vadd.f32 0.0, %v6926
    %v6928 = vpop.f32.mrb[0].mxu0
    %6929 = vmatprep.mubr.f32.mxu0 0.0
    %6930 = vmatmul.mubr.f32.gmra.mrb[0].mxu0 %v6850
    %v6931 = vpop.f32.mrb[0].mxu0
    %v6932 = vadd.f32 0.0, %v6931
    %v6933 = vpop.f32.mrb[0].mxu0
    %6934 = vmatprep.mubr.f32.mxu0 0.0
    %6935 = vmatmul.mubr.f32.gmra.mrb[0].mxu0 %v6853
    %v6936 = vpop.f32.mrb[0].mxu0
    %v6937 = vadd.f32 0.0, %v6936
    %v6938 = vpop.f32.mrb[0].mxu0
    %6939 = vmatprep.mubr.f32.mxu0 0.0
    %6940 = vmatmul.mubr.f32.gmra.mrb[0].mxu0 %v6856
    %v6941 = vpop.f32.mrb[0].mxu0
    %v6942 = vadd.f32 0.0, %v6941
    %v6943 = vpop.f32.mrb[0].mxu0
    %6944 = vdwg.mxu0
    %v6946 = vsel %vm706, %v6556, 0
    %v6949 = vsel %vm706, %v6561, 0
    %v6952 = vsel %vm706, %v6566, 0
    %v6955 = vsel %vm706, %v6571, 0
    %v6957 = vsel %vm800, %v6166, 0
    %6959 = vmatprep.subr.mxu0 0.0
    %6960 = vmatpush1.msra.mxu0 %v6957
    %6961 = vmatprep.subr.mxu0 0.0
    %6962 = vmatpush1.msra.mxu0 0.0
    %6963 = vmatprep.subr.mxu0 0.0
    %6964 = vmatpush1.msra.mxu0 0.0
    %6965 = vmatprep.subr.mxu0 0.0
    %6966 = vmatpush1.msra.mxu0 0.0
    %6967 = vmatprep.subr.mxu0 0.0
    %6968 = vmatpush1.msra.mxu0 0.0
    %6969 = vmatprep.subr.mxu0 0.0
    %6970 = vmatpush1.msra.mxu0 0.0
    %6971 = vmatprep.subr.mxu0 0.0
    %6972 = vmatpush1.msra.mxu0 0.0
    %6973 = vmatprep.subr.mxu0 0.0
    %6974 = vmatpush1.msra.mxu0 0.0
    %6975 = vmatprep.subr.mxu0 0.0
    %6976 = vmatpush1.msra.mxu0 0.0
    %6977 = vmatprep.subr.mxu0 0.0
    %6978 = vmatpush1.msra.mxu0 0.0
    %6979 = vmatprep.subr.mxu0 0.0
    %6980 = vmatpush1.msra.mxu0 0.0
    %6981 = vmatprep.subr.mxu0 0.0
    %6982 = vmatpush1.msra.mxu0 0.0
    %6983 = vmatprep.subr.mxu0 0.0
    %6984 = vmatpush1.msra.mxu0 0.0
    %6985 = vmatprep.subr.mxu0 0.0
    %6986 = vmatpush1.msra.mxu0 0.0
    %6987 = vmatprep.subr.mxu0 0.0
    %6988 = vmatpush1.msra.mxu0 0.0
    %6989 = vmatprep.subr.mxu0 0.0
    %6990 = vmatpush1.msra.mxu0 0.0
    %6991 = vmatprep.subr.mxu0 0.0
    %6992 = vmatpush1.msra.mxu0 0.0
    %6993 = vmatprep.subr.mxu0 0.0
    %6994 = vmatpush1.msra.mxu0 0.0
    %6995 = vmatprep.subr.mxu0 0.0
    %6996 = vmatpush1.msra.mxu0 0.0
    %6997 = vmatprep.subr.mxu0 0.0
    %6998 = vmatpush1.msra.mxu0 0.0
    %6999 = vmatprep.subr.mxu0 0.0
    %7000 = vmatpush1.msra.mxu0 0.0
    %7001 = vmatprep.subr.mxu0 0.0
    %7002 = vmatpush1.msra.mxu0 0.0
    %7003 = vmatprep.subr.mxu0 0.0
    %7004 = vmatpush1.msra.mxu0 0.0
    %7005 = vmatprep.subr.mxu0 0.0
    %7006 = vmatpush1.msra.mxu0 0.0
    %7007 = vmatprep.subr.mxu0 0.0
    %7008 = vmatpush1.msra.mxu0 0.0
    %7009 = vmatprep.subr.mxu0 0.0
    %7010 = vmatpush1.msra.mxu0 0.0
    %7011 = vmatprep.subr.mxu0 0.0
    %7012 = vmatpush1.msra.mxu0 0.0
    %7013 = vmatprep.subr.mxu0 0.0
    %7014 = vmatpush1.msra.mxu0 0.0
    %7015 = vmatprep.subr.mxu0 0.0
    %7016 = vmatpush1.msra.mxu0 0.0
    %7017 = vmatprep.subr.mxu0 0.0
    %7018 = vmatpush1.msra.mxu0 0.0
    %7019 = vmatprep.subr.mxu0 0.0
    %7020 = vmatpush1.msra.mxu0 0.0
    %7021 = vmatprep.subr.mxu0 0.0
    %7022 = vmatpush1.msra.mxu0 0.0
    %7023 = vmatprep.mubr.f32.mxu0 0.0
    %7024 = vmatmul.mubr.f32.gmra.mrb[0].mxu0 %v6946
    %v7025 = vpop.f32.mrb[0].mxu0
    %v7026 = vadd.f32 %v6927, %v7025
    %v7027 = vpop.f32.mrb[0].mxu0
    %7028 = vmatprep.mubr.f32.mxu0 0.0
    %7029 = vmatmul.mubr.f32.gmra.mrb[0].mxu0 %v6949
    %v7030 = vpop.f32.mrb[0].mxu0
    %v7031 = vadd.f32 %v6932, %v7030
    %v7032 = vpop.f32.mrb[0].mxu0
    %7033 = vmatprep.mubr.f32.mxu0 0.0
    %7034 = vmatmul.mubr.f32.gmra.mrb[0].mxu0 %v6952
    %v7035 = vpop.f32.mrb[0].mxu0
    %v7036 = vadd.f32 %v6937, %v7035
    %v7037 = vpop.f32.mrb[0].mxu0
    %7038 = vmatprep.mubr.f32.mxu0 0.0
    %7039 = vmatmul.mubr.f32.gmra.mrb[0].mxu0 %v6955
    %v7040 = vpop.f32.mrb[0].mxu0
    %v7041 = vadd.f32 %v6942, %v7040
    %v7042 = vpop.f32.mrb[0].mxu0
    %7043 = vdwg.mxu0
    %7044 = vrot.lane.b32.xlu0 %v6300, 120
    %v7045 = vpop.permute.xlu0 %7044
    %7046 = vrot.lane.b32.xlu0 %v6301, 120
    %v7047 = vpop.permute.xlu0 %7046
    %7048 = vrot.lane.b32.xlu0 %v6302, 120
    %v7049 = vpop.permute.xlu0 %7048
    %7050 = vrot.lane.b32.xlu0 %v6303, 120
    %v7051 = vpop.permute.xlu0 %7050
    %7052 = vrot.lane.b32.xlu0 %v6282, 88
    %v7053 = vpop.permute.xlu0 %7052
    %7054 = vrot.lane.b32.xlu0 %v6287, 88
    %v7055 = vpop.permute.xlu0 %7054
    %7056 = vrot.lane.b32.xlu0 %v6292, 88
    %v7057 = vpop.permute.xlu0 %7056
    %7058 = vrot.lane.b32.xlu0 %v6297, 88
    %v7059 = vpop.permute.xlu0 %7058
    %v7060 = vsel %vm706, %v7045, 0
    %v7062 = vsel %vm706, %v7047, 0
    %v7064 = vsel %vm706, %v7049, 0
    %v7066 = vsel %vm706, %v7051, 0
    %v7068 = vsel %vm706, %v7053, 0
    %v7070 = vsel %vm706, %v7055, 0
    %v7072 = vsel %vm706, %v7057, 0
    %v7074 = vsel %vm706, %v7059, 0
    %7076 = vmatprep.subr.mxu0 0.0
    %7077 = vmatpush1.xpose.msra.mxu0 %v7068
    %7078 = vmatprep.subr.mxu0 0.0
    %7079 = vmatpush1.xpose.msra.mxu0 %v7070
    %7080 = vmatprep.subr.mxu0 0.0
    %7081 = vmatpush1.xpose.msra.mxu0 %v7072
    %7082 = vmatprep.subr.mxu0 0.0
    %7083 = vmatpush1.xpose.msra.mxu0 %v7074
    %7084 = vmatprep.subr.mxu0 0.0
    %7085 = vmatpush1.xpose.msra.mxu0 0.0
    %7086 = vmatprep.subr.mxu0 0.0
    %7087 = vmatpush1.xpose.msra.mxu0 0.0
    %7088 = vmatprep.subr.mxu0 0.0
    %7089 = vmatpush1.xpose.msra.mxu0 0.0
    %7090 = vmatprep.subr.mxu0 0.0
    %7091 = vmatpush1.xpose.msra.mxu0 0.0
    %7092 = vmatprep.subr.mxu0 0.0
    %7093 = vmatpush1.xpose.msra.mxu0 0.0
    %7094 = vmatprep.subr.mxu0 0.0
    %7095 = vmatpush1.xpose.msra.mxu0 0.0
    %7096 = vmatprep.subr.mxu0 0.0
    %7097 = vmatpush1.xpose.msra.mxu0 0.0
    %7098 = vmatprep.subr.mxu0 0.0
    %7099 = vmatpush1.xpose.msra.mxu0 0.0
    %7100 = vmatprep.subr.mxu0 0.0
    %7101 = vmatpush1.xpose.msra.mxu0 0.0
    %7102 = vmatprep.subr.mxu0 0.0
    %7103 = vmatpush1.xpose.msra.mxu0 0.0
    %7104 = vmatprep.subr.mxu0 0.0
    %7105 = vmatpush1.xpose.msra.mxu0 0.0
    %7106 = vmatprep.subr.mxu0 0.0
    %7107 = vmatpush1.xpose.msra.mxu0 0.0
    %7108 = vmatprep.subr.mxu0 0.0
    %7109 = vmatpush1.xpose.msra.mxu0 0.0
    %7110 = vmatprep.subr.mxu0 0.0
    %7111 = vmatpush1.xpose.msra.mxu0 0.0
    %7112 = vmatprep.subr.mxu0 0.0
    %7113 = vmatpush1.xpose.msra.mxu0 0.0
    %7114 = vmatprep.subr.mxu0 0.0
    %7115 = vmatpush1.xpose.msra.mxu0 0.0
    %7116 = vmatprep.subr.mxu0 0.0
    %7117 = vmatpush1.xpose.msra.mxu0 0.0
    %7118 = vmatprep.subr.mxu0 0.0
    %7119 = vmatpush1.xpose.msra.mxu0 0.0
    %7120 = vmatprep.subr.mxu0 0.0
    %7121 = vmatpush1.xpose.msra.mxu0 0.0
    %7122 = vmatprep.subr.mxu0 0.0
    %7123 = vmatpush1.xpose.msra.mxu0 0.0
    %7124 = vmatprep.subr.mxu0 0.0
    %7125 = vmatpush1.xpose.msra.mxu0 0.0
    %7126 = vmatprep.subr.mxu0 0.0
    %7127 = vmatpush1.xpose.msra.mxu0 0.0
    %7128 = vmatprep.subr.mxu0 0.0
    %7129 = vmatpush1.xpose.msra.mxu0 0.0
    %7130 = vmatprep.subr.mxu0 0.0
    %7131 = vmatpush1.xpose.msra.mxu0 0.0
    %7132 = vmatprep.subr.mxu0 0.0
    %7133 = vmatpush1.xpose.msra.mxu0 0.0
    %7134 = vmatprep.subr.mxu0 0.0
    %7135 = vmatpush1.xpose.msra.mxu0 0.0
    %7136 = vmatprep.subr.mxu0 0.0
    %7137 = vmatpush1.xpose.msra.mxu0 0.0
    %7138 = vmatprep.subr.mxu0 0.0
    %7139 = vmatpush1.xpose.msra.mxu0 0.0
    %7140 = vmatprep.mubr.f32.mxu0 0.0
    %7141 = vmatmul.mubr.f32.gmra.mrb[0].mxu0 %v7060
    %v7142 = vpop.f32.mrb[0].mxu0
    %v7143 = vadd.f32 %v2669, %v7142
    %v7144 = vpop.f32.mrb[0].mxu0
    %7145 = vmatprep.mubr.f32.mxu0 0.0
    %7146 = vmatmul.mubr.f32.gmra.mrb[0].mxu0 %v7062
    %v7147 = vpop.f32.mrb[0].mxu0
    %v7148 = vadd.f32 %v2670, %v7147
    %v7149 = vpop.f32.mrb[0].mxu0
    %7150 = vmatprep.mubr.f32.mxu0 0.0
    %7151 = vmatmul.mubr.f32.gmra.mrb[0].mxu0 %v7064
    %v7152 = vpop.f32.mrb[0].mxu0
    %v7153 = vadd.f32 %v2671, %v7152
    %v7154 = vpop.f32.mrb[0].mxu0
    %7155 = vmatprep.mubr.f32.mxu0 0.0
    %7156 = vmatmul.mubr.f32.gmra.mrb[0].mxu0 %v7066
    %v7157 = vpop.f32.mrb[0].mxu0
    %v7158 = vadd.f32 %v2672, %v7157
    %v7159 = vpop.f32.mrb[0].mxu0
    %7160 = vdwg.mxu0
    %v7161 = vsel %vm628, %v7143, -inf
    %7162 = vmax.xlane.f32.xlu0 %v7161
    %v7163 = vpop.xlane.xlu0 %7162
    %v7164 = vsel %vm628, %v7148, -inf
    %7165 = vmax.xlane.f32.xlu0 %v7164
    %v7166 = vpop.xlane.xlu0 %7165
    %v7167 = vsel %vm628, %v7153, -inf
    %7168 = vmax.xlane.f32.xlu0 %v7167
    %v7169 = vpop.xlane.xlu0 %7168
    %v7170 = vsel %vm628, %v7158, -inf
    %7171 = vmax.xlane.f32.xlu0 %v7170
    %v7172 = vpop.xlane.xlu0 %7171
    %v7173 = vsub.f32 %v7143, %v7163
    %v7174 = vsub.f32 %v7148, %v7166
    %v7175 = vsub.f32 %v7153, %v7169
    %v7176 = vsub.f32 %v7158, %v7172
    %v7177 = vmul.f32 %v7173, 1.442695
    %v7178 = vpow.pop %v7177
    %v7179 = vmul.f32 %v7174, 1.442695
    %v7180 = vpow.pop %v7179
    %v7181 = vmul.f32 %v7175, 1.442695
    %v7182 = vpow.pop %v7181
    %v7183 = vmul.f32 %v7176, 1.442695
    %v7184 = vpow.pop %v7183
    %v7185 = vsel %vm628, %v7178, 0.0
    %7186 = vadd.xlane.f32.xlu0 %v7185
    %v7187 = vpop.xlane.xlu0 %7186
    %v7188 = vsel %vm628, %v7180, 0.0
    %7189 = vadd.xlane.f32.xlu0 %v7188
    %v7190 = vpop.xlane.xlu0 %7189
    %v7191 = vsel %vm628, %v7182, 0.0
    %7192 = vadd.xlane.f32.xlu0 %v7191
    %v7193 = vpop.xlane.xlu0 %7192
    %v7194 = vsel %vm628, %v7184, 0.0
    %7195 = vadd.xlane.f32.xlu0 %v7194
    %v7196 = vpop.xlane.xlu0 %7195
    %v7197 = vrcp.pop %v7187
    %v7198 = vrcp.pop %v7190
    %v7199 = vrcp.pop %v7193
    %v7200 = vrcp.pop %v7196
    %v7201 = vmul.f32 %v7178, %v7197
    %v7202 = vmul.f32 %v7180, %v7198
    %v7203 = vmul.f32 %v7182, %v7199
    %v7204 = vmul.f32 %v7184, %v7200
    %7205 = vrot.lane.b32.xlu0 %v6282, 56
    %v7206 = vpop.permute.xlu0 %7205
    %7207 = vrot.lane.b32.xlu0 %v6287, 56
    %v7208 = vpop.permute.xlu0 %7207
    %7209 = vrot.lane.b32.xlu0 %v6292, 56
    %v7210 = vpop.permute.xlu0 %7209
    %7211 = vrot.lane.b32.xlu0 %v6297, 56
    %v7212 = vpop.permute.xlu0 %7211
    %v7218 = vsel %vm628, %v7201, 0
    %v7221 = vsel %vm628, %v7202, 0
    %v7224 = vsel %vm628, %v7203, 0
    %v7227 = vsel %vm628, %v7204, 0
    %7229 = vmatprep.subr.mxu0 0.0
    %7230 = vmatpush1.msra.mxu0 %v7206
    %7231 = vmatprep.subr.mxu0 0.0
    %7232 = vmatpush1.msra.mxu0 %v7208
    %7233 = vmatprep.subr.mxu0 0.0
    %7234 = vmatpush1.msra.mxu0 %v7210
    %7235 = vmatprep.subr.mxu0 0.0
    %7236 = vmatpush1.msra.mxu0 %v7212
    %7237 = vmatprep.subr.mxu0 0.0
    %7238 = vmatpush1.msra.mxu0 0.0
    %7239 = vmatprep.subr.mxu0 0.0
    %7240 = vmatpush1.msra.mxu0 0.0
    %7241 = vmatprep.subr.mxu0 0.0
    %7242 = vmatpush1.msra.mxu0 0.0
    %7243 = vmatprep.subr.mxu0 0.0
    %7244 = vmatpush1.msra.mxu0 0.0
    %7245 = vmatprep.subr.mxu0 0.0
    %7246 = vmatpush1.msra.mxu0 0.0
    %7247 = vmatprep.subr.mxu0 0.0
    %7248 = vmatpush1.msra.mxu0 0.0
    %7249 = vmatprep.subr.mxu0 0.0
    %7250 = vmatpush1.msra.mxu0 0.0
    %7251 = vmatprep.subr.mxu0 0.0
    %7252 = vmatpush1.msra.mxu0 0.0
    %7253 = vmatprep.subr.mxu0 0.0
    %7254 = vmatpush1.msra.mxu0 0.0
    %7255 = vmatprep.subr.mxu0 0.0
    %7256 = vmatpush1.msra.mxu0 0.0
    %7257 = vmatprep.subr.mxu0 0.0
    %7258 = vmatpush1.msra.mxu0 0.0
    %7259 = vmatprep.subr.mxu0 0.0
    %7260 = vmatpush1.msra.mxu0 0.0
    %7261 = vmatprep.subr.mxu0 0.0
    %7262 = vmatpush1.msra.mxu0 0.0
    %7263 = vmatprep.subr.mxu0 0.0
    %7264 = vmatpush1.msra.mxu0 0.0
    %7265 = vmatprep.subr.mxu0 0.0
    %7266 = vmatpush1.msra.mxu0 0.0
    %7267 = vmatprep.subr.mxu0 0.0
    %7268 = vmatpush1.msra.mxu0 0.0
    %7269 = vmatprep.subr.mxu0 0.0
    %7270 = vmatpush1.msra.mxu0 0.0
    %7271 = vmatprep.subr.mxu0 0.0
    %7272 = vmatpush1.msra.mxu0 0.0
    %7273 = vmatprep.subr.mxu0 0.0
    %7274 = vmatpush1.msra.mxu0 0.0
    %7275 = vmatprep.subr.mxu0 0.0
    %7276 = vmatpush1.msra.mxu0 0.0
    %7277 = vmatprep.subr.mxu0 0.0
    %7278 = vmatpush1.msra.mxu0 0.0
    %7279 = vmatprep.subr.mxu0 0.0
    %7280 = vmatpush1.msra.mxu0 0.0
    %7281 = vmatprep.subr.mxu0 0.0
    %7282 = vmatpush1.msra.mxu0 0.0
    %7283 = vmatprep.subr.mxu0 0.0
    %7284 = vmatpush1.msra.mxu0 0.0
    %7285 = vmatprep.subr.mxu0 0.0
    %7286 = vmatpush1.msra.mxu0 0.0
    %7287 = vmatprep.subr.mxu0 0.0
    %7288 = vmatpush1.msra.mxu0 0.0
    %7289 = vmatprep.subr.mxu0 0.0
    %7290 = vmatpush1.msra.mxu0 0.0
    %7291 = vmatprep.subr.mxu0 0.0
    %7292 = vmatpush1.msra.mxu0 0.0
    %7293 = vmatprep.mubr.f32.mxu0 0.0
    %7294 = vmatmul.mubr.f32.gmra.mrb[0].mxu0 %v7218
    %v7295 = vpop.f32.mrb[0].mxu0
    %v7296 = vadd.f32 0.0, %v7295
    %v7297 = vpop.f32.mrb[0].mxu0
    %7298 = vmatprep.mubr.f32.mxu0 0.0
    %7299 = vmatmul.mubr.f32.gmra.mrb[0].mxu0 %v7221
    %v7300 = vpop.f32.mrb[0].mxu0
    %v7301 = vadd.f32 0.0, %v7300
    %v7302 = vpop.f32.mrb[0].mxu0
    %7303 = vmatprep.mubr.f32.mxu0 0.0
    %7304 = vmatmul.mubr.f32.gmra.mrb[0].mxu0 %v7224
    %v7305 = vpop.f32.mrb[0].mxu0
    %v7306 = vadd.f32 0.0, %v7305
    %v7307 = vpop.f32.mrb[0].mxu0
    %7308 = vmatprep.mubr.f32.mxu0 0.0
    %7309 = vmatmul.mubr.f32.gmra.mrb[0].mxu0 %v7227
    %v7310 = vpop.f32.mrb[0].mxu0
    %v7311 = vadd.f32 0.0, %v7310
    %v7312 = vpop.f32.mrb[0].mxu0
    %7313 = vdwg.mxu0
    %v7315 = vsel %vm706, %v7296, 0
    %v7318 = vsel %vm706, %v7301, 0
    %v7321 = vsel %vm706, %v7306, 0
    %v7324 = vsel %vm706, %v7311, 0
    %v7327 = vsel %vm800, %v6167, 0
    %7329 = vmatprep.subr.mxu0 0.0
    %7330 = vmatpush1.msra.mxu0 %v7327
    %7331 = vmatprep.subr.mxu0 0.0
    %7332 = vmatpush1.msra.mxu0 0.0
    %7333 = vmatprep.subr.mxu0 0.0
    %7334 = vmatpush1.msra.mxu0 0.0
    %7335 = vmatprep.subr.mxu0 0.0
    %7336 = vmatpush1.msra.mxu0 0.0
    %7337 = vmatprep.subr.mxu0 0.0
    %7338 = vmatpush1.msra.mxu0 0.0
    %7339 = vmatprep.subr.mxu0 0.0
    %7340 = vmatpush1.msra.mxu0 0.0
    %7341 = vmatprep.subr.mxu0 0.0
    %7342 = vmatpush1.msra.mxu0 0.0
    %7343 = vmatprep.subr.mxu0 0.0
    %7344 = vmatpush1.msra.mxu0 0.0
    %7345 = vmatprep.subr.mxu0 0.0
    %7346 = vmatpush1.msra.mxu0 0.0
    %7347 = vmatprep.subr.mxu0 0.0
    %7348 = vmatpush1.msra.mxu0 0.0
    %7349 = vmatprep.subr.mxu0 0.0
    %7350 = vmatpush1.msra.mxu0 0.0
    %7351 = vmatprep.subr.mxu0 0.0
    %7352 = vmatpush1.msra.mxu0 0.0
    %7353 = vmatprep.subr.mxu0 0.0
    %7354 = vmatpush1.msra.mxu0 0.0
    %7355 = vmatprep.subr.mxu0 0.0
    %7356 = vmatpush1.msra.mxu0 0.0
    %7357 = vmatprep.subr.mxu0 0.0
    %7358 = vmatpush1.msra.mxu0 0.0
    %7359 = vmatprep.subr.mxu0 0.0
    %7360 = vmatpush1.msra.mxu0 0.0
    %7361 = vmatprep.subr.mxu0 0.0
    %7362 = vmatpush1.msra.mxu0 0.0
    %7363 = vmatprep.subr.mxu0 0.0
    %7364 = vmatpush1.msra.mxu0 0.0
    %7365 = vmatprep.subr.mxu0 0.0
    %7366 = vmatpush1.msra.mxu0 0.0
    %7367 = vmatprep.subr.mxu0 0.0
    %7368 = vmatpush1.msra.mxu0 0.0
    %7369 = vmatprep.subr.mxu0 0.0
    %7370 = vmatpush1.msra.mxu0 0.0
    %7371 = vmatprep.subr.mxu0 0.0
    %7372 = vmatpush1.msra.mxu0 0.0
    %7373 = vmatprep.subr.mxu0 0.0
    %7374 = vmatpush1.msra.mxu0 0.0
    %7375 = vmatprep.subr.mxu0 0.0
    %7376 = vmatpush1.msra.mxu0 0.0
    %7377 = vmatprep.subr.mxu0 0.0
    %7378 = vmatpush1.msra.mxu0 0.0
    %7379 = vmatprep.subr.mxu0 0.0
    %7380 = vmatpush1.msra.mxu0 0.0
    %7381 = vmatprep.subr.mxu0 0.0
    %7382 = vmatpush1.msra.mxu0 0.0
    %7383 = vmatprep.subr.mxu0 0.0
    %7384 = vmatpush1.msra.mxu0 0.0
    %7385 = vmatprep.subr.mxu0 0.0
    %7386 = vmatpush1.msra.mxu0 0.0
    %7387 = vmatprep.subr.mxu0 0.0
    %7388 = vmatpush1.msra.mxu0 0.0
    %7389 = vmatprep.subr.mxu0 0.0
    %7390 = vmatpush1.msra.mxu0 0.0
    %7391 = vmatprep.subr.mxu0 0.0
    %7392 = vmatpush1.msra.mxu0 0.0
    %7393 = vmatprep.mubr.f32.mxu0 0.0
    %7394 = vmatmul.mubr.f32.gmra.mrb[0].mxu0 %v7315
    %v7395 = vpop.f32.mrb[0].mxu0
    %v7396 = vadd.f32 0.0, %v7395
    %v7397 = vpop.f32.mrb[0].mxu0
    %7398 = vmatprep.mubr.f32.mxu0 0.0
    %7399 = vmatmul.mubr.f32.gmra.mrb[0].mxu0 %v7318
    %v7400 = vpop.f32.mrb[0].mxu0
    %v7401 = vadd.f32 0.0, %v7400
    %v7402 = vpop.f32.mrb[0].mxu0
    %7403 = vmatprep.mubr.f32.mxu0 0.0
    %7404 = vmatmul.mubr.f32.gmra.mrb[0].mxu0 %v7321
    %v7405 = vpop.f32.mrb[0].mxu0
    %v7406 = vadd.f32 0.0, %v7405
    %v7407 = vpop.f32.mrb[0].mxu0
    %7408 = vmatprep.mubr.f32.mxu0 0.0
    %7409 = vmatmul.mubr.f32.gmra.mrb[0].mxu0 %v7324
    %v7410 = vpop.f32.mrb[0].mxu0
    %v7411 = vadd.f32 0.0, %v7410
    %v7412 = vpop.f32.mrb[0].mxu0
    %7413 = vdwg.mxu0
    %v7414 = vadd.f32 %v7026, %v7396
    %v7415 = vadd.f32 %v7031, %v7401
    %v7416 = vadd.f32 %v7036, %v7406
    %v7417 = vadd.f32 %v7041, %v7411
    %7418 = vrot.lane.b32.xlu0 %v6300, 116
    %v7419 = vpop.permute.xlu0 %7418
    %7420 = vrot.lane.b32.xlu0 %v6301, 116
    %v7421 = vpop.permute.xlu0 %7420
    %7422 = vrot.lane.b32.xlu0 %v6302, 116
    %v7423 = vpop.permute.xlu0 %7422
    %7424 = vrot.lane.b32.xlu0 %v6303, 116
    %v7425 = vpop.permute.xlu0 %7424
    %7426 = vrot.lane.b32.xlu0 %v6282, 84
    %v7427 = vpop.permute.xlu0 %7426
    %7428 = vrot.lane.b32.xlu0 %v6287, 84
    %v7429 = vpop.permute.xlu0 %7428
    %7430 = vrot.lane.b32.xlu0 %v6292, 84
    %v7431 = vpop.permute.xlu0 %7430
    %7432 = vrot.lane.b32.xlu0 %v6297, 84
    %v7433 = vpop.permute.xlu0 %7432
    %v7434 = vsel %vm706, %v7419, 0
    %v7436 = vsel %vm706, %v7421, 0
    %v7438 = vsel %vm706, %v7423, 0
    %v7440 = vsel %vm706, %v7425, 0
    %v7442 = vsel %vm706, %v7427, 0
    %v7444 = vsel %vm706, %v7429, 0
    %v7446 = vsel %vm706, %v7431, 0
    %v7448 = vsel %vm706, %v7433, 0
    %7450 = vmatprep.subr.mxu0 0.0
    %7451 = vmatpush1.xpose.msra.mxu0 %v7442
    %7452 = vmatprep.subr.mxu0 0.0
    %7453 = vmatpush1.xpose.msra.mxu0 %v7444
    %7454 = vmatprep.subr.mxu0 0.0
    %7455 = vmatpush1.xpose.msra.mxu0 %v7446
    %7456 = vmatprep.subr.mxu0 0.0
    %7457 = vmatpush1.xpose.msra.mxu0 %v7448
    %7458 = vmatprep.subr.mxu0 0.0
    %7459 = vmatpush1.xpose.msra.mxu0 0.0
    %7460 = vmatprep.subr.mxu0 0.0
    %7461 = vmatpush1.xpose.msra.mxu0 0.0
    %7462 = vmatprep.subr.mxu0 0.0
    %7463 = vmatpush1.xpose.msra.mxu0 0.0
    %7464 = vmatprep.subr.mxu0 0.0
    %7465 = vmatpush1.xpose.msra.mxu0 0.0
    %7466 = vmatprep.subr.mxu0 0.0
    %7467 = vmatpush1.xpose.msra.mxu0 0.0
    %7468 = vmatprep.subr.mxu0 0.0
    %7469 = vmatpush1.xpose.msra.mxu0 0.0
    %7470 = vmatprep.subr.mxu0 0.0
    %7471 = vmatpush1.xpose.msra.mxu0 0.0
    %7472 = vmatprep.subr.mxu0 0.0
    %7473 = vmatpush1.xpose.msra.mxu0 0.0
    %7474 = vmatprep.subr.mxu0 0.0
    %7475 = vmatpush1.xpose.msra.mxu0 0.0
    %7476 = vmatprep.subr.mxu0 0.0
    %7477 = vmatpush1.xpose.msra.mxu0 0.0
    %7478 = vmatprep.subr.mxu0 0.0
    %7479 = vmatpush1.xpose.msra.mxu0 0.0
    %7480 = vmatprep.subr.mxu0 0.0
    %7481 = vmatpush1.xpose.msra.mxu0 0.0
    %7482 = vmatprep.subr.mxu0 0.0
    %7483 = vmatpush1.xpose.msra.mxu0 0.0
    %7484 = vmatprep.subr.mxu0 0.0
    %7485 = vmatpush1.xpose.msra.mxu0 0.0
    %7486 = vmatprep.subr.mxu0 0.0
    %7487 = vmatpush1.xpose.msra.mxu0 0.0
    %7488 = vmatprep.subr.mxu0 0.0
    %7489 = vmatpush1.xpose.msra.mxu0 0.0
    %7490 = vmatprep.subr.mxu0 0.0
    %7491 = vmatpush1.xpose.msra.mxu0 0.0
    %7492 = vmatprep.subr.mxu0 0.0
    %7493 = vmatpush1.xpose.msra.mxu0 0.0
    %7494 = vmatprep.subr.mxu0 0.0
    %7495 = vmatpush1.xpose.msra.mxu0 0.0
    %7496 = vmatprep.subr.mxu0 0.0
    %7497 = vmatpush1.xpose.msra.mxu0 0.0
    %7498 = vmatprep.subr.mxu0 0.0
    %7499 = vmatpush1.xpose.msra.mxu0 0.0
    %7500 = vmatprep.subr.mxu0 0.0
    %7501 = vmatpush1.xpose.msra.mxu0 0.0
    %7502 = vmatprep.subr.mxu0 0.0
    %7503 = vmatpush1.xpose.msra.mxu0 0.0
    %7504 = vmatprep.subr.mxu0 0.0
    %7505 = vmatpush1.xpose.msra.mxu0 0.0
    %7506 = vmatprep.subr.mxu0 0.0
    %7507 = vmatpush1.xpose.msra.mxu0 0.0
    %7508 = vmatprep.subr.mxu0 0.0
    %7509 = vmatpush1.xpose.msra.mxu0 0.0
    %7510 = vmatprep.subr.mxu0 0.0
    %7511 = vmatpush1.xpose.msra.mxu0 0.0
    %7512 = vmatprep.subr.mxu0 0.0
    %7513 = vmatpush1.xpose.msra.mxu0 0.0
    %7514 = vmatprep.mubr.f32.mxu0 0.0
    %7515 = vmatmul.mubr.f32.gmra.mrb[0].mxu0 %v7434
    %v7516 = vpop.f32.mrb[0].mxu0
    %v7517 = vadd.f32 %v2669, %v7516
    %v7518 = vpop.f32.mrb[0].mxu0
    %7519 = vmatprep.mubr.f32.mxu0 0.0
    %7520 = vmatmul.mubr.f32.gmra.mrb[0].mxu0 %v7436
    %v7521 = vpop.f32.mrb[0].mxu0
    %v7522 = vadd.f32 %v2670, %v7521
    %v7523 = vpop.f32.mrb[0].mxu0
    %7524 = vmatprep.mubr.f32.mxu0 0.0
    %7525 = vmatmul.mubr.f32.gmra.mrb[0].mxu0 %v7438
    %v7526 = vpop.f32.mrb[0].mxu0
    %v7527 = vadd.f32 %v2671, %v7526
    %v7528 = vpop.f32.mrb[0].mxu0
    %7529 = vmatprep.mubr.f32.mxu0 0.0
    %7530 = vmatmul.mubr.f32.gmra.mrb[0].mxu0 %v7440
    %v7531 = vpop.f32.mrb[0].mxu0
    %v7532 = vadd.f32 %v2672, %v7531
    %v7533 = vpop.f32.mrb[0].mxu0
    %7534 = vdwg.mxu0
    %v7535 = vsel %vm628, %v7517, -inf
    %7536 = vmax.xlane.f32.xlu0 %v7535
    %v7537 = vpop.xlane.xlu0 %7536
    %v7538 = vsel %vm628, %v7522, -inf
    %7539 = vmax.xlane.f32.xlu0 %v7538
    %v7540 = vpop.xlane.xlu0 %7539
    %v7541 = vsel %vm628, %v7527, -inf
    %7542 = vmax.xlane.f32.xlu0 %v7541
    %v7543 = vpop.xlane.xlu0 %7542
    %v7544 = vsel %vm628, %v7532, -inf
    %7545 = vmax.xlane.f32.xlu0 %v7544
    %v7546 = vpop.xlane.xlu0 %7545
    %v7547 = vsub.f32 %v7517, %v7537
    %v7548 = vsub.f32 %v7522, %v7540
    %v7549 = vsub.f32 %v7527, %v7543
    %v7550 = vsub.f32 %v7532, %v7546
    %v7551 = vmul.f32 %v7547, 1.442695
    %v7552 = vpow.pop %v7551
    %v7553 = vmul.f32 %v7548, 1.442695
    %v7554 = vpow.pop %v7553
    %v7555 = vmul.f32 %v7549, 1.442695
    %v7556 = vpow.pop %v7555
    %v7557 = vmul.f32 %v7550, 1.442695
    %v7558 = vpow.pop %v7557
    %v7559 = vsel %vm628, %v7552, 0.0
    %7560 = vadd.xlane.f32.xlu0 %v7559
    %v7561 = vpop.xlane.xlu0 %7560
    %v7562 = vsel %vm628, %v7554, 0.0
    %7563 = vadd.xlane.f32.xlu0 %v7562
    %v7564 = vpop.xlane.xlu0 %7563
    %v7565 = vsel %vm628, %v7556, 0.0
    %7566 = vadd.xlane.f32.xlu0 %v7565
    %v7567 = vpop.xlane.xlu0 %7566
    %v7568 = vsel %vm628, %v7558, 0.0
    %7569 = vadd.xlane.f32.xlu0 %v7568
    %v7570 = vpop.xlane.xlu0 %7569
    %v7571 = vrcp.pop %v7561
    %v7572 = vrcp.pop %v7564
    %v7573 = vrcp.pop %v7567
    %v7574 = vrcp.pop %v7570
    %v7575 = vmul.f32 %v7552, %v7571
    %v7576 = vmul.f32 %v7554, %v7572
    %v7577 = vmul.f32 %v7556, %v7573
    %v7578 = vmul.f32 %v7558, %v7574
    %7579 = vrot.lane.b32.xlu0 %v6282, 52
    %v7580 = vpop.permute.xlu0 %7579
    %7581 = vrot.lane.b32.xlu0 %v6287, 52
    %v7582 = vpop.permute.xlu0 %7581
    %7583 = vrot.lane.b32.xlu0 %v6292, 52
    %v7584 = vpop.permute.xlu0 %7583
    %7585 = vrot.lane.b32.xlu0 %v6297, 52
    %v7586 = vpop.permute.xlu0 %7585
    %v7592 = vsel %vm628, %v7575, 0
    %v7595 = vsel %vm628, %v7576, 0
    %v7598 = vsel %vm628, %v7577, 0
    %v7601 = vsel %vm628, %v7578, 0
    %7603 = vmatprep.subr.mxu0 0.0
    %7604 = vmatpush1.msra.mxu0 %v7580
    %7605 = vmatprep.subr.mxu0 0.0
    %7606 = vmatpush1.msra.mxu0 %v7582
    %7607 = vmatprep.subr.mxu0 0.0
    %7608 = vmatpush1.msra.mxu0 %v7584
    %7609 = vmatprep.subr.mxu0 0.0
    %7610 = vmatpush1.msra.mxu0 %v7586
    %7611 = vmatprep.subr.mxu0 0.0
    %7612 = vmatpush1.msra.mxu0 0.0
    %7613 = vmatprep.subr.mxu0 0.0
    %7614 = vmatpush1.msra.mxu0 0.0
    %7615 = vmatprep.subr.mxu0 0.0
    %7616 = vmatpush1.msra.mxu0 0.0
    %7617 = vmatprep.subr.mxu0 0.0
    %7618 = vmatpush1.msra.mxu0 0.0
    %7619 = vmatprep.subr.mxu0 0.0
    %7620 = vmatpush1.msra.mxu0 0.0
    %7621 = vmatprep.subr.mxu0 0.0
    %7622 = vmatpush1.msra.mxu0 0.0
    %7623 = vmatprep.subr.mxu0 0.0
    %7624 = vmatpush1.msra.mxu0 0.0
    %7625 = vmatprep.subr.mxu0 0.0
    %7626 = vmatpush1.msra.mxu0 0.0
    %7627 = vmatprep.subr.mxu0 0.0
    %7628 = vmatpush1.msra.mxu0 0.0
    %7629 = vmatprep.subr.mxu0 0.0
    %7630 = vmatpush1.msra.mxu0 0.0
    %7631 = vmatprep.subr.mxu0 0.0
    %7632 = vmatpush1.msra.mxu0 0.0
    %7633 = vmatprep.subr.mxu0 0.0
    %7634 = vmatpush1.msra.mxu0 0.0
    %7635 = vmatprep.subr.mxu0 0.0
    %7636 = vmatpush1.msra.mxu0 0.0
    %7637 = vmatprep.subr.mxu0 0.0
    %7638 = vmatpush1.msra.mxu0 0.0
    %7639 = vmatprep.subr.mxu0 0.0
    %7640 = vmatpush1.msra.mxu0 0.0
    %7641 = vmatprep.subr.mxu0 0.0
    %7642 = vmatpush1.msra.mxu0 0.0
    %7643 = vmatprep.subr.mxu0 0.0
    %7644 = vmatpush1.msra.mxu0 0.0
    %7645 = vmatprep.subr.mxu0 0.0
    %7646 = vmatpush1.msra.mxu0 0.0
    %7647 = vmatprep.subr.mxu0 0.0
    %7648 = vmatpush1.msra.mxu0 0.0
    %7649 = vmatprep.subr.mxu0 0.0
    %7650 = vmatpush1.msra.mxu0 0.0
    %7651 = vmatprep.subr.mxu0 0.0
    %7652 = vmatpush1.msra.mxu0 0.0
    %7653 = vmatprep.subr.mxu0 0.0
    %7654 = vmatpush1.msra.mxu0 0.0
    %7655 = vmatprep.subr.mxu0 0.0
    %7656 = vmatpush1.msra.mxu0 0.0
    %7657 = vmatprep.subr.mxu0 0.0
    %7658 = vmatpush1.msra.mxu0 0.0
    %7659 = vmatprep.subr.mxu0 0.0
    %7660 = vmatpush1.msra.mxu0 0.0
    %7661 = vmatprep.subr.mxu0 0.0
    %7662 = vmatpush1.msra.mxu0 0.0
    %7663 = vmatprep.subr.mxu0 0.0
    %7664 = vmatpush1.msra.mxu0 0.0
    %7665 = vmatprep.subr.mxu0 0.0
    %7666 = vmatpush1.msra.mxu0 0.0
    %7667 = vmatprep.mubr.f32.mxu0 0.0
    %7668 = vmatmul.mubr.f32.gmra.mrb[0].mxu0 %v7592
    %v7669 = vpop.f32.mrb[0].mxu0
    %v7670 = vadd.f32 0.0, %v7669
    %v7671 = vpop.f32.mrb[0].mxu0
    %7672 = vmatprep.mubr.f32.mxu0 0.0
    %7673 = vmatmul.mubr.f32.gmra.mrb[0].mxu0 %v7595
    %v7674 = vpop.f32.mrb[0].mxu0
    %v7675 = vadd.f32 0.0, %v7674
    %v7676 = vpop.f32.mrb[0].mxu0
    %7677 = vmatprep.mubr.f32.mxu0 0.0
    %7678 = vmatmul.mubr.f32.gmra.mrb[0].mxu0 %v7598
    %v7679 = vpop.f32.mrb[0].mxu0
    %v7680 = vadd.f32 0.0, %v7679
    %v7681 = vpop.f32.mrb[0].mxu0
    %7682 = vmatprep.mubr.f32.mxu0 0.0
    %7683 = vmatmul.mubr.f32.gmra.mrb[0].mxu0 %v7601
    %v7684 = vpop.f32.mrb[0].mxu0
    %v7685 = vadd.f32 0.0, %v7684
    %v7686 = vpop.f32.mrb[0].mxu0
    %7687 = vdwg.mxu0
    %v7688 = vrot.slane %v6167, 4
    %v7690 = vsel %vm706, %v7670, 0
    %v7693 = vsel %vm706, %v7675, 0
    %v7696 = vsel %vm706, %v7680, 0
    %v7699 = vsel %vm706, %v7685, 0
    %v7701 = vsel %vm800, %v7688, 0
    %7703 = vmatprep.subr.mxu0 0.0
    %7704 = vmatpush1.msra.mxu0 %v7701
    %7705 = vmatprep.subr.mxu0 0.0
    %7706 = vmatpush1.msra.mxu0 0.0
    %7707 = vmatprep.subr.mxu0 0.0
    %7708 = vmatpush1.msra.mxu0 0.0
    %7709 = vmatprep.subr.mxu0 0.0
    %7710 = vmatpush1.msra.mxu0 0.0
    %7711 = vmatprep.subr.mxu0 0.0
    %7712 = vmatpush1.msra.mxu0 0.0
    %7713 = vmatprep.subr.mxu0 0.0
    %7714 = vmatpush1.msra.mxu0 0.0
    %7715 = vmatprep.subr.mxu0 0.0
    %7716 = vmatpush1.msra.mxu0 0.0
    %7717 = vmatprep.subr.mxu0 0.0
    %7718 = vmatpush1.msra.mxu0 0.0
    %7719 = vmatprep.subr.mxu0 0.0
    %7720 = vmatpush1.msra.mxu0 0.0
    %7721 = vmatprep.subr.mxu0 0.0
    %7722 = vmatpush1.msra.mxu0 0.0
    %7723 = vmatprep.subr.mxu0 0.0
    %7724 = vmatpush1.msra.mxu0 0.0
    %7725 = vmatprep.subr.mxu0 0.0
    %7726 = vmatpush1.msra.mxu0 0.0
    %7727 = vmatprep.subr.mxu0 0.0
    %7728 = vmatpush1.msra.mxu0 0.0
    %7729 = vmatprep.subr.mxu0 0.0
    %7730 = vmatpush1.msra.mxu0 0.0
    %7731 = vmatprep.subr.mxu0 0.0
    %7732 = vmatpush1.msra.mxu0 0.0
    %7733 = vmatprep.subr.mxu0 0.0
    %7734 = vmatpush1.msra.mxu0 0.0
    %7735 = vmatprep.subr.mxu0 0.0
    %7736 = vmatpush1.msra.mxu0 0.0
    %7737 = vmatprep.subr.mxu0 0.0
    %7738 = vmatpush1.msra.mxu0 0.0
    %7739 = vmatprep.subr.mxu0 0.0
    %7740 = vmatpush1.msra.mxu0 0.0
    %7741 = vmatprep.subr.mxu0 0.0
    %7742 = vmatpush1.msra.mxu0 0.0
    %7743 = vmatprep.subr.mxu0 0.0
    %7744 = vmatpush1.msra.mxu0 0.0
    %7745 = vmatprep.subr.mxu0 0.0
    %7746 = vmatpush1.msra.mxu0 0.0
    %7747 = vmatprep.subr.mxu0 0.0
    %7748 = vmatpush1.msra.mxu0 0.0
    %7749 = vmatprep.subr.mxu0 0.0
    %7750 = vmatpush1.msra.mxu0 0.0
    %7751 = vmatprep.subr.mxu0 0.0
    %7752 = vmatpush1.msra.mxu0 0.0
    %7753 = vmatprep.subr.mxu0 0.0
    %7754 = vmatpush1.msra.mxu0 0.0
    %7755 = vmatprep.subr.mxu0 0.0
    %7756 = vmatpush1.msra.mxu0 0.0
    %7757 = vmatprep.subr.mxu0 0.0
    %7758 = vmatpush1.msra.mxu0 0.0
    %7759 = vmatprep.subr.mxu0 0.0
    %7760 = vmatpush1.msra.mxu0 0.0
    %7761 = vmatprep.subr.mxu0 0.0
    %7762 = vmatpush1.msra.mxu0 0.0
    %7763 = vmatprep.subr.mxu0 0.0
    %7764 = vmatpush1.msra.mxu0 0.0
    %7765 = vmatprep.subr.mxu0 0.0
    %7766 = vmatpush1.msra.mxu0 0.0
    %7767 = vmatprep.mubr.f32.mxu0 0.0
    %7768 = vmatmul.mubr.f32.gmra.mrb[0].mxu0 %v7690
    %v7769 = vpop.f32.mrb[0].mxu0
    %v7770 = vadd.f32 0.0, %v7769
    %v7771 = vpop.f32.mrb[0].mxu0
    %7772 = vmatprep.mubr.f32.mxu0 0.0
    %7773 = vmatmul.mubr.f32.gmra.mrb[0].mxu0 %v7693
    %v7774 = vpop.f32.mrb[0].mxu0
    %v7775 = vadd.f32 0.0, %v7774
    %v7776 = vpop.f32.mrb[0].mxu0
    %7777 = vmatprep.mubr.f32.mxu0 0.0
    %7778 = vmatmul.mubr.f32.gmra.mrb[0].mxu0 %v7696
    %v7779 = vpop.f32.mrb[0].mxu0
    %v7780 = vadd.f32 0.0, %v7779
    %v7781 = vpop.f32.mrb[0].mxu0
    %7782 = vmatprep.mubr.f32.mxu0 0.0
    %7783 = vmatmul.mubr.f32.gmra.mrb[0].mxu0 %v7699
    %v7784 = vpop.f32.mrb[0].mxu0
    %v7785 = vadd.f32 0.0, %v7784
    %v7786 = vpop.f32.mrb[0].mxu0
    %7787 = vdwg.mxu0
    %v7788 = vadd.f32 %v7414, %v7770
    %v7789 = vadd.f32 %v7415, %v7775
    %v7790 = vadd.f32 %v7416, %v7780
    %v7791 = vadd.f32 %v7417, %v7785
    %7792 = vrot.lane.b32.xlu0 %v6300, 112
    %v7793 = vpop.permute.xlu0 %7792
    %7794 = vrot.lane.b32.xlu0 %v6301, 112
    %v7795 = vpop.permute.xlu0 %7794
    %7796 = vrot.lane.b32.xlu0 %v6302, 112
    %v7797 = vpop.permute.xlu0 %7796
    %7798 = vrot.lane.b32.xlu0 %v6303, 112
    %v7799 = vpop.permute.xlu0 %7798
    %7800 = vrot.lane.b32.xlu0 %v6282, 80
    %v7801 = vpop.permute.xlu0 %7800
    %7802 = vrot.lane.b32.xlu0 %v6287, 80
    %v7803 = vpop.permute.xlu0 %7802
    %7804 = vrot.lane.b32.xlu0 %v6292, 80
    %v7805 = vpop.permute.xlu0 %7804
    %7806 = vrot.lane.b32.xlu0 %v6297, 80
    %v7807 = vpop.permute.xlu0 %7806
    %v7808 = vsel %vm706, %v7793, 0
    %v7810 = vsel %vm706, %v7795, 0
    %v7812 = vsel %vm706, %v7797, 0
    %v7814 = vsel %vm706, %v7799, 0
    %v7816 = vsel %vm706, %v7801, 0
    %v7818 = vsel %vm706, %v7803, 0
    %v7820 = vsel %vm706, %v7805, 0
    %v7822 = vsel %vm706, %v7807, 0
    %7824 = vmatprep.subr.mxu0 0.0
    %7825 = vmatpush1.xpose.msra.mxu0 %v7816
    %7826 = vmatprep.subr.mxu0 0.0
    %7827 = vmatpush1.xpose.msra.mxu0 %v7818
    %7828 = vmatprep.subr.mxu0 0.0
    %7829 = vmatpush1.xpose.msra.mxu0 %v7820
    %7830 = vmatprep.subr.mxu0 0.0
    %7831 = vmatpush1.xpose.msra.mxu0 %v7822
    %7832 = vmatprep.subr.mxu0 0.0
    %7833 = vmatpush1.xpose.msra.mxu0 0.0
    %7834 = vmatprep.subr.mxu0 0.0
    %7835 = vmatpush1.xpose.msra.mxu0 0.0
    %7836 = vmatprep.subr.mxu0 0.0
    %7837 = vmatpush1.xpose.msra.mxu0 0.0
    %7838 = vmatprep.subr.mxu0 0.0
    %7839 = vmatpush1.xpose.msra.mxu0 0.0
    %7840 = vmatprep.subr.mxu0 0.0
    %7841 = vmatpush1.xpose.msra.mxu0 0.0
    %7842 = vmatprep.subr.mxu0 0.0
    %7843 = vmatpush1.xpose.msra.mxu0 0.0
    %7844 = vmatprep.subr.mxu0 0.0
    %7845 = vmatpush1.xpose.msra.mxu0 0.0
    %7846 = vmatprep.subr.mxu0 0.0
    %7847 = vmatpush1.xpose.msra.mxu0 0.0
    %7848 = vmatprep.subr.mxu0 0.0
    %7849 = vmatpush1.xpose.msra.mxu0 0.0
    %7850 = vmatprep.subr.mxu0 0.0
    %7851 = vmatpush1.xpose.msra.mxu0 0.0
    %7852 = vmatprep.subr.mxu0 0.0
    %7853 = vmatpush1.xpose.msra.mxu0 0.0
    %7854 = vmatprep.subr.mxu0 0.0
    %7855 = vmatpush1.xpose.msra.mxu0 0.0
    %7856 = vmatprep.subr.mxu0 0.0
    %7857 = vmatpush1.xpose.msra.mxu0 0.0
    %7858 = vmatprep.subr.mxu0 0.0
    %7859 = vmatpush1.xpose.msra.mxu0 0.0
    %7860 = vmatprep.subr.mxu0 0.0
    %7861 = vmatpush1.xpose.msra.mxu0 0.0
    %7862 = vmatprep.subr.mxu0 0.0
    %7863 = vmatpush1.xpose.msra.mxu0 0.0
    %7864 = vmatprep.subr.mxu0 0.0
    %7865 = vmatpush1.xpose.msra.mxu0 0.0
    %7866 = vmatprep.subr.mxu0 0.0
    %7867 = vmatpush1.xpose.msra.mxu0 0.0
    %7868 = vmatprep.subr.mxu0 0.0
    %7869 = vmatpush1.xpose.msra.mxu0 0.0
    %7870 = vmatprep.subr.mxu0 0.0
    %7871 = vmatpush1.xpose.msra.mxu0 0.0
    %7872 = vmatprep.subr.mxu0 0.0
    %7873 = vmatpush1.xpose.msra.mxu0 0.0
    %7874 = vmatprep.subr.mxu0 0.0
    %7875 = vmatpush1.xpose.msra.mxu0 0.0
    %7876 = vmatprep.subr.mxu0 0.0
    %7877 = vmatpush1.xpose.msra.mxu0 0.0
    %7878 = vmatprep.subr.mxu0 0.0
    %7879 = vmatpush1.xpose.msra.mxu0 0.0
    %7880 = vmatprep.subr.mxu0 0.0
    %7881 = vmatpush1.xpose.msra.mxu0 0.0
    %7882 = vmatprep.subr.mxu0 0.0
    %7883 = vmatpush1.xpose.msra.mxu0 0.0
    %7884 = vmatprep.subr.mxu0 0.0
    %7885 = vmatpush1.xpose.msra.mxu0 0.0
    %7886 = vmatprep.subr.mxu0 0.0
    %7887 = vmatpush1.xpose.msra.mxu0 0.0
    %7888 = vmatprep.mubr.f32.mxu0 0.0
    %7889 = vmatmul.mubr.f32.gmra.mrb[0].mxu0 %v7808
    %v7890 = vpop.f32.mrb[0].mxu0
    %v7891 = vadd.f32 %v2669, %v7890
    %v7892 = vpop.f32.mrb[0].mxu0
    %7893 = vmatprep.mubr.f32.mxu0 0.0
    %7894 = vmatmul.mubr.f32.gmra.mrb[0].mxu0 %v7810
    %v7895 = vpop.f32.mrb[0].mxu0
    %v7896 = vadd.f32 %v2670, %v7895
    %v7897 = vpop.f32.mrb[0].mxu0
    %7898 = vmatprep.mubr.f32.mxu0 0.0
    %7899 = vmatmul.mubr.f32.gmra.mrb[0].mxu0 %v7812
    %v7900 = vpop.f32.mrb[0].mxu0
    %v7901 = vadd.f32 %v2671, %v7900
    %v7902 = vpop.f32.mrb[0].mxu0
    %7903 = vmatprep.mubr.f32.mxu0 0.0
    %7904 = vmatmul.mubr.f32.gmra.mrb[0].mxu0 %v7814
    %v7905 = vpop.f32.mrb[0].mxu0
    %v7906 = vadd.f32 %v2672, %v7905
    %v7907 = vpop.f32.mrb[0].mxu0
    %7908 = vdwg.mxu0
    %v7909 = vsel %vm628, %v7891, -inf
    %7910 = vmax.xlane.f32.xlu0 %v7909
    %v7911 = vpop.xlane.xlu0 %7910
    %v7912 = vsel %vm628, %v7896, -inf
    %7913 = vmax.xlane.f32.xlu0 %v7912
    %v7914 = vpop.xlane.xlu0 %7913
    %v7915 = vsel %vm628, %v7901, -inf
    %7916 = vmax.xlane.f32.xlu0 %v7915
    %v7917 = vpop.xlane.xlu0 %7916
    %v7918 = vsel %vm628, %v7906, -inf
    %7919 = vmax.xlane.f32.xlu0 %v7918
    %v7920 = vpop.xlane.xlu0 %7919
    %v7921 = vsub.f32 %v7891, %v7911
    %v7922 = vsub.f32 %v7896, %v7914
    %v7923 = vsub.f32 %v7901, %v7917
    %v7924 = vsub.f32 %v7906, %v7920
    %v7925 = vmul.f32 %v7921, 1.442695
    %v7926 = vpow.pop %v7925
    %v7927 = vmul.f32 %v7922, 1.442695
    %v7928 = vpow.pop %v7927
    %v7929 = vmul.f32 %v7923, 1.442695
    %v7930 = vpow.pop %v7929
    %v7931 = vmul.f32 %v7924, 1.442695
    %v7932 = vpow.pop %v7931
    %v7933 = vsel %vm628, %v7926, 0.0
    %7934 = vadd.xlane.f32.xlu0 %v7933
    %v7935 = vpop.xlane.xlu0 %7934
    %v7936 = vsel %vm628, %v7928, 0.0
    %7937 = vadd.xlane.f32.xlu0 %v7936
    %v7938 = vpop.xlane.xlu0 %7937
    %v7939 = vsel %vm628, %v7930, 0.0
    %7940 = vadd.xlane.f32.xlu0 %v7939
    %v7941 = vpop.xlane.xlu0 %7940
    %v7942 = vsel %vm628, %v7932, 0.0
    %7943 = vadd.xlane.f32.xlu0 %v7942
    %v7944 = vpop.xlane.xlu0 %7943
    %v7945 = vrcp.pop %v7935
    %v7946 = vrcp.pop %v7938
    %v7947 = vrcp.pop %v7941
    %v7948 = vrcp.pop %v7944
    %v7949 = vmul.f32 %v7926, %v7945
    %v7950 = vmul.f32 %v7928, %v7946
    %v7951 = vmul.f32 %v7930, %v7947
    %v7952 = vmul.f32 %v7932, %v7948
    %7953 = vrot.lane.b32.xlu0 %v6282, 48
    %v7954 = vpop.permute.xlu0 %7953
    %7955 = vrot.lane.b32.xlu0 %v6287, 48
    %v7956 = vpop.permute.xlu0 %7955
    %7957 = vrot.lane.b32.xlu0 %v6292, 48
    %v7958 = vpop.permute.xlu0 %7957
    %7959 = vrot.lane.b32.xlu0 %v6297, 48
    %v7960 = vpop.permute.xlu0 %7959
    %v7966 = vsel %vm628, %v7949, 0
    %v7969 = vsel %vm628, %v7950, 0
    %v7972 = vsel %vm628, %v7951, 0
    %v7975 = vsel %vm628, %v7952, 0
    %7977 = vmatprep.subr.mxu0 0.0
    %7978 = vmatpush1.msra.mxu0 %v7954
    %7979 = vmatprep.subr.mxu0 0.0
    %7980 = vmatpush1.msra.mxu0 %v7956
    %7981 = vmatprep.subr.mxu0 0.0
    %7982 = vmatpush1.msra.mxu0 %v7958
    %7983 = vmatprep.subr.mxu0 0.0
    %7984 = vmatpush1.msra.mxu0 %v7960
    %7985 = vmatprep.subr.mxu0 0.0
    %7986 = vmatpush1.msra.mxu0 0.0
    %7987 = vmatprep.subr.mxu0 0.0
    %7988 = vmatpush1.msra.mxu0 0.0
    %7989 = vmatprep.subr.mxu0 0.0
    %7990 = vmatpush1.msra.mxu0 0.0
    %7991 = vmatprep.subr.mxu0 0.0
    %7992 = vmatpush1.msra.mxu0 0.0
    %7993 = vmatprep.subr.mxu0 0.0
    %7994 = vmatpush1.msra.mxu0 0.0
    %7995 = vmatprep.subr.mxu0 0.0
    %7996 = vmatpush1.msra.mxu0 0.0
    %7997 = vmatprep.subr.mxu0 0.0
    %7998 = vmatpush1.msra.mxu0 0.0
    %7999 = vmatprep.subr.mxu0 0.0
    %8000 = vmatpush1.msra.mxu0 0.0
    %8001 = vmatprep.subr.mxu0 0.0
    %8002 = vmatpush1.msra.mxu0 0.0
    %8003 = vmatprep.subr.mxu0 0.0
    %8004 = vmatpush1.msra.mxu0 0.0
    %8005 = vmatprep.subr.mxu0 0.0
    %8006 = vmatpush1.msra.mxu0 0.0
    %8007 = vmatprep.subr.mxu0 0.0
    %8008 = vmatpush1.msra.mxu0 0.0
    %8009 = vmatprep.subr.mxu0 0.0
    %8010 = vmatpush1.msra.mxu0 0.0
    %8011 = vmatprep.subr.mxu0 0.0
    %8012 = vmatpush1.msra.mxu0 0.0
    %8013 = vmatprep.subr.mxu0 0.0
    %8014 = vmatpush1.msra.mxu0 0.0
    %8015 = vmatprep.subr.mxu0 0.0
    %8016 = vmatpush1.msra.mxu0 0.0
    %8017 = vmatprep.subr.mxu0 0.0
    %8018 = vmatpush1.msra.mxu0 0.0
    %8019 = vmatprep.subr.mxu0 0.0
    %8020 = vmatpush1.msra.mxu0 0.0
    %8021 = vmatprep.subr.mxu0 0.0
    %8022 = vmatpush1.msra.mxu0 0.0
    %8023 = vmatprep.subr.mxu0 0.0
    %8024 = vmatpush1.msra.mxu0 0.0
    %8025 = vmatprep.subr.mxu0 0.0
    %8026 = vmatpush1.msra.mxu0 0.0
    %8027 = vmatprep.subr.mxu0 0.0
    %8028 = vmatpush1.msra.mxu0 0.0
    %8029 = vmatprep.subr.mxu0 0.0
    %8030 = vmatpush1.msra.mxu0 0.0
    %8031 = vmatprep.subr.mxu0 0.0
    %8032 = vmatpush1.msra.mxu0 0.0
    %8033 = vmatprep.subr.mxu0 0.0
    %8034 = vmatpush1.msra.mxu0 0.0
    %8035 = vmatprep.subr.mxu0 0.0
    %8036 = vmatpush1.msra.mxu0 0.0
    %8037 = vmatprep.subr.mxu0 0.0
    %8038 = vmatpush1.msra.mxu0 0.0
    %8039 = vmatprep.subr.mxu0 0.0
    %8040 = vmatpush1.msra.mxu0 0.0
    %8041 = vmatprep.mubr.f32.mxu0 0.0
    %8042 = vmatmul.mubr.f32.gmra.mrb[0].mxu0 %v7966
    %v8043 = vpop.f32.mrb[0].mxu0
    %v8044 = vadd.f32 0.0, %v8043
    %v8045 = vpop.f32.mrb[0].mxu0
    %8046 = vmatprep.mubr.f32.mxu0 0.0
    %8047 = vmatmul.mubr.f32.gmra.mrb[0].mxu0 %v7969
    %v8048 = vpop.f32.mrb[0].mxu0
    %v8049 = vadd.f32 0.0, %v8048
    %v8050 = vpop.f32.mrb[0].mxu0
    %8051 = vmatprep.mubr.f32.mxu0 0.0
    %8052 = vmatmul.mubr.f32.gmra.mrb[0].mxu0 %v7972
    %v8053 = vpop.f32.mrb[0].mxu0
    %v8054 = vadd.f32 0.0, %v8053
    %v8055 = vpop.f32.mrb[0].mxu0
    %8056 = vmatprep.mubr.f32.mxu0 0.0
    %8057 = vmatmul.mubr.f32.gmra.mrb[0].mxu0 %v7975
    %v8058 = vpop.f32.mrb[0].mxu0
    %v8059 = vadd.f32 0.0, %v8058
    %v8060 = vpop.f32.mrb[0].mxu0
    %8061 = vdwg.mxu0
    %v8063 = vsel %vm706, %v8044, 0
    %v8066 = vsel %vm706, %v8049, 0
    %v8069 = vsel %vm706, %v8054, 0
    %v8072 = vsel %vm706, %v8059, 0
    %v8075 = vsel %vm800, %v6168, 0
    %8077 = vmatprep.subr.mxu0 0.0
    %8078 = vmatpush1.msra.mxu0 %v8075
    %8079 = vmatprep.subr.mxu0 0.0
    %8080 = vmatpush1.msra.mxu0 0.0
    %8081 = vmatprep.subr.mxu0 0.0
    %8082 = vmatpush1.msra.mxu0 0.0
    %8083 = vmatprep.subr.mxu0 0.0
    %8084 = vmatpush1.msra.mxu0 0.0
    %8085 = vmatprep.subr.mxu0 0.0
    %8086 = vmatpush1.msra.mxu0 0.0
    %8087 = vmatprep.subr.mxu0 0.0
    %8088 = vmatpush1.msra.mxu0 0.0
    %8089 = vmatprep.subr.mxu0 0.0
    %8090 = vmatpush1.msra.mxu0 0.0
    %8091 = vmatprep.subr.mxu0 0.0
    %8092 = vmatpush1.msra.mxu0 0.0
    %8093 = vmatprep.subr.mxu0 0.0
    %8094 = vmatpush1.msra.mxu0 0.0
    %8095 = vmatprep.subr.mxu0 0.0
    %8096 = vmatpush1.msra.mxu0 0.0
    %8097 = vmatprep.subr.mxu0 0.0
    %8098 = vmatpush1.msra.mxu0 0.0
    %8099 = vmatprep.subr.mxu0 0.0
    %8100 = vmatpush1.msra.mxu0 0.0
    %8101 = vmatprep.subr.mxu0 0.0
    %8102 = vmatpush1.msra.mxu0 0.0
    %8103 = vmatprep.subr.mxu0 0.0
    %8104 = vmatpush1.msra.mxu0 0.0
    %8105 = vmatprep.subr.mxu0 0.0
    %8106 = vmatpush1.msra.mxu0 0.0
    %8107 = vmatprep.subr.mxu0 0.0
    %8108 = vmatpush1.msra.mxu0 0.0
    %8109 = vmatprep.subr.mxu0 0.0
    %8110 = vmatpush1.msra.mxu0 0.0
    %8111 = vmatprep.subr.mxu0 0.0
    %8112 = vmatpush1.msra.mxu0 0.0
    %8113 = vmatprep.subr.mxu0 0.0
    %8114 = vmatpush1.msra.mxu0 0.0
    %8115 = vmatprep.subr.mxu0 0.0
    %8116 = vmatpush1.msra.mxu0 0.0
    %8117 = vmatprep.subr.mxu0 0.0
    %8118 = vmatpush1.msra.mxu0 0.0
    %8119 = vmatprep.subr.mxu0 0.0
    %8120 = vmatpush1.msra.mxu0 0.0
    %8121 = vmatprep.subr.mxu0 0.0
    %8122 = vmatpush1.msra.mxu0 0.0
    %8123 = vmatprep.subr.mxu0 0.0
    %8124 = vmatpush1.msra.mxu0 0.0
    %8125 = vmatprep.subr.mxu0 0.0
    %8126 = vmatpush1.msra.mxu0 0.0
    %8127 = vmatprep.subr.mxu0 0.0
    %8128 = vmatpush1.msra.mxu0 0.0
    %8129 = vmatprep.subr.mxu0 0.0
    %8130 = vmatpush1.msra.mxu0 0.0
    %8131 = vmatprep.subr.mxu0 0.0
    %8132 = vmatpush1.msra.mxu0 0.0
    %8133 = vmatprep.subr.mxu0 0.0
    %8134 = vmatpush1.msra.mxu0 0.0
    %8135 = vmatprep.subr.mxu0 0.0
    %8136 = vmatpush1.msra.mxu0 0.0
    %8137 = vmatprep.subr.mxu0 0.0
    %8138 = vmatpush1.msra.mxu0 0.0
    %8139 = vmatprep.subr.mxu0 0.0
    %8140 = vmatpush1.msra.mxu0 0.0
    %8141 = vmatprep.mubr.f32.mxu0 0.0
    %8142 = vmatmul.mubr.f32.gmra.mrb[0].mxu0 %v8063
    %v8143 = vpop.f32.mrb[0].mxu0
    %v8144 = vadd.f32 0.0, %v8143
    %v8145 = vpop.f32.mrb[0].mxu0
    %8146 = vmatprep.mubr.f32.mxu0 0.0
    %8147 = vmatmul.mubr.f32.gmra.mrb[0].mxu0 %v8066
    %v8148 = vpop.f32.mrb[0].mxu0
    %v8149 = vadd.f32 0.0, %v8148
    %v8150 = vpop.f32.mrb[0].mxu0
    %8151 = vmatprep.mubr.f32.mxu0 0.0
    %8152 = vmatmul.mubr.f32.gmra.mrb[0].mxu0 %v8069
    %v8153 = vpop.f32.mrb[0].mxu0
    %v8154 = vadd.f32 0.0, %v8153
    %v8155 = vpop.f32.mrb[0].mxu0
    %8156 = vmatprep.mubr.f32.mxu0 0.0
    %8157 = vmatmul.mubr.f32.gmra.mrb[0].mxu0 %v8072
    %v8158 = vpop.f32.mrb[0].mxu0
    %v8159 = vadd.f32 0.0, %v8158
    %v8160 = vpop.f32.mrb[0].mxu0
    %8161 = vdwg.mxu0
    %v8162 = vadd.f32 %v7788, %v8144
    %v8163 = vadd.f32 %v7789, %v8149
    %v8164 = vadd.f32 %v7790, %v8154
    %v8165 = vadd.f32 %v7791, %v8159
    %8166 = vrot.lane.b32.xlu0 %v6300, 108
    %v8167 = vpop.permute.xlu0 %8166
    %8168 = vrot.lane.b32.xlu0 %v6301, 108
    %v8169 = vpop.permute.xlu0 %8168
    %8170 = vrot.lane.b32.xlu0 %v6302, 108
    %v8171 = vpop.permute.xlu0 %8170
    %8172 = vrot.lane.b32.xlu0 %v6303, 108
    %v8173 = vpop.permute.xlu0 %8172
    %8174 = vrot.lane.b32.xlu0 %v6282, 76
    %v8175 = vpop.permute.xlu0 %8174
    %8176 = vrot.lane.b32.xlu0 %v6287, 76
    %v8177 = vpop.permute.xlu0 %8176
    %8178 = vrot.lane.b32.xlu0 %v6292, 76
    %v8179 = vpop.permute.xlu0 %8178
    %8180 = vrot.lane.b32.xlu0 %v6297, 76
    %v8181 = vpop.permute.xlu0 %8180
    %v8182 = vsel %vm706, %v8167, 0
    %v8184 = vsel %vm706, %v8169, 0
    %v8186 = vsel %vm706, %v8171, 0
    %v8188 = vsel %vm706, %v8173, 0
    %v8190 = vsel %vm706, %v8175, 0
    %v8192 = vsel %vm706, %v8177, 0
    %v8194 = vsel %vm706, %v8179, 0
    %v8196 = vsel %vm706, %v8181, 0
    %8198 = vmatprep.subr.mxu0 0.0
    %8199 = vmatpush1.xpose.msra.mxu0 %v8190
    %8200 = vmatprep.subr.mxu0 0.0
    %8201 = vmatpush1.xpose.msra.mxu0 %v8192
    %8202 = vmatprep.subr.mxu0 0.0
    %8203 = vmatpush1.xpose.msra.mxu0 %v8194
    %8204 = vmatprep.subr.mxu0 0.0
    %8205 = vmatpush1.xpose.msra.mxu0 %v8196
    %8206 = vmatprep.subr.mxu0 0.0
    %8207 = vmatpush1.xpose.msra.mxu0 0.0
    %8208 = vmatprep.subr.mxu0 0.0
    %8209 = vmatpush1.xpose.msra.mxu0 0.0
    %8210 = vmatprep.subr.mxu0 0.0
    %8211 = vmatpush1.xpose.msra.mxu0 0.0
    %8212 = vmatprep.subr.mxu0 0.0
    %8213 = vmatpush1.xpose.msra.mxu0 0.0
    %8214 = vmatprep.subr.mxu0 0.0
    %8215 = vmatpush1.xpose.msra.mxu0 0.0
    %8216 = vmatprep.subr.mxu0 0.0
    %8217 = vmatpush1.xpose.msra.mxu0 0.0
    %8218 = vmatprep.subr.mxu0 0.0
    %8219 = vmatpush1.xpose.msra.mxu0 0.0
    %8220 = vmatprep.subr.mxu0 0.0
    %8221 = vmatpush1.xpose.msra.mxu0 0.0
    %8222 = vmatprep.subr.mxu0 0.0
    %8223 = vmatpush1.xpose.msra.mxu0 0.0
    %8224 = vmatprep.subr.mxu0 0.0
    %8225 = vmatpush1.xpose.msra.mxu0 0.0
    %8226 = vmatprep.subr.mxu0 0.0
    %8227 = vmatpush1.xpose.msra.mxu0 0.0
    %8228 = vmatprep.subr.mxu0 0.0
    %8229 = vmatpush1.xpose.msra.mxu0 0.0
    %8230 = vmatprep.subr.mxu0 0.0
    %8231 = vmatpush1.xpose.msra.mxu0 0.0
    %8232 = vmatprep.subr.mxu0 0.0
    %8233 = vmatpush1.xpose.msra.mxu0 0.0
    %8234 = vmatprep.subr.mxu0 0.0
    %8235 = vmatpush1.xpose.msra.mxu0 0.0
    %8236 = vmatprep.subr.mxu0 0.0
    %8237 = vmatpush1.xpose.msra.mxu0 0.0
    %8238 = vmatprep.subr.mxu0 0.0
    %8239 = vmatpush1.xpose.msra.mxu0 0.0
    %8240 = vmatprep.subr.mxu0 0.0
    %8241 = vmatpush1.xpose.msra.mxu0 0.0
    %8242 = vmatprep.subr.mxu0 0.0
    %8243 = vmatpush1.xpose.msra.mxu0 0.0
    %8244 = vmatprep.subr.mxu0 0.0
    %8245 = vmatpush1.xpose.msra.mxu0 0.0
    %8246 = vmatprep.subr.mxu0 0.0
    %8247 = vmatpush1.xpose.msra.mxu0 0.0
    %8248 = vmatprep.subr.mxu0 0.0
    %8249 = vmatpush1.xpose.msra.mxu0 0.0
    %8250 = vmatprep.subr.mxu0 0.0
    %8251 = vmatpush1.xpose.msra.mxu0 0.0
    %8252 = vmatprep.subr.mxu0 0.0
    %8253 = vmatpush1.xpose.msra.mxu0 0.0
    %8254 = vmatprep.subr.mxu0 0.0
    %8255 = vmatpush1.xpose.msra.mxu0 0.0
    %8256 = vmatprep.subr.mxu0 0.0
    %8257 = vmatpush1.xpose.msra.mxu0 0.0
    %8258 = vmatprep.subr.mxu0 0.0
    %8259 = vmatpush1.xpose.msra.mxu0 0.0
    %8260 = vmatprep.subr.mxu0 0.0
    %8261 = vmatpush1.xpose.msra.mxu0 0.0
    %8262 = vmatprep.mubr.f32.mxu0 0.0
    %8263 = vmatmul.mubr.f32.gmra.mrb[0].mxu0 %v8182
    %v8264 = vpop.f32.mrb[0].mxu0
    %v8265 = vadd.f32 %v2669, %v8264
    %v8266 = vpop.f32.mrb[0].mxu0
    %8267 = vmatprep.mubr.f32.mxu0 0.0
    %8268 = vmatmul.mubr.f32.gmra.mrb[0].mxu0 %v8184
    %v8269 = vpop.f32.mrb[0].mxu0
    %v8270 = vadd.f32 %v2670, %v8269
    %v8271 = vpop.f32.mrb[0].mxu0
    %8272 = vmatprep.mubr.f32.mxu0 0.0
    %8273 = vmatmul.mubr.f32.gmra.mrb[0].mxu0 %v8186
    %v8274 = vpop.f32.mrb[0].mxu0
    %v8275 = vadd.f32 %v2671, %v8274
    %v8276 = vpop.f32.mrb[0].mxu0
    %8277 = vmatprep.mubr.f32.mxu0 0.0
    %8278 = vmatmul.mubr.f32.gmra.mrb[0].mxu0 %v8188
    %v8279 = vpop.f32.mrb[0].mxu0
    %v8280 = vadd.f32 %v2672, %v8279
    %v8281 = vpop.f32.mrb[0].mxu0
    %8282 = vdwg.mxu0
    %v8283 = vsel %vm628, %v8265, -inf
    %8284 = vmax.xlane.f32.xlu0 %v8283
    %v8285 = vpop.xlane.xlu0 %8284
    %v8286 = vsel %vm628, %v8270, -inf
    %8287 = vmax.xlane.f32.xlu0 %v8286
    %v8288 = vpop.xlane.xlu0 %8287
    %v8289 = vsel %vm628, %v8275, -inf
    %8290 = vmax.xlane.f32.xlu0 %v8289
    %v8291 = vpop.xlane.xlu0 %8290
    %v8292 = vsel %vm628, %v8280, -inf
    %8293 = vmax.xlane.f32.xlu0 %v8292
    %v8294 = vpop.xlane.xlu0 %8293
    %v8295 = vsub.f32 %v8265, %v8285
    %v8296 = vsub.f32 %v8270, %v8288
    %v8297 = vsub.f32 %v8275, %v8291
    %v8298 = vsub.f32 %v8280, %v8294
    %v8299 = vmul.f32 %v8295, 1.442695
    %v8300 = vpow.pop %v8299
    %v8301 = vmul.f32 %v8296, 1.442695
    %v8302 = vpow.pop %v8301
    %v8303 = vmul.f32 %v8297, 1.442695
    %v8304 = vpow.pop %v8303
    %v8305 = vmul.f32 %v8298, 1.442695
    %v8306 = vpow.pop %v8305
    %v8307 = vsel %vm628, %v8300, 0.0
    %8308 = vadd.xlane.f32.xlu0 %v8307
    %v8309 = vpop.xlane.xlu0 %8308
    %v8310 = vsel %vm628, %v8302, 0.0
    %8311 = vadd.xlane.f32.xlu0 %v8310
    %v8312 = vpop.xlane.xlu0 %8311
    %v8313 = vsel %vm628, %v8304, 0.0
    %8314 = vadd.xlane.f32.xlu0 %v8313
    %v8315 = vpop.xlane.xlu0 %8314
    %v8316 = vsel %vm628, %v8306, 0.0
    %8317 = vadd.xlane.f32.xlu0 %v8316
    %v8318 = vpop.xlane.xlu0 %8317
    %v8319 = vrcp.pop %v8309
    %v8320 = vrcp.pop %v8312
    %v8321 = vrcp.pop %v8315
    %v8322 = vrcp.pop %v8318
    %v8323 = vmul.f32 %v8300, %v8319
    %v8324 = vmul.f32 %v8302, %v8320
    %v8325 = vmul.f32 %v8304, %v8321
    %v8326 = vmul.f32 %v8306, %v8322
    %8327 = vrot.lane.b32.xlu0 %v6282, 44
    %v8328 = vpop.permute.xlu0 %8327
    %8329 = vrot.lane.b32.xlu0 %v6287, 44
    %v8330 = vpop.permute.xlu0 %8329
    %8331 = vrot.lane.b32.xlu0 %v6292, 44
    %v8332 = vpop.permute.xlu0 %8331
    %8333 = vrot.lane.b32.xlu0 %v6297, 44
    %v8334 = vpop.permute.xlu0 %8333
    %v8340 = vsel %vm628, %v8323, 0
    %v8343 = vsel %vm628, %v8324, 0
    %v8346 = vsel %vm628, %v8325, 0
    %v8349 = vsel %vm628, %v8326, 0
    %8351 = vmatprep.subr.mxu0 0.0
    %8352 = vmatpush1.msra.mxu0 %v8328
    %8353 = vmatprep.subr.mxu0 0.0
    %8354 = vmatpush1.msra.mxu0 %v8330
    %8355 = vmatprep.subr.mxu0 0.0
    %8356 = vmatpush1.msra.mxu0 %v8332
    %8357 = vmatprep.subr.mxu0 0.0
    %8358 = vmatpush1.msra.mxu0 %v8334
    %8359 = vmatprep.subr.mxu0 0.0
    %8360 = vmatpush1.msra.mxu0 0.0
    %8361 = vmatprep.subr.mxu0 0.0
    %8362 = vmatpush1.msra.mxu0 0.0
    %8363 = vmatprep.subr.mxu0 0.0
    %8364 = vmatpush1.msra.mxu0 0.0
    %8365 = vmatprep.subr.mxu0 0.0
    %8366 = vmatpush1.msra.mxu0 0.0
    %8367 = vmatprep.subr.mxu0 0.0
    %8368 = vmatpush1.msra.mxu0 0.0
    %8369 = vmatprep.subr.mxu0 0.0
    %8370 = vmatpush1.msra.mxu0 0.0
    %8371 = vmatprep.subr.mxu0 0.0
    %8372 = vmatpush1.msra.mxu0 0.0
    %8373 = vmatprep.subr.mxu0 0.0
    %8374 = vmatpush1.msra.mxu0 0.0
    %8375 = vmatprep.subr.mxu0 0.0
    %8376 = vmatpush1.msra.mxu0 0.0
    %8377 = vmatprep.subr.mxu0 0.0
    %8378 = vmatpush1.msra.mxu0 0.0
    %8379 = vmatprep.subr.mxu0 0.0
    %8380 = vmatpush1.msra.mxu0 0.0
    %8381 = vmatprep.subr.mxu0 0.0
    %8382 = vmatpush1.msra.mxu0 0.0
    %8383 = vmatprep.subr.mxu0 0.0
    %8384 = vmatpush1.msra.mxu0 0.0
    %8385 = vmatprep.subr.mxu0 0.0
    %8386 = vmatpush1.msra.mxu0 0.0
    %8387 = vmatprep.subr.mxu0 0.0
    %8388 = vmatpush1.msra.mxu0 0.0
    %8389 = vmatprep.subr.mxu0 0.0
    %8390 = vmatpush1.msra.mxu0 0.0
    %8391 = vmatprep.subr.mxu0 0.0
    %8392 = vmatpush1.msra.mxu0 0.0
    %8393 = vmatprep.subr.mxu0 0.0
    %8394 = vmatpush1.msra.mxu0 0.0
    %8395 = vmatprep.subr.mxu0 0.0
    %8396 = vmatpush1.msra.mxu0 0.0
    %8397 = vmatprep.subr.mxu0 0.0
    %8398 = vmatpush1.msra.mxu0 0.0
    %8399 = vmatprep.subr.mxu0 0.0
    %8400 = vmatpush1.msra.mxu0 0.0
    %8401 = vmatprep.subr.mxu0 0.0
    %8402 = vmatpush1.msra.mxu0 0.0
    %8403 = vmatprep.subr.mxu0 0.0
    %8404 = vmatpush1.msra.mxu0 0.0
    %8405 = vmatprep.subr.mxu0 0.0
    %8406 = vmatpush1.msra.mxu0 0.0
    %8407 = vmatprep.subr.mxu0 0.0
    %8408 = vmatpush1.msra.mxu0 0.0
    %8409 = vmatprep.subr.mxu0 0.0
    %8410 = vmatpush1.msra.mxu0 0.0
    %8411 = vmatprep.subr.mxu0 0.0
    %8412 = vmatpush1.msra.mxu0 0.0
    %8413 = vmatprep.subr.mxu0 0.0
    %8414 = vmatpush1.msra.mxu0 0.0
    %8415 = vmatprep.mubr.f32.mxu0 0.0
    %8416 = vmatmul.mubr.f32.gmra.mrb[0].mxu0 %v8340
    %v8417 = vpop.f32.mrb[0].mxu0
    %v8418 = vadd.f32 0.0, %v8417
    %v8419 = vpop.f32.mrb[0].mxu0
    %8420 = vmatprep.mubr.f32.mxu0 0.0
    %8421 = vmatmul.mubr.f32.gmra.mrb[0].mxu0 %v8343
    %v8422 = vpop.f32.mrb[0].mxu0
    %v8423 = vadd.f32 0.0, %v8422
    %v8424 = vpop.f32.mrb[0].mxu0
    %8425 = vmatprep.mubr.f32.mxu0 0.0
    %8426 = vmatmul.mubr.f32.gmra.mrb[0].mxu0 %v8346
    %v8427 = vpop.f32.mrb[0].mxu0
    %v8428 = vadd.f32 0.0, %v8427
    %v8429 = vpop.f32.mrb[0].mxu0
    %8430 = vmatprep.mubr.f32.mxu0 0.0
    %8431 = vmatmul.mubr.f32.gmra.mrb[0].mxu0 %v8349
    %v8432 = vpop.f32.mrb[0].mxu0
    %v8433 = vadd.f32 0.0, %v8432
    %v8434 = vpop.f32.mrb[0].mxu0
    %8435 = vdwg.mxu0
    %v8436 = vrot.slane %v6168, 4
    %v8438 = vsel %vm706, %v8418, 0
    %v8441 = vsel %vm706, %v8423, 0
    %v8444 = vsel %vm706, %v8428, 0
    %v8447 = vsel %vm706, %v8433, 0
    %v8449 = vsel %vm800, %v8436, 0
    %8451 = vmatprep.subr.mxu0 0.0
    %8452 = vmatpush1.msra.mxu0 %v8449
    %8453 = vmatprep.subr.mxu0 0.0
    %8454 = vmatpush1.msra.mxu0 0.0
    %8455 = vmatprep.subr.mxu0 0.0
    %8456 = vmatpush1.msra.mxu0 0.0
    %8457 = vmatprep.subr.mxu0 0.0
    %8458 = vmatpush1.msra.mxu0 0.0
    %8459 = vmatprep.subr.mxu0 0.0
    %8460 = vmatpush1.msra.mxu0 0.0
    %8461 = vmatprep.subr.mxu0 0.0
    %8462 = vmatpush1.msra.mxu0 0.0
    %8463 = vmatprep.subr.mxu0 0.0
    %8464 = vmatpush1.msra.mxu0 0.0
    %8465 = vmatprep.subr.mxu0 0.0
    %8466 = vmatpush1.msra.mxu0 0.0
    %8467 = vmatprep.subr.mxu0 0.0
    %8468 = vmatpush1.msra.mxu0 0.0
    %8469 = vmatprep.subr.mxu0 0.0
    %8470 = vmatpush1.msra.mxu0 0.0
    %8471 = vmatprep.subr.mxu0 0.0
    %8472 = vmatpush1.msra.mxu0 0.0
    %8473 = vmatprep.subr.mxu0 0.0
    %8474 = vmatpush1.msra.mxu0 0.0
    %8475 = vmatprep.subr.mxu0 0.0
    %8476 = vmatpush1.msra.mxu0 0.0
    %8477 = vmatprep.subr.mxu0 0.0
    %8478 = vmatpush1.msra.mxu0 0.0
    %8479 = vmatprep.subr.mxu0 0.0
    %8480 = vmatpush1.msra.mxu0 0.0
    %8481 = vmatprep.subr.mxu0 0.0
    %8482 = vmatpush1.msra.mxu0 0.0
    %8483 = vmatprep.subr.mxu0 0.0
    %8484 = vmatpush1.msra.mxu0 0.0
    %8485 = vmatprep.subr.mxu0 0.0
    %8486 = vmatpush1.msra.mxu0 0.0
    %8487 = vmatprep.subr.mxu0 0.0
    %8488 = vmatpush1.msra.mxu0 0.0
    %8489 = vmatprep.subr.mxu0 0.0
    %8490 = vmatpush1.msra.mxu0 0.0
    %8491 = vmatprep.subr.mxu0 0.0
    %8492 = vmatpush1.msra.mxu0 0.0
    %8493 = vmatprep.subr.mxu0 0.0
    %8494 = vmatpush1.msra.mxu0 0.0
    %8495 = vmatprep.subr.mxu0 0.0
    %8496 = vmatpush1.msra.mxu0 0.0
    %8497 = vmatprep.subr.mxu0 0.0
    %8498 = vmatpush1.msra.mxu0 0.0
    %8499 = vmatprep.subr.mxu0 0.0
    %8500 = vmatpush1.msra.mxu0 0.0
    %8501 = vmatprep.subr.mxu0 0.0
    %8502 = vmatpush1.msra.mxu0 0.0
    %8503 = vmatprep.subr.mxu0 0.0
    %8504 = vmatpush1.msra.mxu0 0.0
    %8505 = vmatprep.subr.mxu0 0.0
    %8506 = vmatpush1.msra.mxu0 0.0
    %8507 = vmatprep.subr.mxu0 0.0
    %8508 = vmatpush1.msra.mxu0 0.0
    %8509 = vmatprep.subr.mxu0 0.0
    %8510 = vmatpush1.msra.mxu0 0.0
    %8511 = vmatprep.subr.mxu0 0.0
    %8512 = vmatpush1.msra.mxu0 0.0
    %8513 = vmatprep.subr.mxu0 0.0
    %8514 = vmatpush1.msra.mxu0 0.0
    %8515 = vmatprep.mubr.f32.mxu0 0.0
    %8516 = vmatmul.mubr.f32.gmra.mrb[0].mxu0 %v8438
    %v8517 = vpop.f32.mrb[0].mxu0
    %v8518 = vadd.f32 0.0, %v8517
    %v8519 = vpop.f32.mrb[0].mxu0
    %8520 = vmatprep.mubr.f32.mxu0 0.0
    %8521 = vmatmul.mubr.f32.gmra.mrb[0].mxu0 %v8441
    %v8522 = vpop.f32.mrb[0].mxu0
    %v8523 = vadd.f32 0.0, %v8522
    %v8524 = vpop.f32.mrb[0].mxu0
    %8525 = vmatprep.mubr.f32.mxu0 0.0
    %8526 = vmatmul.mubr.f32.gmra.mrb[0].mxu0 %v8444
    %v8527 = vpop.f32.mrb[0].mxu0
    %v8528 = vadd.f32 0.0, %v8527
    %v8529 = vpop.f32.mrb[0].mxu0
    %8530 = vmatprep.mubr.f32.mxu0 0.0
    %8531 = vmatmul.mubr.f32.gmra.mrb[0].mxu0 %v8447
    %v8532 = vpop.f32.mrb[0].mxu0
    %v8533 = vadd.f32 0.0, %v8532
    %v8534 = vpop.f32.mrb[0].mxu0
    %8535 = vdwg.mxu0
    %v8536 = vadd.f32 %v8162, %v8518
    %v8537 = vadd.f32 %v8163, %v8523
    %v8538 = vadd.f32 %v8164, %v8528
    %v8539 = vadd.f32 %v8165, %v8533
    %8540 = vrot.lane.b32.xlu0 %v6300, 104
    %v8541 = vpop.permute.xlu0 %8540
    %8542 = vrot.lane.b32.xlu0 %v6301, 104
    %v8543 = vpop.permute.xlu0 %8542
    %8544 = vrot.lane.b32.xlu0 %v6302, 104
    %v8545 = vpop.permute.xlu0 %8544
    %8546 = vrot.lane.b32.xlu0 %v6303, 104
    %v8547 = vpop.permute.xlu0 %8546
    %8548 = vrot.lane.b32.xlu0 %v6282, 72
    %v8549 = vpop.permute.xlu0 %8548
    %8550 = vrot.lane.b32.xlu0 %v6287, 72
    %v8551 = vpop.permute.xlu0 %8550
    %8552 = vrot.lane.b32.xlu0 %v6292, 72
    %v8553 = vpop.permute.xlu0 %8552
    %8554 = vrot.lane.b32.xlu0 %v6297, 72
    %v8555 = vpop.permute.xlu0 %8554
    %v8556 = vsel %vm706, %v8541, 0
    %v8558 = vsel %vm706, %v8543, 0
    %v8560 = vsel %vm706, %v8545, 0
    %v8562 = vsel %vm706, %v8547, 0
    %v8564 = vsel %vm706, %v8549, 0
    %v8566 = vsel %vm706, %v8551, 0
    %v8568 = vsel %vm706, %v8553, 0
    %v8570 = vsel %vm706, %v8555, 0
    %8572 = vmatprep.subr.mxu0 0.0
    %8573 = vmatpush1.xpose.msra.mxu0 %v8564
    %8574 = vmatprep.subr.mxu0 0.0
    %8575 = vmatpush1.xpose.msra.mxu0 %v8566
    %8576 = vmatprep.subr.mxu0 0.0
    %8577 = vmatpush1.xpose.msra.mxu0 %v8568
    %8578 = vmatprep.subr.mxu0 0.0
    %8579 = vmatpush1.xpose.msra.mxu0 %v8570
    %8580 = vmatprep.subr.mxu0 0.0
    %8581 = vmatpush1.xpose.msra.mxu0 0.0
    %8582 = vmatprep.subr.mxu0 0.0
    %8583 = vmatpush1.xpose.msra.mxu0 0.0
    %8584 = vmatprep.subr.mxu0 0.0
    %8585 = vmatpush1.xpose.msra.mxu0 0.0
    %8586 = vmatprep.subr.mxu0 0.0
    %8587 = vmatpush1.xpose.msra.mxu0 0.0
    %8588 = vmatprep.subr.mxu0 0.0
    %8589 = vmatpush1.xpose.msra.mxu0 0.0
    %8590 = vmatprep.subr.mxu0 0.0
    %8591 = vmatpush1.xpose.msra.mxu0 0.0
    %8592 = vmatprep.subr.mxu0 0.0
    %8593 = vmatpush1.xpose.msra.mxu0 0.0
    %8594 = vmatprep.subr.mxu0 0.0
    %8595 = vmatpush1.xpose.msra.mxu0 0.0
    %8596 = vmatprep.subr.mxu0 0.0
    %8597 = vmatpush1.xpose.msra.mxu0 0.0
    %8598 = vmatprep.subr.mxu0 0.0
    %8599 = vmatpush1.xpose.msra.mxu0 0.0
    %8600 = vmatprep.subr.mxu0 0.0
    %8601 = vmatpush1.xpose.msra.mxu0 0.0
    %8602 = vmatprep.subr.mxu0 0.0
    %8603 = vmatpush1.xpose.msra.mxu0 0.0
    %8604 = vmatprep.subr.mxu0 0.0
    %8605 = vmatpush1.xpose.msra.mxu0 0.0
    %8606 = vmatprep.subr.mxu0 0.0
    %8607 = vmatpush1.xpose.msra.mxu0 0.0
    %8608 = vmatprep.subr.mxu0 0.0
    %8609 = vmatpush1.xpose.msra.mxu0 0.0
    %8610 = vmatprep.subr.mxu0 0.0
    %8611 = vmatpush1.xpose.msra.mxu0 0.0
    %8612 = vmatprep.subr.mxu0 0.0
    %8613 = vmatpush1.xpose.msra.mxu0 0.0
    %8614 = vmatprep.subr.mxu0 0.0
    %8615 = vmatpush1.xpose.msra.mxu0 0.0
    %8616 = vmatprep.subr.mxu0 0.0
    %8617 = vmatpush1.xpose.msra.mxu0 0.0
    %8618 = vmatprep.subr.mxu0 0.0
    %8619 = vmatpush1.xpose.msra.mxu0 0.0
    %8620 = vmatprep.subr.mxu0 0.0
    %8621 = vmatpush1.xpose.msra.mxu0 0.0
    %8622 = vmatprep.subr.mxu0 0.0
    %8623 = vmatpush1.xpose.msra.mxu0 0.0
    %8624 = vmatprep.subr.mxu0 0.0
    %8625 = vmatpush1.xpose.msra.mxu0 0.0
    %8626 = vmatprep.subr.mxu0 0.0
    %8627 = vmatpush1.xpose.msra.mxu0 0.0
    %8628 = vmatprep.subr.mxu0 0.0
    %8629 = vmatpush1.xpose.msra.mxu0 0.0
    %8630 = vmatprep.subr.mxu0 0.0
    %8631 = vmatpush1.xpose.msra.mxu0 0.0
    %8632 = vmatprep.subr.mxu0 0.0
    %8633 = vmatpush1.xpose.msra.mxu0 0.0
    %8634 = vmatprep.subr.mxu0 0.0
    %8635 = vmatpush1.xpose.msra.mxu0 0.0
    %8636 = vmatprep.mubr.f32.mxu0 0.0
    %8637 = vmatmul.mubr.f32.gmra.mrb[0].mxu0 %v8556
    %v8638 = vpop.f32.mrb[0].mxu0
    %v8639 = vadd.f32 %v2669, %v8638
    %v8640 = vpop.f32.mrb[0].mxu0
    %8641 = vmatprep.mubr.f32.mxu0 0.0
    %8642 = vmatmul.mubr.f32.gmra.mrb[0].mxu0 %v8558
    %v8643 = vpop.f32.mrb[0].mxu0
    %v8644 = vadd.f32 %v2670, %v8643
    %v8645 = vpop.f32.mrb[0].mxu0
    %8646 = vmatprep.mubr.f32.mxu0 0.0
    %8647 = vmatmul.mubr.f32.gmra.mrb[0].mxu0 %v8560
    %v8648 = vpop.f32.mrb[0].mxu0
    %v8649 = vadd.f32 %v2671, %v8648
    %v8650 = vpop.f32.mrb[0].mxu0
    %8651 = vmatprep.mubr.f32.mxu0 0.0
    %8652 = vmatmul.mubr.f32.gmra.mrb[0].mxu0 %v8562
    %v8653 = vpop.f32.mrb[0].mxu0
    %v8654 = vadd.f32 %v2672, %v8653
    %v8655 = vpop.f32.mrb[0].mxu0
    %8656 = vdwg.mxu0
    %v8657 = vsel %vm628, %v8639, -inf
    %8658 = vmax.xlane.f32.xlu0 %v8657
    %v8659 = vpop.xlane.xlu0 %8658
    %v8660 = vsel %vm628, %v8644, -inf
    %8661 = vmax.xlane.f32.xlu0 %v8660
    %v8662 = vpop.xlane.xlu0 %8661
    %v8663 = vsel %vm628, %v8649, -inf
    %8664 = vmax.xlane.f32.xlu0 %v8663
    %v8665 = vpop.xlane.xlu0 %8664
    %v8666 = vsel %vm628, %v8654, -inf
    %8667 = vmax.xlane.f32.xlu0 %v8666
    %v8668 = vpop.xlane.xlu0 %8667
    %v8669 = vsub.f32 %v8639, %v8659
    %v8670 = vsub.f32 %v8644, %v8662
    %v8671 = vsub.f32 %v8649, %v8665
    %v8672 = vsub.f32 %v8654, %v8668
    %v8673 = vmul.f32 %v8669, 1.442695
    %v8674 = vpow.pop %v8673
    %v8675 = vmul.f32 %v8670, 1.442695
    %v8676 = vpow.pop %v8675
    %v8677 = vmul.f32 %v8671, 1.442695
    %v8678 = vpow.pop %v8677
    %v8679 = vmul.f32 %v8672, 1.442695
    %v8680 = vpow.pop %v8679
    %v8681 = vsel %vm628, %v8674, 0.0
    %8682 = vadd.xlane.f32.xlu0 %v8681
    %v8683 = vpop.xlane.xlu0 %8682
    %v8684 = vsel %vm628, %v8676, 0.0
    %8685 = vadd.xlane.f32.xlu0 %v8684
    %v8686 = vpop.xlane.xlu0 %8685
    %v8687 = vsel %vm628, %v8678, 0.0
    %8688 = vadd.xlane.f32.xlu0 %v8687
    %v8689 = vpop.xlane.xlu0 %8688
    %v8690 = vsel %vm628, %v8680, 0.0
    %8691 = vadd.xlane.f32.xlu0 %v8690
    %v8692 = vpop.xlane.xlu0 %8691
    %v8693 = vrcp.pop %v8683
    %v8694 = vrcp.pop %v8686
    %v8695 = vrcp.pop %v8689
    %v8696 = vrcp.pop %v8692
    %v8697 = vmul.f32 %v8674, %v8693
    %v8698 = vmul.f32 %v8676, %v8694
    %v8699 = vmul.f32 %v8678, %v8695
    %v8700 = vmul.f32 %v8680, %v8696
    %8701 = vrot.lane.b32.xlu0 %v6282, 40
    %v8702 = vpop.permute.xlu0 %8701
    %8703 = vrot.lane.b32.xlu0 %v6287, 40
    %v8704 = vpop.permute.xlu0 %8703
    %8705 = vrot.lane.b32.xlu0 %v6292, 40
    %v8706 = vpop.permute.xlu0 %8705
    %8707 = vrot.lane.b32.xlu0 %v6297, 40
    %v8708 = vpop.permute.xlu0 %8707
    %v8714 = vsel %vm628, %v8697, 0
    %v8717 = vsel %vm628, %v8698, 0
    %v8720 = vsel %vm628, %v8699, 0
    %v8723 = vsel %vm628, %v8700, 0
    %8725 = vmatprep.subr.mxu0 0.0
    %8726 = vmatpush1.msra.mxu0 %v8702
    %8727 = vmatprep.subr.mxu0 0.0
    %8728 = vmatpush1.msra.mxu0 %v8704
    %8729 = vmatprep.subr.mxu0 0.0
    %8730 = vmatpush1.msra.mxu0 %v8706
    %8731 = vmatprep.subr.mxu0 0.0
    %8732 = vmatpush1.msra.mxu0 %v8708
    %8733 = vmatprep.subr.mxu0 0.0
    %8734 = vmatpush1.msra.mxu0 0.0
    %8735 = vmatprep.subr.mxu0 0.0
    %8736 = vmatpush1.msra.mxu0 0.0
    %8737 = vmatprep.subr.mxu0 0.0
    %8738 = vmatpush1.msra.mxu0 0.0
    %8739 = vmatprep.subr.mxu0 0.0
    %8740 = vmatpush1.msra.mxu0 0.0
    %8741 = vmatprep.subr.mxu0 0.0
    %8742 = vmatpush1.msra.mxu0 0.0
    %8743 = vmatprep.subr.mxu0 0.0
    %8744 = vmatpush1.msra.mxu0 0.0
    %8745 = vmatprep.subr.mxu0 0.0
    %8746 = vmatpush1.msra.mxu0 0.0
    %8747 = vmatprep.subr.mxu0 0.0
    %8748 = vmatpush1.msra.mxu0 0.0
    %8749 = vmatprep.subr.mxu0 0.0
    %8750 = vmatpush1.msra.mxu0 0.0
    %8751 = vmatprep.subr.mxu0 0.0
    %8752 = vmatpush1.msra.mxu0 0.0
    %8753 = vmatprep.subr.mxu0 0.0
    %8754 = vmatpush1.msra.mxu0 0.0
    %8755 = vmatprep.subr.mxu0 0.0
    %8756 = vmatpush1.msra.mxu0 0.0
    %8757 = vmatprep.subr.mxu0 0.0
    %8758 = vmatpush1.msra.mxu0 0.0
    %8759 = vmatprep.subr.mxu0 0.0
    %8760 = vmatpush1.msra.mxu0 0.0
    %8761 = vmatprep.subr.mxu0 0.0
    %8762 = vmatpush1.msra.mxu0 0.0
    %8763 = vmatprep.subr.mxu0 0.0
    %8764 = vmatpush1.msra.mxu0 0.0
    %8765 = vmatprep.subr.mxu0 0.0
    %8766 = vmatpush1.msra.mxu0 0.0
    %8767 = vmatprep.subr.mxu0 0.0
    %8768 = vmatpush1.msra.mxu0 0.0
    %8769 = vmatprep.subr.mxu0 0.0
    %8770 = vmatpush1.msra.mxu0 0.0
    %8771 = vmatprep.subr.mxu0 0.0
    %8772 = vmatpush1.msra.mxu0 0.0
    %8773 = vmatprep.subr.mxu0 0.0
    %8774 = vmatpush1.msra.mxu0 0.0
    %8775 = vmatprep.subr.mxu0 0.0
    %8776 = vmatpush1.msra.mxu0 0.0
    %8777 = vmatprep.subr.mxu0 0.0
    %8778 = vmatpush1.msra.mxu0 0.0
    %8779 = vmatprep.subr.mxu0 0.0
    %8780 = vmatpush1.msra.mxu0 0.0
    %8781 = vmatprep.subr.mxu0 0.0
    %8782 = vmatpush1.msra.mxu0 0.0
    %8783 = vmatprep.subr.mxu0 0.0
    %8784 = vmatpush1.msra.mxu0 0.0
    %8785 = vmatprep.subr.mxu0 0.0
    %8786 = vmatpush1.msra.mxu0 0.0
    %8787 = vmatprep.subr.mxu0 0.0
    %8788 = vmatpush1.msra.mxu0 0.0
    %8789 = vmatprep.mubr.f32.mxu0 0.0
    %8790 = vmatmul.mubr.f32.gmra.mrb[0].mxu0 %v8714
    %v8791 = vpop.f32.mrb[0].mxu0
    %v8792 = vadd.f32 0.0, %v8791
    %v8793 = vpop.f32.mrb[0].mxu0
    %8794 = vmatprep.mubr.f32.mxu0 0.0
    %8795 = vmatmul.mubr.f32.gmra.mrb[0].mxu0 %v8717
    %v8796 = vpop.f32.mrb[0].mxu0
    %v8797 = vadd.f32 0.0, %v8796
    %v8798 = vpop.f32.mrb[0].mxu0
    %8799 = vmatprep.mubr.f32.mxu0 0.0
    %8800 = vmatmul.mubr.f32.gmra.mrb[0].mxu0 %v8720
    %v8801 = vpop.f32.mrb[0].mxu0
    %v8802 = vadd.f32 0.0, %v8801
    %v8803 = vpop.f32.mrb[0].mxu0
    %8804 = vmatprep.mubr.f32.mxu0 0.0
    %8805 = vmatmul.mubr.f32.gmra.mrb[0].mxu0 %v8723
    %v8806 = vpop.f32.mrb[0].mxu0
    %v8807 = vadd.f32 0.0, %v8806
    %v8808 = vpop.f32.mrb[0].mxu0
    %8809 = vdwg.mxu0
    %v8811 = vsel %vm706, %v8792, 0
    %v8814 = vsel %vm706, %v8797, 0
    %v8817 = vsel %vm706, %v8802, 0
    %v8820 = vsel %vm706, %v8807, 0
    %v8823 = vsel %vm800, %v6169, 0
    %8825 = vmatprep.subr.mxu0 0.0
    %8826 = vmatpush1.msra.mxu0 %v8823
    %8827 = vmatprep.subr.mxu0 0.0
    %8828 = vmatpush1.msra.mxu0 0.0
    %8829 = vmatprep.subr.mxu0 0.0
    %8830 = vmatpush1.msra.mxu0 0.0
    %8831 = vmatprep.subr.mxu0 0.0
    %8832 = vmatpush1.msra.mxu0 0.0
    %8833 = vmatprep.subr.mxu0 0.0
    %8834 = vmatpush1.msra.mxu0 0.0
    %8835 = vmatprep.subr.mxu0 0.0
    %8836 = vmatpush1.msra.mxu0 0.0
    %8837 = vmatprep.subr.mxu0 0.0
    %8838 = vmatpush1.msra.mxu0 0.0
    %8839 = vmatprep.subr.mxu0 0.0
    %8840 = vmatpush1.msra.mxu0 0.0
    %8841 = vmatprep.subr.mxu0 0.0
    %8842 = vmatpush1.msra.mxu0 0.0
    %8843 = vmatprep.subr.mxu0 0.0
    %8844 = vmatpush1.msra.mxu0 0.0
    %8845 = vmatprep.subr.mxu0 0.0
    %8846 = vmatpush1.msra.mxu0 0.0
    %8847 = vmatprep.subr.mxu0 0.0
    %8848 = vmatpush1.msra.mxu0 0.0
    %8849 = vmatprep.subr.mxu0 0.0
    %8850 = vmatpush1.msra.mxu0 0.0
    %8851 = vmatprep.subr.mxu0 0.0
    %8852 = vmatpush1.msra.mxu0 0.0
    %8853 = vmatprep.subr.mxu0 0.0
    %8854 = vmatpush1.msra.mxu0 0.0
    %8855 = vmatprep.subr.mxu0 0.0
    %8856 = vmatpush1.msra.mxu0 0.0
    %8857 = vmatprep.subr.mxu0 0.0
    %8858 = vmatpush1.msra.mxu0 0.0
    %8859 = vmatprep.subr.mxu0 0.0
    %8860 = vmatpush1.msra.mxu0 0.0
    %8861 = vmatprep.subr.mxu0 0.0
    %8862 = vmatpush1.msra.mxu0 0.0
    %8863 = vmatprep.subr.mxu0 0.0
    %8864 = vmatpush1.msra.mxu0 0.0
    %8865 = vmatprep.subr.mxu0 0.0
    %8866 = vmatpush1.msra.mxu0 0.0
    %8867 = vmatprep.subr.mxu0 0.0
    %8868 = vmatpush1.msra.mxu0 0.0
    %8869 = vmatprep.subr.mxu0 0.0
    %8870 = vmatpush1.msra.mxu0 0.0
    %8871 = vmatprep.subr.mxu0 0.0
    %8872 = vmatpush1.msra.mxu0 0.0
    %8873 = vmatprep.subr.mxu0 0.0
    %8874 = vmatpush1.msra.mxu0 0.0
    %8875 = vmatprep.subr.mxu0 0.0
    %8876 = vmatpush1.msra.mxu0 0.0
    %8877 = vmatprep.subr.mxu0 0.0
    %8878 = vmatpush1.msra.mxu0 0.0
    %8879 = vmatprep.subr.mxu0 0.0
    %8880 = vmatpush1.msra.mxu0 0.0
    %8881 = vmatprep.subr.mxu0 0.0
    %8882 = vmatpush1.msra.mxu0 0.0
    %8883 = vmatprep.subr.mxu0 0.0
    %8884 = vmatpush1.msra.mxu0 0.0
    %8885 = vmatprep.subr.mxu0 0.0
    %8886 = vmatpush1.msra.mxu0 0.0
    %8887 = vmatprep.subr.mxu0 0.0
    %8888 = vmatpush1.msra.mxu0 0.0
    %8889 = vmatprep.mubr.f32.mxu0 0.0
    %8890 = vmatmul.mubr.f32.gmra.mrb[0].mxu0 %v8811
    %v8891 = vpop.f32.mrb[0].mxu0
    %v8892 = vadd.f32 0.0, %v8891
    %v8893 = vpop.f32.mrb[0].mxu0
    %8894 = vmatprep.mubr.f32.mxu0 0.0
    %8895 = vmatmul.mubr.f32.gmra.mrb[0].mxu0 %v8814
    %v8896 = vpop.f32.mrb[0].mxu0
    %v8897 = vadd.f32 0.0, %v8896
    %v8898 = vpop.f32.mrb[0].mxu0
    %8899 = vmatprep.mubr.f32.mxu0 0.0
    %8900 = vmatmul.mubr.f32.gmra.mrb[0].mxu0 %v8817
    %v8901 = vpop.f32.mrb[0].mxu0
    %v8902 = vadd.f32 0.0, %v8901
    %v8903 = vpop.f32.mrb[0].mxu0
    %8904 = vmatprep.mubr.f32.mxu0 0.0
    %8905 = vmatmul.mubr.f32.gmra.mrb[0].mxu0 %v8820
    %v8906 = vpop.f32.mrb[0].mxu0
    %v8907 = vadd.f32 0.0, %v8906
    %v8908 = vpop.f32.mrb[0].mxu0
    %8909 = vdwg.mxu0
    %v8910 = vadd.f32 %v8536, %v8892
    %v8911 = vadd.f32 %v8537, %v8897
    %v8912 = vadd.f32 %v8538, %v8902
    %v8913 = vadd.f32 %v8539, %v8907
    %8914 = vrot.lane.b32.xlu0 %v6300, 100
    %v8915 = vpop.permute.xlu0 %8914
    %8916 = vrot.lane.b32.xlu0 %v6301, 100
    %v8917 = vpop.permute.xlu0 %8916
    %8918 = vrot.lane.b32.xlu0 %v6302, 100
    %v8919 = vpop.permute.xlu0 %8918
    %8920 = vrot.lane.b32.xlu0 %v6303, 100
    %v8921 = vpop.permute.xlu0 %8920
    %8922 = vrot.lane.b32.xlu0 %v6282, 68
    %v8923 = vpop.permute.xlu0 %8922
    %8924 = vrot.lane.b32.xlu0 %v6287, 68
    %v8925 = vpop.permute.xlu0 %8924
    %8926 = vrot.lane.b32.xlu0 %v6292, 68
    %v8927 = vpop.permute.xlu0 %8926
    %8928 = vrot.lane.b32.xlu0 %v6297, 68
    %v8929 = vpop.permute.xlu0 %8928
    %v8930 = vsel %vm706, %v8915, 0
    %v8932 = vsel %vm706, %v8917, 0
    %v8934 = vsel %vm706, %v8919, 0
    %v8936 = vsel %vm706, %v8921, 0
    %v8938 = vsel %vm706, %v8923, 0
    %v8940 = vsel %vm706, %v8925, 0
    %v8942 = vsel %vm706, %v8927, 0
    %v8944 = vsel %vm706, %v8929, 0
    %8946 = vmatprep.subr.mxu0 0.0
    %8947 = vmatpush1.xpose.msra.mxu0 %v8938
    %8948 = vmatprep.subr.mxu0 0.0
    %8949 = vmatpush1.xpose.msra.mxu0 %v8940
    %8950 = vmatprep.subr.mxu0 0.0
    %8951 = vmatpush1.xpose.msra.mxu0 %v8942
    %8952 = vmatprep.subr.mxu0 0.0
    %8953 = vmatpush1.xpose.msra.mxu0 %v8944
    %8954 = vmatprep.subr.mxu0 0.0
    %8955 = vmatpush1.xpose.msra.mxu0 0.0
    %8956 = vmatprep.subr.mxu0 0.0
    %8957 = vmatpush1.xpose.msra.mxu0 0.0
    %8958 = vmatprep.subr.mxu0 0.0
    %8959 = vmatpush1.xpose.msra.mxu0 0.0
    %8960 = vmatprep.subr.mxu0 0.0
    %8961 = vmatpush1.xpose.msra.mxu0 0.0
    %8962 = vmatprep.subr.mxu0 0.0
    %8963 = vmatpush1.xpose.msra.mxu0 0.0
    %8964 = vmatprep.subr.mxu0 0.0
    %8965 = vmatpush1.xpose.msra.mxu0 0.0
    %8966 = vmatprep.subr.mxu0 0.0
    %8967 = vmatpush1.xpose.msra.mxu0 0.0
    %8968 = vmatprep.subr.mxu0 0.0
    %8969 = vmatpush1.xpose.msra.mxu0 0.0
    %8970 = vmatprep.subr.mxu0 0.0
    %8971 = vmatpush1.xpose.msra.mxu0 0.0
    %8972 = vmatprep.subr.mxu0 0.0
    %8973 = vmatpush1.xpose.msra.mxu0 0.0
    %8974 = vmatprep.subr.mxu0 0.0
    %8975 = vmatpush1.xpose.msra.mxu0 0.0
    %8976 = vmatprep.subr.mxu0 0.0
    %8977 = vmatpush1.xpose.msra.mxu0 0.0
    %8978 = vmatprep.subr.mxu0 0.0
    %8979 = vmatpush1.xpose.msra.mxu0 0.0
    %8980 = vmatprep.subr.mxu0 0.0
    %8981 = vmatpush1.xpose.msra.mxu0 0.0
    %8982 = vmatprep.subr.mxu0 0.0
    %8983 = vmatpush1.xpose.msra.mxu0 0.0
    %8984 = vmatprep.subr.mxu0 0.0
    %8985 = vmatpush1.xpose.msra.mxu0 0.0
    %8986 = vmatprep.subr.mxu0 0.0
    %8987 = vmatpush1.xpose.msra.mxu0 0.0
    %8988 = vmatprep.subr.mxu0 0.0
    %8989 = vmatpush1.xpose.msra.mxu0 0.0
    %8990 = vmatprep.subr.mxu0 0.0
    %8991 = vmatpush1.xpose.msra.mxu0 0.0
    %8992 = vmatprep.subr.mxu0 0.0
    %8993 = vmatpush1.xpose.msra.mxu0 0.0
    %8994 = vmatprep.subr.mxu0 0.0
    %8995 = vmatpush1.xpose.msra.mxu0 0.0
    %8996 = vmatprep.subr.mxu0 0.0
    %8997 = vmatpush1.xpose.msra.mxu0 0.0
    %8998 = vmatprep.subr.mxu0 0.0
    %8999 = vmatpush1.xpose.msra.mxu0 0.0
    %9000 = vmatprep.subr.mxu0 0.0
    %9001 = vmatpush1.xpose.msra.mxu0 0.0
    %9002 = vmatprep.subr.mxu0 0.0
    %9003 = vmatpush1.xpose.msra.mxu0 0.0
    %9004 = vmatprep.subr.mxu0 0.0
    %9005 = vmatpush1.xpose.msra.mxu0 0.0
    %9006 = vmatprep.subr.mxu0 0.0
    %9007 = vmatpush1.xpose.msra.mxu0 0.0
    %9008 = vmatprep.subr.mxu0 0.0
    %9009 = vmatpush1.xpose.msra.mxu0 0.0
    %9010 = vmatprep.mubr.f32.mxu0 0.0
    %9011 = vmatmul.mubr.f32.gmra.mrb[0].mxu0 %v8930
    %v9012 = vpop.f32.mrb[0].mxu0
    %v9013 = vadd.f32 %v2669, %v9012
    %v9014 = vpop.f32.mrb[0].mxu0
    %9015 = vmatprep.mubr.f32.mxu0 0.0
    %9016 = vmatmul.mubr.f32.gmra.mrb[0].mxu0 %v8932
    %v9017 = vpop.f32.mrb[0].mxu0
    %v9018 = vadd.f32 %v2670, %v9017
    %v9019 = vpop.f32.mrb[0].mxu0
    %9020 = vmatprep.mubr.f32.mxu0 0.0
    %9021 = vmatmul.mubr.f32.gmra.mrb[0].mxu0 %v8934
    %v9022 = vpop.f32.mrb[0].mxu0
    %v9023 = vadd.f32 %v2671, %v9022
    %v9024 = vpop.f32.mrb[0].mxu0
    %9025 = vmatprep.mubr.f32.mxu0 0.0
    %9026 = vmatmul.mubr.f32.gmra.mrb[0].mxu0 %v8936
    %v9027 = vpop.f32.mrb[0].mxu0
    %v9028 = vadd.f32 %v2672, %v9027
    %v9029 = vpop.f32.mrb[0].mxu0
    %9030 = vdwg.mxu0
    %v9031 = vsel %vm628, %v9013, -inf
    %9032 = vmax.xlane.f32.xlu0 %v9031
    %v9033 = vpop.xlane.xlu0 %9032
    %v9034 = vsel %vm628, %v9018, -inf
    %9035 = vmax.xlane.f32.xlu0 %v9034
    %v9036 = vpop.xlane.xlu0 %9035
    %v9037 = vsel %vm628, %v9023, -inf
    %9038 = vmax.xlane.f32.xlu0 %v9037
    %v9039 = vpop.xlane.xlu0 %9038
    %v9040 = vsel %vm628, %v9028, -inf
    %9041 = vmax.xlane.f32.xlu0 %v9040
    %v9042 = vpop.xlane.xlu0 %9041
    %v9043 = vsub.f32 %v9013, %v9033
    %v9044 = vsub.f32 %v9018, %v9036
    %v9045 = vsub.f32 %v9023, %v9039
    %v9046 = vsub.f32 %v9028, %v9042
    %v9047 = vmul.f32 %v9043, 1.442695
    %v9048 = vpow.pop %v9047
    %v9049 = vmul.f32 %v9044, 1.442695
    %v9050 = vpow.pop %v9049
    %v9051 = vmul.f32 %v9045, 1.442695
    %v9052 = vpow.pop %v9051
    %v9053 = vmul.f32 %v9046, 1.442695
    %v9054 = vpow.pop %v9053
    %v9055 = vsel %vm628, %v9048, 0.0
    %9056 = vadd.xlane.f32.xlu0 %v9055
    %v9057 = vpop.xlane.xlu0 %9056
    %v9058 = vsel %vm628, %v9050, 0.0
    %9059 = vadd.xlane.f32.xlu0 %v9058
    %v9060 = vpop.xlane.xlu0 %9059
    %v9061 = vsel %vm628, %v9052, 0.0
    %9062 = vadd.xlane.f32.xlu0 %v9061
    %v9063 = vpop.xlane.xlu0 %9062
    %v9064 = vsel %vm628, %v9054, 0.0
    %9065 = vadd.xlane.f32.xlu0 %v9064
    %v9066 = vpop.xlane.xlu0 %9065
    %v9067 = vrcp.pop %v9057
    %v9068 = vrcp.pop %v9060
    %v9069 = vrcp.pop %v9063
    %v9070 = vrcp.pop %v9066
    %v9071 = vmul.f32 %v9048, %v9067
    %v9072 = vmul.f32 %v9050, %v9068
    %v9073 = vmul.f32 %v9052, %v9069
    %v9074 = vmul.f32 %v9054, %v9070
    %9075 = vrot.lane.b32.xlu0 %v6282, 36
    %v9076 = vpop.permute.xlu0 %9075
    %9077 = vrot.lane.b32.xlu0 %v6287, 36
    %v9078 = vpop.permute.xlu0 %9077
    %9079 = vrot.lane.b32.xlu0 %v6292, 36
    %v9080 = vpop.permute.xlu0 %9079
    %9081 = vrot.lane.b32.xlu0 %v6297, 36
    %v9082 = vpop.permute.xlu0 %9081
    %v9088 = vsel %vm628, %v9071, 0
    %v9091 = vsel %vm628, %v9072, 0
    %v9094 = vsel %vm628, %v9073, 0
    %v9097 = vsel %vm628, %v9074, 0
    %9099 = vmatprep.subr.mxu0 0.0
    %9100 = vmatpush1.msra.mxu0 %v9076
    %9101 = vmatprep.subr.mxu0 0.0
    %9102 = vmatpush1.msra.mxu0 %v9078
    %9103 = vmatprep.subr.mxu0 0.0
    %9104 = vmatpush1.msra.mxu0 %v9080
    %9105 = vmatprep.subr.mxu0 0.0
    %9106 = vmatpush1.msra.mxu0 %v9082
    %9107 = vmatprep.subr.mxu0 0.0
    %9108 = vmatpush1.msra.mxu0 0.0
    %9109 = vmatprep.subr.mxu0 0.0
    %9110 = vmatpush1.msra.mxu0 0.0
    %9111 = vmatprep.subr.mxu0 0.0
    %9112 = vmatpush1.msra.mxu0 0.0
    %9113 = vmatprep.subr.mxu0 0.0
    %9114 = vmatpush1.msra.mxu0 0.0
    %9115 = vmatprep.subr.mxu0 0.0
    %9116 = vmatpush1.msra.mxu0 0.0
    %9117 = vmatprep.subr.mxu0 0.0
    %9118 = vmatpush1.msra.mxu0 0.0
    %9119 = vmatprep.subr.mxu0 0.0
    %9120 = vmatpush1.msra.mxu0 0.0
    %9121 = vmatprep.subr.mxu0 0.0
    %9122 = vmatpush1.msra.mxu0 0.0
    %9123 = vmatprep.subr.mxu0 0.0
    %9124 = vmatpush1.msra.mxu0 0.0
    %9125 = vmatprep.subr.mxu0 0.0
    %9126 = vmatpush1.msra.mxu0 0.0
    %9127 = vmatprep.subr.mxu0 0.0
    %9128 = vmatpush1.msra.mxu0 0.0
    %9129 = vmatprep.subr.mxu0 0.0
    %9130 = vmatpush1.msra.mxu0 0.0
    %9131 = vmatprep.subr.mxu0 0.0
    %9132 = vmatpush1.msra.mxu0 0.0
    %9133 = vmatprep.subr.mxu0 0.0
    %9134 = vmatpush1.msra.mxu0 0.0
    %9135 = vmatprep.subr.mxu0 0.0
    %9136 = vmatpush1.msra.mxu0 0.0
    %9137 = vmatprep.subr.mxu0 0.0
    %9138 = vmatpush1.msra.mxu0 0.0
    %9139 = vmatprep.subr.mxu0 0.0
    %9140 = vmatpush1.msra.mxu0 0.0
    %9141 = vmatprep.subr.mxu0 0.0
    %9142 = vmatpush1.msra.mxu0 0.0
    %9143 = vmatprep.subr.mxu0 0.0
    %9144 = vmatpush1.msra.mxu0 0.0
    %9145 = vmatprep.subr.mxu0 0.0
    %9146 = vmatpush1.msra.mxu0 0.0
    %9147 = vmatprep.subr.mxu0 0.0
    %9148 = vmatpush1.msra.mxu0 0.0
    %9149 = vmatprep.subr.mxu0 0.0
    %9150 = vmatpush1.msra.mxu0 0.0
    %9151 = vmatprep.subr.mxu0 0.0
    %9152 = vmatpush1.msra.mxu0 0.0
    %9153 = vmatprep.subr.mxu0 0.0
    %9154 = vmatpush1.msra.mxu0 0.0
    %9155 = vmatprep.subr.mxu0 0.0
    %9156 = vmatpush1.msra.mxu0 0.0
    %9157 = vmatprep.subr.mxu0 0.0
    %9158 = vmatpush1.msra.mxu0 0.0
    %9159 = vmatprep.subr.mxu0 0.0
    %9160 = vmatpush1.msra.mxu0 0.0
    %9161 = vmatprep.subr.mxu0 0.0
    %9162 = vmatpush1.msra.mxu0 0.0
    %9163 = vmatprep.mubr.f32.mxu0 0.0
    %9164 = vmatmul.mubr.f32.gmra.mrb[0].mxu0 %v9088
    %v9165 = vpop.f32.mrb[0].mxu0
    %v9166 = vadd.f32 0.0, %v9165
    %v9167 = vpop.f32.mrb[0].mxu0
    %9168 = vmatprep.mubr.f32.mxu0 0.0
    %9169 = vmatmul.mubr.f32.gmra.mrb[0].mxu0 %v9091
    %v9170 = vpop.f32.mrb[0].mxu0
    %v9171 = vadd.f32 0.0, %v9170
    %v9172 = vpop.f32.mrb[0].mxu0
    %9173 = vmatprep.mubr.f32.mxu0 0.0
    %9174 = vmatmul.mubr.f32.gmra.mrb[0].mxu0 %v9094
    %v9175 = vpop.f32.mrb[0].mxu0
    %v9176 = vadd.f32 0.0, %v9175
    %v9177 = vpop.f32.mrb[0].mxu0
    %9178 = vmatprep.mubr.f32.mxu0 0.0
    %9179 = vmatmul.mubr.f32.gmra.mrb[0].mxu0 %v9097
    %v9180 = vpop.f32.mrb[0].mxu0
    %v9181 = vadd.f32 0.0, %v9180
    %v9182 = vpop.f32.mrb[0].mxu0
    %9183 = vdwg.mxu0
    %v9184 = vrot.slane %v6169, 4
    %v9186 = vsel %vm706, %v9166, 0
    %v9189 = vsel %vm706, %v9171, 0
    %v9192 = vsel %vm706, %v9176, 0
    %v9195 = vsel %vm706, %v9181, 0
    %v9197 = vsel %vm800, %v9184, 0
    %9199 = vmatprep.subr.mxu0 0.0
    %9200 = vmatpush1.msra.mxu0 %v9197
    %9201 = vmatprep.subr.mxu0 0.0
    %9202 = vmatpush1.msra.mxu0 0.0
    %9203 = vmatprep.subr.mxu0 0.0
    %9204 = vmatpush1.msra.mxu0 0.0
    %9205 = vmatprep.subr.mxu0 0.0
    %9206 = vmatpush1.msra.mxu0 0.0
    %9207 = vmatprep.subr.mxu0 0.0
    %9208 = vmatpush1.msra.mxu0 0.0
    %9209 = vmatprep.subr.mxu0 0.0
    %9210 = vmatpush1.msra.mxu0 0.0
    %9211 = vmatprep.subr.mxu0 0.0
    %9212 = vmatpush1.msra.mxu0 0.0
    %9213 = vmatprep.subr.mxu0 0.0
    %9214 = vmatpush1.msra.mxu0 0.0
    %9215 = vmatprep.subr.mxu0 0.0
    %9216 = vmatpush1.msra.mxu0 0.0
    %9217 = vmatprep.subr.mxu0 0.0
    %9218 = vmatpush1.msra.mxu0 0.0
    %9219 = vmatprep.subr.mxu0 0.0
    %9220 = vmatpush1.msra.mxu0 0.0
    %9221 = vmatprep.subr.mxu0 0.0
    %9222 = vmatpush1.msra.mxu0 0.0
    %9223 = vmatprep.subr.mxu0 0.0
    %9224 = vmatpush1.msra.mxu0 0.0
    %9225 = vmatprep.subr.mxu0 0.0
    %9226 = vmatpush1.msra.mxu0 0.0
    %9227 = vmatprep.subr.mxu0 0.0
    %9228 = vmatpush1.msra.mxu0 0.0
    %9229 = vmatprep.subr.mxu0 0.0
    %9230 = vmatpush1.msra.mxu0 0.0
    %9231 = vmatprep.subr.mxu0 0.0
    %9232 = vmatpush1.msra.mxu0 0.0
    %9233 = vmatprep.subr.mxu0 0.0
    %9234 = vmatpush1.msra.mxu0 0.0
    %9235 = vmatprep.subr.mxu0 0.0
    %9236 = vmatpush1.msra.mxu0 0.0
    %9237 = vmatprep.subr.mxu0 0.0
    %9238 = vmatpush1.msra.mxu0 0.0
    %9239 = vmatprep.subr.mxu0 0.0
    %9240 = vmatpush1.msra.mxu0 0.0
    %9241 = vmatprep.subr.mxu0 0.0
    %9242 = vmatpush1.msra.mxu0 0.0
    %9243 = vmatprep.subr.mxu0 0.0
    %9244 = vmatpush1.msra.mxu0 0.0
    %9245 = vmatprep.subr.mxu0 0.0
    %9246 = vmatpush1.msra.mxu0 0.0
    %9247 = vmatprep.subr.mxu0 0.0
    %9248 = vmatpush1.msra.mxu0 0.0
    %9249 = vmatprep.subr.mxu0 0.0
    %9250 = vmatpush1.msra.mxu0 0.0
    %9251 = vmatprep.subr.mxu0 0.0
    %9252 = vmatpush1.msra.mxu0 0.0
    %9253 = vmatprep.subr.mxu0 0.0
    %9254 = vmatpush1.msra.mxu0 0.0
    %9255 = vmatprep.subr.mxu0 0.0
    %9256 = vmatpush1.msra.mxu0 0.0
    %9257 = vmatprep.subr.mxu0 0.0
    %9258 = vmatpush1.msra.mxu0 0.0
    %9259 = vmatprep.subr.mxu0 0.0
    %9260 = vmatpush1.msra.mxu0 0.0
    %9261 = vmatprep.subr.mxu0 0.0
    %9262 = vmatpush1.msra.mxu0 0.0
    %9263 = vmatprep.mubr.f32.mxu0 0.0
    %9264 = vmatmul.mubr.f32.gmra.mrb[0].mxu0 %v9186
    %v9265 = vpop.f32.mrb[0].mxu0
    %v9266 = vadd.f32 0.0, %v9265
    %v9267 = vpop.f32.mrb[0].mxu0
    %9268 = vmatprep.mubr.f32.mxu0 0.0
    %9269 = vmatmul.mubr.f32.gmra.mrb[0].mxu0 %v9189
    %v9270 = vpop.f32.mrb[0].mxu0
    %v9271 = vadd.f32 0.0, %v9270
    %v9272 = vpop.f32.mrb[0].mxu0
    %9273 = vmatprep.mubr.f32.mxu0 0.0
    %9274 = vmatmul.mubr.f32.gmra.mrb[0].mxu0 %v9192
    %v9275 = vpop.f32.mrb[0].mxu0
    %v9276 = vadd.f32 0.0, %v9275
    %v9277 = vpop.f32.mrb[0].mxu0
    %9278 = vmatprep.mubr.f32.mxu0 0.0
    %9279 = vmatmul.mubr.f32.gmra.mrb[0].mxu0 %v9195
    %v9280 = vpop.f32.mrb[0].mxu0
    %v9281 = vadd.f32 0.0, %v9280
    %v9282 = vpop.f32.mrb[0].mxu0
    %9283 = vdwg.mxu0
    %v9284 = vadd.f32 %v8910, %v9266
    %v9285 = vadd.f32 %v8911, %v9271
    %v9286 = vadd.f32 %v8912, %v9276
    %v9287 = vadd.f32 %v8913, %v9281
    %v9289 = vlaneseq
    %v9290 = vshrl.u32 %v9289, 7
    %v9291 = vsub.s32 0, %v9290
    %v9292 = vrot.slane %v6170, %v9291
    %v9294 = vadd.f32 %v9284, %v9292
    %v9295 = vadd.f32 %v9285, %v9292
    %v9296 = vadd.f32 %v9286, %v9292
    %v9297 = vadd.f32 %v9287, %v9292
    %v9298 = vadd.f32 %v6157, %v9294
    %v9299 = vadd.f32 %v6158, %v9295
    %v9300 = vadd.f32 %v6159, %v9296
    %v9301 = vadd.f32 %v6160, %v9297
    %v9302 = vsel %vm628, %v9298, 0.0
    %9303 = vadd.xlane.f32.xlu0 %v9302
    %v9304 = vpop.xlane.xlu0 %9303
    %v9305 = vsel %vm628, %v9299, 0.0
    %9306 = vadd.xlane.f32.xlu0 %v9305
    %v9307 = vpop.xlane.xlu0 %9306
    %v9308 = vsel %vm628, %v9300, 0.0
    %9309 = vadd.xlane.f32.xlu0 %v9308
    %v9310 = vpop.xlane.xlu0 %9309
    %v9311 = vsel %vm628, %v9301, 0.0
    %9312 = vadd.xlane.f32.xlu0 %v9311
    %v9313 = vpop.xlane.xlu0 %9312
    %v9314 = vmul.f32 %v9304, %v5826
    %v9315 = vmul.f32 %v9307, %v5826
    %v9316 = vmul.f32 %v9310, %v5826
    %v9317 = vmul.f32 %v9313, %v5826
    %v9318 = vsub.f32 %v9298, %v9314
    %v9319 = vsub.f32 %v9299, %v9315
    %v9320 = vsub.f32 %v9300, %v9316
    %v9321 = vsub.f32 %v9301, %v9317
    %v9322 = vmul.f32 %v9318, %v9318
    %v9323 = vmul.f32 %v9319, %v9319
    %v9324 = vmul.f32 %v9320, %v9320
    %v9325 = vmul.f32 %v9321, %v9321
    %v9326 = vsel %vm628, %v9322, 0.0
    %9327 = vadd.xlane.f32.xlu0 %v9326
    %v9328 = vpop.xlane.xlu0 %9327
    %v9329 = vsel %vm628, %v9323, 0.0
    %9330 = vadd.xlane.f32.xlu0 %v9329
    %v9331 = vpop.xlane.xlu0 %9330
    %v9332 = vsel %vm628, %v9324, 0.0
    %9333 = vadd.xlane.f32.xlu0 %v9332
    %v9334 = vpop.xlane.xlu0 %9333
    %v9335 = vsel %vm628, %v9325, 0.0
    %9336 = vadd.xlane.f32.xlu0 %v9335
    %v9337 = vpop.xlane.xlu0 %9336
    %v9338 = vmul.f32 %v9328, %v5826
    %v9339 = vmul.f32 %v9331, %v5826
    %v9340 = vmul.f32 %v9334, %v5826
    %v9341 = vmul.f32 %v9337, %v5826
    %v9342 = vadd.f32 %v9338, 1e-05
    %v9343 = vadd.f32 %v9339, 1e-05
    %v9344 = vadd.f32 %v9340, 1e-05
    %v9345 = vadd.f32 %v9341, 1e-05
    %v9346 = vrsqrt.pop %v9342
    %v9347 = vrsqrt.pop %v9343
    %v9348 = vrsqrt.pop %v9344
    %v9349 = vrsqrt.pop %v9345
    %v9350 = vmul.f32 %v9318, %v9346
    %v9351 = vmul.f32 %v9319, %v9347
    %v9352 = vmul.f32 %v9320, %v9348
    %v9353 = vmul.f32 %v9321, %v9349
    %v9355 = vlaneseq
    %v9356 = vshrl.u32 %v9355, 7
    %v9357 = vsub.s32 0, %v9356
    %v9358 = vrot.slane %v6171, %v9357
    %v9360 = vmul.f32 %v9350, %v9358
    %v9361 = vmul.f32 %v9351, %v9358
    %v9362 = vmul.f32 %v9352, %v9358
    %v9363 = vmul.f32 %v9353, %v9358
    %v9365 = vlaneseq
    %v9366 = vshrl.u32 %v9365, 7
    %v9367 = vsub.s32 0, %v9366
    %v9368 = vrot.slane %v6172, %v9367
    %v9370 = vadd.f32 %v9360, %v9368
    %v9371 = vadd.f32 %v9361, %v9368
    %v9372 = vadd.f32 %v9362, %v9368
    %v9373 = vadd.f32 %v9363, %v9368
    %v9375 = vlaneseq
    %v9376 = vshrl.u32 %v9375, 7
    %v9377 = vsub.s32 0, %v9376
    %v9378 = vrot.slane %v6177, %v9377
    %v9381 = vsel %vm628, %v9370, 0
    %v9384 = vsel %vm628, %v9371, 0
    %v9387 = vsel %vm628, %v9372, 0
    %v9390 = vsel %vm628, %v9373, 0
    %9392 = vmatprep.subr.mxu0 0.0
    %9393 = vmatpush1.msra.mxu0 %v6173
    %9394 = vmatprep.subr.mxu0 0.0
    %9395 = vmatpush1.msra.mxu0 %v6174
    %9396 = vmatprep.subr.mxu0 0.0
    %9397 = vmatpush1.msra.mxu0 %v6175
    %9398 = vmatprep.subr.mxu0 0.0
    %9399 = vmatpush1.msra.mxu0 %v6176
    %9400 = vmatprep.subr.mxu0 0.0
    %9401 = vmatpush1.msra.mxu0 0.0
    %9402 = vmatprep.subr.mxu0 0.0
    %9403 = vmatpush1.msra.mxu0 0.0
    %9404 = vmatprep.subr.mxu0 0.0
    %9405 = vmatpush1.msra.mxu0 0.0
    %9406 = vmatprep.subr.mxu0 0.0
    %9407 = vmatpush1.msra.mxu0 0.0
    %9408 = vmatprep.subr.mxu0 0.0
    %9409 = vmatpush1.msra.mxu0 0.0
    %9410 = vmatprep.subr.mxu0 0.0
    %9411 = vmatpush1.msra.mxu0 0.0
    %9412 = vmatprep.subr.mxu0 0.0
    %9413 = vmatpush1.msra.mxu0 0.0
    %9414 = vmatprep.subr.mxu0 0.0
    %9415 = vmatpush1.msra.mxu0 0.0
    %9416 = vmatprep.subr.mxu0 0.0
    %9417 = vmatpush1.msra.mxu0 0.0
    %9418 = vmatprep.subr.mxu0 0.0
    %9419 = vmatpush1.msra.mxu0 0.0
    %9420 = vmatprep.subr.mxu0 0.0
    %9421 = vmatpush1.msra.mxu0 0.0
    %9422 = vmatprep.subr.mxu0 0.0
    %9423 = vmatpush1.msra.mxu0 0.0
    %9424 = vmatprep.subr.mxu0 0.0
    %9425 = vmatpush1.msra.mxu0 0.0
    %9426 = vmatprep.subr.mxu0 0.0
    %9427 = vmatpush1.msra.mxu0 0.0
    %9428 = vmatprep.subr.mxu0 0.0
    %9429 = vmatpush1.msra.mxu0 0.0
    %9430 = vmatprep.subr.mxu0 0.0
    %9431 = vmatpush1.msra.mxu0 0.0
    %9432 = vmatprep.subr.mxu0 0.0
    %9433 = vmatpush1.msra.mxu0 0.0
    %9434 = vmatprep.subr.mxu0 0.0
    %9435 = vmatpush1.msra.mxu0 0.0
    %9436 = vmatprep.subr.mxu0 0.0
    %9437 = vmatpush1.msra.mxu0 0.0
    %9438 = vmatprep.subr.mxu0 0.0
    %9439 = vmatpush1.msra.mxu0 0.0
    %9440 = vmatprep.subr.mxu0 0.0
    %9441 = vmatpush1.msra.mxu0 0.0
    %9442 = vmatprep.subr.mxu0 0.0
    %9443 = vmatpush1.msra.mxu0 0.0
    %9444 = vmatprep.subr.mxu0 0.0
    %9445 = vmatpush1.msra.mxu0 0.0
    %9446 = vmatprep.subr.mxu0 0.0
    %9447 = vmatpush1.msra.mxu0 0.0
    %9448 = vmatprep.subr.mxu0 0.0
    %9449 = vmatpush1.msra.mxu0 0.0
    %9450 = vmatprep.subr.mxu0 0.0
    %9451 = vmatpush1.msra.mxu0 0.0
    %9452 = vmatprep.subr.mxu0 0.0
    %9453 = vmatpush1.msra.mxu0 0.0
    %9454 = vmatprep.subr.mxu0 0.0
    %9455 = vmatpush1.msra.mxu0 0.0
    %9456 = vmatprep.mubr.f32.mxu0 0.0
    %9457 = vmatmul.mubr.f32.gmra.mrb[0].mxu0 %v9381
    %v9458 = vpop.f32.mrb[0].mxu0
    %v9459 = vadd.f32 %v9378, %v9458
    %v9460 = vpop.f32.mrb[0].mxu0
    %9461 = vmatprep.mubr.f32.mxu0 0.0
    %9462 = vmatmul.mubr.f32.gmra.mrb[0].mxu0 %v9384
    %v9463 = vpop.f32.mrb[0].mxu0
    %v9464 = vadd.f32 %v9378, %v9463
    %v9465 = vpop.f32.mrb[0].mxu0
    %9466 = vmatprep.mubr.f32.mxu0 0.0
    %9467 = vmatmul.mubr.f32.gmra.mrb[0].mxu0 %v9387
    %v9468 = vpop.f32.mrb[0].mxu0
    %v9469 = vadd.f32 %v9378, %v9468
    %v9470 = vpop.f32.mrb[0].mxu0
    %9471 = vmatprep.mubr.f32.mxu0 0.0
    %9472 = vmatmul.mubr.f32.gmra.mrb[0].mxu0 %v9390
    %v9473 = vpop.f32.mrb[0].mxu0
    %v9474 = vadd.f32 %v9378, %v9473
    %v9475 = vpop.f32.mrb[0].mxu0
    %9476 = vdwg.mxu0
    %v9477 = vmax.f32 %v9459, 0.0
    %v9478 = vmax.f32 %v9464, 0.0
    %v9479 = vmax.f32 %v9469, 0.0
    %v9480 = vmax.f32 %v9474, 0.0
    %v9482 = vlaneseq
    %v9483 = vshrl.u32 %v9482, 7
    %v9484 = vsub.s32 0, %v9483
    %v9485 = vrot.slane %v6194, %v9484
    %9487 = vmatprep.subr.mxu0 0.0
    %9488 = vmatpush1.msra.mxu0 %v6178
    %9489 = vmatprep.subr.mxu0 0.0
    %9490 = vmatpush1.msra.mxu0 %v6179
    %9491 = vmatprep.subr.mxu0 0.0
    %9492 = vmatpush1.msra.mxu0 %v6180
    %9493 = vmatprep.subr.mxu0 0.0
    %9494 = vmatpush1.msra.mxu0 %v6181
    %9495 = vmatprep.subr.mxu0 0.0
    %9496 = vmatpush1.msra.mxu0 %v6182
    %9497 = vmatprep.subr.mxu0 0.0
    %9498 = vmatpush1.msra.mxu0 %v6183
    %9499 = vmatprep.subr.mxu0 0.0
    %9500 = vmatpush1.msra.mxu0 %v6184
    %9501 = vmatprep.subr.mxu0 0.0
    %9502 = vmatpush1.msra.mxu0 %v6185
    %9503 = vmatprep.subr.mxu0 0.0
    %9504 = vmatpush1.msra.mxu0 %v6186
    %9505 = vmatprep.subr.mxu0 0.0
    %9506 = vmatpush1.msra.mxu0 %v6187
    %9507 = vmatprep.subr.mxu0 0.0
    %9508 = vmatpush1.msra.mxu0 %v6188
    %9509 = vmatprep.subr.mxu0 0.0
    %9510 = vmatpush1.msra.mxu0 %v6189
    %9511 = vmatprep.subr.mxu0 0.0
    %9512 = vmatpush1.msra.mxu0 %v6190
    %9513 = vmatprep.subr.mxu0 0.0
    %9514 = vmatpush1.msra.mxu0 %v6191
    %9515 = vmatprep.subr.mxu0 0.0
    %9516 = vmatpush1.msra.mxu0 %v6192
    %9517 = vmatprep.subr.mxu0 0.0
    %9518 = vmatpush1.msra.mxu0 %v6193
    %9519 = vmatprep.subr.mxu0 0.0
    %9520 = vmatpush1.msra.mxu0 0.0
    %9521 = vmatprep.subr.mxu0 0.0
    %9522 = vmatpush1.msra.mxu0 0.0
    %9523 = vmatprep.subr.mxu0 0.0
    %9524 = vmatpush1.msra.mxu0 0.0
    %9525 = vmatprep.subr.mxu0 0.0
    %9526 = vmatpush1.msra.mxu0 0.0
    %9527 = vmatprep.subr.mxu0 0.0
    %9528 = vmatpush1.msra.mxu0 0.0
    %9529 = vmatprep.subr.mxu0 0.0
    %9530 = vmatpush1.msra.mxu0 0.0
    %9531 = vmatprep.subr.mxu0 0.0
    %9532 = vmatpush1.msra.mxu0 0.0
    %9533 = vmatprep.subr.mxu0 0.0
    %9534 = vmatpush1.msra.mxu0 0.0
    %9535 = vmatprep.subr.mxu0 0.0
    %9536 = vmatpush1.msra.mxu0 0.0
    %9537 = vmatprep.subr.mxu0 0.0
    %9538 = vmatpush1.msra.mxu0 0.0
    %9539 = vmatprep.subr.mxu0 0.0
    %9540 = vmatpush1.msra.mxu0 0.0
    %9541 = vmatprep.subr.mxu0 0.0
    %9542 = vmatpush1.msra.mxu0 0.0
    %9543 = vmatprep.subr.mxu0 0.0
    %9544 = vmatpush1.msra.mxu0 0.0
    %9545 = vmatprep.subr.mxu0 0.0
    %9546 = vmatpush1.msra.mxu0 0.0
    %9547 = vmatprep.subr.mxu0 0.0
    %9548 = vmatpush1.msra.mxu0 0.0
    %9549 = vmatprep.subr.mxu0 0.0
    %9550 = vmatpush1.msra.mxu0 0.0
    %9551 = vmatprep.mubr.f32.mxu0 0.0
    %9552 = vmatmul.mubr.f32.gmra.mrb[0].mxu0 %v9477
    %v9553 = vpop.f32.mrb[0].mxu0
    %v9554 = vadd.f32 %v9485, %v9553
    %v9555 = vpop.f32.mrb[0].mxu0
    %9556 = vmatprep.mubr.f32.mxu0 0.0
    %9557 = vmatmul.mubr.f32.gmra.mrb[0].mxu0 %v9478
    %v9558 = vpop.f32.mrb[0].mxu0
    %v9559 = vadd.f32 %v9485, %v9558
    %v9560 = vpop.f32.mrb[0].mxu0
    %9561 = vmatprep.mubr.f32.mxu0 0.0
    %9562 = vmatmul.mubr.f32.gmra.mrb[0].mxu0 %v9479
    %v9563 = vpop.f32.mrb[0].mxu0
    %v9564 = vadd.f32 %v9485, %v9563
    %v9565 = vpop.f32.mrb[0].mxu0
    %9566 = vmatprep.mubr.f32.mxu0 0.0
    %9567 = vmatmul.mubr.f32.gmra.mrb[0].mxu0 %v9480
    %v9568 = vpop.f32.mrb[0].mxu0
    %v9569 = vadd.f32 %v9485, %v9568
    %v9570 = vpop.f32.mrb[0].mxu0
    %9571 = vdwg.mxu0
    %v9572 = vadd.f32 %v9370, %v9554
    %v9573 = vadd.f32 %v9371, %v9559
    %v9574 = vadd.f32 %v9372, %v9564
    %v9575 = vadd.f32 %v9373, %v9569
    %v9576 = vsel %vm628, %v9572, 0.0
    %9577 = vadd.xlane.f32.xlu0 %v9576
    %v9578 = vpop.xlane.xlu0 %9577
    %v9579 = vsel %vm628, %v9573, 0.0
    %9580 = vadd.xlane.f32.xlu0 %v9579
    %v9581 = vpop.xlane.xlu0 %9580
    %v9582 = vsel %vm628, %v9574, 0.0
    %9583 = vadd.xlane.f32.xlu0 %v9582
    %v9584 = vpop.xlane.xlu0 %9583
    %v9585 = vsel %vm628, %v9575, 0.0
    %9586 = vadd.xlane.f32.xlu0 %v9585
    %v9587 = vpop.xlane.xlu0 %9586
    %v9588 = vmul.f32 %v9578, %v5826
    %v9589 = vmul.f32 %v9581, %v5826
    %v9590 = vmul.f32 %v9584, %v5826
    %v9591 = vmul.f32 %v9587, %v5826
    %v9592 = vsub.f32 %v9572, %v9588
    %v9593 = vsub.f32 %v9573, %v9589
    %v9594 = vsub.f32 %v9574, %v9590
    %v9595 = vsub.f32 %v9575, %v9591
    %v9596 = vmul.f32 %v9592, %v9592
    %v9597 = vmul.f32 %v9593, %v9593
    %v9598 = vmul.f32 %v9594, %v9594
    %v9599 = vmul.f32 %v9595, %v9595
    %v9600 = vsel %vm628, %v9596, 0.0
    %9601 = vadd.xlane.f32.xlu0 %v9600
    %v9602 = vpop.xlane.xlu0 %9601
    %v9603 = vsel %vm628, %v9597, 0.0
    %9604 = vadd.xlane.f32.xlu0 %v9603
    %v9605 = vpop.xlane.xlu0 %9604
    %v9606 = vsel %vm628, %v9598, 0.0
    %9607 = vadd.xlane.f32.xlu0 %v9606
    %v9608 = vpop.xlane.xlu0 %9607
    %v9609 = vsel %vm628, %v9599, 0.0
    %9610 = vadd.xlane.f32.xlu0 %v9609
    %v9611 = vpop.xlane.xlu0 %9610
    %v9612 = vmul.f32 %v9602, %v5826
    %v9613 = vmul.f32 %v9605, %v5826
    %v9614 = vmul.f32 %v9608, %v5826
    %v9615 = vmul.f32 %v9611, %v5826
    %v9616 = vadd.f32 %v9612, 1e-05
    %v9617 = vadd.f32 %v9613, 1e-05
    %v9618 = vadd.f32 %v9614, 1e-05
    %v9619 = vadd.f32 %v9615, 1e-05
    %v9620 = vrsqrt.pop %v9616
    %v9621 = vrsqrt.pop %v9617
    %v9622 = vrsqrt.pop %v9618
    %v9623 = vrsqrt.pop %v9619
    %v9624 = vmul.f32 %v9592, %v9620
    %v9625 = vmul.f32 %v9593, %v9621
    %v9626 = vmul.f32 %v9594, %v9622
    %v9627 = vmul.f32 %v9595, %v9623
    %v9629 = vlaneseq
    %v9630 = vshrl.u32 %v9629, 7
    %v9631 = vsub.s32 0, %v9630
    %v9632 = vrot.slane %v6195, %v9631
    %v9634 = vmul.f32 %v9624, %v9632
    %v9635 = vmul.f32 %v9625, %v9632
    %v9636 = vmul.f32 %v9626, %v9632
    %v9637 = vmul.f32 %v9627, %v9632
    %v9639 = vlaneseq
    %v9640 = vshrl.u32 %v9639, 7
    %v9641 = vsub.s32 0, %v9640
    %v9642 = vrot.slane %v6196, %v9641
    %v9644 = vadd.f32 %v9634, %v9642
    %v9645 = vadd.f32 %v9635, %v9642
    %v9646 = vadd.f32 %v9636, %v9642
    %v9647 = vadd.f32 %v9637, %v9642
    %v9648 = vld [vmem:[#allocation53] sm:$0xff]
    %v9649 = vld [vmem:[#allocation53 + $0x8] sm:$0xff]
    %v9650 = vld [vmem:[#allocation53 + $0x10] sm:$0xff]
    %v9651 = vld [vmem:[#allocation53 + $0x18] sm:$0xff]
    %v9653 = vsel %vm628, %v2662, 0
    %9655 = vmatprep.subr.mxu0 0.0
    %9656 = vmatpush1.msra.mxu0 %v9648
    %9657 = vmatprep.subr.mxu0 0.0
    %9658 = vmatpush1.msra.mxu0 %v9649
    %9659 = vmatprep.subr.mxu0 0.0
    %9660 = vmatpush1.msra.mxu0 %v9650
    %9661 = vmatprep.subr.mxu0 0.0
    %9662 = vmatpush1.msra.mxu0 %v9651
    %9663 = vmatprep.subr.mxu0 0.0
    %9664 = vmatpush1.msra.mxu0 0.0
    %9665 = vmatprep.subr.mxu0 0.0
    %9666 = vmatpush1.msra.mxu0 0.0
    %9667 = vmatprep.subr.mxu0 0.0
    %9668 = vmatpush1.msra.mxu0 0.0
    %9669 = vmatprep.subr.mxu0 0.0
    %9670 = vmatpush1.msra.mxu0 0.0
    %9671 = vmatprep.subr.mxu0 0.0
    %9672 = vmatpush1.msra.mxu0 0.0
    %9673 = vmatprep.subr.mxu0 0.0
    %9674 = vmatpush1.msra.mxu0 0.0
    %9675 = vmatprep.subr.mxu0 0.0
    %9676 = vmatpush1.msra.mxu0 0.0
    %9677 = vmatprep.subr.mxu0 0.0
    %9678 = vmatpush1.msra.mxu0 0.0
    %9679 = vmatprep.subr.mxu0 0.0
    %9680 = vmatpush1.msra.mxu0 0.0
    %9681 = vmatprep.subr.mxu0 0.0
    %9682 = vmatpush1.msra.mxu0 0.0
    %9683 = vmatprep.subr.mxu0 0.0
    %9684 = vmatpush1.msra.mxu0 0.0
    %9685 = vmatprep.subr.mxu0 0.0
    %9686 = vmatpush1.msra.mxu0 0.0
    %9687 = vmatprep.subr.mxu0 0.0
    %9688 = vmatpush1.msra.mxu0 0.0
    %9689 = vmatprep.subr.mxu0 0.0
    %9690 = vmatpush1.msra.mxu0 0.0
    %9691 = vmatprep.subr.mxu0 0.0
    %9692 = vmatpush1.msra.mxu0 0.0
    %9693 = vmatprep.subr.mxu0 0.0
    %9694 = vmatpush1.msra.mxu0 0.0
    %9695 = vmatprep.subr.mxu0 0.0
    %9696 = vmatpush1.msra.mxu0 0.0
    %9697 = vmatprep.subr.mxu0 0.0
    %9698 = vmatpush1.msra.mxu0 0.0
    %9699 = vmatprep.subr.mxu0 0.0
    %9700 = vmatpush1.msra.mxu0 0.0
    %9701 = vmatprep.subr.mxu0 0.0
    %9702 = vmatpush1.msra.mxu0 0.0
    %9703 = vmatprep.subr.mxu0 0.0
    %9704 = vmatpush1.msra.mxu0 0.0
    %9705 = vmatprep.subr.mxu0 0.0
    %9706 = vmatpush1.msra.mxu0 0.0
    %9707 = vmatprep.subr.mxu0 0.0
    %9708 = vmatpush1.msra.mxu0 0.0
    %9709 = vmatprep.subr.mxu0 0.0
    %9710 = vmatpush1.msra.mxu0 0.0
    %9711 = vmatprep.subr.mxu0 0.0
    %9712 = vmatpush1.msra.mxu0 0.0
    %9713 = vmatprep.subr.mxu0 0.0
    %9714 = vmatpush1.msra.mxu0 0.0
    %9715 = vmatprep.subr.mxu0 0.0
    %9716 = vmatpush1.msra.mxu0 0.0
    %9717 = vmatprep.subr.mxu0 0.0
    %9718 = vmatpush1.msra.mxu0 0.0
    %9719 = vmatprep.mubr.f32.mxu0 0.0
    %9720 = vmatmul.mubr.f32.gmra.mrb[0].mxu0 %v9653
    %v9721 = vpop.f32.mrb[0].mxu0
    %v9722 = vadd.f32 0.0, %v9721
    %v9723 = vpop.f32.mrb[0].mxu0
    %9724 = vdwg.mxu0
    %v9725 = vld [vmem:[#allocation10] sm:$0xff]
    %v9726 = vld [vmem:[#allocation10 + $0x8] sm:$0xff]
    %v9727 = vld [vmem:[#allocation10 + $0x10] sm:$0xff]
    %v9728 = vld [vmem:[#allocation10 + $0x18] sm:$0xff]
    %v9730 = vsel %vm706, %v9725, 0
    %v9733 = vsel %vm706, %v9726, 0
    %v9736 = vsel %vm706, %v9727, 0
    %v9739 = vsel %vm706, %v9728, 0
    %v9742 = vsel %vm800, %v9722, 0
    %9744 = vmatprep.subr.mxu0 0.0
    %9745 = vmatpush1.msra.mxu0 %v9742
    %9746 = vmatprep.subr.mxu0 0.0
    %9747 = vmatpush1.msra.mxu0 0.0
    %9748 = vmatprep.subr.mxu0 0.0
    %9749 = vmatpush1.msra.mxu0 0.0
    %9750 = vmatprep.subr.mxu0 0.0
    %9751 = vmatpush1.msra.mxu0 0.0
    %9752 = vmatprep.subr.mxu0 0.0
    %9753 = vmatpush1.msra.mxu0 0.0
    %9754 = vmatprep.subr.mxu0 0.0
    %9755 = vmatpush1.msra.mxu0 0.0
    %9756 = vmatprep.subr.mxu0 0.0
    %9757 = vmatpush1.msra.mxu0 0.0
    %9758 = vmatprep.subr.mxu0 0.0
    %9759 = vmatpush1.msra.mxu0 0.0
    %9760 = vmatprep.subr.mxu0 0.0
    %9761 = vmatpush1.msra.mxu0 0.0
    %9762 = vmatprep.subr.mxu0 0.0
    %9763 = vmatpush1.msra.mxu0 0.0
    %9764 = vmatprep.subr.mxu0 0.0
    %9765 = vmatpush1.msra.mxu0 0.0
    %9766 = vmatprep.subr.mxu0 0.0
    %9767 = vmatpush1.msra.mxu0 0.0
    %9768 = vmatprep.subr.mxu0 0.0
    %9769 = vmatpush1.msra.mxu0 0.0
    %9770 = vmatprep.subr.mxu0 0.0
    %9771 = vmatpush1.msra.mxu0 0.0
    %9772 = vmatprep.subr.mxu0 0.0
    %9773 = vmatpush1.msra.mxu0 0.0
    %9774 = vmatprep.subr.mxu0 0.0
    %9775 = vmatpush1.msra.mxu0 0.0
    %9776 = vmatprep.subr.mxu0 0.0
    %9777 = vmatpush1.msra.mxu0 0.0
    %9778 = vmatprep.subr.mxu0 0.0
    %9779 = vmatpush1.msra.mxu0 0.0
    %9780 = vmatprep.subr.mxu0 0.0
    %9781 = vmatpush1.msra.mxu0 0.0
    %9782 = vmatprep.subr.mxu0 0.0
    %9783 = vmatpush1.msra.mxu0 0.0
    %9784 = vmatprep.subr.mxu0 0.0
    %9785 = vmatpush1.msra.mxu0 0.0
    %9786 = vmatprep.subr.mxu0 0.0
    %9787 = vmatpush1.msra.mxu0 0.0
    %9788 = vmatprep.subr.mxu0 0.0
    %9789 = vmatpush1.msra.mxu0 0.0
    %9790 = vmatprep.subr.mxu0 0.0
    %9791 = vmatpush1.msra.mxu0 0.0
    %9792 = vmatprep.subr.mxu0 0.0
    %9793 = vmatpush1.msra.mxu0 0.0
    %9794 = vmatprep.subr.mxu0 0.0
    %9795 = vmatpush1.msra.mxu0 0.0
    %9796 = vmatprep.subr.mxu0 0.0
    %9797 = vmatpush1.msra.mxu0 0.0
    %9798 = vmatprep.subr.mxu0 0.0
    %9799 = vmatpush1.msra.mxu0 0.0
    %9800 = vmatprep.subr.mxu0 0.0
    %9801 = vmatpush1.msra.mxu0 0.0
    %9802 = vmatprep.subr.mxu0 0.0
    %9803 = vmatpush1.msra.mxu0 0.0
    %9804 = vmatprep.subr.mxu0 0.0
    %9805 = vmatpush1.msra.mxu0 0.0
    %9806 = vmatprep.subr.mxu0 0.0
    %9807 = vmatpush1.msra.mxu0 0.0
    %9808 = vmatprep.mubr.f32.mxu0 0.0
    %9809 = vmatmul.mubr.f32.gmra.mrb[0].mxu0 %v9730
    %v9810 = vpop.f32.mrb[0].mxu0
    %v9811 = vadd.f32 0.0, %v9810
    %v9812 = vpop.f32.mrb[0].mxu0
    %9813 = vmatprep.mubr.f32.mxu0 0.0
    %9814 = vmatmul.mubr.f32.gmra.mrb[0].mxu0 %v9733
    %v9815 = vpop.f32.mrb[0].mxu0
    %v9816 = vadd.f32 0.0, %v9815
    %v9817 = vpop.f32.mrb[0].mxu0
    %9818 = vmatprep.mubr.f32.mxu0 0.0
    %9819 = vmatmul.mubr.f32.gmra.mrb[0].mxu0 %v9736
    %v9820 = vpop.f32.mrb[0].mxu0
    %v9821 = vadd.f32 0.0, %v9820
    %v9822 = vpop.f32.mrb[0].mxu0
    %9823 = vmatprep.mubr.f32.mxu0 0.0
    %9824 = vmatmul.mubr.f32.gmra.mrb[0].mxu0 %v9739
    %v9825 = vpop.f32.mrb[0].mxu0
    %v9826 = vadd.f32 0.0, %v9825
    %v9827 = vpop.f32.mrb[0].mxu0
    %9828 = vdwg.mxu0
    %v9829 = vld [vmem:[#allocation52] sm:$0xff]
    %v9830 = vld [vmem:[#allocation52 + $0x8] sm:$0xff]
    %v9831 = vld [vmem:[#allocation52 + $0x10] sm:$0xff]
    %v9832 = vld [vmem:[#allocation52 + $0x18] sm:$0xff]
    %v9834 = vsel %vm628, %v9644, 0
    %v9837 = vsel %vm628, %v9645, 0
    %v9840 = vsel %vm628, %v9646, 0
    %v9843 = vsel %vm628, %v9647, 0
    %9845 = vmatprep.subr.mxu0 0.0
    %9846 = vmatpush1.msra.mxu0 %v9829
    %9847 = vmatprep.subr.mxu0 0.0
    %9848 = vmatpush1.msra.mxu0 %v9830
    %9849 = vmatprep.subr.mxu0 0.0
    %9850 = vmatpush1.msra.mxu0 %v9831
    %9851 = vmatprep.subr.mxu0 0.0
    %9852 = vmatpush1.msra.mxu0 %v9832
    %9853 = vmatprep.subr.mxu0 0.0
    %9854 = vmatpush1.msra.mxu0 0.0
    %9855 = vmatprep.subr.mxu0 0.0
    %9856 = vmatpush1.msra.mxu0 0.0
    %9857 = vmatprep.subr.mxu0 0.0
    %9858 = vmatpush1.msra.mxu0 0.0
    %9859 = vmatprep.subr.mxu0 0.0
    %9860 = vmatpush1.msra.mxu0 0.0
    %9861 = vmatprep.subr.mxu0 0.0
    %9862 = vmatpush1.msra.mxu0 0.0
    %9863 = vmatprep.subr.mxu0 0.0
    %9864 = vmatpush1.msra.mxu0 0.0
    %9865 = vmatprep.subr.mxu0 0.0
    %9866 = vmatpush1.msra.mxu0 0.0
    %9867 = vmatprep.subr.mxu0 0.0
    %9868 = vmatpush1.msra.mxu0 0.0
    %9869 = vmatprep.subr.mxu0 0.0
    %9870 = vmatpush1.msra.mxu0 0.0
    %9871 = vmatprep.subr.mxu0 0.0
    %9872 = vmatpush1.msra.mxu0 0.0
    %9873 = vmatprep.subr.mxu0 0.0
    %9874 = vmatpush1.msra.mxu0 0.0
    %9875 = vmatprep.subr.mxu0 0.0
    %9876 = vmatpush1.msra.mxu0 0.0
    %9877 = vmatprep.subr.mxu0 0.0
    %9878 = vmatpush1.msra.mxu0 0.0
    %9879 = vmatprep.subr.mxu0 0.0
    %9880 = vmatpush1.msra.mxu0 0.0
    %9881 = vmatprep.subr.mxu0 0.0
    %9882 = vmatpush1.msra.mxu0 0.0
    %9883 = vmatprep.subr.mxu0 0.0
    %9884 = vmatpush1.msra.mxu0 0.0
    %9885 = vmatprep.subr.mxu0 0.0
    %9886 = vmatpush1.msra.mxu0 0.0
    %9887 = vmatprep.subr.mxu0 0.0
    %9888 = vmatpush1.msra.mxu0 0.0
    %9889 = vmatprep.subr.mxu0 0.0
    %9890 = vmatpush1.msra.mxu0 0.0
    %9891 = vmatprep.subr.mxu0 0.0
    %9892 = vmatpush1.msra.mxu0 0.0
    %9893 = vmatprep.subr.mxu0 0.0
    %9894 = vmatpush1.msra.mxu0 0.0
    %9895 = vmatprep.subr.mxu0 0.0
    %9896 = vmatpush1.msra.mxu0 0.0
    %9897 = vmatprep.subr.mxu0 0.0
    %9898 = vmatpush1.msra.mxu0 0.0
    %9899 = vmatprep.subr.mxu0 0.0
    %9900 = vmatpush1.msra.mxu0 0.0
    %9901 = vmatprep.subr.mxu0 0.0
    %9902 = vmatpush1.msra.mxu0 0.0
    %9903 = vmatprep.subr.mxu0 0.0
    %9904 = vmatpush1.msra.mxu0 0.0
    %9905 = vmatprep.subr.mxu0 0.0
    %9906 = vmatpush1.msra.mxu0 0.0
    %9907 = vmatprep.subr.mxu0 0.0
    %9908 = vmatpush1.msra.mxu0 0.0
    %9909 = vmatprep.mubr.f32.mxu0 0.0
    %9910 = vmatmul.mubr.f32.gmra.mrb[0].mxu0 %v9834
    %v9911 = vpop.f32.mrb[0].mxu0
    %v9912 = vadd.f32 %v9811, %v9911
    %v9913 = vpop.f32.mrb[0].mxu0
    %9914 = vmatprep.mubr.f32.mxu0 0.0
    %9915 = vmatmul.mubr.f32.gmra.mrb[0].mxu0 %v9837
    %v9916 = vpop.f32.mrb[0].mxu0
    %v9917 = vadd.f32 %v9816, %v9916
    %v9918 = vpop.f32.mrb[0].mxu0
    %9919 = vmatprep.mubr.f32.mxu0 0.0
    %9920 = vmatmul.mubr.f32.gmra.mrb[0].mxu0 %v9840
    %v9921 = vpop.f32.mrb[0].mxu0
    %v9922 = vadd.f32 %v9821, %v9921
    %v9923 = vpop.f32.mrb[0].mxu0
    %9924 = vmatprep.mubr.f32.mxu0 0.0
    %9925 = vmatmul.mubr.f32.gmra.mrb[0].mxu0 %v9843
    %v9926 = vpop.f32.mrb[0].mxu0
    %v9927 = vadd.f32 %v9826, %v9926
    %v9928 = vpop.f32.mrb[0].mxu0
    %9929 = vdwg.mxu0
    %v9930 = vld [vmem:[#allocation55] sm:$0x1]
    %v9932 = vlaneseq
    %v9933 = vshrl.u32 %v9932, 7
    %v9934 = vsub.s32 0, %v9933
    %v9935 = vrot.slane %v9930, %v9934
    %v9937 = vadd.f32 %v9912, %v9935
    %v9938 = vadd.f32 %v9917, %v9935
    %v9939 = vadd.f32 %v9922, %v9935
    %v9940 = vadd.f32 %v9927, %v9935
    %v9941 = vmax.f32 %v9937, 0.0
    %v9942 = vmax.f32 %v9938, 0.0
    %v9943 = vmax.f32 %v9939, 0.0
    %v9944 = vmax.f32 %v9940, 0.0
    %v9945 = vld [vmem:[#allocation56] sm:$0xff]
    %v9946 = vld [vmem:[#allocation56 + $0x8] sm:$0xff]
    %v9947 = vld [vmem:[#allocation56 + $0x10] sm:$0xff]
    %v9948 = vld [vmem:[#allocation56 + $0x18] sm:$0xff]
    %v9949 = vld [vmem:[#allocation58] sm:$0x1]
    %v9951 = vlaneseq
    %v9952 = vshrl.u32 %v9951, 7
    %v9953 = vsub.s32 0, %v9952
    %v9954 = vrot.slane %v9949, %v9953
    %v9957 = vsel %vm628, %v9941, 0
    %v9960 = vsel %vm628, %v9942, 0
    %v9963 = vsel %vm628, %v9943, 0
    %v9966 = vsel %vm628, %v9944, 0
    %9968 = vmatprep.subr.mxu0 0.0
    %9969 = vmatpush1.msra.mxu0 %v9945
    %9970 = vmatprep.subr.mxu0 0.0
    %9971 = vmatpush1.msra.mxu0 %v9946
    %9972 = vmatprep.subr.mxu0 0.0
    %9973 = vmatpush1.msra.mxu0 %v9947
    %9974 = vmatprep.subr.mxu0 0.0
    %9975 = vmatpush1.msra.mxu0 %v9948
    %9976 = vmatprep.subr.mxu0 0.0
    %9977 = vmatpush1.msra.mxu0 0.0
    %9978 = vmatprep.subr.mxu0 0.0
    %9979 = vmatpush1.msra.mxu0 0.0
    %9980 = vmatprep.subr.mxu0 0.0
    %9981 = vmatpush1.msra.mxu0 0.0
    %9982 = vmatprep.subr.mxu0 0.0
    %9983 = vmatpush1.msra.mxu0 0.0
    %9984 = vmatprep.subr.mxu0 0.0
    %9985 = vmatpush1.msra.mxu0 0.0
    %9986 = vmatprep.subr.mxu0 0.0
    %9987 = vmatpush1.msra.mxu0 0.0
    %9988 = vmatprep.subr.mxu0 0.0
    %9989 = vmatpush1.msra.mxu0 0.0
    %9990 = vmatprep.subr.mxu0 0.0
    %9991 = vmatpush1.msra.mxu0 0.0
    %9992 = vmatprep.subr.mxu0 0.0
    %9993 = vmatpush1.msra.mxu0 0.0
    %9994 = vmatprep.subr.mxu0 0.0
    %9995 = vmatpush1.msra.mxu0 0.0
    %9996 = vmatprep.subr.mxu0 0.0
    %9997 = vmatpush1.msra.mxu0 0.0
    %9998 = vmatprep.subr.mxu0 0.0
    %9999 = vmatpush1.msra.mxu0 0.0
    %10000 = vmatprep.subr.mxu0 0.0
    %10001 = vmatpush1.msra.mxu0 0.0
    %10002 = vmatprep.subr.mxu0 0.0
    %10003 = vmatpush1.msra.mxu0 0.0
    %10004 = vmatprep.subr.mxu0 0.0
    %10005 = vmatpush1.msra.mxu0 0.0
    %10006 = vmatprep.subr.mxu0 0.0
    %10007 = vmatpush1.msra.mxu0 0.0
    %10008 = vmatprep.subr.mxu0 0.0
    %10009 = vmatpush1.msra.mxu0 0.0
    %10010 = vmatprep.subr.mxu0 0.0
    %10011 = vmatpush1.msra.mxu0 0.0
    %10012 = vmatprep.subr.mxu0 0.0
    %10013 = vmatpush1.msra.mxu0 0.0
    %10014 = vmatprep.subr.mxu0 0.0
    %10015 = vmatpush1.msra.mxu0 0.0
    %10016 = vmatprep.subr.mxu0 0.0
    %10017 = vmatpush1.msra.mxu0 0.0
    %10018 = vmatprep.subr.mxu0 0.0
    %10019 = vmatpush1.msra.mxu0 0.0
    %10020 = vmatprep.subr.mxu0 0.0
    %10021 = vmatpush1.msra.mxu0 0.0
    %10022 = vmatprep.subr.mxu0 0.0
    %10023 = vmatpush1.msra.mxu0 0.0
    %10024 = vmatprep.subr.mxu0 0.0
    %10025 = vmatpush1.msra.mxu0 0.0
    %10026 = vmatprep.subr.mxu0 0.0
    %10027 = vmatpush1.msra.mxu0 0.0
    %10028 = vmatprep.subr.mxu0 0.0
    %10029 = vmatpush1.msra.mxu0 0.0
    %10030 = vmatprep.subr.mxu0 0.0
    %10031 = vmatpush1.msra.mxu0 0.0
    %10032 = vmatprep.mubr.f32.mxu0 0.0
    %10033 = vmatmul.mubr.f32.gmra.mrb[0].mxu0 %v9957
    %v10034 = vpop.f32.mrb[0].mxu0
    %v10035 = vadd.f32 %v9954, %v10034
    %v10036 = vpop.f32.mrb[0].mxu0
    %10037 = vmatprep.mubr.f32.mxu0 0.0
    %10038 = vmatmul.mubr.f32.gmra.mrb[0].mxu0 %v9960
    %v10039 = vpop.f32.mrb[0].mxu0
    %v10040 = vadd.f32 %v9954, %v10039
    %v10041 = vpop.f32.mrb[0].mxu0
    %10042 = vmatprep.mubr.f32.mxu0 0.0
    %10043 = vmatmul.mubr.f32.gmra.mrb[0].mxu0 %v9963
    %v10044 = vpop.f32.mrb[0].mxu0
    %v10045 = vadd.f32 %v9954, %v10044
    %v10046 = vpop.f32.mrb[0].mxu0
    %10047 = vmatprep.mubr.f32.mxu0 0.0
    %10048 = vmatmul.mubr.f32.gmra.mrb[0].mxu0 %v9966
    %v10049 = vpop.f32.mrb[0].mxu0
    %v10050 = vadd.f32 %v9954, %v10049
    %v10051 = vpop.f32.mrb[0].mxu0
    %10052 = vdwg.mxu0
    %10053 = vst.msk [vmem:[#allocation59] sm:$0xff] %vm628, %v10035
    %10054 = vst.msk [vmem:[#allocation59 + $0x8] sm:$0xff] %vm628, %v10040
    %10055 = vst.msk [vmem:[#allocation59 + $0x10] sm:$0xff] %vm628, %v10045
    %10056 = vst.msk [vmem:[#allocation59 + $0x18] sm:$0xff] %vm628, %v10050
    // Predicated region
    $region298: #{_forward_jit.1} parent=1 // pred_check
      _
    $region299: #{_forward_jit.1} parent=1 // pred_check_branch
      %10058 = sbr.rel (0) target = $region301
    $region300: #{_forward_jit.1} parent=1 // pred_region
      %s10060 = ssub.s32 512, 512
      %10061 = vsyncadd [#allocation4], %s10060
      %s10062 = sshll.u32 [#allocation59], 4
      %s10063 = int_to_ptr.vmem [resolvable:$true] %s10062
      %10068 = dma.vmem_to_hbm [thread:$0]  %s10063, 512, %s75, [#allocation4], 128, 128, 8
    $region301: #{_forward_jit.1} parent=1 // pred_fallthru
      _
    // Predicated region
    $region302: #{_forward_jit.1} parent=1 // pred_check
      _
    $region303: #{_forward_jit.1} parent=1 // pred_check_branch
      %10070 = sbr.rel (0) target = $region305
    $region304: #{_forward_jit.1} parent=1 // pred_region
      %s10072 = ssub.s32 64, 64
      %10073 = vsyncadd [#allocation61], %s10072
      %s10075 = sshll.u32 [#allocation60], 4
      %s10076 = int_to_ptr.vmem [resolvable:$true] %s10075
      %10078 = dma.vmem_to_hbm [thread:$0]  %s10076, 64, %s77, [#allocation61]
    $region305: #{_forward_jit.1} parent=1 // pred_fallthru
      _
    // Predicated region
    $region306: #{_forward_jit.1} parent=1 // pred_check
      _
    $region307: #{_forward_jit.1} parent=1 // pred_check_branch
      %10080 = sbr.rel (0) target = $region309
    $region308: #{_forward_jit.1} parent=1 // pred_region
      %10081 = dma.done [#allocation4], 512
    $region309: #{_forward_jit.1} parent=1 // pred_fallthru
      _
    // Predicated region
    $region310: #{_forward_jit.1} parent=1 // pred_check
      _
    $region311: #{_forward_jit.1} parent=1 // pred_check_branch
      %10083 = sbr.rel (0) target = $region313
    $region312: #{_forward_jit.1} parent=1 // pred_region
      %10084 = dma.done [#allocation61], 64
    $region313: #{_forward_jit.1} parent=1 // pred_fallthru
      _
    %10085 = vsyncpa [#allocation3], 1
    %10086 = vsyncpa [#allocation6], 1
    %10087 = vsyncpa [#allocation9], 1
    %10088 = vsyncpa [#allocation12], 1
    %10089 = vsyncpa [#allocation15], 1
    %10090 = vsyncpa [#allocation18], 1
    %10091 = vsyncpa [#allocation21], 1
    %10092 = vsyncpa [#allocation24], 1
    %10093 = vsyncpa [#allocation27], 1
    %10094 = vsyncpa [#allocation30], 1
    %10095 = vsyncpa [#allocation33], 1
    %10096 = vsyncpa [#allocation36], 1
    %10097 = vsyncpa [#allocation39], 1
    %10098 = vsyncpa [#allocation42], 1
    %10099 = vsyncpa [#allocation45], 1
    %10100 = vsyncpa [#allocation48], 1
    %10101 = vsyncpa [#allocation51], 1
    %10102 = vsyncpa [#allocation54], 1
    %10103 = vsyncpa [#allocation57], 1
    %10104 = vsyncpa [#allocation4], 1
    %10105 = vsyncpa [#allocation61], 1

</llo_original>
